<compile_context>
chip_gen: v6e
topology: v6e:2x2x1
jax: 0.10.0
libtpu: 0.0.40
codegen_flags: <defaults>
</compile_context>

<pallas_src>
import functools
import math

import jax
import jax.numpy as jnp
from jax import lax
from jax.experimental import pallas as pl
from jax.experimental.pallas import tpu as pltpu

BN_EPS = 1e-5


def _rup(x, m):
    return ((x + m - 1) // m) * m


# ------------------------------ fused Pallas kernel --------------------------

def _resnet_kernel(x_ref, vec_ref,
                   wc1, wc2, wc3, wc4, wc5, wc6,
                   ws1, ws2, ws3,
                   wf1, wf2, wf3, wo,
                   o_ref,
                   xpad_ref, patch_ref, pool_ref,
                   *, N, blocks, head_widths):
    """Whole ResNet forward on one TensorCore, everything VMEM-resident.

    x_ref     : (N*L, C_in) f32, channels-last, batch-flattened rows
    vec_ref   : (25, VEC_W) f32 packed per-channel vectors; row order is
                per block [s_a, t_a, b_a, s_b, t_b, b_b, b_sc] then
                head [fc1_b, fc2_b, fc3_b, out_b]
    wc*       : (K*C_in, C_out) bf16 im2col-packed conv weights
    ws*       : (C_in, C_out)   bf16 1x1 shortcut weights (input BN folded in)
    wf*/wo    : (in, out)       bf16 MLP weights
    xpad_ref  : f32 scratch — per-batch zero-halo segments of the conv input
    patch_ref : bf16 scratch — im2col patch matrix (NL, K*C_in)
    pool_ref  : f32 scratch — maxpool staging for strided reads
    """
    conv_w = ((wc1, wc2), (wc3, wc4), (wc5, wc6))
    sc_w = (ws1, ws2, ws3)

    def vec(row, width):                                  # (1, width) f32
        return vec_ref[pl.ds(row, 1), pl.ds(0, width)]

    def conv_same(xn, w_ref, bias, Lb, K, C_in):
        """Conv1d('same'), channels-last: (N*Lb, C_in) -> (N*Lb, C_out).

        Batch-gap layout: batch b owns xpad rows [b*P, (b+1)*P) with its data
        at [b*P+off, b*P+off+Lb) and zeroed halos on both sides, so every
        shifted tap read stays in-segment and reads exact zeros (no masks).
        The K shifted views are packed into patch_ref (bf16) and contracted in
        a single MXU matmul against the (K*C_in, C_out) packed weights.
        """
        left = (K - 1) // 2
        right = K - 1 - left
        off = _rup(left, 8)                               # 8-aligned data offset
        P = _rup(off + Lb + right, 8)                     # per-batch segment stride
        NL = N * Lb
        zl = jnp.zeros((off, C_in), jnp.float32)
        nzr = P - off - Lb
        zr = jnp.zeros((max(nzr, 1), C_in), jnp.float32)
        for b in range(N):
            base = b * P
            if off:                                       # left halo
                xpad_ref[pl.ds(base, off), pl.ds(0, C_in)] = zl
            if nzr:                                       # right halo
                xpad_ref[pl.ds(base + off + Lb, nzr), pl.ds(0, C_in)] = zr
            xpad_ref[pl.ds(base + off, Lb), pl.ds(0, C_in)] = \
                xn[b * Lb:(b + 1) * Lb, :]
        for k in range(K):                                # build im2col patches
            for b in range(N):
                patch_ref[pl.ds(b * Lb, Lb), pl.ds(k * C_in, C_in)] = (
                    xpad_ref[pl.ds(b * P + off - left + k, Lb),
                             pl.ds(0, C_in)].astype(jnp.bfloat16))
        patches = patch_ref[pl.ds(0, NL), pl.ds(0, K * C_in)]
        return jnp.dot(patches, w_ref[...],
                       preferred_element_type=jnp.float32) + bias

    def maxpool2(y, C):
        """MaxPool1d(k=2,s=2): strided sublane reads; pairs never cross batch."""
        NL = y.shape[0]
        M = NL // 2
        pool_ref[pl.ds(0, NL), pl.ds(0, C)] = y
        even = pool_ref[pl.ds(0, M, 2), pl.ds(0, C)]
        odd = pool_ref[pl.ds(1, M, 2), pl.ds(0, C)]
        return jnp.maximum(even, odd)

    # TODO(synk): Dropout layers are identity (inference semantics); BatchNorm
    # uses folded running statistics (eval mode) — no batch-stat updates.
    h = x_ref[...]
    row = 0
    for i, (Lb, K, C_in, C_out) in enumerate(blocks):
        s_a, t_a = vec(row, C_in), vec(row + 1, C_in)
        b_a = vec(row + 2, C_out)
        s_b, t_b = vec(row + 3, C_out), vec(row + 4, C_out)
        b_b = vec(row + 5, C_out)
        b_sc = vec(row + 6, C_out)
        row += 7
        w_a, w_b = conv_w[i]
        xa = jnp.maximum(h * s_a + t_a, 0.0)              # relu(bn_a(h))
        ca = conv_same(xa, w_a, b_a, Lb, K, C_in)         # conv_a
        xb = jnp.maximum(ca * s_b + t_b, 0.0)             # relu(bn_b(.))
        cb = conv_same(xb, w_b, b_b, Lb, K, C_out)        # conv_b
        sc = jnp.dot(h.astype(jnp.bfloat16), sc_w[i][...],  # bn_a folded 1x1
                     preferred_element_type=jnp.float32) + b_sc
        h = maxpool2(jnp.maximum(cb + sc, 0.0), C_out)

    # AdaptiveAvgPool1d(1): per-batch mean over length (linear sublane reduce)
    Lf = h.shape[0] // N
    parts = [jnp.sum(h[b * Lf:(b + 1) * Lf, :], axis=0, keepdims=True)
             for b in range(N)]
    g = jnp.concatenate(parts, axis=0) * (1.0 / Lf)       # (N, C_final)

    d1, d2, d3, nb = head_widths

    def dense(v, w_ref, bias, relu=True):
        r = jnp.dot(v.astype(jnp.bfloat16), w_ref[...],
                    preferred_element_type=jnp.float32) + bias
        return jnp.maximum(r, 0.0) if relu else r

    z = dense(g, wf1, vec(row, d1))
    z = dense(z, wf2, vec(row + 1, d2))
    z = dense(z, wf3, vec(row + 2, d3))
    logits = dense(z, wo, vec(row + 3, nb), relu=False)
    m = jnp.max(logits, axis=1, keepdims=True)
    e = jnp.exp(logits - m)
    o_ref[...] = e / jnp.sum(e, axis=1, keepdims=True)


# ------------------------------ wrapper / weight prep -------------------------

def pallas_forward(x, params):
    P = params
    N, C_in, L = x.shape
    x_flat = jnp.transpose(x, (0, 2, 1)).reshape(N * L, C_in)  # lane dim = C

    def bn_sf(name):
        bnp = P[name]
        scale = bnp["gamma"] / jnp.sqrt(bnp["var"] + BN_EPS)
        shift = bnp["beta"] - bnp["mean"] * scale
        return scale, shift

    def pack_conv(name):                    # torch (O, I, K) -> (K*I, O) bf16
        w = P[name + "_w"]
        O, I, K = w.shape
        return jnp.transpose(w, (2, 1, 0)).reshape(K * I, O).astype(jnp.bfloat16)

    def shortcut_folded(name, bn_name):     # fold input BN into the 1x1 conv
        w = P[name + "_w"][:, :, 0]         # (O, I)
        b = P[name + "_b"]                  # (O,)
        s, t = bn_sf(bn_name)
        wf = (w * s[None, :]).T.astype(jnp.bfloat16)   # (I, O)
        bf = w @ t + b                                  # (O,)
        return wf, bf

    blocks_def = [
        ("bn1", "conv1", "bn2", "conv2", "shortcut1", L),
        ("bn3", "conv3", "bn4", "conv4", "shortcut2", L // 2),
        ("bn5", "conv5", "bn6", "conv6", "shortcut3", L // 4),
    ]

    raw_vecs, conv_ws, sc_ws, blocks_cfg = [], [], [], []
    pad_r, pad_c, patch_r, patch_c, pool_r, pool_c = 8, 128, 8, 128, 8, 128
    for bn_a, cv_a, bn_b, cv_b, sc, Lb in blocks_def:
        Oa, Ia, Ka = P[cv_a + "_w"].shape
        Ob, Ib, Kb = P[cv_b + "_w"].shape
        assert Ka == Kb and Ib == Oa and Ob == Oa, "block conv shapes mismatch"
        s_a, t_a = bn_sf(bn_a)
        s_b, t_b = bn_sf(bn_b)
        wsc, bsc = shortcut_folded(sc, bn_a)
        raw_vecs += [s_a, t_a, P[cv_a + "_b"], s_b, t_b, P[cv_b + "_b"], bsc]
        conv_ws += [pack_conv(cv_a), pack_conv(cv_b)]
        sc_ws.append(wsc)
        blocks_cfg.append((Lb, int(Ka), int(Ia), int(Oa)))
        for K, Ci in ((Ka, Ia), (Kb, Ib)):              # scratch sizing
            left = (K - 1) // 2
            off = _rup(left, 8)
            seg = _rup(off + Lb + (K - 1 - left), 8)
            pad_r = max(pad_r, N * seg)
            pad_c = max(pad_c, Ci)
            patch_r = max(patch_r, N * Lb)
            patch_c = max(patch_c, K * Ci)
        pool_r = max(pool_r, N * Lb)
        pool_c = max(pool_c, Oa)
    pad_r, pad_c = _rup(pad_r, 8), _rup(pad_c, 128)
    patch_r, patch_c = _rup(patch_r, 8), _rup(patch_c, 128)
    pool_r, pool_c = _rup(pool_r, 8), _rup(pool_c, 128)

    for name in ("fc1", "fc2", "fc3", "out"):
        raw_vecs.append(P[name + "_b"])
    vec_w = _rup(max(int(v.shape[0]) for v in raw_vecs), 128)
    vec = jnp.stack(
        [jnp.pad(jnp.asarray(v, jnp.float32), (0, vec_w - int(v.shape[0])))
         for v in raw_vecs], axis=0)                    # one packed DMA

    fc_ws = [P["fc1_w"].T.astype(jnp.bfloat16), P["fc2_w"].T.astype(jnp.bfloat16),
             P["fc3_w"].T.astype(jnp.bfloat16), P["out_w"].T.astype(jnp.bfloat16)]
    head_widths = (int(P["fc1_w"].shape[0]), int(P["fc2_w"].shape[0]),
                   int(P["fc3_w"].shape[0]), int(P["out_w"].shape[0]))
    nb = P["out_w"].shape[0]

    args = [x_flat, vec] + conv_ws + sc_ws + fc_ws
    vspec = pl.BlockSpec(memory_space=pltpu.MemorySpace.VMEM)
    kernel = functools.partial(_resnet_kernel, N=N, blocks=tuple(blocks_cfg),
                               head_widths=head_widths)
    return pl.pallas_call(
        kernel,
        out_shape=jax.ShapeDtypeStruct((N, nb), jnp.float32),
        in_specs=[vspec] * len(args),
        out_specs=vspec,
        scratch_shapes=[
            pltpu.VMEM((pad_r, pad_c), jnp.float32),     # zero-halo'd conv input
            pltpu.VMEM((patch_r, patch_c), jnp.bfloat16),  # im2col patches
            pltpu.VMEM((pool_r, pool_c), jnp.float32),   # maxpool staging
        ],
        compiler_params=pltpu.CompilerParams(vmem_limit_bytes=32 * 1024 * 1024),
    )(*args)


# --------------------------- reference (plain JAX) ---------------------------

def ref_forward(x, P):
    relu = jax.nn.relu

    def bn(x, bnp):
        g, b, m, v = bnp["gamma"], bnp["beta"], bnp["mean"], bnp["var"]
        return ((x - m[None, :, None]) / jnp.sqrt(v[None, :, None] + BN_EPS)
                * g[None, :, None] + b[None, :, None])

    def conv(x, w, b):
        K = w.shape[-1]
        left = (K - 1) // 2
        y = lax.conv_general_dilated(
            x, w, window_strides=(1,), padding=[(left, K - 1 - left)],
            dimension_numbers=("NCH", "OIH", "NCH"))
        return y + b[None, :, None]

    def mpool(x):
        n, c, l = x.shape
        return jnp.max(x.reshape(n, c, l // 2, 2), axis=-1)

    cx = conv(relu(bn(x, P["bn1"])), P["conv1_w"], P["conv1_b"])
    cy = conv(relu(bn(cx, P["bn2"])), P["conv2_w"], P["conv2_b"])
    sc = conv(bn(x, P["bn1"]), P["shortcut1_w"], P["shortcut1_b"])
    ob1 = mpool(relu(cy + sc))
    cx = conv(relu(bn(ob1, P["bn3"])), P["conv3_w"], P["conv3_b"])
    cy = conv(relu(bn(cx, P["bn4"])), P["conv4_w"], P["conv4_b"])
    sc = conv(bn(ob1, P["bn3"]), P["shortcut2_w"], P["shortcut2_b"])
    ob2 = mpool(relu(cy + sc))
    cx = conv(relu(bn(ob2, P["bn5"])), P["conv5_w"], P["conv5_b"])
    cy = conv(relu(bn(cx, P["bn6"])), P["conv6_w"], P["conv6_b"])
    sc = conv(bn(ob2, P["bn5"]), P["shortcut3_w"], P["shortcut3_b"])
    ob3 = mpool(relu(cy + sc))
    g = jnp.mean(ob3, axis=2)
    h = relu(g @ P["fc1_w"].T + P["fc1_b"])
    h = relu(h @ P["fc2_w"].T + P["fc2_b"])
    h = relu(h @ P["fc3_w"].T + P["fc3_b"])
    logits = h @ P["out_w"].T + P["out_b"]
    return jax.nn.softmax(logits, axis=1)


# ----------------------------- deterministic init ----------------------------

def make_params(key, c_in, nb_classes):
    nfm = 32
    p = {}

    def u(k, shape, lo, hi):
        return jax.random.uniform(k, shape, jnp.float32, lo, hi)

    def conv(name, co, ci, ksz):
        nonlocal key
        key, kw, kb = jax.random.split(key, 3)
        bound = 1.0 / math.sqrt(ci * ksz)
        p[name + "_w"] = u(kw, (co, ci, ksz), -bound, bound)   # torch (O, I, K)
        p[name + "_b"] = u(kb, (co,), -bound, bound)

    def bn(name, c):
        nonlocal key
        key, k1, k2, k3, k4 = jax.random.split(key, 5)
        p[name] = dict(gamma=u(k1, (c,), 0.8, 1.2),
                       beta=u(k2, (c,), -0.1, 0.1),
                       mean=u(k3, (c,), -0.1, 0.1),
                       var=u(k4, (c,), 0.8, 1.2))

    def lin(name, out_d, in_d):
        nonlocal key
        key, kw, kb = jax.random.split(key, 3)
        bound = 1.0 / math.sqrt(in_d)
        p[name + "_w"] = u(kw, (out_d, in_d), -bound, bound)   # torch (out, in)
        p[name + "_b"] = u(kb, (out_d,), -bound, bound)

    bn("bn1", c_in);      conv("conv1", nfm, c_in, 32)
    bn("bn2", nfm);       conv("conv2", nfm, nfm, 32)
    conv("shortcut1", nfm, c_in, 1)
    bn("bn3", nfm);       conv("conv3", 2 * nfm, nfm, 16)
    bn("bn4", 2 * nfm);   conv("conv4", 2 * nfm, 2 * nfm, 16)
    conv("shortcut2", 2 * nfm, nfm, 1)
    bn("bn5", 2 * nfm);   conv("conv5", 4 * nfm, 2 * nfm, 8)
    bn("bn6", 4 * nfm);   conv("conv6", 4 * nfm, 4 * nfm, 8)
    conv("shortcut3", 4 * nfm, 2 * nfm, 1)
    lin("fc1", 256, 4 * nfm)
    lin("fc2", 128, 256)
    lin("fc3", 128, 128)
    lin("out", nb_classes, 128)
    return p


# ----------------------------------- main ------------------------------------

if __name__ == "__main__":
    N, C_IN, L = 2, 4, 16          # x: (batch, channels, length) — Conv1d input
    NB_CLASSES = 5

    root = jax.random.PRNGKey(0)
    xkey, pkey = jax.random.split(root)
    x = jax.random.normal(xkey, (N, C_IN, L), jnp.float32)
    params = make_params(pkey, C_IN, NB_CLASSES)

    fwd = jax.jit(lambda xx: pallas_forward(xx, params))
    out = jax.block_until_ready(fwd(x))

    ref = ref_forward(x, params)
    assert out.shape == (N, NB_CLASSES)
    assert bool(jnp.all(jnp.isfinite(out)))
    assert bool(jnp.allclose(jnp.sum(out, axis=1), 1.0, atol=1e-3))
    # bf16 MXU operands with f32 accumulation -> slightly looser tolerance
    assert bool(jnp.allclose(out, ref, atol=2e-2, rtol=2e-2))

    print("KERNEL_OK")
</pallas_src>

<mosaic_0001>
module attributes {stable_mosaic.version = 11 : i64} {
  func.func @_resnet_kernel(%arg0: memref<32x4xf32, #tpu.memory_space<vmem>>, %arg1: memref<25x256xf32, #tpu.memory_space<vmem>>, %arg2: memref<128x32xbf16, #tpu.memory_space<vmem>>, %arg3: memref<1024x32xbf16, #tpu.memory_space<vmem>>, %arg4: memref<512x64xbf16, #tpu.memory_space<vmem>>, %arg5: memref<1024x64xbf16, #tpu.memory_space<vmem>>, %arg6: memref<512x128xbf16, #tpu.memory_space<vmem>>, %arg7: memref<1024x128xbf16, #tpu.memory_space<vmem>>, %arg8: memref<4x32xbf16, #tpu.memory_space<vmem>>, %arg9: memref<32x64xbf16, #tpu.memory_space<vmem>>, %arg10: memref<64x128xbf16, #tpu.memory_space<vmem>>, %arg11: memref<128x256xbf16, #tpu.memory_space<vmem>>, %arg12: memref<256x128xbf16, #tpu.memory_space<vmem>>, %arg13: memref<128x128xbf16, #tpu.memory_space<vmem>>, %arg14: memref<128x5xbf16, #tpu.memory_space<vmem>>, %arg15: memref<2x5xf32, #tpu.memory_space<vmem>>, %arg16: memref<96x128xf32, #tpu.memory_space<vmem>>, %arg17: memref<32x1024xbf16, #tpu.memory_space<vmem>>, %arg18: memref<32x128xf32, #tpu.memory_space<vmem>>) attributes {dimension_semantics = [], scalar_prefetch = 0 : i64, scratch_operands = 3 : i64, tpu.core_type = #tpu.core_type<tc>} {
    %c0 = arith.constant 0 : index
    %c0_0 = arith.constant 0 : index
    %0 = vector.load %arg0[%c0, %c0_0] : memref<32x4xf32, #tpu.memory_space<vmem>>, vector<32x4xf32>
    %c0_1 = arith.constant 0 : index
    %c0_2 = arith.constant 0 : index
    %1 = vector.load %arg1[%c0_1, %c0_2] : memref<25x256xf32, #tpu.memory_space<vmem>>, vector<1x4xf32>
    %c1 = arith.constant 1 : index
    %c0_3 = arith.constant 0 : index
    %2 = vector.load %arg1[%c1, %c0_3] : memref<25x256xf32, #tpu.memory_space<vmem>>, vector<1x4xf32>
    %c2 = arith.constant 2 : index
    %c0_4 = arith.constant 0 : index
    %3 = vector.load %arg1[%c2, %c0_4] : memref<25x256xf32, #tpu.memory_space<vmem>>, vector<1x32xf32>
    %c3 = arith.constant 3 : index
    %c0_5 = arith.constant 0 : index
    %4 = vector.load %arg1[%c3, %c0_5] : memref<25x256xf32, #tpu.memory_space<vmem>>, vector<1x32xf32>
    %c4 = arith.constant 4 : index
    %c0_6 = arith.constant 0 : index
    %5 = vector.load %arg1[%c4, %c0_6] : memref<25x256xf32, #tpu.memory_space<vmem>>, vector<1x32xf32>
    %c5 = arith.constant 5 : index
    %c0_7 = arith.constant 0 : index
    %6 = vector.load %arg1[%c5, %c0_7] : memref<25x256xf32, #tpu.memory_space<vmem>>, vector<1x32xf32>
    %c6 = arith.constant 6 : index
    %c0_8 = arith.constant 0 : index
    %7 = vector.load %arg1[%c6, %c0_8] : memref<25x256xf32, #tpu.memory_space<vmem>>, vector<1x32xf32>
    %8 = vector.broadcast %1 : vector<1x4xf32> to vector<32x4xf32>
    %9 = arith.mulf %0, %8 : vector<32x4xf32>
    %10 = vector.broadcast %2 : vector<1x4xf32> to vector<32x4xf32>
    %11 = arith.addf %9, %10 : vector<32x4xf32>
    %cst = arith.constant 0.000000e+00 : f32
    %12 = vector.broadcast %cst : f32 to vector<32x4xf32>
    %13 = arith.maximumf %11, %12 : vector<32x4xf32>
    %cst_9 = arith.constant 0.000000e+00 : f32
    %14 = vector.broadcast %cst_9 : f32 to vector<16x4xf32>
    %cst_10 = arith.constant 0.000000e+00 : f32
    %15 = vector.broadcast %cst_10 : f32 to vector<16x4xf32>
    %c0_11 = arith.constant 0 : index
    %c0_12 = arith.constant 0 : index
    %16 = vector.load %arg16[%c0_11, %c0_12] : memref<96x128xf32, #tpu.memory_space<vmem>>, vector<16x4xf32>
    tpu.vector_store %arg16[%c0_11, %c0_12], %14 {strides = array<i32>} : memref<96x128xf32, #tpu.memory_space<vmem>>, vector<16x4xf32>,
    %c32 = arith.constant 32 : index
    %c0_13 = arith.constant 0 : index
    %17 = vector.load %arg16[%c32, %c0_13] : memref<96x128xf32, #tpu.memory_space<vmem>>, vector<16x4xf32>
    tpu.vector_store %arg16[%c32, %c0_13], %15 {strides = array<i32>} : memref<96x128xf32, #tpu.memory_space<vmem>>, vector<16x4xf32>,
    %18 = vector.extract_strided_slice %13 {offsets = [0, 0], sizes = [16, 4], strides = [1, 1]} : vector<32x4xf32> to vector<16x4xf32>
    %c16 = arith.constant 16 : index
    %c0_14 = arith.constant 0 : index
    %19 = vector.load %arg16[%c16, %c0_14] : memref<96x128xf32, #tpu.memory_space<vmem>>, vector<16x4xf32>
    tpu.vector_store %arg16[%c16, %c0_14], %18 {strides = array<i32>} : memref<96x128xf32, #tpu.memory_space<vmem>>, vector<16x4xf32>,
    %c48 = arith.constant 48 : index
    %c0_15 = arith.constant 0 : index
    %20 = vector.load %arg16[%c48, %c0_15] : memref<96x128xf32, #tpu.memory_space<vmem>>, vector<16x4xf32>
    tpu.vector_store %arg16[%c48, %c0_15], %14 {strides = array<i32>} : memref<96x128xf32, #tpu.memory_space<vmem>>, vector<16x4xf32>,
    %c80 = arith.constant 80 : index
    %c0_16 = arith.constant 0 : index
    %21 = vector.load %arg16[%c80, %c0_16] : memref<96x128xf32, #tpu.memory_space<vmem>>, vector<16x4xf32>
    tpu.vector_store %arg16[%c80, %c0_16], %15 {strides = array<i32>} : memref<96x128xf32, #tpu.memory_space<vmem>>, vector<16x4xf32>,
    %22 = vector.extract_strided_slice %13 {offsets = [16, 0], sizes = [16, 4], strides = [1, 1]} : vector<32x4xf32> to vector<16x4xf32>
    %c64 = arith.constant 64 : index
    %c0_17 = arith.constant 0 : index
    %23 = vector.load %arg16[%c64, %c0_17] : memref<96x128xf32, #tpu.memory_space<vmem>>, vector<16x4xf32>
    tpu.vector_store %arg16[%c64, %c0_17], %22 {strides = array<i32>} : memref<96x128xf32, #tpu.memory_space<vmem>>, vector<16x4xf32>,
    %c1_18 = arith.constant 1 : index
    %c0_19 = arith.constant 0 : index
    %24 = vector.load %arg16[%c1_18, %c0_19] : memref<96x128xf32, #tpu.memory_space<vmem>>, vector<16x4xf32>
    %25 = arith.truncf %24 : vector<16x4xf32> to vector<16x4xbf16>
    %c0_20 = arith.constant 0 : index
    %c0_21 = arith.constant 0 : index
    %26 = vector.load %arg17[%c0_20, %c0_21] : memref<32x1024xbf16, #tpu.memory_space<vmem>>, vector<16x4xbf16>
    tpu.vector_store %arg17[%c0_20, %c0_21], %25 {strides = array<i32>} : memref<32x1024xbf16, #tpu.memory_space<vmem>>, vector<16x4xbf16>,
    %c49 = arith.constant 49 : index
    %c0_22 = arith.constant 0 : index
    %27 = vector.load %arg16[%c49, %c0_22] : memref<96x128xf32, #tpu.memory_space<vmem>>, vector<16x4xf32>
    %28 = arith.truncf %27 : vector<16x4xf32> to vector<16x4xbf16>
    %c16_23 = arith.constant 16 : index
    %c0_24 = arith.constant 0 : index
    %29 = vector.load %arg17[%c16_23, %c0_24] : memref<32x1024xbf16, #tpu.memory_space<vmem>>, vector<16x4xbf16>
    tpu.vector_store %arg17[%c16_23, %c0_24], %28 {strides = array<i32>} : memref<32x1024xbf16, #tpu.memory_space<vmem>>, vector<16x4xbf16>,
    %c2_25 = arith.constant 2 : index
    %c0_26 = arith.constant 0 : index
    %30 = vector.load %arg16[%c2_25, %c0_26] : memref<96x128xf32, #tpu.memory_space<vmem>>, vector<16x4xf32>
    %31 = arith.truncf %30 : vector<16x4xf32> to vector<16x4xbf16>
    %c0_27 = arith.constant 0 : index
    %c4_28 = arith.constant 4 : index
    %32 = vector.load %arg17[%c0_27, %c4_28] : memref<32x1024xbf16, #tpu.memory_space<vmem>>, vector<16x4xbf16>
    tpu.vector_store %arg17[%c0_27, %c4_28], %31 {strides = array<i32>} : memref<32x1024xbf16, #tpu.memory_space<vmem>>, vector<16x4xbf16>,
    %c50 = arith.constant 50 : index
    %c0_29 = arith.constant 0 : index
    %33 = vector.load %arg16[%c50, %c0_29] : memref<96x128xf32, #tpu.memory_space<vmem>>, vector<16x4xf32>
    %34 = arith.truncf %33 : vector<16x4xf32> to vector<16x4xbf16>
    %c16_30 = arith.constant 16 : index
    %c4_31 = arith.constant 4 : index
    %35 = vector.load %arg17[%c16_30, %c4_31] : memref<32x1024xbf16, #tpu.memory_space<vmem>>, vector<16x4xbf16>
    tpu.vector_store %arg17[%c16_30, %c4_31], %34 {strides = array<i32>} : memref<32x1024xbf16, #tpu.memory_space<vmem>>, vector<16x4xbf16>,
    %c3_32 = arith.constant 3 : index
    %c0_33 = arith.constant 0 : index
    %36 = vector.load %arg16[%c3_32, %c0_33] : memref<96x128xf32, #tpu.memory_space<vmem>>, vector<16x4xf32>
    %37 = arith.truncf %36 : vector<16x4xf32> to vector<16x4xbf16>
    %c0_34 = arith.constant 0 : index
    %c8 = arith.constant 8 : index
    %38 = vector.load %arg17[%c0_34, %c8] : memref<32x1024xbf16, #tpu.memory_space<vmem>>, vector<16x4xbf16>
    tpu.vector_store %arg17[%c0_34, %c8], %37 {strides = array<i32>} : memref<32x1024xbf16, #tpu.memory_space<vmem>>, vector<16x4xbf16>,
    %c51 = arith.constant 51 : index
    %c0_35 = arith.constant 0 : index
    %39 = vector.load %arg16[%c51, %c0_35] : memref<96x128xf32, #tpu.memory_space<vmem>>, vector<16x4xf32>
    %40 = arith.truncf %39 : vector<16x4xf32> to vector<16x4xbf16>
    %c16_36 = arith.constant 16 : index
    %c8_37 = arith.constant 8 : index
    %41 = vector.load %arg17[%c16_36, %c8_37] : memref<32x1024xbf16, #tpu.memory_space<vmem>>, vector<16x4xbf16>
    tpu.vector_store %arg17[%c16_36, %c8_37], %40 {strides = array<i32>} : memref<32x1024xbf16, #tpu.memory_space<vmem>>, vector<16x4xbf16>,
    %c4_38 = arith.constant 4 : index
    %c0_39 = arith.constant 0 : index
    %42 = vector.load %arg16[%c4_38, %c0_39] : memref<96x128xf32, #tpu.memory_space<vmem>>, vector<16x4xf32>
    %43 = arith.truncf %42 : vector<16x4xf32> to vector<16x4xbf16>
    %c0_40 = arith.constant 0 : index
    %c12 = arith.constant 12 : index
    %44 = vector.load %arg17[%c0_40, %c12] : memref<32x1024xbf16, #tpu.memory_space<vmem>>, vector<16x4xbf16>
    tpu.vector_store %arg17[%c0_40, %c12], %43 {strides = array<i32>} : memref<32x1024xbf16, #tpu.memory_space<vmem>>, vector<16x4xbf16>,
    %c52 = arith.constant 52 : index
    %c0_41 = arith.constant 0 : index
    %45 = vector.load %arg16[%c52, %c0_41] : memref<96x128xf32, #tpu.memory_space<vmem>>, vector<16x4xf32>
    %46 = arith.truncf %45 : vector<16x4xf32> to vector<16x4xbf16>
    %c16_42 = arith.constant 16 : index
    %c12_43 = arith.constant 12 : index
    %47 = vector.load %arg17[%c16_42, %c12_43] : memref<32x1024xbf16, #tpu.memory_space<vmem>>, vector<16x4xbf16>
    tpu.vector_store %arg17[%c16_42, %c12_43], %46 {strides = array<i32>} : memref<32x1024xbf16, #tpu.memory_space<vmem>>, vector<16x4xbf16>,
    %c5_44 = arith.constant 5 : index
    %c0_45 = arith.constant 0 : index
    %48 = vector.load %arg16[%c5_44, %c0_45] : memref<96x128xf32, #tpu.memory_space<vmem>>, vector<16x4xf32>
    %49 = arith.truncf %48 : vector<16x4xf32> to vector<16x4xbf16>
    %c0_46 = arith.constant 0 : index
    %c16_47 = arith.constant 16 : index
    %50 = vector.load %arg17[%c0_46, %c16_47] : memref<32x1024xbf16, #tpu.memory_space<vmem>>, vector<16x4xbf16>
    tpu.vector_store %arg17[%c0_46, %c16_47], %49 {strides = array<i32>} : memref<32x1024xbf16, #tpu.memory_space<vmem>>, vector<16x4xbf16>,
    %c53 = arith.constant 53 : index
    %c0_48 = arith.constant 0 : index
    %51 = vector.load %arg16[%c53, %c0_48] : memref<96x128xf32, #tpu.memory_space<vmem>>, vector<16x4xf32>
    %52 = arith.truncf %51 : vector<16x4xf32> to vector<16x4xbf16>
    %c16_49 = arith.constant 16 : index
    %c16_50 = arith.constant 16 : index
    %53 = vector.load %arg17[%c16_49, %c16_50] : memref<32x1024xbf16, #tpu.memory_space<vmem>>, vector<16x4xbf16>
    tpu.vector_store %arg17[%c16_49, %c16_50], %52 {strides = array<i32>} : memref<32x1024xbf16, #tpu.memory_space<vmem>>, vector<16x4xbf16>,
    %c6_51 = arith.constant 6 : index
    %c0_52 = arith.constant 0 : index
    %54 = vector.load %arg16[%c6_51, %c0_52] : memref<96x128xf32, #tpu.memory_space<vmem>>, vector<16x4xf32>
    %55 = arith.truncf %54 : vector<16x4xf32> to vector<16x4xbf16>
    %c0_53 = arith.constant 0 : index
    %c20 = arith.constant 20 : index
    %56 = vector.load %arg17[%c0_53, %c20] : memref<32x1024xbf16, #tpu.memory_space<vmem>>, vector<16x4xbf16>
    tpu.vector_store %arg17[%c0_53, %c20], %55 {strides = array<i32>} : memref<32x1024xbf16, #tpu.memory_space<vmem>>, vector<16x4xbf16>,
    %c54 = arith.constant 54 : index
    %c0_54 = arith.constant 0 : index
    %57 = vector.load %arg16[%c54, %c0_54] : memref<96x128xf32, #tpu.memory_space<vmem>>, vector<16x4xf32>
    %58 = arith.truncf %57 : vector<16x4xf32> to vector<16x4xbf16>
    %c16_55 = arith.constant 16 : index
    %c20_56 = arith.constant 20 : index
    %59 = vector.load %arg17[%c16_55, %c20_56] : memref<32x1024xbf16, #tpu.memory_space<vmem>>, vector<16x4xbf16>
    tpu.vector_store %arg17[%c16_55, %c20_56], %58 {strides = array<i32>} : memref<32x1024xbf16, #tpu.memory_space<vmem>>, vector<16x4xbf16>,
    %c7 = arith.constant 7 : index
    %c0_57 = arith.constant 0 : index
    %60 = vector.load %arg16[%c7, %c0_57] : memref<96x128xf32, #tpu.memory_space<vmem>>, vector<16x4xf32>
    %61 = arith.truncf %60 : vector<16x4xf32> to vector<16x4xbf16>
    %c0_58 = arith.constant 0 : index
    %c24 = arith.constant 24 : index
    %62 = vector.load %arg17[%c0_58, %c24] : memref<32x1024xbf16, #tpu.memory_space<vmem>>, vector<16x4xbf16>
    tpu.vector_store %arg17[%c0_58, %c24], %61 {strides = array<i32>} : memref<32x1024xbf16, #tpu.memory_space<vmem>>, vector<16x4xbf16>,
    %c55 = arith.constant 55 : index
    %c0_59 = arith.constant 0 : index
    %63 = vector.load %arg16[%c55, %c0_59] : memref<96x128xf32, #tpu.memory_space<vmem>>, vector<16x4xf32>
    %64 = arith.truncf %63 : vector<16x4xf32> to vector<16x4xbf16>
    %c16_60 = arith.constant 16 : index
    %c24_61 = arith.constant 24 : index
    %65 = vector.load %arg17[%c16_60, %c24_61] : memref<32x1024xbf16, #tpu.memory_space<vmem>>, vector<16x4xbf16>
    tpu.vector_store %arg17[%c16_60, %c24_61], %64 {strides = array<i32>} : memref<32x1024xbf16, #tpu.memory_space<vmem>>, vector<16x4xbf16>,
    %c8_62 = arith.constant 8 : index
    %c0_63 = arith.constant 0 : index
    %66 = vector.load %arg16[%c8_62, %c0_63] : memref<96x128xf32, #tpu.memory_space<vmem>>, vector<16x4xf32>
    %67 = arith.truncf %66 : vector<16x4xf32> to vector<16x4xbf16>
    %c0_64 = arith.constant 0 : index
    %c28 = arith.constant 28 : index
    %68 = vector.load %arg17[%c0_64, %c28] : memref<32x1024xbf16, #tpu.memory_space<vmem>>, vector<16x4xbf16>
    tpu.vector_store %arg17[%c0_64, %c28], %67 {strides = array<i32>} : memref<32x1024xbf16, #tpu.memory_space<vmem>>, vector<16x4xbf16>,
    %c56 = arith.constant 56 : index
    %c0_65 = arith.constant 0 : index
    %69 = vector.load %arg16[%c56, %c0_65] : memref<96x128xf32, #tpu.memory_space<vmem>>, vector<16x4xf32>
    %70 = arith.truncf %69 : vector<16x4xf32> to vector<16x4xbf16>
    %c16_66 = arith.constant 16 : index
    %c28_67 = arith.constant 28 : index
    %71 = vector.load %arg17[%c16_66, %c28_67] : memref<32x1024xbf16, #tpu.memory_space<vmem>>, vector<16x4xbf16>
    tpu.vector_store %arg17[%c16_66, %c28_67], %70 {strides = array<i32>} : memref<32x1024xbf16, #tpu.memory_space<vmem>>, vector<16x4xbf16>,
    %c9 = arith.constant 9 : index
    %c0_68 = arith.constant 0 : index
    %72 = vector.load %arg16[%c9, %c0_68] : memref<96x128xf32, #tpu.memory_space<vmem>>, vector<16x4xf32>
    %73 = arith.truncf %72 : vector<16x4xf32> to vector<16x4xbf16>
    %c0_69 = arith.constant 0 : index
    %c32_70 = arith.constant 32 : index
    %74 = vector.load %arg17[%c0_69, %c32_70] : memref<32x1024xbf16, #tpu.memory_space<vmem>>, vector<16x4xbf16>
    tpu.vector_store %arg17[%c0_69, %c32_70], %73 {strides = array<i32>} : memref<32x1024xbf16, #tpu.memory_space<vmem>>, vector<16x4xbf16>,
    %c57 = arith.constant 57 : index
    %c0_71 = arith.constant 0 : index
    %75 = vector.load %arg16[%c57, %c0_71] : memref<96x128xf32, #tpu.memory_space<vmem>>, vector<16x4xf32>
    %76 = arith.truncf %75 : vector<16x4xf32> to vector<16x4xbf16>
    %c16_72 = arith.constant 16 : index
    %c32_73 = arith.constant 32 : index
    %77 = vector.load %arg17[%c16_72, %c32_73] : memref<32x1024xbf16, #tpu.memory_space<vmem>>, vector<16x4xbf16>
    tpu.vector_store %arg17[%c16_72, %c32_73], %76 {strides = array<i32>} : memref<32x1024xbf16, #tpu.memory_space<vmem>>, vector<16x4xbf16>,
    %c10 = arith.constant 10 : index
    %c0_74 = arith.constant 0 : index
    %78 = vector.load %arg16[%c10, %c0_74] : memref<96x128xf32, #tpu.memory_space<vmem>>, vector<16x4xf32>
    %79 = arith.truncf %78 : vector<16x4xf32> to vector<16x4xbf16>
    %c0_75 = arith.constant 0 : index
    %c36 = arith.constant 36 : index
    %80 = vector.load %arg17[%c0_75, %c36] : memref<32x1024xbf16, #tpu.memory_space<vmem>>, vector<16x4xbf16>
    tpu.vector_store %arg17[%c0_75, %c36], %79 {strides = array<i32>} : memref<32x1024xbf16, #tpu.memory_space<vmem>>, vector<16x4xbf16>,
    %c58 = arith.constant 58 : index
    %c0_76 = arith.constant 0 : index
    %81 = vector.load %arg16[%c58, %c0_76] : memref<96x128xf32, #tpu.memory_space<vmem>>, vector<16x4xf32>
    %82 = arith.truncf %81 : vector<16x4xf32> to vector<16x4xbf16>
    %c16_77 = arith.constant 16 : index
    %c36_78 = arith.constant 36 : index
    %83 = vector.load %arg17[%c16_77, %c36_78] : memref<32x1024xbf16, #tpu.memory_space<vmem>>, vector<16x4xbf16>
    tpu.vector_store %arg17[%c16_77, %c36_78], %82 {strides = array<i32>} : memref<32x1024xbf16, #tpu.memory_space<vmem>>, vector<16x4xbf16>,
    %c11 = arith.constant 11 : index
    %c0_79 = arith.constant 0 : index
    %84 = vector.load %arg16[%c11, %c0_79] : memref<96x128xf32, #tpu.memory_space<vmem>>, vector<16x4xf32>
    %85 = arith.truncf %84 : vector<16x4xf32> to vector<16x4xbf16>
    %c0_80 = arith.constant 0 : index
    %c40 = arith.constant 40 : index
    %86 = vector.load %arg17[%c0_80, %c40] : memref<32x1024xbf16, #tpu.memory_space<vmem>>, vector<16x4xbf16>
    tpu.vector_store %arg17[%c0_80, %c40], %85 {strides = array<i32>} : memref<32x1024xbf16, #tpu.memory_space<vmem>>, vector<16x4xbf16>,
    %c59 = arith.constant 59 : index
    %c0_81 = arith.constant 0 : index
    %87 = vector.load %arg16[%c59, %c0_81] : memref<96x128xf32, #tpu.memory_space<vmem>>, vector<16x4xf32>
    %88 = arith.truncf %87 : vector<16x4xf32> to vector<16x4xbf16>
    %c16_82 = arith.constant 16 : index
    %c40_83 = arith.constant 40 : index
    %89 = vector.load %arg17[%c16_82, %c40_83] : memref<32x1024xbf16, #tpu.memory_space<vmem>>, vector<16x4xbf16>
    tpu.vector_store %arg17[%c16_82, %c40_83], %88 {strides = array<i32>} : memref<32x1024xbf16, #tpu.memory_space<vmem>>, vector<16x4xbf16>,
    %c12_84 = arith.constant 12 : index
    %c0_85 = arith.constant 0 : index
    %90 = vector.load %arg16[%c12_84, %c0_85] : memref<96x128xf32, #tpu.memory_space<vmem>>, vector<16x4xf32>
    %91 = arith.truncf %90 : vector<16x4xf32> to vector<16x4xbf16>
    %c0_86 = arith.constant 0 : index
    %c44 = arith.constant 44 : index
    %92 = vector.load %arg17[%c0_86, %c44] : memref<32x1024xbf16, #tpu.memory_space<vmem>>, vector<16x4xbf16>
    tpu.vector_store %arg17[%c0_86, %c44], %91 {strides = array<i32>} : memref<32x1024xbf16, #tpu.memory_space<vmem>>, vector<16x4xbf16>,
    %c60 = arith.constant 60 : index
    %c0_87 = arith.constant 0 : index
    %93 = vector.load %arg16[%c60, %c0_87] : memref<96x128xf32, #tpu.memory_space<vmem>>, vector<16x4xf32>
    %94 = arith.truncf %93 : vector<16x4xf32> to vector<16x4xbf16>
    %c16_88 = arith.constant 16 : index
    %c44_89 = arith.constant 44 : index
    %95 = vector.load %arg17[%c16_88, %c44_89] : memref<32x1024xbf16, #tpu.memory_space<vmem>>, vector<16x4xbf16>
    tpu.vector_store %arg17[%c16_88, %c44_89], %94 {strides = array<i32>} : memref<32x1024xbf16, #tpu.memory_space<vmem>>, vector<16x4xbf16>,
    %c13 = arith.constant 13 : index
    %c0_90 = arith.constant 0 : index
    %96 = vector.load %arg16[%c13, %c0_90] : memref<96x128xf32, #tpu.memory_space<vmem>>, vector<16x4xf32>
    %97 = arith.truncf %96 : vector<16x4xf32> to vector<16x4xbf16>
    %c0_91 = arith.constant 0 : index
    %c48_92 = arith.constant 48 : index
    %98 = vector.load %arg17[%c0_91, %c48_92] : memref<32x1024xbf16, #tpu.memory_space<vmem>>, vector<16x4xbf16>
    tpu.vector_store %arg17[%c0_91, %c48_92], %97 {strides = array<i32>} : memref<32x1024xbf16, #tpu.memory_space<vmem>>, vector<16x4xbf16>,
    %c61 = arith.constant 61 : index
    %c0_93 = arith.constant 0 : index
    %99 = vector.load %arg16[%c61, %c0_93] : memref<96x128xf32, #tpu.memory_space<vmem>>, vector<16x4xf32>
    %100 = arith.truncf %99 : vector<16x4xf32> to vector<16x4xbf16>
    %c16_94 = arith.constant 16 : index
    %c48_95 = arith.constant 48 : index
    %101 = vector.load %arg17[%c16_94, %c48_95] : memref<32x1024xbf16, #tpu.memory_space<vmem>>, vector<16x4xbf16>
    tpu.vector_store %arg17[%c16_94, %c48_95], %100 {strides = array<i32>} : memref<32x1024xbf16, #tpu.memory_space<vmem>>, vector<16x4xbf16>,
    %c14 = arith.constant 14 : index
    %c0_96 = arith.constant 0 : index
    %102 = vector.load %arg16[%c14, %c0_96] : memref<96x128xf32, #tpu.memory_space<vmem>>, vector<16x4xf32>
    %103 = arith.truncf %102 : vector<16x4xf32> to vector<16x4xbf16>
    %c0_97 = arith.constant 0 : index
    %c52_98 = arith.constant 52 : index
    %104 = vector.load %arg17[%c0_97, %c52_98] : memref<32x1024xbf16, #tpu.memory_space<vmem>>, vector<16x4xbf16>
    tpu.vector_store %arg17[%c0_97, %c52_98], %103 {strides = array<i32>} : memref<32x1024xbf16, #tpu.memory_space<vmem>>, vector<16x4xbf16>,
    %c62 = arith.constant 62 : index
    %c0_99 = arith.constant 0 : index
    %105 = vector.load %arg16[%c62, %c0_99] : memref<96x128xf32, #tpu.memory_space<vmem>>, vector<16x4xf32>
    %106 = arith.truncf %105 : vector<16x4xf32> to vector<16x4xbf16>
    %c16_100 = arith.constant 16 : index
    %c52_101 = arith.constant 52 : index
    %107 = vector.load %arg17[%c16_100, %c52_101] : memref<32x1024xbf16, #tpu.memory_space<vmem>>, vector<16x4xbf16>
    tpu.vector_store %arg17[%c16_100, %c52_101], %106 {strides = array<i32>} : memref<32x1024xbf16, #tpu.memory_space<vmem>>, vector<16x4xbf16>,
    %c15 = arith.constant 15 : index
    %c0_102 = arith.constant 0 : index
    %108 = vector.load %arg16[%c15, %c0_102] : memref<96x128xf32, #tpu.memory_space<vmem>>, vector<16x4xf32>
    %109 = arith.truncf %108 : vector<16x4xf32> to vector<16x4xbf16>
    %c0_103 = arith.constant 0 : index
    %c56_104 = arith.constant 56 : index
    %110 = vector.load %arg17[%c0_103, %c56_104] : memref<32x1024xbf16, #tpu.memory_space<vmem>>, vector<16x4xbf16>
    tpu.vector_store %arg17[%c0_103, %c56_104], %109 {strides = array<i32>} : memref<32x1024xbf16, #tpu.memory_space<vmem>>, vector<16x4xbf16>,
    %c63 = arith.constant 63 : index
    %c0_105 = arith.constant 0 : index
    %111 = vector.load %arg16[%c63, %c0_105] : memref<96x128xf32, #tpu.memory_space<vmem>>, vector<16x4xf32>
    %112 = arith.truncf %111 : vector<16x4xf32> to vector<16x4xbf16>
    %c16_106 = arith.constant 16 : index
    %c56_107 = arith.constant 56 : index
    %113 = vector.load %arg17[%c16_106, %c56_107] : memref<32x1024xbf16, #tpu.memory_space<vmem>>, vector<16x4xbf16>
    tpu.vector_store %arg17[%c16_106, %c56_107], %112 {strides = array<i32>} : memref<32x1024xbf16, #tpu.memory_space<vmem>>, vector<16x4xbf16>,
    %c16_108 = arith.constant 16 : index
    %c0_109 = arith.constant 0 : index
    %114 = vector.load %arg16[%c16_108, %c0_109] : memref<96x128xf32, #tpu.memory_space<vmem>>, vector<16x4xf32>
    %115 = arith.truncf %114 : vector<16x4xf32> to vector<16x4xbf16>
    %c0_110 = arith.constant 0 : index
    %c60_111 = arith.constant 60 : index
    %116 = vector.load %arg17[%c0_110, %c60_111] : memref<32x1024xbf16, #tpu.memory_space<vmem>>, vector<16x4xbf16>
    tpu.vector_store %arg17[%c0_110, %c60_111], %115 {strides = array<i32>} : memref<32x1024xbf16, #tpu.memory_space<vmem>>, vector<16x4xbf16>,
    %c64_112 = arith.constant 64 : index
    %c0_113 = arith.constant 0 : index
    %117 = vector.load %arg16[%c64_112, %c0_113] : memref<96x128xf32, #tpu.memory_space<vmem>>, vector<16x4xf32>
    %118 = arith.truncf %117 : vector<16x4xf32> to vector<16x4xbf16>
    %c16_114 = arith.constant 16 : index
    %c60_115 = arith.constant 60 : index
    %119 = vector.load %arg17[%c16_114, %c60_115] : memref<32x1024xbf16, #tpu.memory_space<vmem>>, vector<16x4xbf16>
    tpu.vector_store %arg17[%c16_114, %c60_115], %118 {strides = array<i32>} : memref<32x1024xbf16, #tpu.memory_space<vmem>>, vector<16x4xbf16>,
    %c17 = arith.constant 17 : index
    %c0_116 = arith.constant 0 : index
    %120 = vector.load %arg16[%c17, %c0_116] : memref<96x128xf32, #tpu.memory_space<vmem>>, vector<16x4xf32>
    %121 = arith.truncf %120 : vector<16x4xf32> to vector<16x4xbf16>
    %c0_117 = arith.constant 0 : index
    %c64_118 = arith.constant 64 : index
    %122 = vector.load %arg17[%c0_117, %c64_118] : memref<32x1024xbf16, #tpu.memory_space<vmem>>, vector<16x4xbf16>
    tpu.vector_store %arg17[%c0_117, %c64_118], %121 {strides = array<i32>} : memref<32x1024xbf16, #tpu.memory_space<vmem>>, vector<16x4xbf16>,
    %c65 = arith.constant 65 : index
    %c0_119 = arith.constant 0 : index
    %123 = vector.load %arg16[%c65, %c0_119] : memref<96x128xf32, #tpu.memory_space<vmem>>, vector<16x4xf32>
    %124 = arith.truncf %123 : vector<16x4xf32> to vector<16x4xbf16>
    %c16_120 = arith.constant 16 : index
    %c64_121 = arith.constant 64 : index
    %125 = vector.load %arg17[%c16_120, %c64_121] : memref<32x1024xbf16, #tpu.memory_space<vmem>>, vector<16x4xbf16>
    tpu.vector_store %arg17[%c16_120, %c64_121], %124 {strides = array<i32>} : memref<32x1024xbf16, #tpu.memory_space<vmem>>, vector<16x4xbf16>,
    %c18 = arith.constant 18 : index
    %c0_122 = arith.constant 0 : index
    %126 = vector.load %arg16[%c18, %c0_122] : memref<96x128xf32, #tpu.memory_space<vmem>>, vector<16x4xf32>
    %127 = arith.truncf %126 : vector<16x4xf32> to vector<16x4xbf16>
    %c0_123 = arith.constant 0 : index
    %c68 = arith.constant 68 : index
    %128 = vector.load %arg17[%c0_123, %c68] : memref<32x1024xbf16, #tpu.memory_space<vmem>>, vector<16x4xbf16>
    tpu.vector_store %arg17[%c0_123, %c68], %127 {strides = array<i32>} : memref<32x1024xbf16, #tpu.memory_space<vmem>>, vector<16x4xbf16>,
    %c66 = arith.constant 66 : index
    %c0_124 = arith.constant 0 : index
    %129 = vector.load %arg16[%c66, %c0_124] : memref<96x128xf32, #tpu.memory_space<vmem>>, vector<16x4xf32>
    %130 = arith.truncf %129 : vector<16x4xf32> to vector<16x4xbf16>
    %c16_125 = arith.constant 16 : index
    %c68_126 = arith.constant 68 : index
    %131 = vector.load %arg17[%c16_125, %c68_126] : memref<32x1024xbf16, #tpu.memory_space<vmem>>, vector<16x4xbf16>
    tpu.vector_store %arg17[%c16_125, %c68_126], %130 {strides = array<i32>} : memref<32x1024xbf16, #tpu.memory_space<vmem>>, vector<16x4xbf16>,
    %c19 = arith.constant 19 : index
    %c0_127 = arith.constant 0 : index
    %132 = vector.load %arg16[%c19, %c0_127] : memref<96x128xf32, #tpu.memory_space<vmem>>, vector<16x4xf32>
    %133 = arith.truncf %132 : vector<16x4xf32> to vector<16x4xbf16>
    %c0_128 = arith.constant 0 : index
    %c72 = arith.constant 72 : index
    %134 = vector.load %arg17[%c0_128, %c72] : memref<32x1024xbf16, #tpu.memory_space<vmem>>, vector<16x4xbf16>
    tpu.vector_store %arg17[%c0_128, %c72], %133 {strides = array<i32>} : memref<32x1024xbf16, #tpu.memory_space<vmem>>, vector<16x4xbf16>,
    %c67 = arith.constant 67 : index
    %c0_129 = arith.constant 0 : index
    %135 = vector.load %arg16[%c67, %c0_129] : memref<96x128xf32, #tpu.memory_space<vmem>>, vector<16x4xf32>
    %136 = arith.truncf %135 : vector<16x4xf32> to vector<16x4xbf16>
    %c16_130 = arith.constant 16 : index
    %c72_131 = arith.constant 72 : index
    %137 = vector.load %arg17[%c16_130, %c72_131] : memref<32x1024xbf16, #tpu.memory_space<vmem>>, vector<16x4xbf16>
    tpu.vector_store %arg17[%c16_130, %c72_131], %136 {strides = array<i32>} : memref<32x1024xbf16, #tpu.memory_space<vmem>>, vector<16x4xbf16>,
    %c20_132 = arith.constant 20 : index
    %c0_133 = arith.constant 0 : index
    %138 = vector.load %arg16[%c20_132, %c0_133] : memref<96x128xf32, #tpu.memory_space<vmem>>, vector<16x4xf32>
    %139 = arith.truncf %138 : vector<16x4xf32> to vector<16x4xbf16>
    %c0_134 = arith.constant 0 : index
    %c76 = arith.constant 76 : index
    %140 = vector.load %arg17[%c0_134, %c76] : memref<32x1024xbf16, #tpu.memory_space<vmem>>, vector<16x4xbf16>
    tpu.vector_store %arg17[%c0_134, %c76], %139 {strides = array<i32>} : memref<32x1024xbf16, #tpu.memory_space<vmem>>, vector<16x4xbf16>,
    %c68_135 = arith.constant 68 : index
    %c0_136 = arith.constant 0 : index
    %141 = vector.load %arg16[%c68_135, %c0_136] : memref<96x128xf32, #tpu.memory_space<vmem>>, vector<16x4xf32>
    %142 = arith.truncf %141 : vector<16x4xf32> to vector<16x4xbf16>
    %c16_137 = arith.constant 16 : index
    %c76_138 = arith.constant 76 : index
    %143 = vector.load %arg17[%c16_137, %c76_138] : memref<32x1024xbf16, #tpu.memory_space<vmem>>, vector<16x4xbf16>
    tpu.vector_store %arg17[%c16_137, %c76_138], %142 {strides = array<i32>} : memref<32x1024xbf16, #tpu.memory_space<vmem>>, vector<16x4xbf16>,
    %c21 = arith.constant 21 : index
    %c0_139 = arith.constant 0 : index
    %144 = vector.load %arg16[%c21, %c0_139] : memref<96x128xf32, #tpu.memory_space<vmem>>, vector<16x4xf32>
    %145 = arith.truncf %144 : vector<16x4xf32> to vector<16x4xbf16>
    %c0_140 = arith.constant 0 : index
    %c80_141 = arith.constant 80 : index
    %146 = vector.load %arg17[%c0_140, %c80_141] : memref<32x1024xbf16, #tpu.memory_space<vmem>>, vector<16x4xbf16>
    tpu.vector_store %arg17[%c0_140, %c80_141], %145 {strides = array<i32>} : memref<32x1024xbf16, #tpu.memory_space<vmem>>, vector<16x4xbf16>,
    %c69 = arith.constant 69 : index
    %c0_142 = arith.constant 0 : index
    %147 = vector.load %arg16[%c69, %c0_142] : memref<96x128xf32, #tpu.memory_space<vmem>>, vector<16x4xf32>
    %148 = arith.truncf %147 : vector<16x4xf32> to vector<16x4xbf16>
    %c16_143 = arith.constant 16 : index
    %c80_144 = arith.constant 80 : index
    %149 = vector.load %arg17[%c16_143, %c80_144] : memref<32x1024xbf16, #tpu.memory_space<vmem>>, vector<16x4xbf16>
    tpu.vector_store %arg17[%c16_143, %c80_144], %148 {strides = array<i32>} : memref<32x1024xbf16, #tpu.memory_space<vmem>>, vector<16x4xbf16>,
    %c22 = arith.constant 22 : index
    %c0_145 = arith.constant 0 : index
    %150 = vector.load %arg16[%c22, %c0_145] : memref<96x128xf32, #tpu.memory_space<vmem>>, vector<16x4xf32>
    %151 = arith.truncf %150 : vector<16x4xf32> to vector<16x4xbf16>
    %c0_146 = arith.constant 0 : index
    %c84 = arith.constant 84 : index
    %152 = vector.load %arg17[%c0_146, %c84] : memref<32x1024xbf16, #tpu.memory_space<vmem>>, vector<16x4xbf16>
    tpu.vector_store %arg17[%c0_146, %c84], %151 {strides = array<i32>} : memref<32x1024xbf16, #tpu.memory_space<vmem>>, vector<16x4xbf16>,
    %c70 = arith.constant 70 : index
    %c0_147 = arith.constant 0 : index
    %153 = vector.load %arg16[%c70, %c0_147] : memref<96x128xf32, #tpu.memory_space<vmem>>, vector<16x4xf32>
    %154 = arith.truncf %153 : vector<16x4xf32> to vector<16x4xbf16>
    %c16_148 = arith.constant 16 : index
    %c84_149 = arith.constant 84 : index
    %155 = vector.load %arg17[%c16_148, %c84_149] : memref<32x1024xbf16, #tpu.memory_space<vmem>>, vector<16x4xbf16>
    tpu.vector_store %arg17[%c16_148, %c84_149], %154 {strides = array<i32>} : memref<32x1024xbf16, #tpu.memory_space<vmem>>, vector<16x4xbf16>,
    %c23 = arith.constant 23 : index
    %c0_150 = arith.constant 0 : index
    %156 = vector.load %arg16[%c23, %c0_150] : memref<96x128xf32, #tpu.memory_space<vmem>>, vector<16x4xf32>
    %157 = arith.truncf %156 : vector<16x4xf32> to vector<16x4xbf16>
    %c0_151 = arith.constant 0 : index
    %c88 = arith.constant 88 : index
    %158 = vector.load %arg17[%c0_151, %c88] : memref<32x1024xbf16, #tpu.memory_space<vmem>>, vector<16x4xbf16>
    tpu.vector_store %arg17[%c0_151, %c88], %157 {strides = array<i32>} : memref<32x1024xbf16, #tpu.memory_space<vmem>>, vector<16x4xbf16>,
    %c71 = arith.constant 71 : index
    %c0_152 = arith.constant 0 : index
    %159 = vector.load %arg16[%c71, %c0_152] : memref<96x128xf32, #tpu.memory_space<vmem>>, vector<16x4xf32>
    %160 = arith.truncf %159 : vector<16x4xf32> to vector<16x4xbf16>
    %c16_153 = arith.constant 16 : index
    %c88_154 = arith.constant 88 : index
    %161 = vector.load %arg17[%c16_153, %c88_154] : memref<32x1024xbf16, #tpu.memory_space<vmem>>, vector<16x4xbf16>
    tpu.vector_store %arg17[%c16_153, %c88_154], %160 {strides = array<i32>} : memref<32x1024xbf16, #tpu.memory_space<vmem>>, vector<16x4xbf16>,
    %c24_155 = arith.constant 24 : index
    %c0_156 = arith.constant 0 : index
    %162 = vector.load %arg16[%c24_155, %c0_156] : memref<96x128xf32, #tpu.memory_space<vmem>>, vector<16x4xf32>
    %163 = arith.truncf %162 : vector<16x4xf32> to vector<16x4xbf16>
    %c0_157 = arith.constant 0 : index
    %c92 = arith.constant 92 : index
    %164 = vector.load %arg17[%c0_157, %c92] : memref<32x1024xbf16, #tpu.memory_space<vmem>>, vector<16x4xbf16>
    tpu.vector_store %arg17[%c0_157, %c92], %163 {strides = array<i32>} : memref<32x1024xbf16, #tpu.memory_space<vmem>>, vector<16x4xbf16>,
    %c72_158 = arith.constant 72 : index
    %c0_159 = arith.constant 0 : index
    %165 = vector.load %arg16[%c72_158, %c0_159] : memref<96x128xf32, #tpu.memory_space<vmem>>, vector<16x4xf32>
    %166 = arith.truncf %165 : vector<16x4xf32> to vector<16x4xbf16>
    %c16_160 = arith.constant 16 : index
    %c92_161 = arith.constant 92 : index
    %167 = vector.load %arg17[%c16_160, %c92_161] : memref<32x1024xbf16, #tpu.memory_space<vmem>>, vector<16x4xbf16>
    tpu.vector_store %arg17[%c16_160, %c92_161], %166 {strides = array<i32>} : memref<32x1024xbf16, #tpu.memory_space<vmem>>, vector<16x4xbf16>,
    %c25 = arith.constant 25 : index
    %c0_162 = arith.constant 0 : index
    %168 = vector.load %arg16[%c25, %c0_162] : memref<96x128xf32, #tpu.memory_space<vmem>>, vector<16x4xf32>
    %169 = arith.truncf %168 : vector<16x4xf32> to vector<16x4xbf16>
    %c0_163 = arith.constant 0 : index
    %c96 = arith.constant 96 : index
    %170 = vector.load %arg17[%c0_163, %c96] : memref<32x1024xbf16, #tpu.memory_space<vmem>>, vector<16x4xbf16>
    tpu.vector_store %arg17[%c0_163, %c96], %169 {strides = array<i32>} : memref<32x1024xbf16, #tpu.memory_space<vmem>>, vector<16x4xbf16>,
    %c73 = arith.constant 73 : index
    %c0_164 = arith.constant 0 : index
    %171 = vector.load %arg16[%c73, %c0_164] : memref<96x128xf32, #tpu.memory_space<vmem>>, vector<16x4xf32>
    %172 = arith.truncf %171 : vector<16x4xf32> to vector<16x4xbf16>
    %c16_165 = arith.constant 16 : index
    %c96_166 = arith.constant 96 : index
    %173 = vector.load %arg17[%c16_165, %c96_166] : memref<32x1024xbf16, #tpu.memory_space<vmem>>, vector<16x4xbf16>
    tpu.vector_store %arg17[%c16_165, %c96_166], %172 {strides = array<i32>} : memref<32x1024xbf16, #tpu.memory_space<vmem>>, vector<16x4xbf16>,
    %c26 = arith.constant 26 : index
    %c0_167 = arith.constant 0 : index
    %174 = vector.load %arg16[%c26, %c0_167] : memref<96x128xf32, #tpu.memory_space<vmem>>, vector<16x4xf32>
    %175 = arith.truncf %174 : vector<16x4xf32> to vector<16x4xbf16>
    %c0_168 = arith.constant 0 : index
    %c100 = arith.constant 100 : index
    %176 = vector.load %arg17[%c0_168, %c100] : memref<32x1024xbf16, #tpu.memory_space<vmem>>, vector<16x4xbf16>
    tpu.vector_store %arg17[%c0_168, %c100], %175 {strides = array<i32>} : memref<32x1024xbf16, #tpu.memory_space<vmem>>, vector<16x4xbf16>,
    %c74 = arith.constant 74 : index
    %c0_169 = arith.constant 0 : index
    %177 = vector.load %arg16[%c74, %c0_169] : memref<96x128xf32, #tpu.memory_space<vmem>>, vector<16x4xf32>
    %178 = arith.truncf %177 : vector<16x4xf32> to vector<16x4xbf16>
    %c16_170 = arith.constant 16 : index
    %c100_171 = arith.constant 100 : index
    %179 = vector.load %arg17[%c16_170, %c100_171] : memref<32x1024xbf16, #tpu.memory_space<vmem>>, vector<16x4xbf16>
    tpu.vector_store %arg17[%c16_170, %c100_171], %178 {strides = array<i32>} : memref<32x1024xbf16, #tpu.memory_space<vmem>>, vector<16x4xbf16>,
    %c27 = arith.constant 27 : index
    %c0_172 = arith.constant 0 : index
    %180 = vector.load %arg16[%c27, %c0_172] : memref<96x128xf32, #tpu.memory_space<vmem>>, vector<16x4xf32>
    %181 = arith.truncf %180 : vector<16x4xf32> to vector<16x4xbf16>
    %c0_173 = arith.constant 0 : index
    %c104 = arith.constant 104 : index
    %182 = vector.load %arg17[%c0_173, %c104] : memref<32x1024xbf16, #tpu.memory_space<vmem>>, vector<16x4xbf16>
    tpu.vector_store %arg17[%c0_173, %c104], %181 {strides = array<i32>} : memref<32x1024xbf16, #tpu.memory_space<vmem>>, vector<16x4xbf16>,
    %c75 = arith.constant 75 : index
    %c0_174 = arith.constant 0 : index
    %183 = vector.load %arg16[%c75, %c0_174] : memref<96x128xf32, #tpu.memory_space<vmem>>, vector<16x4xf32>
    %184 = arith.truncf %183 : vector<16x4xf32> to vector<16x4xbf16>
    %c16_175 = arith.constant 16 : index
    %c104_176 = arith.constant 104 : index
    %185 = vector.load %arg17[%c16_175, %c104_176] : memref<32x1024xbf16, #tpu.memory_space<vmem>>, vector<16x4xbf16>
    tpu.vector_store %arg17[%c16_175, %c104_176], %184 {strides = array<i32>} : memref<32x1024xbf16, #tpu.memory_space<vmem>>, vector<16x4xbf16>,
    %c28_177 = arith.constant 28 : index
    %c0_178 = arith.constant 0 : index
    %186 = vector.load %arg16[%c28_177, %c0_178] : memref<96x128xf32, #tpu.memory_space<vmem>>, vector<16x4xf32>
    %187 = arith.truncf %186 : vector<16x4xf32> to vector<16x4xbf16>
    %c0_179 = arith.constant 0 : index
    %c108 = arith.constant 108 : index
    %188 = vector.load %arg17[%c0_179, %c108] : memref<32x1024xbf16, #tpu.memory_space<vmem>>, vector<16x4xbf16>
    tpu.vector_store %arg17[%c0_179, %c108], %187 {strides = array<i32>} : memref<32x1024xbf16, #tpu.memory_space<vmem>>, vector<16x4xbf16>,
    %c76_180 = arith.constant 76 : index
    %c0_181 = arith.constant 0 : index
    %189 = vector.load %arg16[%c76_180, %c0_181] : memref<96x128xf32, #tpu.memory_space<vmem>>, vector<16x4xf32>
    %190 = arith.truncf %189 : vector<16x4xf32> to vector<16x4xbf16>
    %c16_182 = arith.constant 16 : index
    %c108_183 = arith.constant 108 : index
    %191 = vector.load %arg17[%c16_182, %c108_183] : memref<32x1024xbf16, #tpu.memory_space<vmem>>, vector<16x4xbf16>
    tpu.vector_store %arg17[%c16_182, %c108_183], %190 {strides = array<i32>} : memref<32x1024xbf16, #tpu.memory_space<vmem>>, vector<16x4xbf16>,
    %c29 = arith.constant 29 : index
    %c0_184 = arith.constant 0 : index
    %192 = vector.load %arg16[%c29, %c0_184] : memref<96x128xf32, #tpu.memory_space<vmem>>, vector<16x4xf32>
    %193 = arith.truncf %192 : vector<16x4xf32> to vector<16x4xbf16>
    %c0_185 = arith.constant 0 : index
    %c112 = arith.constant 112 : index
    %194 = vector.load %arg17[%c0_185, %c112] : memref<32x1024xbf16, #tpu.memory_space<vmem>>, vector<16x4xbf16>
    tpu.vector_store %arg17[%c0_185, %c112], %193 {strides = array<i32>} : memref<32x1024xbf16, #tpu.memory_space<vmem>>, vector<16x4xbf16>,
    %c77 = arith.constant 77 : index
    %c0_186 = arith.constant 0 : index
    %195 = vector.load %arg16[%c77, %c0_186] : memref<96x128xf32, #tpu.memory_space<vmem>>, vector<16x4xf32>
    %196 = arith.truncf %195 : vector<16x4xf32> to vector<16x4xbf16>
    %c16_187 = arith.constant 16 : index
    %c112_188 = arith.constant 112 : index
    %197 = vector.load %arg17[%c16_187, %c112_188] : memref<32x1024xbf16, #tpu.memory_space<vmem>>, vector<16x4xbf16>
    tpu.vector_store %arg17[%c16_187, %c112_188], %196 {strides = array<i32>} : memref<32x1024xbf16, #tpu.memory_space<vmem>>, vector<16x4xbf16>,
    %c30 = arith.constant 30 : index
    %c0_189 = arith.constant 0 : index
    %198 = vector.load %arg16[%c30, %c0_189] : memref<96x128xf32, #tpu.memory_space<vmem>>, vector<16x4xf32>
    %199 = arith.truncf %198 : vector<16x4xf32> to vector<16x4xbf16>
    %c0_190 = arith.constant 0 : index
    %c116 = arith.constant 116 : index
    %200 = vector.load %arg17[%c0_190, %c116] : memref<32x1024xbf16, #tpu.memory_space<vmem>>, vector<16x4xbf16>
    tpu.vector_store %arg17[%c0_190, %c116], %199 {strides = array<i32>} : memref<32x1024xbf16, #tpu.memory_space<vmem>>, vector<16x4xbf16>,
    %c78 = arith.constant 78 : index
    %c0_191 = arith.constant 0 : index
    %201 = vector.load %arg16[%c78, %c0_191] : memref<96x128xf32, #tpu.memory_space<vmem>>, vector<16x4xf32>
    %202 = arith.truncf %201 : vector<16x4xf32> to vector<16x4xbf16>
    %c16_192 = arith.constant 16 : index
    %c116_193 = arith.constant 116 : index
    %203 = vector.load %arg17[%c16_192, %c116_193] : memref<32x1024xbf16, #tpu.memory_space<vmem>>, vector<16x4xbf16>
    tpu.vector_store %arg17[%c16_192, %c116_193], %202 {strides = array<i32>} : memref<32x1024xbf16, #tpu.memory_space<vmem>>, vector<16x4xbf16>,
    %c31 = arith.constant 31 : index
    %c0_194 = arith.constant 0 : index
    %204 = vector.load %arg16[%c31, %c0_194] : memref<96x128xf32, #tpu.memory_space<vmem>>, vector<16x4xf32>
    %205 = arith.truncf %204 : vector<16x4xf32> to vector<16x4xbf16>
    %c0_195 = arith.constant 0 : index
    %c120 = arith.constant 120 : index
    %206 = vector.load %arg17[%c0_195, %c120] : memref<32x1024xbf16, #tpu.memory_space<vmem>>, vector<16x4xbf16>
    tpu.vector_store %arg17[%c0_195, %c120], %205 {strides = array<i32>} : memref<32x1024xbf16, #tpu.memory_space<vmem>>, vector<16x4xbf16>,
    %c79 = arith.constant 79 : index
    %c0_196 = arith.constant 0 : index
    %207 = vector.load %arg16[%c79, %c0_196] : memref<96x128xf32, #tpu.memory_space<vmem>>, vector<16x4xf32>
    %208 = arith.truncf %207 : vector<16x4xf32> to vector<16x4xbf16>
    %c16_197 = arith.constant 16 : index
    %c120_198 = arith.constant 120 : index
    %209 = vector.load %arg17[%c16_197, %c120_198] : memref<32x1024xbf16, #tpu.memory_space<vmem>>, vector<16x4xbf16>
    tpu.vector_store %arg17[%c16_197, %c120_198], %208 {strides = array<i32>} : memref<32x1024xbf16, #tpu.memory_space<vmem>>, vector<16x4xbf16>,
    %c32_199 = arith.constant 32 : index
    %c0_200 = arith.constant 0 : index
    %210 = vector.load %arg16[%c32_199, %c0_200] : memref<96x128xf32, #tpu.memory_space<vmem>>, vector<16x4xf32>
    %211 = arith.truncf %210 : vector<16x4xf32> to vector<16x4xbf16>
    %c0_201 = arith.constant 0 : index
    %c124 = arith.constant 124 : index
    %212 = vector.load %arg17[%c0_201, %c124] : memref<32x1024xbf16, #tpu.memory_space<vmem>>, vector<16x4xbf16>
    tpu.vector_store %arg17[%c0_201, %c124], %211 {strides = array<i32>} : memref<32x1024xbf16, #tpu.memory_space<vmem>>, vector<16x4xbf16>,
    %c80_202 = arith.constant 80 : index
    %c0_203 = arith.constant 0 : index
    %213 = vector.load %arg16[%c80_202, %c0_203] : memref<96x128xf32, #tpu.memory_space<vmem>>, vector<16x4xf32>
    %214 = arith.truncf %213 : vector<16x4xf32> to vector<16x4xbf16>
    %c16_204 = arith.constant 16 : index
    %c124_205 = arith.constant 124 : index
    %215 = vector.load %arg17[%c16_204, %c124_205] : memref<32x1024xbf16, #tpu.memory_space<vmem>>, vector<16x4xbf16>
    tpu.vector_store %arg17[%c16_204, %c124_205], %214 {strides = array<i32>} : memref<32x1024xbf16, #tpu.memory_space<vmem>>, vector<16x4xbf16>,
    %c0_206 = arith.constant 0 : index
    %c0_207 = arith.constant 0 : index
    %216 = vector.load %arg17[%c0_206, %c0_207] : memref<32x1024xbf16, #tpu.memory_space<vmem>>, vector<32x128xbf16>
    %c0_208 = arith.constant 0 : index
    %c0_209 = arith.constant 0 : index
    %217 = vector.load %arg2[%c0_208, %c0_209] : memref<128x32xbf16, #tpu.memory_space<vmem>>, vector<128x32xbf16>
    %cst_210 = arith.constant dense<0.000000e+00> : vector<32x32xf32>
    %218 = tpu.matmul %216, %217, %cst_210 {dimension_numbers = #tpu.dot_dimension_numbers<[1], [0], [0], [1], [0, 0, 1, 1], [], []>} : vector<32x128xbf16>, vector<128x32xbf16>, vector<32x32xf32> -> vector<32x32xf32>
    %219 = vector.broadcast %3 : vector<1x32xf32> to vector<32x32xf32>
    %220 = arith.addf %218, %219 : vector<32x32xf32>
    %221 = vector.broadcast %4 : vector<1x32xf32> to vector<32x32xf32>
    %222 = arith.mulf %220, %221 : vector<32x32xf32>
    %223 = vector.broadcast %5 : vector<1x32xf32> to vector<32x32xf32>
    %224 = arith.addf %222, %223 : vector<32x32xf32>
    %cst_211 = arith.constant 0.000000e+00 : f32
    %225 = vector.broadcast %cst_211 : f32 to vector<32x32xf32>
    %226 = arith.maximumf %224, %225 : vector<32x32xf32>
    %cst_212 = arith.constant 0.000000e+00 : f32
    %227 = vector.broadcast %cst_212 : f32 to vector<16x32xf32>
    %cst_213 = arith.constant 0.000000e+00 : f32
    %228 = vector.broadcast %cst_213 : f32 to vector<16x32xf32>
    %c0_214 = arith.constant 0 : index
    %c0_215 = arith.constant 0 : index
    %229 = vector.load %arg16[%c0_214, %c0_215] : memref<96x128xf32, #tpu.memory_space<vmem>>, vector<16x32xf32>
    tpu.vector_store %arg16[%c0_214, %c0_215], %227 {strides = array<i32>} : memref<96x128xf32, #tpu.memory_space<vmem>>, vector<16x32xf32>,
    %c32_216 = arith.constant 32 : index
    %c0_217 = arith.constant 0 : index
    %230 = vector.load %arg16[%c32_216, %c0_217] : memref<96x128xf32, #tpu.memory_space<vmem>>, vector<16x32xf32>
    tpu.vector_store %arg16[%c32_216, %c0_217], %228 {strides = array<i32>} : memref<96x128xf32, #tpu.memory_space<vmem>>, vector<16x32xf32>,
    %231 = vector.extract_strided_slice %226 {offsets = [0, 0], sizes = [16, 32], strides = [1, 1]} : vector<32x32xf32> to vector<16x32xf32>
    %c16_218 = arith.constant 16 : index
    %c0_219 = arith.constant 0 : index
    %232 = vector.load %arg16[%c16_218, %c0_219] : memref<96x128xf32, #tpu.memory_space<vmem>>, vector<16x32xf32>
    tpu.vector_store %arg16[%c16_218, %c0_219], %231 {strides = array<i32>} : memref<96x128xf32, #tpu.memory_space<vmem>>, vector<16x32xf32>,
    %c48_220 = arith.constant 48 : index
    %c0_221 = arith.constant 0 : index
    %233 = vector.load %arg16[%c48_220, %c0_221] : memref<96x128xf32, #tpu.memory_space<vmem>>, vector<16x32xf32>
    tpu.vector_store %arg16[%c48_220, %c0_221], %227 {strides = array<i32>} : memref<96x128xf32, #tpu.memory_space<vmem>>, vector<16x32xf32>,
    %c80_222 = arith.constant 80 : index
    %c0_223 = arith.constant 0 : index
    %234 = vector.load %arg16[%c80_222, %c0_223] : memref<96x128xf32, #tpu.memory_space<vmem>>, vector<16x32xf32>
    tpu.vector_store %arg16[%c80_222, %c0_223], %228 {strides = array<i32>} : memref<96x128xf32, #tpu.memory_space<vmem>>, vector<16x32xf32>,
    %235 = vector.extract_strided_slice %226 {offsets = [16, 0], sizes = [16, 32], strides = [1, 1]} : vector<32x32xf32> to vector<16x32xf32>
    %c64_224 = arith.constant 64 : index
    %c0_225 = arith.constant 0 : index
    %236 = vector.load %arg16[%c64_224, %c0_225] : memref<96x128xf32, #tpu.memory_space<vmem>>, vector<16x32xf32>
    tpu.vector_store %arg16[%c64_224, %c0_225], %235 {strides = array<i32>} : memref<96x128xf32, #tpu.memory_space<vmem>>, vector<16x32xf32>,
    %c1_226 = arith.constant 1 : index
    %c0_227 = arith.constant 0 : index
    %237 = vector.load %arg16[%c1_226, %c0_227] : memref<96x128xf32, #tpu.memory_space<vmem>>, vector<16x32xf32>
    %238 = arith.truncf %237 : vector<16x32xf32> to vector<16x32xbf16>
    %c0_228 = arith.constant 0 : index
    %c0_229 = arith.constant 0 : index
    %239 = vector.load %arg17[%c0_228, %c0_229] : memref<32x1024xbf16, #tpu.memory_space<vmem>>, vector<16x32xbf16>
    tpu.vector_store %arg17[%c0_228, %c0_229], %238 {strides = array<i32>} : memref<32x1024xbf16, #tpu.memory_space<vmem>>, vector<16x32xbf16>,
    %c49_230 = arith.constant 49 : index
    %c0_231 = arith.constant 0 : index
    %240 = vector.load %arg16[%c49_230, %c0_231] : memref<96x128xf32, #tpu.memory_space<vmem>>, vector<16x32xf32>
    %241 = arith.truncf %240 : vector<16x32xf32> to vector<16x32xbf16>
    %c16_232 = arith.constant 16 : index
    %c0_233 = arith.constant 0 : index
    %242 = vector.load %arg17[%c16_232, %c0_233] : memref<32x1024xbf16, #tpu.memory_space<vmem>>, vector<16x32xbf16>
    tpu.vector_store %arg17[%c16_232, %c0_233], %241 {strides = array<i32>} : memref<32x1024xbf16, #tpu.memory_space<vmem>>, vector<16x32xbf16>,
    %c2_234 = arith.constant 2 : index
    %c0_235 = arith.constant 0 : index
    %243 = vector.load %arg16[%c2_234, %c0_235] : memref<96x128xf32, #tpu.memory_space<vmem>>, vector<16x32xf32>
    %244 = arith.truncf %243 : vector<16x32xf32> to vector<16x32xbf16>
    %c0_236 = arith.constant 0 : index
    %c32_237 = arith.constant 32 : index
    %245 = vector.load %arg17[%c0_236, %c32_237] : memref<32x1024xbf16, #tpu.memory_space<vmem>>, vector<16x32xbf16>
    tpu.vector_store %arg17[%c0_236, %c32_237], %244 {strides = array<i32>} : memref<32x1024xbf16, #tpu.memory_space<vmem>>, vector<16x32xbf16>,
    %c50_238 = arith.constant 50 : index
    %c0_239 = arith.constant 0 : index
    %246 = vector.load %arg16[%c50_238, %c0_239] : memref<96x128xf32, #tpu.memory_space<vmem>>, vector<16x32xf32>
    %247 = arith.truncf %246 : vector<16x32xf32> to vector<16x32xbf16>
    %c16_240 = arith.constant 16 : index
    %c32_241 = arith.constant 32 : index
    %248 = vector.load %arg17[%c16_240, %c32_241] : memref<32x1024xbf16, #tpu.memory_space<vmem>>, vector<16x32xbf16>
    tpu.vector_store %arg17[%c16_240, %c32_241], %247 {strides = array<i32>} : memref<32x1024xbf16, #tpu.memory_space<vmem>>, vector<16x32xbf16>,
    %c3_242 = arith.constant 3 : index
    %c0_243 = arith.constant 0 : index
    %249 = vector.load %arg16[%c3_242, %c0_243] : memref<96x128xf32, #tpu.memory_space<vmem>>, vector<16x32xf32>
    %250 = arith.truncf %249 : vector<16x32xf32> to vector<16x32xbf16>
    %c0_244 = arith.constant 0 : index
    %c64_245 = arith.constant 64 : index
    %251 = vector.load %arg17[%c0_244, %c64_245] : memref<32x1024xbf16, #tpu.memory_space<vmem>>, vector<16x32xbf16>
    tpu.vector_store %arg17[%c0_244, %c64_245], %250 {strides = array<i32>} : memref<32x1024xbf16, #tpu.memory_space<vmem>>, vector<16x32xbf16>,
    %c51_246 = arith.constant 51 : index
    %c0_247 = arith.constant 0 : index
    %252 = vector.load %arg16[%c51_246, %c0_247] : memref<96x128xf32, #tpu.memory_space<vmem>>, vector<16x32xf32>
    %253 = arith.truncf %252 : vector<16x32xf32> to vector<16x32xbf16>
    %c16_248 = arith.constant 16 : index
    %c64_249 = arith.constant 64 : index
    %254 = vector.load %arg17[%c16_248, %c64_249] : memref<32x1024xbf16, #tpu.memory_space<vmem>>, vector<16x32xbf16>
    tpu.vector_store %arg17[%c16_248, %c64_249], %253 {strides = array<i32>} : memref<32x1024xbf16, #tpu.memory_space<vmem>>, vector<16x32xbf16>,
    %c4_250 = arith.constant 4 : index
    %c0_251 = arith.constant 0 : index
    %255 = vector.load %arg16[%c4_250, %c0_251] : memref<96x128xf32, #tpu.memory_space<vmem>>, vector<16x32xf32>
    %256 = arith.truncf %255 : vector<16x32xf32> to vector<16x32xbf16>
    %c0_252 = arith.constant 0 : index
    %c96_253 = arith.constant 96 : index
    %257 = vector.load %arg17[%c0_252, %c96_253] : memref<32x1024xbf16, #tpu.memory_space<vmem>>, vector<16x32xbf16>
    tpu.vector_store %arg17[%c0_252, %c96_253], %256 {strides = array<i32>} : memref<32x1024xbf16, #tpu.memory_space<vmem>>, vector<16x32xbf16>,
    %c52_254 = arith.constant 52 : index
    %c0_255 = arith.constant 0 : index
    %258 = vector.load %arg16[%c52_254, %c0_255] : memref<96x128xf32, #tpu.memory_space<vmem>>, vector<16x32xf32>
    %259 = arith.truncf %258 : vector<16x32xf32> to vector<16x32xbf16>
    %c16_256 = arith.constant 16 : index
    %c96_257 = arith.constant 96 : index
    %260 = vector.load %arg17[%c16_256, %c96_257] : memref<32x1024xbf16, #tpu.memory_space<vmem>>, vector<16x32xbf16>
    tpu.vector_store %arg17[%c16_256, %c96_257], %259 {strides = array<i32>} : memref<32x1024xbf16, #tpu.memory_space<vmem>>, vector<16x32xbf16>,
    %c5_258 = arith.constant 5 : index
    %c0_259 = arith.constant 0 : index
    %261 = vector.load %arg16[%c5_258, %c0_259] : memref<96x128xf32, #tpu.memory_space<vmem>>, vector<16x32xf32>
    %262 = arith.truncf %261 : vector<16x32xf32> to vector<16x32xbf16>
    %c0_260 = arith.constant 0 : index
    %c128 = arith.constant 128 : index
    %263 = vector.load %arg17[%c0_260, %c128] : memref<32x1024xbf16, #tpu.memory_space<vmem>>, vector<16x32xbf16>
    tpu.vector_store %arg17[%c0_260, %c128], %262 {strides = array<i32>} : memref<32x1024xbf16, #tpu.memory_space<vmem>>, vector<16x32xbf16>,
    %c53_261 = arith.constant 53 : index
    %c0_262 = arith.constant 0 : index
    %264 = vector.load %arg16[%c53_261, %c0_262] : memref<96x128xf32, #tpu.memory_space<vmem>>, vector<16x32xf32>
    %265 = arith.truncf %264 : vector<16x32xf32> to vector<16x32xbf16>
    %c16_263 = arith.constant 16 : index
    %c128_264 = arith.constant 128 : index
    %266 = vector.load %arg17[%c16_263, %c128_264] : memref<32x1024xbf16, #tpu.memory_space<vmem>>, vector<16x32xbf16>
    tpu.vector_store %arg17[%c16_263, %c128_264], %265 {strides = array<i32>} : memref<32x1024xbf16, #tpu.memory_space<vmem>>, vector<16x32xbf16>,
    %c6_265 = arith.constant 6 : index
    %c0_266 = arith.constant 0 : index
    %267 = vector.load %arg16[%c6_265, %c0_266] : memref<96x128xf32, #tpu.memory_space<vmem>>, vector<16x32xf32>
    %268 = arith.truncf %267 : vector<16x32xf32> to vector<16x32xbf16>
    %c0_267 = arith.constant 0 : index
    %c160 = arith.constant 160 : index
    %269 = vector.load %arg17[%c0_267, %c160] : memref<32x1024xbf16, #tpu.memory_space<vmem>>, vector<16x32xbf16>
    tpu.vector_store %arg17[%c0_267, %c160], %268 {strides = array<i32>} : memref<32x1024xbf16, #tpu.memory_space<vmem>>, vector<16x32xbf16>,
    %c54_268 = arith.constant 54 : index
    %c0_269 = arith.constant 0 : index
    %270 = vector.load %arg16[%c54_268, %c0_269] : memref<96x128xf32, #tpu.memory_space<vmem>>, vector<16x32xf32>
    %271 = arith.truncf %270 : vector<16x32xf32> to vector<16x32xbf16>
    %c16_270 = arith.constant 16 : index
    %c160_271 = arith.constant 160 : index
    %272 = vector.load %arg17[%c16_270, %c160_271] : memref<32x1024xbf16, #tpu.memory_space<vmem>>, vector<16x32xbf16>
    tpu.vector_store %arg17[%c16_270, %c160_271], %271 {strides = array<i32>} : memref<32x1024xbf16, #tpu.memory_space<vmem>>, vector<16x32xbf16>,
    %c7_272 = arith.constant 7 : index
    %c0_273 = arith.constant 0 : index
    %273 = vector.load %arg16[%c7_272, %c0_273] : memref<96x128xf32, #tpu.memory_space<vmem>>, vector<16x32xf32>
    %274 = arith.truncf %273 : vector<16x32xf32> to vector<16x32xbf16>
    %c0_274 = arith.constant 0 : index
    %c192 = arith.constant 192 : index
    %275 = vector.load %arg17[%c0_274, %c192] : memref<32x1024xbf16, #tpu.memory_space<vmem>>, vector<16x32xbf16>
    tpu.vector_store %arg17[%c0_274, %c192], %274 {strides = array<i32>} : memref<32x1024xbf16, #tpu.memory_space<vmem>>, vector<16x32xbf16>,
    %c55_275 = arith.constant 55 : index
    %c0_276 = arith.constant 0 : index
    %276 = vector.load %arg16[%c55_275, %c0_276] : memref<96x128xf32, #tpu.memory_space<vmem>>, vector<16x32xf32>
    %277 = arith.truncf %276 : vector<16x32xf32> to vector<16x32xbf16>
    %c16_277 = arith.constant 16 : index
    %c192_278 = arith.constant 192 : index
    %278 = vector.load %arg17[%c16_277, %c192_278] : memref<32x1024xbf16, #tpu.memory_space<vmem>>, vector<16x32xbf16>
    tpu.vector_store %arg17[%c16_277, %c192_278], %277 {strides = array<i32>} : memref<32x1024xbf16, #tpu.memory_space<vmem>>, vector<16x32xbf16>,
    %c8_279 = arith.constant 8 : index
    %c0_280 = arith.constant 0 : index
    %279 = vector.load %arg16[%c8_279, %c0_280] : memref<96x128xf32, #tpu.memory_space<vmem>>, vector<16x32xf32>
    %280 = arith.truncf %279 : vector<16x32xf32> to vector<16x32xbf16>
    %c0_281 = arith.constant 0 : index
    %c224 = arith.constant 224 : index
    %281 = vector.load %arg17[%c0_281, %c224] : memref<32x1024xbf16, #tpu.memory_space<vmem>>, vector<16x32xbf16>
    tpu.vector_store %arg17[%c0_281, %c224], %280 {strides = array<i32>} : memref<32x1024xbf16, #tpu.memory_space<vmem>>, vector<16x32xbf16>,
    %c56_282 = arith.constant 56 : index
    %c0_283 = arith.constant 0 : index
    %282 = vector.load %arg16[%c56_282, %c0_283] : memref<96x128xf32, #tpu.memory_space<vmem>>, vector<16x32xf32>
    %283 = arith.truncf %282 : vector<16x32xf32> to vector<16x32xbf16>
    %c16_284 = arith.constant 16 : index
    %c224_285 = arith.constant 224 : index
    %284 = vector.load %arg17[%c16_284, %c224_285] : memref<32x1024xbf16, #tpu.memory_space<vmem>>, vector<16x32xbf16>
    tpu.vector_store %arg17[%c16_284, %c224_285], %283 {strides = array<i32>} : memref<32x1024xbf16, #tpu.memory_space<vmem>>, vector<16x32xbf16>,
    %c9_286 = arith.constant 9 : index
    %c0_287 = arith.constant 0 : index
    %285 = vector.load %arg16[%c9_286, %c0_287] : memref<96x128xf32, #tpu.memory_space<vmem>>, vector<16x32xf32>
    %286 = arith.truncf %285 : vector<16x32xf32> to vector<16x32xbf16>
    %c0_288 = arith.constant 0 : index
    %c256 = arith.constant 256 : index
    %287 = vector.load %arg17[%c0_288, %c256] : memref<32x1024xbf16, #tpu.memory_space<vmem>>, vector<16x32xbf16>
    tpu.vector_store %arg17[%c0_288, %c256], %286 {strides = array<i32>} : memref<32x1024xbf16, #tpu.memory_space<vmem>>, vector<16x32xbf16>,
    %c57_289 = arith.constant 57 : index
    %c0_290 = arith.constant 0 : index
    %288 = vector.load %arg16[%c57_289, %c0_290] : memref<96x128xf32, #tpu.memory_space<vmem>>, vector<16x32xf32>
    %289 = arith.truncf %288 : vector<16x32xf32> to vector<16x32xbf16>
    %c16_291 = arith.constant 16 : index
    %c256_292 = arith.constant 256 : index
    %290 = vector.load %arg17[%c16_291, %c256_292] : memref<32x1024xbf16, #tpu.memory_space<vmem>>, vector<16x32xbf16>
    tpu.vector_store %arg17[%c16_291, %c256_292], %289 {strides = array<i32>} : memref<32x1024xbf16, #tpu.memory_space<vmem>>, vector<16x32xbf16>,
    %c10_293 = arith.constant 10 : index
    %c0_294 = arith.constant 0 : index
    %291 = vector.load %arg16[%c10_293, %c0_294] : memref<96x128xf32, #tpu.memory_space<vmem>>, vector<16x32xf32>
    %292 = arith.truncf %291 : vector<16x32xf32> to vector<16x32xbf16>
    %c0_295 = arith.constant 0 : index
    %c288 = arith.constant 288 : index
    %293 = vector.load %arg17[%c0_295, %c288] : memref<32x1024xbf16, #tpu.memory_space<vmem>>, vector<16x32xbf16>
    tpu.vector_store %arg17[%c0_295, %c288], %292 {strides = array<i32>} : memref<32x1024xbf16, #tpu.memory_space<vmem>>, vector<16x32xbf16>,
    %c58_296 = arith.constant 58 : index
    %c0_297 = arith.constant 0 : index
    %294 = vector.load %arg16[%c58_296, %c0_297] : memref<96x128xf32, #tpu.memory_space<vmem>>, vector<16x32xf32>
    %295 = arith.truncf %294 : vector<16x32xf32> to vector<16x32xbf16>
    %c16_298 = arith.constant 16 : index
    %c288_299 = arith.constant 288 : index
    %296 = vector.load %arg17[%c16_298, %c288_299] : memref<32x1024xbf16, #tpu.memory_space<vmem>>, vector<16x32xbf16>
    tpu.vector_store %arg17[%c16_298, %c288_299], %295 {strides = array<i32>} : memref<32x1024xbf16, #tpu.memory_space<vmem>>, vector<16x32xbf16>,
    %c11_300 = arith.constant 11 : index
    %c0_301 = arith.constant 0 : index
    %297 = vector.load %arg16[%c11_300, %c0_301] : memref<96x128xf32, #tpu.memory_space<vmem>>, vector<16x32xf32>
    %298 = arith.truncf %297 : vector<16x32xf32> to vector<16x32xbf16>
    %c0_302 = arith.constant 0 : index
    %c320 = arith.constant 320 : index
    %299 = vector.load %arg17[%c0_302, %c320] : memref<32x1024xbf16, #tpu.memory_space<vmem>>, vector<16x32xbf16>
    tpu.vector_store %arg17[%c0_302, %c320], %298 {strides = array<i32>} : memref<32x1024xbf16, #tpu.memory_space<vmem>>, vector<16x32xbf16>,
    %c59_303 = arith.constant 59 : index
    %c0_304 = arith.constant 0 : index
    %300 = vector.load %arg16[%c59_303, %c0_304] : memref<96x128xf32, #tpu.memory_space<vmem>>, vector<16x32xf32>
    %301 = arith.truncf %300 : vector<16x32xf32> to vector<16x32xbf16>
    %c16_305 = arith.constant 16 : index
    %c320_306 = arith.constant 320 : index
    %302 = vector.load %arg17[%c16_305, %c320_306] : memref<32x1024xbf16, #tpu.memory_space<vmem>>, vector<16x32xbf16>
    tpu.vector_store %arg17[%c16_305, %c320_306], %301 {strides = array<i32>} : memref<32x1024xbf16, #tpu.memory_space<vmem>>, vector<16x32xbf16>,
    %c12_307 = arith.constant 12 : index
    %c0_308 = arith.constant 0 : index
    %303 = vector.load %arg16[%c12_307, %c0_308] : memref<96x128xf32, #tpu.memory_space<vmem>>, vector<16x32xf32>
    %304 = arith.truncf %303 : vector<16x32xf32> to vector<16x32xbf16>
    %c0_309 = arith.constant 0 : index
    %c352 = arith.constant 352 : index
    %305 = vector.load %arg17[%c0_309, %c352] : memref<32x1024xbf16, #tpu.memory_space<vmem>>, vector<16x32xbf16>
    tpu.vector_store %arg17[%c0_309, %c352], %304 {strides = array<i32>} : memref<32x1024xbf16, #tpu.memory_space<vmem>>, vector<16x32xbf16>,
    %c60_310 = arith.constant 60 : index
    %c0_311 = arith.constant 0 : index
    %306 = vector.load %arg16[%c60_310, %c0_311] : memref<96x128xf32, #tpu.memory_space<vmem>>, vector<16x32xf32>
    %307 = arith.truncf %306 : vector<16x32xf32> to vector<16x32xbf16>
    %c16_312 = arith.constant 16 : index
    %c352_313 = arith.constant 352 : index
    %308 = vector.load %arg17[%c16_312, %c352_313] : memref<32x1024xbf16, #tpu.memory_space<vmem>>, vector<16x32xbf16>
    tpu.vector_store %arg17[%c16_312, %c352_313], %307 {strides = array<i32>} : memref<32x1024xbf16, #tpu.memory_space<vmem>>, vector<16x32xbf16>,
    %c13_314 = arith.constant 13 : index
    %c0_315 = arith.constant 0 : index
    %309 = vector.load %arg16[%c13_314, %c0_315] : memref<96x128xf32, #tpu.memory_space<vmem>>, vector<16x32xf32>
    %310 = arith.truncf %309 : vector<16x32xf32> to vector<16x32xbf16>
    %c0_316 = arith.constant 0 : index
    %c384 = arith.constant 384 : index
    %311 = vector.load %arg17[%c0_316, %c384] : memref<32x1024xbf16, #tpu.memory_space<vmem>>, vector<16x32xbf16>
    tpu.vector_store %arg17[%c0_316, %c384], %310 {strides = array<i32>} : memref<32x1024xbf16, #tpu.memory_space<vmem>>, vector<16x32xbf16>,
    %c61_317 = arith.constant 61 : index
    %c0_318 = arith.constant 0 : index
    %312 = vector.load %arg16[%c61_317, %c0_318] : memref<96x128xf32, #tpu.memory_space<vmem>>, vector<16x32xf32>
    %313 = arith.truncf %312 : vector<16x32xf32> to vector<16x32xbf16>
    %c16_319 = arith.constant 16 : index
    %c384_320 = arith.constant 384 : index
    %314 = vector.load %arg17[%c16_319, %c384_320] : memref<32x1024xbf16, #tpu.memory_space<vmem>>, vector<16x32xbf16>
    tpu.vector_store %arg17[%c16_319, %c384_320], %313 {strides = array<i32>} : memref<32x1024xbf16, #tpu.memory_space<vmem>>, vector<16x32xbf16>,
    %c14_321 = arith.constant 14 : index
    %c0_322 = arith.constant 0 : index
    %315 = vector.load %arg16[%c14_321, %c0_322] : memref<96x128xf32, #tpu.memory_space<vmem>>, vector<16x32xf32>
    %316 = arith.truncf %315 : vector<16x32xf32> to vector<16x32xbf16>
    %c0_323 = arith.constant 0 : index
    %c416 = arith.constant 416 : index
    %317 = vector.load %arg17[%c0_323, %c416] : memref<32x1024xbf16, #tpu.memory_space<vmem>>, vector<16x32xbf16>
    tpu.vector_store %arg17[%c0_323, %c416], %316 {strides = array<i32>} : memref<32x1024xbf16, #tpu.memory_space<vmem>>, vector<16x32xbf16>,
    %c62_324 = arith.constant 62 : index
    %c0_325 = arith.constant 0 : index
    %318 = vector.load %arg16[%c62_324, %c0_325] : memref<96x128xf32, #tpu.memory_space<vmem>>, vector<16x32xf32>
    %319 = arith.truncf %318 : vector<16x32xf32> to vector<16x32xbf16>
    %c16_326 = arith.constant 16 : index
    %c416_327 = arith.constant 416 : index
    %320 = vector.load %arg17[%c16_326, %c416_327] : memref<32x1024xbf16, #tpu.memory_space<vmem>>, vector<16x32xbf16>
    tpu.vector_store %arg17[%c16_326, %c416_327], %319 {strides = array<i32>} : memref<32x1024xbf16, #tpu.memory_space<vmem>>, vector<16x32xbf16>,
    %c15_328 = arith.constant 15 : index
    %c0_329 = arith.constant 0 : index
    %321 = vector.load %arg16[%c15_328, %c0_329] : memref<96x128xf32, #tpu.memory_space<vmem>>, vector<16x32xf32>
    %322 = arith.truncf %321 : vector<16x32xf32> to vector<16x32xbf16>
    %c0_330 = arith.constant 0 : index
    %c448 = arith.constant 448 : index
    %323 = vector.load %arg17[%c0_330, %c448] : memref<32x1024xbf16, #tpu.memory_space<vmem>>, vector<16x32xbf16>
    tpu.vector_store %arg17[%c0_330, %c448], %322 {strides = array<i32>} : memref<32x1024xbf16, #tpu.memory_space<vmem>>, vector<16x32xbf16>,
    %c63_331 = arith.constant 63 : index
    %c0_332 = arith.constant 0 : index
    %324 = vector.load %arg16[%c63_331, %c0_332] : memref<96x128xf32, #tpu.memory_space<vmem>>, vector<16x32xf32>
    %325 = arith.truncf %324 : vector<16x32xf32> to vector<16x32xbf16>
    %c16_333 = arith.constant 16 : index
    %c448_334 = arith.constant 448 : index
    %326 = vector.load %arg17[%c16_333, %c448_334] : memref<32x1024xbf16, #tpu.memory_space<vmem>>, vector<16x32xbf16>
    tpu.vector_store %arg17[%c16_333, %c448_334], %325 {strides = array<i32>} : memref<32x1024xbf16, #tpu.memory_space<vmem>>, vector<16x32xbf16>,
    %c16_335 = arith.constant 16 : index
    %c0_336 = arith.constant 0 : index
    %327 = vector.load %arg16[%c16_335, %c0_336] : memref<96x128xf32, #tpu.memory_space<vmem>>, vector<16x32xf32>
    %328 = arith.truncf %327 : vector<16x32xf32> to vector<16x32xbf16>
    %c0_337 = arith.constant 0 : index
    %c480 = arith.constant 480 : index
    %329 = vector.load %arg17[%c0_337, %c480] : memref<32x1024xbf16, #tpu.memory_space<vmem>>, vector<16x32xbf16>
    tpu.vector_store %arg17[%c0_337, %c480], %328 {strides = array<i32>} : memref<32x1024xbf16, #tpu.memory_space<vmem>>, vector<16x32xbf16>,
    %c64_338 = arith.constant 64 : index
    %c0_339 = arith.constant 0 : index
    %330 = vector.load %arg16[%c64_338, %c0_339] : memref<96x128xf32, #tpu.memory_space<vmem>>, vector<16x32xf32>
    %331 = arith.truncf %330 : vector<16x32xf32> to vector<16x32xbf16>
    %c16_340 = arith.constant 16 : index
    %c480_341 = arith.constant 480 : index
    %332 = vector.load %arg17[%c16_340, %c480_341] : memref<32x1024xbf16, #tpu.memory_space<vmem>>, vector<16x32xbf16>
    tpu.vector_store %arg17[%c16_340, %c480_341], %331 {strides = array<i32>} : memref<32x1024xbf16, #tpu.memory_space<vmem>>, vector<16x32xbf16>,
    %c17_342 = arith.constant 17 : index
    %c0_343 = arith.constant 0 : index
    %333 = vector.load %arg16[%c17_342, %c0_343] : memref<96x128xf32, #tpu.memory_space<vmem>>, vector<16x32xf32>
    %334 = arith.truncf %333 : vector<16x32xf32> to vector<16x32xbf16>
    %c0_344 = arith.constant 0 : index
    %c512 = arith.constant 512 : index
    %335 = vector.load %arg17[%c0_344, %c512] : memref<32x1024xbf16, #tpu.memory_space<vmem>>, vector<16x32xbf16>
    tpu.vector_store %arg17[%c0_344, %c512], %334 {strides = array<i32>} : memref<32x1024xbf16, #tpu.memory_space<vmem>>, vector<16x32xbf16>,
    %c65_345 = arith.constant 65 : index
    %c0_346 = arith.constant 0 : index
    %336 = vector.load %arg16[%c65_345, %c0_346] : memref<96x128xf32, #tpu.memory_space<vmem>>, vector<16x32xf32>
    %337 = arith.truncf %336 : vector<16x32xf32> to vector<16x32xbf16>
    %c16_347 = arith.constant 16 : index
    %c512_348 = arith.constant 512 : index
    %338 = vector.load %arg17[%c16_347, %c512_348] : memref<32x1024xbf16, #tpu.memory_space<vmem>>, vector<16x32xbf16>
    tpu.vector_store %arg17[%c16_347, %c512_348], %337 {strides = array<i32>} : memref<32x1024xbf16, #tpu.memory_space<vmem>>, vector<16x32xbf16>,
    %c18_349 = arith.constant 18 : index
    %c0_350 = arith.constant 0 : index
    %339 = vector.load %arg16[%c18_349, %c0_350] : memref<96x128xf32, #tpu.memory_space<vmem>>, vector<16x32xf32>
    %340 = arith.truncf %339 : vector<16x32xf32> to vector<16x32xbf16>
    %c0_351 = arith.constant 0 : index
    %c544 = arith.constant 544 : index
    %341 = vector.load %arg17[%c0_351, %c544] : memref<32x1024xbf16, #tpu.memory_space<vmem>>, vector<16x32xbf16>
    tpu.vector_store %arg17[%c0_351, %c544], %340 {strides = array<i32>} : memref<32x1024xbf16, #tpu.memory_space<vmem>>, vector<16x32xbf16>,
    %c66_352 = arith.constant 66 : index
    %c0_353 = arith.constant 0 : index
    %342 = vector.load %arg16[%c66_352, %c0_353] : memref<96x128xf32, #tpu.memory_space<vmem>>, vector<16x32xf32>
    %343 = arith.truncf %342 : vector<16x32xf32> to vector<16x32xbf16>
    %c16_354 = arith.constant 16 : index
    %c544_355 = arith.constant 544 : index
    %344 = vector.load %arg17[%c16_354, %c544_355] : memref<32x1024xbf16, #tpu.memory_space<vmem>>, vector<16x32xbf16>
    tpu.vector_store %arg17[%c16_354, %c544_355], %343 {strides = array<i32>} : memref<32x1024xbf16, #tpu.memory_space<vmem>>, vector<16x32xbf16>,
    %c19_356 = arith.constant 19 : index
    %c0_357 = arith.constant 0 : index
    %345 = vector.load %arg16[%c19_356, %c0_357] : memref<96x128xf32, #tpu.memory_space<vmem>>, vector<16x32xf32>
    %346 = arith.truncf %345 : vector<16x32xf32> to vector<16x32xbf16>
    %c0_358 = arith.constant 0 : index
    %c576 = arith.constant 576 : index
    %347 = vector.load %arg17[%c0_358, %c576] : memref<32x1024xbf16, #tpu.memory_space<vmem>>, vector<16x32xbf16>
    tpu.vector_store %arg17[%c0_358, %c576], %346 {strides = array<i32>} : memref<32x1024xbf16, #tpu.memory_space<vmem>>, vector<16x32xbf16>,
    %c67_359 = arith.constant 67 : index
    %c0_360 = arith.constant 0 : index
    %348 = vector.load %arg16[%c67_359, %c0_360] : memref<96x128xf32, #tpu.memory_space<vmem>>, vector<16x32xf32>
    %349 = arith.truncf %348 : vector<16x32xf32> to vector<16x32xbf16>
    %c16_361 = arith.constant 16 : index
    %c576_362 = arith.constant 576 : index
    %350 = vector.load %arg17[%c16_361, %c576_362] : memref<32x1024xbf16, #tpu.memory_space<vmem>>, vector<16x32xbf16>
    tpu.vector_store %arg17[%c16_361, %c576_362], %349 {strides = array<i32>} : memref<32x1024xbf16, #tpu.memory_space<vmem>>, vector<16x32xbf16>,
    %c20_363 = arith.constant 20 : index
    %c0_364 = arith.constant 0 : index
    %351 = vector.load %arg16[%c20_363, %c0_364] : memref<96x128xf32, #tpu.memory_space<vmem>>, vector<16x32xf32>
    %352 = arith.truncf %351 : vector<16x32xf32> to vector<16x32xbf16>
    %c0_365 = arith.constant 0 : index
    %c608 = arith.constant 608 : index
    %353 = vector.load %arg17[%c0_365, %c608] : memref<32x1024xbf16, #tpu.memory_space<vmem>>, vector<16x32xbf16>
    tpu.vector_store %arg17[%c0_365, %c608], %352 {strides = array<i32>} : memref<32x1024xbf16, #tpu.memory_space<vmem>>, vector<16x32xbf16>,
    %c68_366 = arith.constant 68 : index
    %c0_367 = arith.constant 0 : index
    %354 = vector.load %arg16[%c68_366, %c0_367] : memref<96x128xf32, #tpu.memory_space<vmem>>, vector<16x32xf32>
    %355 = arith.truncf %354 : vector<16x32xf32> to vector<16x32xbf16>
    %c16_368 = arith.constant 16 : index
    %c608_369 = arith.constant 608 : index
    %356 = vector.load %arg17[%c16_368, %c608_369] : memref<32x1024xbf16, #tpu.memory_space<vmem>>, vector<16x32xbf16>
    tpu.vector_store %arg17[%c16_368, %c608_369], %355 {strides = array<i32>} : memref<32x1024xbf16, #tpu.memory_space<vmem>>, vector<16x32xbf16>,
    %c21_370 = arith.constant 21 : index
    %c0_371 = arith.constant 0 : index
    %357 = vector.load %arg16[%c21_370, %c0_371] : memref<96x128xf32, #tpu.memory_space<vmem>>, vector<16x32xf32>
    %358 = arith.truncf %357 : vector<16x32xf32> to vector<16x32xbf16>
    %c0_372 = arith.constant 0 : index
    %c640 = arith.constant 640 : index
    %359 = vector.load %arg17[%c0_372, %c640] : memref<32x1024xbf16, #tpu.memory_space<vmem>>, vector<16x32xbf16>
    tpu.vector_store %arg17[%c0_372, %c640], %358 {strides = array<i32>} : memref<32x1024xbf16, #tpu.memory_space<vmem>>, vector<16x32xbf16>,
    %c69_373 = arith.constant 69 : index
    %c0_374 = arith.constant 0 : index
    %360 = vector.load %arg16[%c69_373, %c0_374] : memref<96x128xf32, #tpu.memory_space<vmem>>, vector<16x32xf32>
    %361 = arith.truncf %360 : vector<16x32xf32> to vector<16x32xbf16>
    %c16_375 = arith.constant 16 : index
    %c640_376 = arith.constant 640 : index
    %362 = vector.load %arg17[%c16_375, %c640_376] : memref<32x1024xbf16, #tpu.memory_space<vmem>>, vector<16x32xbf16>
    tpu.vector_store %arg17[%c16_375, %c640_376], %361 {strides = array<i32>} : memref<32x1024xbf16, #tpu.memory_space<vmem>>, vector<16x32xbf16>,
    %c22_377 = arith.constant 22 : index
    %c0_378 = arith.constant 0 : index
    %363 = vector.load %arg16[%c22_377, %c0_378] : memref<96x128xf32, #tpu.memory_space<vmem>>, vector<16x32xf32>
    %364 = arith.truncf %363 : vector<16x32xf32> to vector<16x32xbf16>
    %c0_379 = arith.constant 0 : index
    %c672 = arith.constant 672 : index
    %365 = vector.load %arg17[%c0_379, %c672] : memref<32x1024xbf16, #tpu.memory_space<vmem>>, vector<16x32xbf16>
    tpu.vector_store %arg17[%c0_379, %c672], %364 {strides = array<i32>} : memref<32x1024xbf16, #tpu.memory_space<vmem>>, vector<16x32xbf16>,
    %c70_380 = arith.constant 70 : index
    %c0_381 = arith.constant 0 : index
    %366 = vector.load %arg16[%c70_380, %c0_381] : memref<96x128xf32, #tpu.memory_space<vmem>>, vector<16x32xf32>
    %367 = arith.truncf %366 : vector<16x32xf32> to vector<16x32xbf16>
    %c16_382 = arith.constant 16 : index
    %c672_383 = arith.constant 672 : index
    %368 = vector.load %arg17[%c16_382, %c672_383] : memref<32x1024xbf16, #tpu.memory_space<vmem>>, vector<16x32xbf16>
    tpu.vector_store %arg17[%c16_382, %c672_383], %367 {strides = array<i32>} : memref<32x1024xbf16, #tpu.memory_space<vmem>>, vector<16x32xbf16>,
    %c23_384 = arith.constant 23 : index
    %c0_385 = arith.constant 0 : index
    %369 = vector.load %arg16[%c23_384, %c0_385] : memref<96x128xf32, #tpu.memory_space<vmem>>, vector<16x32xf32>
    %370 = arith.truncf %369 : vector<16x32xf32> to vector<16x32xbf16>
    %c0_386 = arith.constant 0 : index
    %c704 = arith.constant 704 : index
    %371 = vector.load %arg17[%c0_386, %c704] : memref<32x1024xbf16, #tpu.memory_space<vmem>>, vector<16x32xbf16>
    tpu.vector_store %arg17[%c0_386, %c704], %370 {strides = array<i32>} : memref<32x1024xbf16, #tpu.memory_space<vmem>>, vector<16x32xbf16>,
    %c71_387 = arith.constant 71 : index
    %c0_388 = arith.constant 0 : index
    %372 = vector.load %arg16[%c71_387, %c0_388] : memref<96x128xf32, #tpu.memory_space<vmem>>, vector<16x32xf32>
    %373 = arith.truncf %372 : vector<16x32xf32> to vector<16x32xbf16>
    %c16_389 = arith.constant 16 : index
    %c704_390 = arith.constant 704 : index
    %374 = vector.load %arg17[%c16_389, %c704_390] : memref<32x1024xbf16, #tpu.memory_space<vmem>>, vector<16x32xbf16>
    tpu.vector_store %arg17[%c16_389, %c704_390], %373 {strides = array<i32>} : memref<32x1024xbf16, #tpu.memory_space<vmem>>, vector<16x32xbf16>,
    %c24_391 = arith.constant 24 : index
    %c0_392 = arith.constant 0 : index
    %375 = vector.load %arg16[%c24_391, %c0_392] : memref<96x128xf32, #tpu.memory_space<vmem>>, vector<16x32xf32>
    %376 = arith.truncf %375 : vector<16x32xf32> to vector<16x32xbf16>
    %c0_393 = arith.constant 0 : index
    %c736 = arith.constant 736 : index
    %377 = vector.load %arg17[%c0_393, %c736] : memref<32x1024xbf16, #tpu.memory_space<vmem>>, vector<16x32xbf16>
    tpu.vector_store %arg17[%c0_393, %c736], %376 {strides = array<i32>} : memref<32x1024xbf16, #tpu.memory_space<vmem>>, vector<16x32xbf16>,
    %c72_394 = arith.constant 72 : index
    %c0_395 = arith.constant 0 : index
    %378 = vector.load %arg16[%c72_394, %c0_395] : memref<96x128xf32, #tpu.memory_space<vmem>>, vector<16x32xf32>
    %379 = arith.truncf %378 : vector<16x32xf32> to vector<16x32xbf16>
    %c16_396 = arith.constant 16 : index
    %c736_397 = arith.constant 736 : index
    %380 = vector.load %arg17[%c16_396, %c736_397] : memref<32x1024xbf16, #tpu.memory_space<vmem>>, vector<16x32xbf16>
    tpu.vector_store %arg17[%c16_396, %c736_397], %379 {strides = array<i32>} : memref<32x1024xbf16, #tpu.memory_space<vmem>>, vector<16x32xbf16>,
    %c25_398 = arith.constant 25 : index
    %c0_399 = arith.constant 0 : index
    %381 = vector.load %arg16[%c25_398, %c0_399] : memref<96x128xf32, #tpu.memory_space<vmem>>, vector<16x32xf32>
    %382 = arith.truncf %381 : vector<16x32xf32> to vector<16x32xbf16>
    %c0_400 = arith.constant 0 : index
    %c768 = arith.constant 768 : index
    %383 = vector.load %arg17[%c0_400, %c768] : memref<32x1024xbf16, #tpu.memory_space<vmem>>, vector<16x32xbf16>
    tpu.vector_store %arg17[%c0_400, %c768], %382 {strides = array<i32>} : memref<32x1024xbf16, #tpu.memory_space<vmem>>, vector<16x32xbf16>,
    %c73_401 = arith.constant 73 : index
    %c0_402 = arith.constant 0 : index
    %384 = vector.load %arg16[%c73_401, %c0_402] : memref<96x128xf32, #tpu.memory_space<vmem>>, vector<16x32xf32>
    %385 = arith.truncf %384 : vector<16x32xf32> to vector<16x32xbf16>
    %c16_403 = arith.constant 16 : index
    %c768_404 = arith.constant 768 : index
    %386 = vector.load %arg17[%c16_403, %c768_404] : memref<32x1024xbf16, #tpu.memory_space<vmem>>, vector<16x32xbf16>
    tpu.vector_store %arg17[%c16_403, %c768_404], %385 {strides = array<i32>} : memref<32x1024xbf16, #tpu.memory_space<vmem>>, vector<16x32xbf16>,
    %c26_405 = arith.constant 26 : index
    %c0_406 = arith.constant 0 : index
    %387 = vector.load %arg16[%c26_405, %c0_406] : memref<96x128xf32, #tpu.memory_space<vmem>>, vector<16x32xf32>
    %388 = arith.truncf %387 : vector<16x32xf32> to vector<16x32xbf16>
    %c0_407 = arith.constant 0 : index
    %c800 = arith.constant 800 : index
    %389 = vector.load %arg17[%c0_407, %c800] : memref<32x1024xbf16, #tpu.memory_space<vmem>>, vector<16x32xbf16>
    tpu.vector_store %arg17[%c0_407, %c800], %388 {strides = array<i32>} : memref<32x1024xbf16, #tpu.memory_space<vmem>>, vector<16x32xbf16>,
    %c74_408 = arith.constant 74 : index
    %c0_409 = arith.constant 0 : index
    %390 = vector.load %arg16[%c74_408, %c0_409] : memref<96x128xf32, #tpu.memory_space<vmem>>, vector<16x32xf32>
    %391 = arith.truncf %390 : vector<16x32xf32> to vector<16x32xbf16>
    %c16_410 = arith.constant 16 : index
    %c800_411 = arith.constant 800 : index
    %392 = vector.load %arg17[%c16_410, %c800_411] : memref<32x1024xbf16, #tpu.memory_space<vmem>>, vector<16x32xbf16>
    tpu.vector_store %arg17[%c16_410, %c800_411], %391 {strides = array<i32>} : memref<32x1024xbf16, #tpu.memory_space<vmem>>, vector<16x32xbf16>,
    %c27_412 = arith.constant 27 : index
    %c0_413 = arith.constant 0 : index
    %393 = vector.load %arg16[%c27_412, %c0_413] : memref<96x128xf32, #tpu.memory_space<vmem>>, vector<16x32xf32>
    %394 = arith.truncf %393 : vector<16x32xf32> to vector<16x32xbf16>
    %c0_414 = arith.constant 0 : index
    %c832 = arith.constant 832 : index
    %395 = vector.load %arg17[%c0_414, %c832] : memref<32x1024xbf16, #tpu.memory_space<vmem>>, vector<16x32xbf16>
    tpu.vector_store %arg17[%c0_414, %c832], %394 {strides = array<i32>} : memref<32x1024xbf16, #tpu.memory_space<vmem>>, vector<16x32xbf16>,
    %c75_415 = arith.constant 75 : index
    %c0_416 = arith.constant 0 : index
    %396 = vector.load %arg16[%c75_415, %c0_416] : memref<96x128xf32, #tpu.memory_space<vmem>>, vector<16x32xf32>
    %397 = arith.truncf %396 : vector<16x32xf32> to vector<16x32xbf16>
    %c16_417 = arith.constant 16 : index
    %c832_418 = arith.constant 832 : index
    %398 = vector.load %arg17[%c16_417, %c832_418] : memref<32x1024xbf16, #tpu.memory_space<vmem>>, vector<16x32xbf16>
    tpu.vector_store %arg17[%c16_417, %c832_418], %397 {strides = array<i32>} : memref<32x1024xbf16, #tpu.memory_space<vmem>>, vector<16x32xbf16>,
    %c28_419 = arith.constant 28 : index
    %c0_420 = arith.constant 0 : index
    %399 = vector.load %arg16[%c28_419, %c0_420] : memref<96x128xf32, #tpu.memory_space<vmem>>, vector<16x32xf32>
    %400 = arith.truncf %399 : vector<16x32xf32> to vector<16x32xbf16>
    %c0_421 = arith.constant 0 : index
    %c864 = arith.constant 864 : index
    %401 = vector.load %arg17[%c0_421, %c864] : memref<32x1024xbf16, #tpu.memory_space<vmem>>, vector<16x32xbf16>
    tpu.vector_store %arg17[%c0_421, %c864], %400 {strides = array<i32>} : memref<32x1024xbf16, #tpu.memory_space<vmem>>, vector<16x32xbf16>,
    %c76_422 = arith.constant 76 : index
    %c0_423 = arith.constant 0 : index
    %402 = vector.load %arg16[%c76_422, %c0_423] : memref<96x128xf32, #tpu.memory_space<vmem>>, vector<16x32xf32>
    %403 = arith.truncf %402 : vector<16x32xf32> to vector<16x32xbf16>
    %c16_424 = arith.constant 16 : index
    %c864_425 = arith.constant 864 : index
    %404 = vector.load %arg17[%c16_424, %c864_425] : memref<32x1024xbf16, #tpu.memory_space<vmem>>, vector<16x32xbf16>
    tpu.vector_store %arg17[%c16_424, %c864_425], %403 {strides = array<i32>} : memref<32x1024xbf16, #tpu.memory_space<vmem>>, vector<16x32xbf16>,
    %c29_426 = arith.constant 29 : index
    %c0_427 = arith.constant 0 : index
    %405 = vector.load %arg16[%c29_426, %c0_427] : memref<96x128xf32, #tpu.memory_space<vmem>>, vector<16x32xf32>
    %406 = arith.truncf %405 : vector<16x32xf32> to vector<16x32xbf16>
    %c0_428 = arith.constant 0 : index
    %c896 = arith.constant 896 : index
    %407 = vector.load %arg17[%c0_428, %c896] : memref<32x1024xbf16, #tpu.memory_space<vmem>>, vector<16x32xbf16>
    tpu.vector_store %arg17[%c0_428, %c896], %406 {strides = array<i32>} : memref<32x1024xbf16, #tpu.memory_space<vmem>>, vector<16x32xbf16>,
    %c77_429 = arith.constant 77 : index
    %c0_430 = arith.constant 0 : index
    %408 = vector.load %arg16[%c77_429, %c0_430] : memref<96x128xf32, #tpu.memory_space<vmem>>, vector<16x32xf32>
    %409 = arith.truncf %408 : vector<16x32xf32> to vector<16x32xbf16>
    %c16_431 = arith.constant 16 : index
    %c896_432 = arith.constant 896 : index
    %410 = vector.load %arg17[%c16_431, %c896_432] : memref<32x1024xbf16, #tpu.memory_space<vmem>>, vector<16x32xbf16>
    tpu.vector_store %arg17[%c16_431, %c896_432], %409 {strides = array<i32>} : memref<32x1024xbf16, #tpu.memory_space<vmem>>, vector<16x32xbf16>,
    %c30_433 = arith.constant 30 : index
    %c0_434 = arith.constant 0 : index
    %411 = vector.load %arg16[%c30_433, %c0_434] : memref<96x128xf32, #tpu.memory_space<vmem>>, vector<16x32xf32>
    %412 = arith.truncf %411 : vector<16x32xf32> to vector<16x32xbf16>
    %c0_435 = arith.constant 0 : index
    %c928 = arith.constant 928 : index
    %413 = vector.load %arg17[%c0_435, %c928] : memref<32x1024xbf16, #tpu.memory_space<vmem>>, vector<16x32xbf16>
    tpu.vector_store %arg17[%c0_435, %c928], %412 {strides = array<i32>} : memref<32x1024xbf16, #tpu.memory_space<vmem>>, vector<16x32xbf16>,
    %c78_436 = arith.constant 78 : index
    %c0_437 = arith.constant 0 : index
    %414 = vector.load %arg16[%c78_436, %c0_437] : memref<96x128xf32, #tpu.memory_space<vmem>>, vector<16x32xf32>
    %415 = arith.truncf %414 : vector<16x32xf32> to vector<16x32xbf16>
    %c16_438 = arith.constant 16 : index
    %c928_439 = arith.constant 928 : index
    %416 = vector.load %arg17[%c16_438, %c928_439] : memref<32x1024xbf16, #tpu.memory_space<vmem>>, vector<16x32xbf16>
    tpu.vector_store %arg17[%c16_438, %c928_439], %415 {strides = array<i32>} : memref<32x1024xbf16, #tpu.memory_space<vmem>>, vector<16x32xbf16>,
    %c31_440 = arith.constant 31 : index
    %c0_441 = arith.constant 0 : index
    %417 = vector.load %arg16[%c31_440, %c0_441] : memref<96x128xf32, #tpu.memory_space<vmem>>, vector<16x32xf32>
    %418 = arith.truncf %417 : vector<16x32xf32> to vector<16x32xbf16>
    %c0_442 = arith.constant 0 : index
    %c960 = arith.constant 960 : index
    %419 = vector.load %arg17[%c0_442, %c960] : memref<32x1024xbf16, #tpu.memory_space<vmem>>, vector<16x32xbf16>
    tpu.vector_store %arg17[%c0_442, %c960], %418 {strides = array<i32>} : memref<32x1024xbf16, #tpu.memory_space<vmem>>, vector<16x32xbf16>,
    %c79_443 = arith.constant 79 : index
    %c0_444 = arith.constant 0 : index
    %420 = vector.load %arg16[%c79_443, %c0_444] : memref<96x128xf32, #tpu.memory_space<vmem>>, vector<16x32xf32>
    %421 = arith.truncf %420 : vector<16x32xf32> to vector<16x32xbf16>
    %c16_445 = arith.constant 16 : index
    %c960_446 = arith.constant 960 : index
    %422 = vector.load %arg17[%c16_445, %c960_446] : memref<32x1024xbf16, #tpu.memory_space<vmem>>, vector<16x32xbf16>
    tpu.vector_store %arg17[%c16_445, %c960_446], %421 {strides = array<i32>} : memref<32x1024xbf16, #tpu.memory_space<vmem>>, vector<16x32xbf16>,
    %c32_447 = arith.constant 32 : index
    %c0_448 = arith.constant 0 : index
    %423 = vector.load %arg16[%c32_447, %c0_448] : memref<96x128xf32, #tpu.memory_space<vmem>>, vector<16x32xf32>
    %424 = arith.truncf %423 : vector<16x32xf32> to vector<16x32xbf16>
    %c0_449 = arith.constant 0 : index
    %c992 = arith.constant 992 : index
    %425 = vector.load %arg17[%c0_449, %c992] : memref<32x1024xbf16, #tpu.memory_space<vmem>>, vector<16x32xbf16>
    tpu.vector_store %arg17[%c0_449, %c992], %424 {strides = array<i32>} : memref<32x1024xbf16, #tpu.memory_space<vmem>>, vector<16x32xbf16>,
    %c80_450 = arith.constant 80 : index
    %c0_451 = arith.constant 0 : index
    %426 = vector.load %arg16[%c80_450, %c0_451] : memref<96x128xf32, #tpu.memory_space<vmem>>, vector<16x32xf32>
    %427 = arith.truncf %426 : vector<16x32xf32> to vector<16x32xbf16>
    %c16_452 = arith.constant 16 : index
    %c992_453 = arith.constant 992 : index
    %428 = vector.load %arg17[%c16_452, %c992_453] : memref<32x1024xbf16, #tpu.memory_space<vmem>>, vector<16x32xbf16>
    tpu.vector_store %arg17[%c16_452, %c992_453], %427 {strides = array<i32>} : memref<32x1024xbf16, #tpu.memory_space<vmem>>, vector<16x32xbf16>,
    %c0_454 = arith.constant 0 : index
    %c0_455 = arith.constant 0 : index
    %429 = vector.load %arg17[%c0_454, %c0_455] : memref<32x1024xbf16, #tpu.memory_space<vmem>>, vector<32x1024xbf16>
    %c0_456 = arith.constant 0 : index
    %c0_457 = arith.constant 0 : index
    %430 = vector.load %arg3[%c0_456, %c0_457] : memref<1024x32xbf16, #tpu.memory_space<vmem>>, vector<1024x32xbf16>
    %cst_458 = arith.constant dense<0.000000e+00> : vector<32x32xf32>
    %431 = tpu.matmul %429, %430, %cst_458 {dimension_numbers = #tpu.dot_dimension_numbers<[1], [0], [0], [1], [0, 0, 1, 1], [], []>} : vector<32x1024xbf16>, vector<1024x32xbf16>, vector<32x32xf32> -> vector<32x32xf32>
    %432 = vector.broadcast %6 : vector<1x32xf32> to vector<32x32xf32>
    %433 = arith.addf %431, %432 : vector<32x32xf32>
    %434 = arith.truncf %0 : vector<32x4xf32> to vector<32x4xbf16>
    %c0_459 = arith.constant 0 : index
    %c0_460 = arith.constant 0 : index
    %435 = vector.load %arg8[%c0_459, %c0_460] : memref<4x32xbf16, #tpu.memory_space<vmem>>, vector<4x32xbf16>
    %cst_461 = arith.constant dense<0.000000e+00> : vector<32x32xf32>
    %436 = tpu.matmul %434, %435, %cst_461 {dimension_numbers = #tpu.dot_dimension_numbers<[1], [0], [0], [1], [0, 0, 1, 1], [], []>} : vector<32x4xbf16>, vector<4x32xbf16>, vector<32x32xf32> -> vector<32x32xf32>
    %437 = vector.broadcast %7 : vector<1x32xf32> to vector<32x32xf32>
    %438 = arith.addf %436, %437 : vector<32x32xf32>
    %439 = arith.addf %433, %438 : vector<32x32xf32>
    %cst_462 = arith.constant 0.000000e+00 : f32
    %440 = vector.broadcast %cst_462 : f32 to vector<32x32xf32>
    %441 = arith.maximumf %439, %440 : vector<32x32xf32>
    %c0_463 = arith.constant 0 : index
    %c0_464 = arith.constant 0 : index
    %442 = vector.load %arg18[%c0_463, %c0_464] : memref<32x128xf32, #tpu.memory_space<vmem>>, vector<32x32xf32>
    tpu.vector_store %arg18[%c0_463, %c0_464], %441 {strides = array<i32>} : memref<32x128xf32, #tpu.memory_space<vmem>>, vector<32x32xf32>,
    %c0_465 = arith.constant 0 : index
    %c0_466 = arith.constant 0 : index
    %443 = tpu.strided_load %arg18[%c0_465, %c0_466] {strides = array<i32: 2, 1>} : memref<32x128xf32, #tpu.memory_space<vmem>>, vector<16x32xf32>
    %c1_467 = arith.constant 1 : index
    %c0_468 = arith.constant 0 : index
    %444 = tpu.strided_load %arg18[%c1_467, %c0_468] {strides = array<i32: 2, 1>} : memref<32x128xf32, #tpu.memory_space<vmem>>, vector<16x32xf32>
    %445 = arith.maximumf %443, %444 : vector<16x32xf32>
    %c7_469 = arith.constant 7 : index
    %c0_470 = arith.constant 0 : index
    %446 = vector.load %arg1[%c7_469, %c0_470] : memref<25x256xf32, #tpu.memory_space<vmem>>, vector<1x32xf32>
    %c8_471 = arith.constant 8 : index
    %c0_472 = arith.constant 0 : index
    %447 = vector.load %arg1[%c8_471, %c0_472] : memref<25x256xf32, #tpu.memory_space<vmem>>, vector<1x32xf32>
    %c9_473 = arith.constant 9 : index
    %c0_474 = arith.constant 0 : index
    %448 = vector.load %arg1[%c9_473, %c0_474] : memref<25x256xf32, #tpu.memory_space<vmem>>, vector<1x64xf32>
    %c10_475 = arith.constant 10 : index
    %c0_476 = arith.constant 0 : index
    %449 = vector.load %arg1[%c10_475, %c0_476] : memref<25x256xf32, #tpu.memory_space<vmem>>, vector<1x64xf32>
    %c11_477 = arith.constant 11 : index
    %c0_478 = arith.constant 0 : index
    %450 = vector.load %arg1[%c11_477, %c0_478] : memref<25x256xf32, #tpu.memory_space<vmem>>, vector<1x64xf32>
    %c12_479 = arith.constant 12 : index
    %c0_480 = arith.constant 0 : index
    %451 = vector.load %arg1[%c12_479, %c0_480] : memref<25x256xf32, #tpu.memory_space<vmem>>, vector<1x64xf32>
    %c13_481 = arith.constant 13 : index
    %c0_482 = arith.constant 0 : index
    %452 = vector.load %arg1[%c13_481, %c0_482] : memref<25x256xf32, #tpu.memory_space<vmem>>, vector<1x64xf32>
    %453 = vector.broadcast %446 : vector<1x32xf32> to vector<16x32xf32>
    %454 = arith.mulf %445, %453 : vector<16x32xf32>
    %455 = vector.broadcast %447 : vector<1x32xf32> to vector<16x32xf32>
    %456 = arith.addf %454, %455 : vector<16x32xf32>
    %cst_483 = arith.constant 0.000000e+00 : f32
    %457 = vector.broadcast %cst_483 : f32 to vector<16x32xf32>
    %458 = arith.maximumf %456, %457 : vector<16x32xf32>
    %cst_484 = arith.constant 0.000000e+00 : f32
    %459 = vector.broadcast %cst_484 : f32 to vector<8x32xf32>
    %cst_485 = arith.constant 0.000000e+00 : f32
    %460 = vector.broadcast %cst_485 : f32 to vector<8x32xf32>
    %c0_486 = arith.constant 0 : index
    %c0_487 = arith.constant 0 : index
    %461 = vector.load %arg16[%c0_486, %c0_487] : memref<96x128xf32, #tpu.memory_space<vmem>>, vector<8x32xf32>
    tpu.vector_store %arg16[%c0_486, %c0_487], %459 {strides = array<i32>} : memref<96x128xf32, #tpu.memory_space<vmem>>, vector<8x32xf32>,
    %c16_488 = arith.constant 16 : index
    %c0_489 = arith.constant 0 : index
    %462 = vector.load %arg16[%c16_488, %c0_489] : memref<96x128xf32, #tpu.memory_space<vmem>>, vector<8x32xf32>
    tpu.vector_store %arg16[%c16_488, %c0_489], %460 {strides = array<i32>} : memref<96x128xf32, #tpu.memory_space<vmem>>, vector<8x32xf32>,
    %463 = vector.extract_strided_slice %458 {offsets = [0, 0], sizes = [8, 32], strides = [1, 1]} : vector<16x32xf32> to vector<8x32xf32>
    %c8_490 = arith.constant 8 : index
    %c0_491 = arith.constant 0 : index
    %464 = vector.load %arg16[%c8_490, %c0_491] : memref<96x128xf32, #tpu.memory_space<vmem>>, vector<8x32xf32>
    tpu.vector_store %arg16[%c8_490, %c0_491], %463 {strides = array<i32>} : memref<96x128xf32, #tpu.memory_space<vmem>>, vector<8x32xf32>,
    %c24_492 = arith.constant 24 : index
    %c0_493 = arith.constant 0 : index
    %465 = vector.load %arg16[%c24_492, %c0_493] : memref<96x128xf32, #tpu.memory_space<vmem>>, vector<8x32xf32>
    tpu.vector_store %arg16[%c24_492, %c0_493], %459 {strides = array<i32>} : memref<96x128xf32, #tpu.memory_space<vmem>>, vector<8x32xf32>,
    %c40_494 = arith.constant 40 : index
    %c0_495 = arith.constant 0 : index
    %466 = vector.load %arg16[%c40_494, %c0_495] : memref<96x128xf32, #tpu.memory_space<vmem>>, vector<8x32xf32>
    tpu.vector_store %arg16[%c40_494, %c0_495], %460 {strides = array<i32>} : memref<96x128xf32, #tpu.memory_space<vmem>>, vector<8x32xf32>,
    %467 = vector.extract_strided_slice %458 {offsets = [8, 0], sizes = [8, 32], strides = [1, 1]} : vector<16x32xf32> to vector<8x32xf32>
    %c32_496 = arith.constant 32 : index
    %c0_497 = arith.constant 0 : index
    %468 = vector.load %arg16[%c32_496, %c0_497] : memref<96x128xf32, #tpu.memory_space<vmem>>, vector<8x32xf32>
    tpu.vector_store %arg16[%c32_496, %c0_497], %467 {strides = array<i32>} : memref<96x128xf32, #tpu.memory_space<vmem>>, vector<8x32xf32>,
    %c1_498 = arith.constant 1 : index
    %c0_499 = arith.constant 0 : index
    %469 = vector.load %arg16[%c1_498, %c0_499] : memref<96x128xf32, #tpu.memory_space<vmem>>, vector<8x32xf32>
    %470 = arith.truncf %469 : vector<8x32xf32> to vector<8x32xbf16>
    %c0_500 = arith.constant 0 : index
    %c0_501 = arith.constant 0 : index
    %471 = vector.load %arg17[%c0_500, %c0_501] : memref<32x1024xbf16, #tpu.memory_space<vmem>>, vector<8x32xbf16>
    tpu.vector_store %arg17[%c0_500, %c0_501], %470 {strides = array<i32>} : memref<32x1024xbf16, #tpu.memory_space<vmem>>, vector<8x32xbf16>,
    %c25_502 = arith.constant 25 : index
    %c0_503 = arith.constant 0 : index
    %472 = vector.load %arg16[%c25_502, %c0_503] : memref<96x128xf32, #tpu.memory_space<vmem>>, vector<8x32xf32>
    %473 = arith.truncf %472 : vector<8x32xf32> to vector<8x32xbf16>
    %c8_504 = arith.constant 8 : index
    %c0_505 = arith.constant 0 : index
    %474 = vector.load %arg17[%c8_504, %c0_505] : memref<32x1024xbf16, #tpu.memory_space<vmem>>, vector<8x32xbf16>
    tpu.vector_store %arg17[%c8_504, %c0_505], %473 {strides = array<i32>} : memref<32x1024xbf16, #tpu.memory_space<vmem>>, vector<8x32xbf16>,
    %c2_506 = arith.constant 2 : index
    %c0_507 = arith.constant 0 : index
    %475 = vector.load %arg16[%c2_506, %c0_507] : memref<96x128xf32, #tpu.memory_space<vmem>>, vector<8x32xf32>
    %476 = arith.truncf %475 : vector<8x32xf32> to vector<8x32xbf16>
    %c0_508 = arith.constant 0 : index
    %c32_509 = arith.constant 32 : index
    %477 = vector.load %arg17[%c0_508, %c32_509] : memref<32x1024xbf16, #tpu.memory_space<vmem>>, vector<8x32xbf16>
    tpu.vector_store %arg17[%c0_508, %c32_509], %476 {strides = array<i32>} : memref<32x1024xbf16, #tpu.memory_space<vmem>>, vector<8x32xbf16>,
    %c26_510 = arith.constant 26 : index
    %c0_511 = arith.constant 0 : index
    %478 = vector.load %arg16[%c26_510, %c0_511] : memref<96x128xf32, #tpu.memory_space<vmem>>, vector<8x32xf32>
    %479 = arith.truncf %478 : vector<8x32xf32> to vector<8x32xbf16>
    %c8_512 = arith.constant 8 : index
    %c32_513 = arith.constant 32 : index
    %480 = vector.load %arg17[%c8_512, %c32_513] : memref<32x1024xbf16, #tpu.memory_space<vmem>>, vector<8x32xbf16>
    tpu.vector_store %arg17[%c8_512, %c32_513], %479 {strides = array<i32>} : memref<32x1024xbf16, #tpu.memory_space<vmem>>, vector<8x32xbf16>,
    %c3_514 = arith.constant 3 : index
    %c0_515 = arith.constant 0 : index
    %481 = vector.load %arg16[%c3_514, %c0_515] : memref<96x128xf32, #tpu.memory_space<vmem>>, vector<8x32xf32>
    %482 = arith.truncf %481 : vector<8x32xf32> to vector<8x32xbf16>
    %c0_516 = arith.constant 0 : index
    %c64_517 = arith.constant 64 : index
    %483 = vector.load %arg17[%c0_516, %c64_517] : memref<32x1024xbf16, #tpu.memory_space<vmem>>, vector<8x32xbf16>
    tpu.vector_store %arg17[%c0_516, %c64_517], %482 {strides = array<i32>} : memref<32x1024xbf16, #tpu.memory_space<vmem>>, vector<8x32xbf16>,
    %c27_518 = arith.constant 27 : index
    %c0_519 = arith.constant 0 : index
    %484 = vector.load %arg16[%c27_518, %c0_519] : memref<96x128xf32, #tpu.memory_space<vmem>>, vector<8x32xf32>
    %485 = arith.truncf %484 : vector<8x32xf32> to vector<8x32xbf16>
    %c8_520 = arith.constant 8 : index
    %c64_521 = arith.constant 64 : index
    %486 = vector.load %arg17[%c8_520, %c64_521] : memref<32x1024xbf16, #tpu.memory_space<vmem>>, vector<8x32xbf16>
    tpu.vector_store %arg17[%c8_520, %c64_521], %485 {strides = array<i32>} : memref<32x1024xbf16, #tpu.memory_space<vmem>>, vector<8x32xbf16>,
    %c4_522 = arith.constant 4 : index
    %c0_523 = arith.constant 0 : index
    %487 = vector.load %arg16[%c4_522, %c0_523] : memref<96x128xf32, #tpu.memory_space<vmem>>, vector<8x32xf32>
    %488 = arith.truncf %487 : vector<8x32xf32> to vector<8x32xbf16>
    %c0_524 = arith.constant 0 : index
    %c96_525 = arith.constant 96 : index
    %489 = vector.load %arg17[%c0_524, %c96_525] : memref<32x1024xbf16, #tpu.memory_space<vmem>>, vector<8x32xbf16>
    tpu.vector_store %arg17[%c0_524, %c96_525], %488 {strides = array<i32>} : memref<32x1024xbf16, #tpu.memory_space<vmem>>, vector<8x32xbf16>,
    %c28_526 = arith.constant 28 : index
    %c0_527 = arith.constant 0 : index
    %490 = vector.load %arg16[%c28_526, %c0_527] : memref<96x128xf32, #tpu.memory_space<vmem>>, vector<8x32xf32>
    %491 = arith.truncf %490 : vector<8x32xf32> to vector<8x32xbf16>
    %c8_528 = arith.constant 8 : index
    %c96_529 = arith.constant 96 : index
    %492 = vector.load %arg17[%c8_528, %c96_529] : memref<32x1024xbf16, #tpu.memory_space<vmem>>, vector<8x32xbf16>
    tpu.vector_store %arg17[%c8_528, %c96_529], %491 {strides = array<i32>} : memref<32x1024xbf16, #tpu.memory_space<vmem>>, vector<8x32xbf16>,
    %c5_530 = arith.constant 5 : index
    %c0_531 = arith.constant 0 : index
    %493 = vector.load %arg16[%c5_530, %c0_531] : memref<96x128xf32, #tpu.memory_space<vmem>>, vector<8x32xf32>
    %494 = arith.truncf %493 : vector<8x32xf32> to vector<8x32xbf16>
    %c0_532 = arith.constant 0 : index
    %c128_533 = arith.constant 128 : index
    %495 = vector.load %arg17[%c0_532, %c128_533] : memref<32x1024xbf16, #tpu.memory_space<vmem>>, vector<8x32xbf16>
    tpu.vector_store %arg17[%c0_532, %c128_533], %494 {strides = array<i32>} : memref<32x1024xbf16, #tpu.memory_space<vmem>>, vector<8x32xbf16>,
    %c29_534 = arith.constant 29 : index
    %c0_535 = arith.constant 0 : index
    %496 = vector.load %arg16[%c29_534, %c0_535] : memref<96x128xf32, #tpu.memory_space<vmem>>, vector<8x32xf32>
    %497 = arith.truncf %496 : vector<8x32xf32> to vector<8x32xbf16>
    %c8_536 = arith.constant 8 : index
    %c128_537 = arith.constant 128 : index
    %498 = vector.load %arg17[%c8_536, %c128_537] : memref<32x1024xbf16, #tpu.memory_space<vmem>>, vector<8x32xbf16>
    tpu.vector_store %arg17[%c8_536, %c128_537], %497 {strides = array<i32>} : memref<32x1024xbf16, #tpu.memory_space<vmem>>, vector<8x32xbf16>,
    %c6_538 = arith.constant 6 : index
    %c0_539 = arith.constant 0 : index
    %499 = vector.load %arg16[%c6_538, %c0_539] : memref<96x128xf32, #tpu.memory_space<vmem>>, vector<8x32xf32>
    %500 = arith.truncf %499 : vector<8x32xf32> to vector<8x32xbf16>
    %c0_540 = arith.constant 0 : index
    %c160_541 = arith.constant 160 : index
    %501 = vector.load %arg17[%c0_540, %c160_541] : memref<32x1024xbf16, #tpu.memory_space<vmem>>, vector<8x32xbf16>
    tpu.vector_store %arg17[%c0_540, %c160_541], %500 {strides = array<i32>} : memref<32x1024xbf16, #tpu.memory_space<vmem>>, vector<8x32xbf16>,
    %c30_542 = arith.constant 30 : index
    %c0_543 = arith.constant 0 : index
    %502 = vector.load %arg16[%c30_542, %c0_543] : memref<96x128xf32, #tpu.memory_space<vmem>>, vector<8x32xf32>
    %503 = arith.truncf %502 : vector<8x32xf32> to vector<8x32xbf16>
    %c8_544 = arith.constant 8 : index
    %c160_545 = arith.constant 160 : index
    %504 = vector.load %arg17[%c8_544, %c160_545] : memref<32x1024xbf16, #tpu.memory_space<vmem>>, vector<8x32xbf16>
    tpu.vector_store %arg17[%c8_544, %c160_545], %503 {strides = array<i32>} : memref<32x1024xbf16, #tpu.memory_space<vmem>>, vector<8x32xbf16>,
    %c7_546 = arith.constant 7 : index
    %c0_547 = arith.constant 0 : index
    %505 = vector.load %arg16[%c7_546, %c0_547] : memref<96x128xf32, #tpu.memory_space<vmem>>, vector<8x32xf32>
    %506 = arith.truncf %505 : vector<8x32xf32> to vector<8x32xbf16>
    %c0_548 = arith.constant 0 : index
    %c192_549 = arith.constant 192 : index
    %507 = vector.load %arg17[%c0_548, %c192_549] : memref<32x1024xbf16, #tpu.memory_space<vmem>>, vector<8x32xbf16>
    tpu.vector_store %arg17[%c0_548, %c192_549], %506 {strides = array<i32>} : memref<32x1024xbf16, #tpu.memory_space<vmem>>, vector<8x32xbf16>,
    %c31_550 = arith.constant 31 : index
    %c0_551 = arith.constant 0 : index
    %508 = vector.load %arg16[%c31_550, %c0_551] : memref<96x128xf32, #tpu.memory_space<vmem>>, vector<8x32xf32>
    %509 = arith.truncf %508 : vector<8x32xf32> to vector<8x32xbf16>
    %c8_552 = arith.constant 8 : index
    %c192_553 = arith.constant 192 : index
    %510 = vector.load %arg17[%c8_552, %c192_553] : memref<32x1024xbf16, #tpu.memory_space<vmem>>, vector<8x32xbf16>
    tpu.vector_store %arg17[%c8_552, %c192_553], %509 {strides = array<i32>} : memref<32x1024xbf16, #tpu.memory_space<vmem>>, vector<8x32xbf16>,
    %c8_554 = arith.constant 8 : index
    %c0_555 = arith.constant 0 : index
    %511 = vector.load %arg16[%c8_554, %c0_555] : memref<96x128xf32, #tpu.memory_space<vmem>>, vector<8x32xf32>
    %512 = arith.truncf %511 : vector<8x32xf32> to vector<8x32xbf16>
    %c0_556 = arith.constant 0 : index
    %c224_557 = arith.constant 224 : index
    %513 = vector.load %arg17[%c0_556, %c224_557] : memref<32x1024xbf16, #tpu.memory_space<vmem>>, vector<8x32xbf16>
    tpu.vector_store %arg17[%c0_556, %c224_557], %512 {strides = array<i32>} : memref<32x1024xbf16, #tpu.memory_space<vmem>>, vector<8x32xbf16>,
    %c32_558 = arith.constant 32 : index
    %c0_559 = arith.constant 0 : index
    %514 = vector.load %arg16[%c32_558, %c0_559] : memref<96x128xf32, #tpu.memory_space<vmem>>, vector<8x32xf32>
    %515 = arith.truncf %514 : vector<8x32xf32> to vector<8x32xbf16>
    %c8_560 = arith.constant 8 : index
    %c224_561 = arith.constant 224 : index
    %516 = vector.load %arg17[%c8_560, %c224_561] : memref<32x1024xbf16, #tpu.memory_space<vmem>>, vector<8x32xbf16>
    tpu.vector_store %arg17[%c8_560, %c224_561], %515 {strides = array<i32>} : memref<32x1024xbf16, #tpu.memory_space<vmem>>, vector<8x32xbf16>,
    %c9_562 = arith.constant 9 : index
    %c0_563 = arith.constant 0 : index
    %517 = vector.load %arg16[%c9_562, %c0_563] : memref<96x128xf32, #tpu.memory_space<vmem>>, vector<8x32xf32>
    %518 = arith.truncf %517 : vector<8x32xf32> to vector<8x32xbf16>
    %c0_564 = arith.constant 0 : index
    %c256_565 = arith.constant 256 : index
    %519 = vector.load %arg17[%c0_564, %c256_565] : memref<32x1024xbf16, #tpu.memory_space<vmem>>, vector<8x32xbf16>
    tpu.vector_store %arg17[%c0_564, %c256_565], %518 {strides = array<i32>} : memref<32x1024xbf16, #tpu.memory_space<vmem>>, vector<8x32xbf16>,
    %c33 = arith.constant 33 : index
    %c0_566 = arith.constant 0 : index
    %520 = vector.load %arg16[%c33, %c0_566] : memref<96x128xf32, #tpu.memory_space<vmem>>, vector<8x32xf32>
    %521 = arith.truncf %520 : vector<8x32xf32> to vector<8x32xbf16>
    %c8_567 = arith.constant 8 : index
    %c256_568 = arith.constant 256 : index
    %522 = vector.load %arg17[%c8_567, %c256_568] : memref<32x1024xbf16, #tpu.memory_space<vmem>>, vector<8x32xbf16>
    tpu.vector_store %arg17[%c8_567, %c256_568], %521 {strides = array<i32>} : memref<32x1024xbf16, #tpu.memory_space<vmem>>, vector<8x32xbf16>,
    %c10_569 = arith.constant 10 : index
    %c0_570 = arith.constant 0 : index
    %523 = vector.load %arg16[%c10_569, %c0_570] : memref<96x128xf32, #tpu.memory_space<vmem>>, vector<8x32xf32>
    %524 = arith.truncf %523 : vector<8x32xf32> to vector<8x32xbf16>
    %c0_571 = arith.constant 0 : index
    %c288_572 = arith.constant 288 : index
    %525 = vector.load %arg17[%c0_571, %c288_572] : memref<32x1024xbf16, #tpu.memory_space<vmem>>, vector<8x32xbf16>
    tpu.vector_store %arg17[%c0_571, %c288_572], %524 {strides = array<i32>} : memref<32x1024xbf16, #tpu.memory_space<vmem>>, vector<8x32xbf16>,
    %c34 = arith.constant 34 : index
    %c0_573 = arith.constant 0 : index
    %526 = vector.load %arg16[%c34, %c0_573] : memref<96x128xf32, #tpu.memory_space<vmem>>, vector<8x32xf32>
    %527 = arith.truncf %526 : vector<8x32xf32> to vector<8x32xbf16>
    %c8_574 = arith.constant 8 : index
    %c288_575 = arith.constant 288 : index
    %528 = vector.load %arg17[%c8_574, %c288_575] : memref<32x1024xbf16, #tpu.memory_space<vmem>>, vector<8x32xbf16>
    tpu.vector_store %arg17[%c8_574, %c288_575], %527 {strides = array<i32>} : memref<32x1024xbf16, #tpu.memory_space<vmem>>, vector<8x32xbf16>,
    %c11_576 = arith.constant 11 : index
    %c0_577 = arith.constant 0 : index
    %529 = vector.load %arg16[%c11_576, %c0_577] : memref<96x128xf32, #tpu.memory_space<vmem>>, vector<8x32xf32>
    %530 = arith.truncf %529 : vector<8x32xf32> to vector<8x32xbf16>
    %c0_578 = arith.constant 0 : index
    %c320_579 = arith.constant 320 : index
    %531 = vector.load %arg17[%c0_578, %c320_579] : memref<32x1024xbf16, #tpu.memory_space<vmem>>, vector<8x32xbf16>
    tpu.vector_store %arg17[%c0_578, %c320_579], %530 {strides = array<i32>} : memref<32x1024xbf16, #tpu.memory_space<vmem>>, vector<8x32xbf16>,
    %c35 = arith.constant 35 : index
    %c0_580 = arith.constant 0 : index
    %532 = vector.load %arg16[%c35, %c0_580] : memref<96x128xf32, #tpu.memory_space<vmem>>, vector<8x32xf32>
    %533 = arith.truncf %532 : vector<8x32xf32> to vector<8x32xbf16>
    %c8_581 = arith.constant 8 : index
    %c320_582 = arith.constant 320 : index
    %534 = vector.load %arg17[%c8_581, %c320_582] : memref<32x1024xbf16, #tpu.memory_space<vmem>>, vector<8x32xbf16>
    tpu.vector_store %arg17[%c8_581, %c320_582], %533 {strides = array<i32>} : memref<32x1024xbf16, #tpu.memory_space<vmem>>, vector<8x32xbf16>,
    %c12_583 = arith.constant 12 : index
    %c0_584 = arith.constant 0 : index
    %535 = vector.load %arg16[%c12_583, %c0_584] : memref<96x128xf32, #tpu.memory_space<vmem>>, vector<8x32xf32>
    %536 = arith.truncf %535 : vector<8x32xf32> to vector<8x32xbf16>
    %c0_585 = arith.constant 0 : index
    %c352_586 = arith.constant 352 : index
    %537 = vector.load %arg17[%c0_585, %c352_586] : memref<32x1024xbf16, #tpu.memory_space<vmem>>, vector<8x32xbf16>
    tpu.vector_store %arg17[%c0_585, %c352_586], %536 {strides = array<i32>} : memref<32x1024xbf16, #tpu.memory_space<vmem>>, vector<8x32xbf16>,
    %c36_587 = arith.constant 36 : index
    %c0_588 = arith.constant 0 : index
    %538 = vector.load %arg16[%c36_587, %c0_588] : memref<96x128xf32, #tpu.memory_space<vmem>>, vector<8x32xf32>
    %539 = arith.truncf %538 : vector<8x32xf32> to vector<8x32xbf16>
    %c8_589 = arith.constant 8 : index
    %c352_590 = arith.constant 352 : index
    %540 = vector.load %arg17[%c8_589, %c352_590] : memref<32x1024xbf16, #tpu.memory_space<vmem>>, vector<8x32xbf16>
    tpu.vector_store %arg17[%c8_589, %c352_590], %539 {strides = array<i32>} : memref<32x1024xbf16, #tpu.memory_space<vmem>>, vector<8x32xbf16>,
    %c13_591 = arith.constant 13 : index
    %c0_592 = arith.constant 0 : index
    %541 = vector.load %arg16[%c13_591, %c0_592] : memref<96x128xf32, #tpu.memory_space<vmem>>, vector<8x32xf32>
    %542 = arith.truncf %541 : vector<8x32xf32> to vector<8x32xbf16>
    %c0_593 = arith.constant 0 : index
    %c384_594 = arith.constant 384 : index
    %543 = vector.load %arg17[%c0_593, %c384_594] : memref<32x1024xbf16, #tpu.memory_space<vmem>>, vector<8x32xbf16>
    tpu.vector_store %arg17[%c0_593, %c384_594], %542 {strides = array<i32>} : memref<32x1024xbf16, #tpu.memory_space<vmem>>, vector<8x32xbf16>,
    %c37 = arith.constant 37 : index
    %c0_595 = arith.constant 0 : index
    %544 = vector.load %arg16[%c37, %c0_595] : memref<96x128xf32, #tpu.memory_space<vmem>>, vector<8x32xf32>
    %545 = arith.truncf %544 : vector<8x32xf32> to vector<8x32xbf16>
    %c8_596 = arith.constant 8 : index
    %c384_597 = arith.constant 384 : index
    %546 = vector.load %arg17[%c8_596, %c384_597] : memref<32x1024xbf16, #tpu.memory_space<vmem>>, vector<8x32xbf16>
    tpu.vector_store %arg17[%c8_596, %c384_597], %545 {strides = array<i32>} : memref<32x1024xbf16, #tpu.memory_space<vmem>>, vector<8x32xbf16>,
    %c14_598 = arith.constant 14 : index
    %c0_599 = arith.constant 0 : index
    %547 = vector.load %arg16[%c14_598, %c0_599] : memref<96x128xf32, #tpu.memory_space<vmem>>, vector<8x32xf32>
    %548 = arith.truncf %547 : vector<8x32xf32> to vector<8x32xbf16>
    %c0_600 = arith.constant 0 : index
    %c416_601 = arith.constant 416 : index
    %549 = vector.load %arg17[%c0_600, %c416_601] : memref<32x1024xbf16, #tpu.memory_space<vmem>>, vector<8x32xbf16>
    tpu.vector_store %arg17[%c0_600, %c416_601], %548 {strides = array<i32>} : memref<32x1024xbf16, #tpu.memory_space<vmem>>, vector<8x32xbf16>,
    %c38 = arith.constant 38 : index
    %c0_602 = arith.constant 0 : index
    %550 = vector.load %arg16[%c38, %c0_602] : memref<96x128xf32, #tpu.memory_space<vmem>>, vector<8x32xf32>
    %551 = arith.truncf %550 : vector<8x32xf32> to vector<8x32xbf16>
    %c8_603 = arith.constant 8 : index
    %c416_604 = arith.constant 416 : index
    %552 = vector.load %arg17[%c8_603, %c416_604] : memref<32x1024xbf16, #tpu.memory_space<vmem>>, vector<8x32xbf16>
    tpu.vector_store %arg17[%c8_603, %c416_604], %551 {strides = array<i32>} : memref<32x1024xbf16, #tpu.memory_space<vmem>>, vector<8x32xbf16>,
    %c15_605 = arith.constant 15 : index
    %c0_606 = arith.constant 0 : index
    %553 = vector.load %arg16[%c15_605, %c0_606] : memref<96x128xf32, #tpu.memory_space<vmem>>, vector<8x32xf32>
    %554 = arith.truncf %553 : vector<8x32xf32> to vector<8x32xbf16>
    %c0_607 = arith.constant 0 : index
    %c448_608 = arith.constant 448 : index
    %555 = vector.load %arg17[%c0_607, %c448_608] : memref<32x1024xbf16, #tpu.memory_space<vmem>>, vector<8x32xbf16>
    tpu.vector_store %arg17[%c0_607, %c448_608], %554 {strides = array<i32>} : memref<32x1024xbf16, #tpu.memory_space<vmem>>, vector<8x32xbf16>,
    %c39 = arith.constant 39 : index
    %c0_609 = arith.constant 0 : index
    %556 = vector.load %arg16[%c39, %c0_609] : memref<96x128xf32, #tpu.memory_space<vmem>>, vector<8x32xf32>
    %557 = arith.truncf %556 : vector<8x32xf32> to vector<8x32xbf16>
    %c8_610 = arith.constant 8 : index
    %c448_611 = arith.constant 448 : index
    %558 = vector.load %arg17[%c8_610, %c448_611] : memref<32x1024xbf16, #tpu.memory_space<vmem>>, vector<8x32xbf16>
    tpu.vector_store %arg17[%c8_610, %c448_611], %557 {strides = array<i32>} : memref<32x1024xbf16, #tpu.memory_space<vmem>>, vector<8x32xbf16>,
    %c16_612 = arith.constant 16 : index
    %c0_613 = arith.constant 0 : index
    %559 = vector.load %arg16[%c16_612, %c0_613] : memref<96x128xf32, #tpu.memory_space<vmem>>, vector<8x32xf32>
    %560 = arith.truncf %559 : vector<8x32xf32> to vector<8x32xbf16>
    %c0_614 = arith.constant 0 : index
    %c480_615 = arith.constant 480 : index
    %561 = vector.load %arg17[%c0_614, %c480_615] : memref<32x1024xbf16, #tpu.memory_space<vmem>>, vector<8x32xbf16>
    tpu.vector_store %arg17[%c0_614, %c480_615], %560 {strides = array<i32>} : memref<32x1024xbf16, #tpu.memory_space<vmem>>, vector<8x32xbf16>,
    %c40_616 = arith.constant 40 : index
    %c0_617 = arith.constant 0 : index
    %562 = vector.load %arg16[%c40_616, %c0_617] : memref<96x128xf32, #tpu.memory_space<vmem>>, vector<8x32xf32>
    %563 = arith.truncf %562 : vector<8x32xf32> to vector<8x32xbf16>
    %c8_618 = arith.constant 8 : index
    %c480_619 = arith.constant 480 : index
    %564 = vector.load %arg17[%c8_618, %c480_619] : memref<32x1024xbf16, #tpu.memory_space<vmem>>, vector<8x32xbf16>
    tpu.vector_store %arg17[%c8_618, %c480_619], %563 {strides = array<i32>} : memref<32x1024xbf16, #tpu.memory_space<vmem>>, vector<8x32xbf16>,
    %c0_620 = arith.constant 0 : index
    %c0_621 = arith.constant 0 : index
    %565 = vector.load %arg17[%c0_620, %c0_621] : memref<32x1024xbf16, #tpu.memory_space<vmem>>, vector<16x512xbf16>
    %c0_622 = arith.constant 0 : index
    %c0_623 = arith.constant 0 : index
    %566 = vector.load %arg4[%c0_622, %c0_623] : memref<512x64xbf16, #tpu.memory_space<vmem>>, vector<512x64xbf16>
    %cst_624 = arith.constant dense<0.000000e+00> : vector<16x64xf32>
    %567 = tpu.matmul %565, %566, %cst_624 {dimension_numbers = #tpu.dot_dimension_numbers<[1], [0], [0], [1], [0, 0, 1, 1], [], []>} : vector<16x512xbf16>, vector<512x64xbf16>, vector<16x64xf32> -> vector<16x64xf32>
    %568 = vector.broadcast %448 : vector<1x64xf32> to vector<16x64xf32>
    %569 = arith.addf %567, %568 : vector<16x64xf32>
    %570 = vector.broadcast %449 : vector<1x64xf32> to vector<16x64xf32>
    %571 = arith.mulf %569, %570 : vector<16x64xf32>
    %572 = vector.broadcast %450 : vector<1x64xf32> to vector<16x64xf32>
    %573 = arith.addf %571, %572 : vector<16x64xf32>
    %cst_625 = arith.constant 0.000000e+00 : f32
    %574 = vector.broadcast %cst_625 : f32 to vector<16x64xf32>
    %575 = arith.maximumf %573, %574 : vector<16x64xf32>
    %cst_626 = arith.constant 0.000000e+00 : f32
    %576 = vector.broadcast %cst_626 : f32 to vector<8x64xf32>
    %cst_627 = arith.constant 0.000000e+00 : f32
    %577 = vector.broadcast %cst_627 : f32 to vector<8x64xf32>
    %c0_628 = arith.constant 0 : index
    %c0_629 = arith.constant 0 : index
    %578 = vector.load %arg16[%c0_628, %c0_629] : memref<96x128xf32, #tpu.memory_space<vmem>>, vector<8x64xf32>
    tpu.vector_store %arg16[%c0_628, %c0_629], %576 {strides = array<i32>} : memref<96x128xf32, #tpu.memory_space<vmem>>, vector<8x64xf32>,
    %c16_630 = arith.constant 16 : index
    %c0_631 = arith.constant 0 : index
    %579 = vector.load %arg16[%c16_630, %c0_631] : memref<96x128xf32, #tpu.memory_space<vmem>>, vector<8x64xf32>
    tpu.vector_store %arg16[%c16_630, %c0_631], %577 {strides = array<i32>} : memref<96x128xf32, #tpu.memory_space<vmem>>, vector<8x64xf32>,
    %580 = vector.extract_strided_slice %575 {offsets = [0, 0], sizes = [8, 64], strides = [1, 1]} : vector<16x64xf32> to vector<8x64xf32>
    %c8_632 = arith.constant 8 : index
    %c0_633 = arith.constant 0 : index
    %581 = vector.load %arg16[%c8_632, %c0_633] : memref<96x128xf32, #tpu.memory_space<vmem>>, vector<8x64xf32>
    tpu.vector_store %arg16[%c8_632, %c0_633], %580 {strides = array<i32>} : memref<96x128xf32, #tpu.memory_space<vmem>>, vector<8x64xf32>,
    %c24_634 = arith.constant 24 : index
    %c0_635 = arith.constant 0 : index
    %582 = vector.load %arg16[%c24_634, %c0_635] : memref<96x128xf32, #tpu.memory_space<vmem>>, vector<8x64xf32>
    tpu.vector_store %arg16[%c24_634, %c0_635], %576 {strides = array<i32>} : memref<96x128xf32, #tpu.memory_space<vmem>>, vector<8x64xf32>,
    %c40_636 = arith.constant 40 : index
    %c0_637 = arith.constant 0 : index
    %583 = vector.load %arg16[%c40_636, %c0_637] : memref<96x128xf32, #tpu.memory_space<vmem>>, vector<8x64xf32>
    tpu.vector_store %arg16[%c40_636, %c0_637], %577 {strides = array<i32>} : memref<96x128xf32, #tpu.memory_space<vmem>>, vector<8x64xf32>,
    %584 = vector.extract_strided_slice %575 {offsets = [8, 0], sizes = [8, 64], strides = [1, 1]} : vector<16x64xf32> to vector<8x64xf32>
    %c32_638 = arith.constant 32 : index
    %c0_639 = arith.constant 0 : index
    %585 = vector.load %arg16[%c32_638, %c0_639] : memref<96x128xf32, #tpu.memory_space<vmem>>, vector<8x64xf32>
    tpu.vector_store %arg16[%c32_638, %c0_639], %584 {strides = array<i32>} : memref<96x128xf32, #tpu.memory_space<vmem>>, vector<8x64xf32>,
    %c1_640 = arith.constant 1 : index
    %c0_641 = arith.constant 0 : index
    %586 = vector.load %arg16[%c1_640, %c0_641] : memref<96x128xf32, #tpu.memory_space<vmem>>, vector<8x64xf32>
    %587 = arith.truncf %586 : vector<8x64xf32> to vector<8x64xbf16>
    %c0_642 = arith.constant 0 : index
    %c0_643 = arith.constant 0 : index
    %588 = vector.load %arg17[%c0_642, %c0_643] : memref<32x1024xbf16, #tpu.memory_space<vmem>>, vector<8x64xbf16>
    tpu.vector_store %arg17[%c0_642, %c0_643], %587 {strides = array<i32>} : memref<32x1024xbf16, #tpu.memory_space<vmem>>, vector<8x64xbf16>,
    %c25_644 = arith.constant 25 : index
    %c0_645 = arith.constant 0 : index
    %589 = vector.load %arg16[%c25_644, %c0_645] : memref<96x128xf32, #tpu.memory_space<vmem>>, vector<8x64xf32>
    %590 = arith.truncf %589 : vector<8x64xf32> to vector<8x64xbf16>
    %c8_646 = arith.constant 8 : index
    %c0_647 = arith.constant 0 : index
    %591 = vector.load %arg17[%c8_646, %c0_647] : memref<32x1024xbf16, #tpu.memory_space<vmem>>, vector<8x64xbf16>
    tpu.vector_store %arg17[%c8_646, %c0_647], %590 {strides = array<i32>} : memref<32x1024xbf16, #tpu.memory_space<vmem>>, vector<8x64xbf16>,
    %c2_648 = arith.constant 2 : index
    %c0_649 = arith.constant 0 : index
    %592 = vector.load %arg16[%c2_648, %c0_649] : memref<96x128xf32, #tpu.memory_space<vmem>>, vector<8x64xf32>
    %593 = arith.truncf %592 : vector<8x64xf32> to vector<8x64xbf16>
    %c0_650 = arith.constant 0 : index
    %c64_651 = arith.constant 64 : index
    %594 = vector.load %arg17[%c0_650, %c64_651] : memref<32x1024xbf16, #tpu.memory_space<vmem>>, vector<8x64xbf16>
    tpu.vector_store %arg17[%c0_650, %c64_651], %593 {strides = array<i32>} : memref<32x1024xbf16, #tpu.memory_space<vmem>>, vector<8x64xbf16>,
    %c26_652 = arith.constant 26 : index
    %c0_653 = arith.constant 0 : index
    %595 = vector.load %arg16[%c26_652, %c0_653] : memref<96x128xf32, #tpu.memory_space<vmem>>, vector<8x64xf32>
    %596 = arith.truncf %595 : vector<8x64xf32> to vector<8x64xbf16>
    %c8_654 = arith.constant 8 : index
    %c64_655 = arith.constant 64 : index
    %597 = vector.load %arg17[%c8_654, %c64_655] : memref<32x1024xbf16, #tpu.memory_space<vmem>>, vector<8x64xbf16>
    tpu.vector_store %arg17[%c8_654, %c64_655], %596 {strides = array<i32>} : memref<32x1024xbf16, #tpu.memory_space<vmem>>, vector<8x64xbf16>,
    %c3_656 = arith.constant 3 : index
    %c0_657 = arith.constant 0 : index
    %598 = vector.load %arg16[%c3_656, %c0_657] : memref<96x128xf32, #tpu.memory_space<vmem>>, vector<8x64xf32>
    %599 = arith.truncf %598 : vector<8x64xf32> to vector<8x64xbf16>
    %c0_658 = arith.constant 0 : index
    %c128_659 = arith.constant 128 : index
    %600 = vector.load %arg17[%c0_658, %c128_659] : memref<32x1024xbf16, #tpu.memory_space<vmem>>, vector<8x64xbf16>
    tpu.vector_store %arg17[%c0_658, %c128_659], %599 {strides = array<i32>} : memref<32x1024xbf16, #tpu.memory_space<vmem>>, vector<8x64xbf16>,
    %c27_660 = arith.constant 27 : index
    %c0_661 = arith.constant 0 : index
    %601 = vector.load %arg16[%c27_660, %c0_661] : memref<96x128xf32, #tpu.memory_space<vmem>>, vector<8x64xf32>
    %602 = arith.truncf %601 : vector<8x64xf32> to vector<8x64xbf16>
    %c8_662 = arith.constant 8 : index
    %c128_663 = arith.constant 128 : index
    %603 = vector.load %arg17[%c8_662, %c128_663] : memref<32x1024xbf16, #tpu.memory_space<vmem>>, vector<8x64xbf16>
    tpu.vector_store %arg17[%c8_662, %c128_663], %602 {strides = array<i32>} : memref<32x1024xbf16, #tpu.memory_space<vmem>>, vector<8x64xbf16>,
    %c4_664 = arith.constant 4 : index
    %c0_665 = arith.constant 0 : index
    %604 = vector.load %arg16[%c4_664, %c0_665] : memref<96x128xf32, #tpu.memory_space<vmem>>, vector<8x64xf32>
    %605 = arith.truncf %604 : vector<8x64xf32> to vector<8x64xbf16>
    %c0_666 = arith.constant 0 : index
    %c192_667 = arith.constant 192 : index
    %606 = vector.load %arg17[%c0_666, %c192_667] : memref<32x1024xbf16, #tpu.memory_space<vmem>>, vector<8x64xbf16>
    tpu.vector_store %arg17[%c0_666, %c192_667], %605 {strides = array<i32>} : memref<32x1024xbf16, #tpu.memory_space<vmem>>, vector<8x64xbf16>,
    %c28_668 = arith.constant 28 : index
    %c0_669 = arith.constant 0 : index
    %607 = vector.load %arg16[%c28_668, %c0_669] : memref<96x128xf32, #tpu.memory_space<vmem>>, vector<8x64xf32>
    %608 = arith.truncf %607 : vector<8x64xf32> to vector<8x64xbf16>
    %c8_670 = arith.constant 8 : index
    %c192_671 = arith.constant 192 : index
    %609 = vector.load %arg17[%c8_670, %c192_671] : memref<32x1024xbf16, #tpu.memory_space<vmem>>, vector<8x64xbf16>
    tpu.vector_store %arg17[%c8_670, %c192_671], %608 {strides = array<i32>} : memref<32x1024xbf16, #tpu.memory_space<vmem>>, vector<8x64xbf16>,
    %c5_672 = arith.constant 5 : index
    %c0_673 = arith.constant 0 : index
    %610 = vector.load %arg16[%c5_672, %c0_673] : memref<96x128xf32, #tpu.memory_space<vmem>>, vector<8x64xf32>
    %611 = arith.truncf %610 : vector<8x64xf32> to vector<8x64xbf16>
    %c0_674 = arith.constant 0 : index
    %c256_675 = arith.constant 256 : index
    %612 = vector.load %arg17[%c0_674, %c256_675] : memref<32x1024xbf16, #tpu.memory_space<vmem>>, vector<8x64xbf16>
    tpu.vector_store %arg17[%c0_674, %c256_675], %611 {strides = array<i32>} : memref<32x1024xbf16, #tpu.memory_space<vmem>>, vector<8x64xbf16>,
    %c29_676 = arith.constant 29 : index
    %c0_677 = arith.constant 0 : index
    %613 = vector.load %arg16[%c29_676, %c0_677] : memref<96x128xf32, #tpu.memory_space<vmem>>, vector<8x64xf32>
    %614 = arith.truncf %613 : vector<8x64xf32> to vector<8x64xbf16>
    %c8_678 = arith.constant 8 : index
    %c256_679 = arith.constant 256 : index
    %615 = vector.load %arg17[%c8_678, %c256_679] : memref<32x1024xbf16, #tpu.memory_space<vmem>>, vector<8x64xbf16>
    tpu.vector_store %arg17[%c8_678, %c256_679], %614 {strides = array<i32>} : memref<32x1024xbf16, #tpu.memory_space<vmem>>, vector<8x64xbf16>,
    %c6_680 = arith.constant 6 : index
    %c0_681 = arith.constant 0 : index
    %616 = vector.load %arg16[%c6_680, %c0_681] : memref<96x128xf32, #tpu.memory_space<vmem>>, vector<8x64xf32>
    %617 = arith.truncf %616 : vector<8x64xf32> to vector<8x64xbf16>
    %c0_682 = arith.constant 0 : index
    %c320_683 = arith.constant 320 : index
    %618 = vector.load %arg17[%c0_682, %c320_683] : memref<32x1024xbf16, #tpu.memory_space<vmem>>, vector<8x64xbf16>
    tpu.vector_store %arg17[%c0_682, %c320_683], %617 {strides = array<i32>} : memref<32x1024xbf16, #tpu.memory_space<vmem>>, vector<8x64xbf16>,
    %c30_684 = arith.constant 30 : index
    %c0_685 = arith.constant 0 : index
    %619 = vector.load %arg16[%c30_684, %c0_685] : memref<96x128xf32, #tpu.memory_space<vmem>>, vector<8x64xf32>
    %620 = arith.truncf %619 : vector<8x64xf32> to vector<8x64xbf16>
    %c8_686 = arith.constant 8 : index
    %c320_687 = arith.constant 320 : index
    %621 = vector.load %arg17[%c8_686, %c320_687] : memref<32x1024xbf16, #tpu.memory_space<vmem>>, vector<8x64xbf16>
    tpu.vector_store %arg17[%c8_686, %c320_687], %620 {strides = array<i32>} : memref<32x1024xbf16, #tpu.memory_space<vmem>>, vector<8x64xbf16>,
    %c7_688 = arith.constant 7 : index
    %c0_689 = arith.constant 0 : index
    %622 = vector.load %arg16[%c7_688, %c0_689] : memref<96x128xf32, #tpu.memory_space<vmem>>, vector<8x64xf32>
    %623 = arith.truncf %622 : vector<8x64xf32> to vector<8x64xbf16>
    %c0_690 = arith.constant 0 : index
    %c384_691 = arith.constant 384 : index
    %624 = vector.load %arg17[%c0_690, %c384_691] : memref<32x1024xbf16, #tpu.memory_space<vmem>>, vector<8x64xbf16>
    tpu.vector_store %arg17[%c0_690, %c384_691], %623 {strides = array<i32>} : memref<32x1024xbf16, #tpu.memory_space<vmem>>, vector<8x64xbf16>,
    %c31_692 = arith.constant 31 : index
    %c0_693 = arith.constant 0 : index
    %625 = vector.load %arg16[%c31_692, %c0_693] : memref<96x128xf32, #tpu.memory_space<vmem>>, vector<8x64xf32>
    %626 = arith.truncf %625 : vector<8x64xf32> to vector<8x64xbf16>
    %c8_694 = arith.constant 8 : index
    %c384_695 = arith.constant 384 : index
    %627 = vector.load %arg17[%c8_694, %c384_695] : memref<32x1024xbf16, #tpu.memory_space<vmem>>, vector<8x64xbf16>
    tpu.vector_store %arg17[%c8_694, %c384_695], %626 {strides = array<i32>} : memref<32x1024xbf16, #tpu.memory_space<vmem>>, vector<8x64xbf16>,
    %c8_696 = arith.constant 8 : index
    %c0_697 = arith.constant 0 : index
    %628 = vector.load %arg16[%c8_696, %c0_697] : memref<96x128xf32, #tpu.memory_space<vmem>>, vector<8x64xf32>
    %629 = arith.truncf %628 : vector<8x64xf32> to vector<8x64xbf16>
    %c0_698 = arith.constant 0 : index
    %c448_699 = arith.constant 448 : index
    %630 = vector.load %arg17[%c0_698, %c448_699] : memref<32x1024xbf16, #tpu.memory_space<vmem>>, vector<8x64xbf16>
    tpu.vector_store %arg17[%c0_698, %c448_699], %629 {strides = array<i32>} : memref<32x1024xbf16, #tpu.memory_space<vmem>>, vector<8x64xbf16>,
    %c32_700 = arith.constant 32 : index
    %c0_701 = arith.constant 0 : index
    %631 = vector.load %arg16[%c32_700, %c0_701] : memref<96x128xf32, #tpu.memory_space<vmem>>, vector<8x64xf32>
    %632 = arith.truncf %631 : vector<8x64xf32> to vector<8x64xbf16>
    %c8_702 = arith.constant 8 : index
    %c448_703 = arith.constant 448 : index
    %633 = vector.load %arg17[%c8_702, %c448_703] : memref<32x1024xbf16, #tpu.memory_space<vmem>>, vector<8x64xbf16>
    tpu.vector_store %arg17[%c8_702, %c448_703], %632 {strides = array<i32>} : memref<32x1024xbf16, #tpu.memory_space<vmem>>, vector<8x64xbf16>,
    %c9_704 = arith.constant 9 : index
    %c0_705 = arith.constant 0 : index
    %634 = vector.load %arg16[%c9_704, %c0_705] : memref<96x128xf32, #tpu.memory_space<vmem>>, vector<8x64xf32>
    %635 = arith.truncf %634 : vector<8x64xf32> to vector<8x64xbf16>
    %c0_706 = arith.constant 0 : index
    %c512_707 = arith.constant 512 : index
    %636 = vector.load %arg17[%c0_706, %c512_707] : memref<32x1024xbf16, #tpu.memory_space<vmem>>, vector<8x64xbf16>
    tpu.vector_store %arg17[%c0_706, %c512_707], %635 {strides = array<i32>} : memref<32x1024xbf16, #tpu.memory_space<vmem>>, vector<8x64xbf16>,
    %c33_708 = arith.constant 33 : index
    %c0_709 = arith.constant 0 : index
    %637 = vector.load %arg16[%c33_708, %c0_709] : memref<96x128xf32, #tpu.memory_space<vmem>>, vector<8x64xf32>
    %638 = arith.truncf %637 : vector<8x64xf32> to vector<8x64xbf16>
    %c8_710 = arith.constant 8 : index
    %c512_711 = arith.constant 512 : index
    %639 = vector.load %arg17[%c8_710, %c512_711] : memref<32x1024xbf16, #tpu.memory_space<vmem>>, vector<8x64xbf16>
    tpu.vector_store %arg17[%c8_710, %c512_711], %638 {strides = array<i32>} : memref<32x1024xbf16, #tpu.memory_space<vmem>>, vector<8x64xbf16>,
    %c10_712 = arith.constant 10 : index
    %c0_713 = arith.constant 0 : index
    %640 = vector.load %arg16[%c10_712, %c0_713] : memref<96x128xf32, #tpu.memory_space<vmem>>, vector<8x64xf32>
    %641 = arith.truncf %640 : vector<8x64xf32> to vector<8x64xbf16>
    %c0_714 = arith.constant 0 : index
    %c576_715 = arith.constant 576 : index
    %642 = vector.load %arg17[%c0_714, %c576_715] : memref<32x1024xbf16, #tpu.memory_space<vmem>>, vector<8x64xbf16>
    tpu.vector_store %arg17[%c0_714, %c576_715], %641 {strides = array<i32>} : memref<32x1024xbf16, #tpu.memory_space<vmem>>, vector<8x64xbf16>,
    %c34_716 = arith.constant 34 : index
    %c0_717 = arith.constant 0 : index
    %643 = vector.load %arg16[%c34_716, %c0_717] : memref<96x128xf32, #tpu.memory_space<vmem>>, vector<8x64xf32>
    %644 = arith.truncf %643 : vector<8x64xf32> to vector<8x64xbf16>
    %c8_718 = arith.constant 8 : index
    %c576_719 = arith.constant 576 : index
    %645 = vector.load %arg17[%c8_718, %c576_719] : memref<32x1024xbf16, #tpu.memory_space<vmem>>, vector<8x64xbf16>
    tpu.vector_store %arg17[%c8_718, %c576_719], %644 {strides = array<i32>} : memref<32x1024xbf16, #tpu.memory_space<vmem>>, vector<8x64xbf16>,
    %c11_720 = arith.constant 11 : index
    %c0_721 = arith.constant 0 : index
    %646 = vector.load %arg16[%c11_720, %c0_721] : memref<96x128xf32, #tpu.memory_space<vmem>>, vector<8x64xf32>
    %647 = arith.truncf %646 : vector<8x64xf32> to vector<8x64xbf16>
    %c0_722 = arith.constant 0 : index
    %c640_723 = arith.constant 640 : index
    %648 = vector.load %arg17[%c0_722, %c640_723] : memref<32x1024xbf16, #tpu.memory_space<vmem>>, vector<8x64xbf16>
    tpu.vector_store %arg17[%c0_722, %c640_723], %647 {strides = array<i32>} : memref<32x1024xbf16, #tpu.memory_space<vmem>>, vector<8x64xbf16>,
    %c35_724 = arith.constant 35 : index
    %c0_725 = arith.constant 0 : index
    %649 = vector.load %arg16[%c35_724, %c0_725] : memref<96x128xf32, #tpu.memory_space<vmem>>, vector<8x64xf32>
    %650 = arith.truncf %649 : vector<8x64xf32> to vector<8x64xbf16>
    %c8_726 = arith.constant 8 : index
    %c640_727 = arith.constant 640 : index
    %651 = vector.load %arg17[%c8_726, %c640_727] : memref<32x1024xbf16, #tpu.memory_space<vmem>>, vector<8x64xbf16>
    tpu.vector_store %arg17[%c8_726, %c640_727], %650 {strides = array<i32>} : memref<32x1024xbf16, #tpu.memory_space<vmem>>, vector<8x64xbf16>,
    %c12_728 = arith.constant 12 : index
    %c0_729 = arith.constant 0 : index
    %652 = vector.load %arg16[%c12_728, %c0_729] : memref<96x128xf32, #tpu.memory_space<vmem>>, vector<8x64xf32>
    %653 = arith.truncf %652 : vector<8x64xf32> to vector<8x64xbf16>
    %c0_730 = arith.constant 0 : index
    %c704_731 = arith.constant 704 : index
    %654 = vector.load %arg17[%c0_730, %c704_731] : memref<32x1024xbf16, #tpu.memory_space<vmem>>, vector<8x64xbf16>
    tpu.vector_store %arg17[%c0_730, %c704_731], %653 {strides = array<i32>} : memref<32x1024xbf16, #tpu.memory_space<vmem>>, vector<8x64xbf16>,
    %c36_732 = arith.constant 36 : index
    %c0_733 = arith.constant 0 : index
    %655 = vector.load %arg16[%c36_732, %c0_733] : memref<96x128xf32, #tpu.memory_space<vmem>>, vector<8x64xf32>
    %656 = arith.truncf %655 : vector<8x64xf32> to vector<8x64xbf16>
    %c8_734 = arith.constant 8 : index
    %c704_735 = arith.constant 704 : index
    %657 = vector.load %arg17[%c8_734, %c704_735] : memref<32x1024xbf16, #tpu.memory_space<vmem>>, vector<8x64xbf16>
    tpu.vector_store %arg17[%c8_734, %c704_735], %656 {strides = array<i32>} : memref<32x1024xbf16, #tpu.memory_space<vmem>>, vector<8x64xbf16>,
    %c13_736 = arith.constant 13 : index
    %c0_737 = arith.constant 0 : index
    %658 = vector.load %arg16[%c13_736, %c0_737] : memref<96x128xf32, #tpu.memory_space<vmem>>, vector<8x64xf32>
    %659 = arith.truncf %658 : vector<8x64xf32> to vector<8x64xbf16>
    %c0_738 = arith.constant 0 : index
    %c768_739 = arith.constant 768 : index
    %660 = vector.load %arg17[%c0_738, %c768_739] : memref<32x1024xbf16, #tpu.memory_space<vmem>>, vector<8x64xbf16>
    tpu.vector_store %arg17[%c0_738, %c768_739], %659 {strides = array<i32>} : memref<32x1024xbf16, #tpu.memory_space<vmem>>, vector<8x64xbf16>,
    %c37_740 = arith.constant 37 : index
    %c0_741 = arith.constant 0 : index
    %661 = vector.load %arg16[%c37_740, %c0_741] : memref<96x128xf32, #tpu.memory_space<vmem>>, vector<8x64xf32>
    %662 = arith.truncf %661 : vector<8x64xf32> to vector<8x64xbf16>
    %c8_742 = arith.constant 8 : index
    %c768_743 = arith.constant 768 : index
    %663 = vector.load %arg17[%c8_742, %c768_743] : memref<32x1024xbf16, #tpu.memory_space<vmem>>, vector<8x64xbf16>
    tpu.vector_store %arg17[%c8_742, %c768_743], %662 {strides = array<i32>} : memref<32x1024xbf16, #tpu.memory_space<vmem>>, vector<8x64xbf16>,
    %c14_744 = arith.constant 14 : index
    %c0_745 = arith.constant 0 : index
    %664 = vector.load %arg16[%c14_744, %c0_745] : memref<96x128xf32, #tpu.memory_space<vmem>>, vector<8x64xf32>
    %665 = arith.truncf %664 : vector<8x64xf32> to vector<8x64xbf16>
    %c0_746 = arith.constant 0 : index
    %c832_747 = arith.constant 832 : index
    %666 = vector.load %arg17[%c0_746, %c832_747] : memref<32x1024xbf16, #tpu.memory_space<vmem>>, vector<8x64xbf16>
    tpu.vector_store %arg17[%c0_746, %c832_747], %665 {strides = array<i32>} : memref<32x1024xbf16, #tpu.memory_space<vmem>>, vector<8x64xbf16>,
    %c38_748 = arith.constant 38 : index
    %c0_749 = arith.constant 0 : index
    %667 = vector.load %arg16[%c38_748, %c0_749] : memref<96x128xf32, #tpu.memory_space<vmem>>, vector<8x64xf32>
    %668 = arith.truncf %667 : vector<8x64xf32> to vector<8x64xbf16>
    %c8_750 = arith.constant 8 : index
    %c832_751 = arith.constant 832 : index
    %669 = vector.load %arg17[%c8_750, %c832_751] : memref<32x1024xbf16, #tpu.memory_space<vmem>>, vector<8x64xbf16>
    tpu.vector_store %arg17[%c8_750, %c832_751], %668 {strides = array<i32>} : memref<32x1024xbf16, #tpu.memory_space<vmem>>, vector<8x64xbf16>,
    %c15_752 = arith.constant 15 : index
    %c0_753 = arith.constant 0 : index
    %670 = vector.load %arg16[%c15_752, %c0_753] : memref<96x128xf32, #tpu.memory_space<vmem>>, vector<8x64xf32>
    %671 = arith.truncf %670 : vector<8x64xf32> to vector<8x64xbf16>
    %c0_754 = arith.constant 0 : index
    %c896_755 = arith.constant 896 : index
    %672 = vector.load %arg17[%c0_754, %c896_755] : memref<32x1024xbf16, #tpu.memory_space<vmem>>, vector<8x64xbf16>
    tpu.vector_store %arg17[%c0_754, %c896_755], %671 {strides = array<i32>} : memref<32x1024xbf16, #tpu.memory_space<vmem>>, vector<8x64xbf16>,
    %c39_756 = arith.constant 39 : index
    %c0_757 = arith.constant 0 : index
    %673 = vector.load %arg16[%c39_756, %c0_757] : memref<96x128xf32, #tpu.memory_space<vmem>>, vector<8x64xf32>
    %674 = arith.truncf %673 : vector<8x64xf32> to vector<8x64xbf16>
    %c8_758 = arith.constant 8 : index
    %c896_759 = arith.constant 896 : index
    %675 = vector.load %arg17[%c8_758, %c896_759] : memref<32x1024xbf16, #tpu.memory_space<vmem>>, vector<8x64xbf16>
    tpu.vector_store %arg17[%c8_758, %c896_759], %674 {strides = array<i32>} : memref<32x1024xbf16, #tpu.memory_space<vmem>>, vector<8x64xbf16>,
    %c16_760 = arith.constant 16 : index
    %c0_761 = arith.constant 0 : index
    %676 = vector.load %arg16[%c16_760, %c0_761] : memref<96x128xf32, #tpu.memory_space<vmem>>, vector<8x64xf32>
    %677 = arith.truncf %676 : vector<8x64xf32> to vector<8x64xbf16>
    %c0_762 = arith.constant 0 : index
    %c960_763 = arith.constant 960 : index
    %678 = vector.load %arg17[%c0_762, %c960_763] : memref<32x1024xbf16, #tpu.memory_space<vmem>>, vector<8x64xbf16>
    tpu.vector_store %arg17[%c0_762, %c960_763], %677 {strides = array<i32>} : memref<32x1024xbf16, #tpu.memory_space<vmem>>, vector<8x64xbf16>,
    %c40_764 = arith.constant 40 : index
    %c0_765 = arith.constant 0 : index
    %679 = vector.load %arg16[%c40_764, %c0_765] : memref<96x128xf32, #tpu.memory_space<vmem>>, vector<8x64xf32>
    %680 = arith.truncf %679 : vector<8x64xf32> to vector<8x64xbf16>
    %c8_766 = arith.constant 8 : index
    %c960_767 = arith.constant 960 : index
    %681 = vector.load %arg17[%c8_766, %c960_767] : memref<32x1024xbf16, #tpu.memory_space<vmem>>, vector<8x64xbf16>
    tpu.vector_store %arg17[%c8_766, %c960_767], %680 {strides = array<i32>} : memref<32x1024xbf16, #tpu.memory_space<vmem>>, vector<8x64xbf16>,
    %c0_768 = arith.constant 0 : index
    %c0_769 = arith.constant 0 : index
    %682 = vector.load %arg17[%c0_768, %c0_769] : memref<32x1024xbf16, #tpu.memory_space<vmem>>, vector<16x1024xbf16>
    %c0_770 = arith.constant 0 : index
    %c0_771 = arith.constant 0 : index
    %683 = vector.load %arg5[%c0_770, %c0_771] : memref<1024x64xbf16, #tpu.memory_space<vmem>>, vector<1024x64xbf16>
    %cst_772 = arith.constant dense<0.000000e+00> : vector<16x64xf32>
    %684 = tpu.matmul %682, %683, %cst_772 {dimension_numbers = #tpu.dot_dimension_numbers<[1], [0], [0], [1], [0, 0, 1, 1], [], []>} : vector<16x1024xbf16>, vector<1024x64xbf16>, vector<16x64xf32> -> vector<16x64xf32>
    %685 = vector.broadcast %451 : vector<1x64xf32> to vector<16x64xf32>
    %686 = arith.addf %684, %685 : vector<16x64xf32>
    %687 = arith.truncf %445 : vector<16x32xf32> to vector<16x32xbf16>
    %c0_773 = arith.constant 0 : index
    %c0_774 = arith.constant 0 : index
    %688 = vector.load %arg9[%c0_773, %c0_774] : memref<32x64xbf16, #tpu.memory_space<vmem>>, vector<32x64xbf16>
    %cst_775 = arith.constant dense<0.000000e+00> : vector<16x64xf32>
    %689 = tpu.matmul %687, %688, %cst_775 {dimension_numbers = #tpu.dot_dimension_numbers<[1], [0], [0], [1], [0, 0, 1, 1], [], []>} : vector<16x32xbf16>, vector<32x64xbf16>, vector<16x64xf32> -> vector<16x64xf32>
    %690 = vector.broadcast %452 : vector<1x64xf32> to vector<16x64xf32>
    %691 = arith.addf %689, %690 : vector<16x64xf32>
    %692 = arith.addf %686, %691 : vector<16x64xf32>
    %cst_776 = arith.constant 0.000000e+00 : f32
    %693 = vector.broadcast %cst_776 : f32 to vector<16x64xf32>
    %694 = arith.maximumf %692, %693 : vector<16x64xf32>
    %c0_777 = arith.constant 0 : index
    %c0_778 = arith.constant 0 : index
    %695 = vector.load %arg18[%c0_777, %c0_778] : memref<32x128xf32, #tpu.memory_space<vmem>>, vector<16x64xf32>
    tpu.vector_store %arg18[%c0_777, %c0_778], %694 {strides = array<i32>} : memref<32x128xf32, #tpu.memory_space<vmem>>, vector<16x64xf32>,
    %c0_779 = arith.constant 0 : index
    %c0_780 = arith.constant 0 : index
    %696 = tpu.strided_load %arg18[%c0_779, %c0_780] {strides = array<i32: 2, 1>} : memref<32x128xf32, #tpu.memory_space<vmem>>, vector<8x64xf32>
    %c1_781 = arith.constant 1 : index
    %c0_782 = arith.constant 0 : index
    %697 = tpu.strided_load %arg18[%c1_781, %c0_782] {strides = array<i32: 2, 1>} : memref<32x128xf32, #tpu.memory_space<vmem>>, vector<8x64xf32>
    %698 = arith.maximumf %696, %697 : vector<8x64xf32>
    %c14_783 = arith.constant 14 : index
    %c0_784 = arith.constant 0 : index
    %699 = vector.load %arg1[%c14_783, %c0_784] : memref<25x256xf32, #tpu.memory_space<vmem>>, vector<1x64xf32>
    %c15_785 = arith.constant 15 : index
    %c0_786 = arith.constant 0 : index
    %700 = vector.load %arg1[%c15_785, %c0_786] : memref<25x256xf32, #tpu.memory_space<vmem>>, vector<1x64xf32>
    %c16_787 = arith.constant 16 : index
    %c0_788 = arith.constant 0 : index
    %701 = vector.load %arg1[%c16_787, %c0_788] : memref<25x256xf32, #tpu.memory_space<vmem>>, vector<1x128xf32>
    %c17_789 = arith.constant 17 : index
    %c0_790 = arith.constant 0 : index
    %702 = vector.load %arg1[%c17_789, %c0_790] : memref<25x256xf32, #tpu.memory_space<vmem>>, vector<1x128xf32>
    %c18_791 = arith.constant 18 : index
    %c0_792 = arith.constant 0 : index
    %703 = vector.load %arg1[%c18_791, %c0_792] : memref<25x256xf32, #tpu.memory_space<vmem>>, vector<1x128xf32>
    %c19_793 = arith.constant 19 : index
    %c0_794 = arith.constant 0 : index
    %704 = vector.load %arg1[%c19_793, %c0_794] : memref<25x256xf32, #tpu.memory_space<vmem>>, vector<1x128xf32>
    %c20_795 = arith.constant 20 : index
    %c0_796 = arith.constant 0 : index
    %705 = vector.load %arg1[%c20_795, %c0_796] : memref<25x256xf32, #tpu.memory_space<vmem>>, vector<1x128xf32>
    %706 = vector.broadcast %699 : vector<1x64xf32> to vector<8x64xf32>
    %707 = arith.mulf %698, %706 : vector<8x64xf32>
    %708 = vector.broadcast %700 : vector<1x64xf32> to vector<8x64xf32>
    %709 = arith.addf %707, %708 : vector<8x64xf32>
    %cst_797 = arith.constant 0.000000e+00 : f32
    %710 = vector.broadcast %cst_797 : f32 to vector<8x64xf32>
    %711 = arith.maximumf %709, %710 : vector<8x64xf32>
    %cst_798 = arith.constant 0.000000e+00 : f32
    %712 = vector.broadcast %cst_798 : f32 to vector<8x64xf32>
    %cst_799 = arith.constant 0.000000e+00 : f32
    %713 = vector.broadcast %cst_799 : f32 to vector<4x64xf32>
    %c0_800 = arith.constant 0 : index
    %c0_801 = arith.constant 0 : index
    %714 = vector.load %arg16[%c0_800, %c0_801] : memref<96x128xf32, #tpu.memory_space<vmem>>, vector<8x64xf32>
    tpu.vector_store %arg16[%c0_800, %c0_801], %712 {strides = array<i32>} : memref<96x128xf32, #tpu.memory_space<vmem>>, vector<8x64xf32>,
    %c12_802 = arith.constant 12 : index
    %c0_803 = arith.constant 0 : index
    %715 = vector.load %arg16[%c12_802, %c0_803] : memref<96x128xf32, #tpu.memory_space<vmem>>, vector<4x64xf32>
    tpu.vector_store %arg16[%c12_802, %c0_803], %713 {strides = array<i32>} : memref<96x128xf32, #tpu.memory_space<vmem>>, vector<4x64xf32>,
    %716 = vector.extract_strided_slice %711 {offsets = [0, 0], sizes = [4, 64], strides = [1, 1]} : vector<8x64xf32> to vector<4x64xf32>
    %c8_804 = arith.constant 8 : index
    %c0_805 = arith.constant 0 : index
    %717 = vector.load %arg16[%c8_804, %c0_805] : memref<96x128xf32, #tpu.memory_space<vmem>>, vector<4x64xf32>
    tpu.vector_store %arg16[%c8_804, %c0_805], %716 {strides = array<i32>} : memref<96x128xf32, #tpu.memory_space<vmem>>, vector<4x64xf32>,
    %c16_806 = arith.constant 16 : index
    %c0_807 = arith.constant 0 : index
    %718 = vector.load %arg16[%c16_806, %c0_807] : memref<96x128xf32, #tpu.memory_space<vmem>>, vector<8x64xf32>
    tpu.vector_store %arg16[%c16_806, %c0_807], %712 {strides = array<i32>} : memref<96x128xf32, #tpu.memory_space<vmem>>, vector<8x64xf32>,
    %c28_808 = arith.constant 28 : index
    %c0_809 = arith.constant 0 : index
    %719 = vector.load %arg16[%c28_808, %c0_809] : memref<96x128xf32, #tpu.memory_space<vmem>>, vector<4x64xf32>
    tpu.vector_store %arg16[%c28_808, %c0_809], %713 {strides = array<i32>} : memref<96x128xf32, #tpu.memory_space<vmem>>, vector<4x64xf32>,
    %720 = vector.extract_strided_slice %711 {offsets = [4, 0], sizes = [4, 64], strides = [1, 1]} : vector<8x64xf32> to vector<4x64xf32>
    %c24_810 = arith.constant 24 : index
    %c0_811 = arith.constant 0 : index
    %721 = vector.load %arg16[%c24_810, %c0_811] : memref<96x128xf32, #tpu.memory_space<vmem>>, vector<4x64xf32>
    tpu.vector_store %arg16[%c24_810, %c0_811], %720 {strides = array<i32>} : memref<96x128xf32, #tpu.memory_space<vmem>>, vector<4x64xf32>,
    %c5_812 = arith.constant 5 : index
    %c0_813 = arith.constant 0 : index
    %722 = vector.load %arg16[%c5_812, %c0_813] : memref<96x128xf32, #tpu.memory_space<vmem>>, vector<4x64xf32>
    %723 = arith.truncf %722 : vector<4x64xf32> to vector<4x64xbf16>
    %c0_814 = arith.constant 0 : index
    %c0_815 = arith.constant 0 : index
    %724 = vector.load %arg17[%c0_814, %c0_815] : memref<32x1024xbf16, #tpu.memory_space<vmem>>, vector<4x64xbf16>
    tpu.vector_store %arg17[%c0_814, %c0_815], %723 {strides = array<i32>} : memref<32x1024xbf16, #tpu.memory_space<vmem>>, vector<4x64xbf16>,
    %c21_816 = arith.constant 21 : index
    %c0_817 = arith.constant 0 : index
    %725 = vector.load %arg16[%c21_816, %c0_817] : memref<96x128xf32, #tpu.memory_space<vmem>>, vector<4x64xf32>
    %726 = arith.truncf %725 : vector<4x64xf32> to vector<4x64xbf16>
    %c4_818 = arith.constant 4 : index
    %c0_819 = arith.constant 0 : index
    %727 = vector.load %arg17[%c4_818, %c0_819] : memref<32x1024xbf16, #tpu.memory_space<vmem>>, vector<4x64xbf16>
    tpu.vector_store %arg17[%c4_818, %c0_819], %726 {strides = array<i32>} : memref<32x1024xbf16, #tpu.memory_space<vmem>>, vector<4x64xbf16>,
    %c6_820 = arith.constant 6 : index
    %c0_821 = arith.constant 0 : index
    %728 = vector.load %arg16[%c6_820, %c0_821] : memref<96x128xf32, #tpu.memory_space<vmem>>, vector<4x64xf32>
    %729 = arith.truncf %728 : vector<4x64xf32> to vector<4x64xbf16>
    %c0_822 = arith.constant 0 : index
    %c64_823 = arith.constant 64 : index
    %730 = vector.load %arg17[%c0_822, %c64_823] : memref<32x1024xbf16, #tpu.memory_space<vmem>>, vector<4x64xbf16>
    tpu.vector_store %arg17[%c0_822, %c64_823], %729 {strides = array<i32>} : memref<32x1024xbf16, #tpu.memory_space<vmem>>, vector<4x64xbf16>,
    %c22_824 = arith.constant 22 : index
    %c0_825 = arith.constant 0 : index
    %731 = vector.load %arg16[%c22_824, %c0_825] : memref<96x128xf32, #tpu.memory_space<vmem>>, vector<4x64xf32>
    %732 = arith.truncf %731 : vector<4x64xf32> to vector<4x64xbf16>
    %c4_826 = arith.constant 4 : index
    %c64_827 = arith.constant 64 : index
    %733 = vector.load %arg17[%c4_826, %c64_827] : memref<32x1024xbf16, #tpu.memory_space<vmem>>, vector<4x64xbf16>
    tpu.vector_store %arg17[%c4_826, %c64_827], %732 {strides = array<i32>} : memref<32x1024xbf16, #tpu.memory_space<vmem>>, vector<4x64xbf16>,
    %c7_828 = arith.constant 7 : index
    %c0_829 = arith.constant 0 : index
    %734 = vector.load %arg16[%c7_828, %c0_829] : memref<96x128xf32, #tpu.memory_space<vmem>>, vector<4x64xf32>
    %735 = arith.truncf %734 : vector<4x64xf32> to vector<4x64xbf16>
    %c0_830 = arith.constant 0 : index
    %c128_831 = arith.constant 128 : index
    %736 = vector.load %arg17[%c0_830, %c128_831] : memref<32x1024xbf16, #tpu.memory_space<vmem>>, vector<4x64xbf16>
    tpu.vector_store %arg17[%c0_830, %c128_831], %735 {strides = array<i32>} : memref<32x1024xbf16, #tpu.memory_space<vmem>>, vector<4x64xbf16>,
    %c23_832 = arith.constant 23 : index
    %c0_833 = arith.constant 0 : index
    %737 = vector.load %arg16[%c23_832, %c0_833] : memref<96x128xf32, #tpu.memory_space<vmem>>, vector<4x64xf32>
    %738 = arith.truncf %737 : vector<4x64xf32> to vector<4x64xbf16>
    %c4_834 = arith.constant 4 : index
    %c128_835 = arith.constant 128 : index
    %739 = vector.load %arg17[%c4_834, %c128_835] : memref<32x1024xbf16, #tpu.memory_space<vmem>>, vector<4x64xbf16>
    tpu.vector_store %arg17[%c4_834, %c128_835], %738 {strides = array<i32>} : memref<32x1024xbf16, #tpu.memory_space<vmem>>, vector<4x64xbf16>,
    %c8_836 = arith.constant 8 : index
    %c0_837 = arith.constant 0 : index
    %740 = vector.load %arg16[%c8_836, %c0_837] : memref<96x128xf32, #tpu.memory_space<vmem>>, vector<4x64xf32>
    %741 = arith.truncf %740 : vector<4x64xf32> to vector<4x64xbf16>
    %c0_838 = arith.constant 0 : index
    %c192_839 = arith.constant 192 : index
    %742 = vector.load %arg17[%c0_838, %c192_839] : memref<32x1024xbf16, #tpu.memory_space<vmem>>, vector<4x64xbf16>
    tpu.vector_store %arg17[%c0_838, %c192_839], %741 {strides = array<i32>} : memref<32x1024xbf16, #tpu.memory_space<vmem>>, vector<4x64xbf16>,
    %c24_840 = arith.constant 24 : index
    %c0_841 = arith.constant 0 : index
    %743 = vector.load %arg16[%c24_840, %c0_841] : memref<96x128xf32, #tpu.memory_space<vmem>>, vector<4x64xf32>
    %744 = arith.truncf %743 : vector<4x64xf32> to vector<4x64xbf16>
    %c4_842 = arith.constant 4 : index
    %c192_843 = arith.constant 192 : index
    %745 = vector.load %arg17[%c4_842, %c192_843] : memref<32x1024xbf16, #tpu.memory_space<vmem>>, vector<4x64xbf16>
    tpu.vector_store %arg17[%c4_842, %c192_843], %744 {strides = array<i32>} : memref<32x1024xbf16, #tpu.memory_space<vmem>>, vector<4x64xbf16>,
    %c9_844 = arith.constant 9 : index
    %c0_845 = arith.constant 0 : index
    %746 = vector.load %arg16[%c9_844, %c0_845] : memref<96x128xf32, #tpu.memory_space<vmem>>, vector<4x64xf32>
    %747 = arith.truncf %746 : vector<4x64xf32> to vector<4x64xbf16>
    %c0_846 = arith.constant 0 : index
    %c256_847 = arith.constant 256 : index
    %748 = vector.load %arg17[%c0_846, %c256_847] : memref<32x1024xbf16, #tpu.memory_space<vmem>>, vector<4x64xbf16>
    tpu.vector_store %arg17[%c0_846, %c256_847], %747 {strides = array<i32>} : memref<32x1024xbf16, #tpu.memory_space<vmem>>, vector<4x64xbf16>,
    %c25_848 = arith.constant 25 : index
    %c0_849 = arith.constant 0 : index
    %749 = vector.load %arg16[%c25_848, %c0_849] : memref<96x128xf32, #tpu.memory_space<vmem>>, vector<4x64xf32>
    %750 = arith.truncf %749 : vector<4x64xf32> to vector<4x64xbf16>
    %c4_850 = arith.constant 4 : index
    %c256_851 = arith.constant 256 : index
    %751 = vector.load %arg17[%c4_850, %c256_851] : memref<32x1024xbf16, #tpu.memory_space<vmem>>, vector<4x64xbf16>
    tpu.vector_store %arg17[%c4_850, %c256_851], %750 {strides = array<i32>} : memref<32x1024xbf16, #tpu.memory_space<vmem>>, vector<4x64xbf16>,
    %c10_852 = arith.constant 10 : index
    %c0_853 = arith.constant 0 : index
    %752 = vector.load %arg16[%c10_852, %c0_853] : memref<96x128xf32, #tpu.memory_space<vmem>>, vector<4x64xf32>
    %753 = arith.truncf %752 : vector<4x64xf32> to vector<4x64xbf16>
    %c0_854 = arith.constant 0 : index
    %c320_855 = arith.constant 320 : index
    %754 = vector.load %arg17[%c0_854, %c320_855] : memref<32x1024xbf16, #tpu.memory_space<vmem>>, vector<4x64xbf16>
    tpu.vector_store %arg17[%c0_854, %c320_855], %753 {strides = array<i32>} : memref<32x1024xbf16, #tpu.memory_space<vmem>>, vector<4x64xbf16>,
    %c26_856 = arith.constant 26 : index
    %c0_857 = arith.constant 0 : index
    %755 = vector.load %arg16[%c26_856, %c0_857] : memref<96x128xf32, #tpu.memory_space<vmem>>, vector<4x64xf32>
    %756 = arith.truncf %755 : vector<4x64xf32> to vector<4x64xbf16>
    %c4_858 = arith.constant 4 : index
    %c320_859 = arith.constant 320 : index
    %757 = vector.load %arg17[%c4_858, %c320_859] : memref<32x1024xbf16, #tpu.memory_space<vmem>>, vector<4x64xbf16>
    tpu.vector_store %arg17[%c4_858, %c320_859], %756 {strides = array<i32>} : memref<32x1024xbf16, #tpu.memory_space<vmem>>, vector<4x64xbf16>,
    %c11_860 = arith.constant 11 : index
    %c0_861 = arith.constant 0 : index
    %758 = vector.load %arg16[%c11_860, %c0_861] : memref<96x128xf32, #tpu.memory_space<vmem>>, vector<4x64xf32>
    %759 = arith.truncf %758 : vector<4x64xf32> to vector<4x64xbf16>
    %c0_862 = arith.constant 0 : index
    %c384_863 = arith.constant 384 : index
    %760 = vector.load %arg17[%c0_862, %c384_863] : memref<32x1024xbf16, #tpu.memory_space<vmem>>, vector<4x64xbf16>
    tpu.vector_store %arg17[%c0_862, %c384_863], %759 {strides = array<i32>} : memref<32x1024xbf16, #tpu.memory_space<vmem>>, vector<4x64xbf16>,
    %c27_864 = arith.constant 27 : index
    %c0_865 = arith.constant 0 : index
    %761 = vector.load %arg16[%c27_864, %c0_865] : memref<96x128xf32, #tpu.memory_space<vmem>>, vector<4x64xf32>
    %762 = arith.truncf %761 : vector<4x64xf32> to vector<4x64xbf16>
    %c4_866 = arith.constant 4 : index
    %c384_867 = arith.constant 384 : index
    %763 = vector.load %arg17[%c4_866, %c384_867] : memref<32x1024xbf16, #tpu.memory_space<vmem>>, vector<4x64xbf16>
    tpu.vector_store %arg17[%c4_866, %c384_867], %762 {strides = array<i32>} : memref<32x1024xbf16, #tpu.memory_space<vmem>>, vector<4x64xbf16>,
    %c12_868 = arith.constant 12 : index
    %c0_869 = arith.constant 0 : index
    %764 = vector.load %arg16[%c12_868, %c0_869] : memref<96x128xf32, #tpu.memory_space<vmem>>, vector<4x64xf32>
    %765 = arith.truncf %764 : vector<4x64xf32> to vector<4x64xbf16>
    %c0_870 = arith.constant 0 : index
    %c448_871 = arith.constant 448 : index
    %766 = vector.load %arg17[%c0_870, %c448_871] : memref<32x1024xbf16, #tpu.memory_space<vmem>>, vector<4x64xbf16>
    tpu.vector_store %arg17[%c0_870, %c448_871], %765 {strides = array<i32>} : memref<32x1024xbf16, #tpu.memory_space<vmem>>, vector<4x64xbf16>,
    %c28_872 = arith.constant 28 : index
    %c0_873 = arith.constant 0 : index
    %767 = vector.load %arg16[%c28_872, %c0_873] : memref<96x128xf32, #tpu.memory_space<vmem>>, vector<4x64xf32>
    %768 = arith.truncf %767 : vector<4x64xf32> to vector<4x64xbf16>
    %c4_874 = arith.constant 4 : index
    %c448_875 = arith.constant 448 : index
    %769 = vector.load %arg17[%c4_874, %c448_875] : memref<32x1024xbf16, #tpu.memory_space<vmem>>, vector<4x64xbf16>
    tpu.vector_store %arg17[%c4_874, %c448_875], %768 {strides = array<i32>} : memref<32x1024xbf16, #tpu.memory_space<vmem>>, vector<4x64xbf16>,
    %c0_876 = arith.constant 0 : index
    %c0_877 = arith.constant 0 : index
    %770 = vector.load %arg17[%c0_876, %c0_877] : memref<32x1024xbf16, #tpu.memory_space<vmem>>, vector<8x512xbf16>
    %c0_878 = arith.constant 0 : index
    %c0_879 = arith.constant 0 : index
    %771 = vector.load %arg6[%c0_878, %c0_879] : memref<512x128xbf16, #tpu.memory_space<vmem>>, vector<512x128xbf16>
    %cst_880 = arith.constant dense<0.000000e+00> : vector<8x128xf32>
    %772 = tpu.matmul %770, %771, %cst_880 {dimension_numbers = #tpu.dot_dimension_numbers<[1], [0], [0], [1], [0, 0, 1, 1], [], []>} : vector<8x512xbf16>, vector<512x128xbf16>, vector<8x128xf32> -> vector<8x128xf32>
    %773 = vector.broadcast %701 : vector<1x128xf32> to vector<8x128xf32>
    %774 = arith.addf %772, %773 : vector<8x128xf32>
    %775 = vector.broadcast %702 : vector<1x128xf32> to vector<8x128xf32>
    %776 = arith.mulf %774, %775 : vector<8x128xf32>
    %777 = vector.broadcast %703 : vector<1x128xf32> to vector<8x128xf32>
    %778 = arith.addf %776, %777 : vector<8x128xf32>
    %cst_881 = arith.constant 0.000000e+00 : f32
    %779 = vector.broadcast %cst_881 : f32 to vector<8x128xf32>
    %780 = arith.maximumf %778, %779 : vector<8x128xf32>
    %cst_882 = arith.constant 0.000000e+00 : f32
    %781 = vector.broadcast %cst_882 : f32 to vector<8x128xf32>
    %cst_883 = arith.constant 0.000000e+00 : f32
    %782 = vector.broadcast %cst_883 : f32 to vector<4x128xf32>
    %c0_884 = arith.constant 0 : index
    %c0_885 = arith.constant 0 : index
    %783 = vector.load %arg16[%c0_884, %c0_885] : memref<96x128xf32, #tpu.memory_space<vmem>>, vector<8x128xf32>
    tpu.vector_store %arg16[%c0_884, %c0_885], %781 {strides = array<i32>} : memref<96x128xf32, #tpu.memory_space<vmem>>, vector<8x128xf32>,
    %c12_886 = arith.constant 12 : index
    %c0_887 = arith.constant 0 : index
    %784 = vector.load %arg16[%c12_886, %c0_887] : memref<96x128xf32, #tpu.memory_space<vmem>>, vector<4x128xf32>
    tpu.vector_store %arg16[%c12_886, %c0_887], %782 {strides = array<i32>} : memref<96x128xf32, #tpu.memory_space<vmem>>, vector<4x128xf32>,
    %785 = vector.extract_strided_slice %780 {offsets = [0, 0], sizes = [4, 128], strides = [1, 1]} : vector<8x128xf32> to vector<4x128xf32>
    %c8_888 = arith.constant 8 : index
    %c0_889 = arith.constant 0 : index
    %786 = vector.load %arg16[%c8_888, %c0_889] : memref<96x128xf32, #tpu.memory_space<vmem>>, vector<4x128xf32>
    tpu.vector_store %arg16[%c8_888, %c0_889], %785 {strides = array<i32>} : memref<96x128xf32, #tpu.memory_space<vmem>>, vector<4x128xf32>,
    %c16_890 = arith.constant 16 : index
    %c0_891 = arith.constant 0 : index
    %787 = vector.load %arg16[%c16_890, %c0_891] : memref<96x128xf32, #tpu.memory_space<vmem>>, vector<8x128xf32>
    tpu.vector_store %arg16[%c16_890, %c0_891], %781 {strides = array<i32>} : memref<96x128xf32, #tpu.memory_space<vmem>>, vector<8x128xf32>,
    %c28_892 = arith.constant 28 : index
    %c0_893 = arith.constant 0 : index
    %788 = vector.load %arg16[%c28_892, %c0_893] : memref<96x128xf32, #tpu.memory_space<vmem>>, vector<4x128xf32>
    tpu.vector_store %arg16[%c28_892, %c0_893], %782 {strides = array<i32>} : memref<96x128xf32, #tpu.memory_space<vmem>>, vector<4x128xf32>,
    %789 = vector.extract_strided_slice %780 {offsets = [4, 0], sizes = [4, 128], strides = [1, 1]} : vector<8x128xf32> to vector<4x128xf32>
    %c24_894 = arith.constant 24 : index
    %c0_895 = arith.constant 0 : index
    %790 = vector.load %arg16[%c24_894, %c0_895] : memref<96x128xf32, #tpu.memory_space<vmem>>, vector<4x128xf32>
    tpu.vector_store %arg16[%c24_894, %c0_895], %789 {strides = array<i32>} : memref<96x128xf32, #tpu.memory_space<vmem>>, vector<4x128xf32>,
    %c5_896 = arith.constant 5 : index
    %c0_897 = arith.constant 0 : index
    %791 = vector.load %arg16[%c5_896, %c0_897] : memref<96x128xf32, #tpu.memory_space<vmem>>, vector<4x128xf32>
    %792 = arith.truncf %791 : vector<4x128xf32> to vector<4x128xbf16>
    %c0_898 = arith.constant 0 : index
    %c0_899 = arith.constant 0 : index
    %793 = vector.load %arg17[%c0_898, %c0_899] : memref<32x1024xbf16, #tpu.memory_space<vmem>>, vector<4x128xbf16>
    tpu.vector_store %arg17[%c0_898, %c0_899], %792 {strides = array<i32>} : memref<32x1024xbf16, #tpu.memory_space<vmem>>, vector<4x128xbf16>,
    %c21_900 = arith.constant 21 : index
    %c0_901 = arith.constant 0 : index
    %794 = vector.load %arg16[%c21_900, %c0_901] : memref<96x128xf32, #tpu.memory_space<vmem>>, vector<4x128xf32>
    %795 = arith.truncf %794 : vector<4x128xf32> to vector<4x128xbf16>
    %c4_902 = arith.constant 4 : index
    %c0_903 = arith.constant 0 : index
    %796 = vector.load %arg17[%c4_902, %c0_903] : memref<32x1024xbf16, #tpu.memory_space<vmem>>, vector<4x128xbf16>
    tpu.vector_store %arg17[%c4_902, %c0_903], %795 {strides = array<i32>} : memref<32x1024xbf16, #tpu.memory_space<vmem>>, vector<4x128xbf16>,
    %c6_904 = arith.constant 6 : index
    %c0_905 = arith.constant 0 : index
    %797 = vector.load %arg16[%c6_904, %c0_905] : memref<96x128xf32, #tpu.memory_space<vmem>>, vector<4x128xf32>
    %798 = arith.truncf %797 : vector<4x128xf32> to vector<4x128xbf16>
    %c0_906 = arith.constant 0 : index
    %c128_907 = arith.constant 128 : index
    %799 = vector.load %arg17[%c0_906, %c128_907] : memref<32x1024xbf16, #tpu.memory_space<vmem>>, vector<4x128xbf16>
    tpu.vector_store %arg17[%c0_906, %c128_907], %798 {strides = array<i32>} : memref<32x1024xbf16, #tpu.memory_space<vmem>>, vector<4x128xbf16>,
    %c22_908 = arith.constant 22 : index
    %c0_909 = arith.constant 0 : index
    %800 = vector.load %arg16[%c22_908, %c0_909] : memref<96x128xf32, #tpu.memory_space<vmem>>, vector<4x128xf32>
    %801 = arith.truncf %800 : vector<4x128xf32> to vector<4x128xbf16>
    %c4_910 = arith.constant 4 : index
    %c128_911 = arith.constant 128 : index
    %802 = vector.load %arg17[%c4_910, %c128_911] : memref<32x1024xbf16, #tpu.memory_space<vmem>>, vector<4x128xbf16>
    tpu.vector_store %arg17[%c4_910, %c128_911], %801 {strides = array<i32>} : memref<32x1024xbf16, #tpu.memory_space<vmem>>, vector<4x128xbf16>,
    %c7_912 = arith.constant 7 : index
    %c0_913 = arith.constant 0 : index
    %803 = vector.load %arg16[%c7_912, %c0_913] : memref<96x128xf32, #tpu.memory_space<vmem>>, vector<4x128xf32>
    %804 = arith.truncf %803 : vector<4x128xf32> to vector<4x128xbf16>
    %c0_914 = arith.constant 0 : index
    %c256_915 = arith.constant 256 : index
    %805 = vector.load %arg17[%c0_914, %c256_915] : memref<32x1024xbf16, #tpu.memory_space<vmem>>, vector<4x128xbf16>
    tpu.vector_store %arg17[%c0_914, %c256_915], %804 {strides = array<i32>} : memref<32x1024xbf16, #tpu.memory_space<vmem>>, vector<4x128xbf16>,
    %c23_916 = arith.constant 23 : index
    %c0_917 = arith.constant 0 : index
    %806 = vector.load %arg16[%c23_916, %c0_917] : memref<96x128xf32, #tpu.memory_space<vmem>>, vector<4x128xf32>
    %807 = arith.truncf %806 : vector<4x128xf32> to vector<4x128xbf16>
    %c4_918 = arith.constant 4 : index
    %c256_919 = arith.constant 256 : index
    %808 = vector.load %arg17[%c4_918, %c256_919] : memref<32x1024xbf16, #tpu.memory_space<vmem>>, vector<4x128xbf16>
    tpu.vector_store %arg17[%c4_918, %c256_919], %807 {strides = array<i32>} : memref<32x1024xbf16, #tpu.memory_space<vmem>>, vector<4x128xbf16>,
    %c8_920 = arith.constant 8 : index
    %c0_921 = arith.constant 0 : index
    %809 = vector.load %arg16[%c8_920, %c0_921] : memref<96x128xf32, #tpu.memory_space<vmem>>, vector<4x128xf32>
    %810 = arith.truncf %809 : vector<4x128xf32> to vector<4x128xbf16>
    %c0_922 = arith.constant 0 : index
    %c384_923 = arith.constant 384 : index
    %811 = vector.load %arg17[%c0_922, %c384_923] : memref<32x1024xbf16, #tpu.memory_space<vmem>>, vector<4x128xbf16>
    tpu.vector_store %arg17[%c0_922, %c384_923], %810 {strides = array<i32>} : memref<32x1024xbf16, #tpu.memory_space<vmem>>, vector<4x128xbf16>,
    %c24_924 = arith.constant 24 : index
    %c0_925 = arith.constant 0 : index
    %812 = vector.load %arg16[%c24_924, %c0_925] : memref<96x128xf32, #tpu.memory_space<vmem>>, vector<4x128xf32>
    %813 = arith.truncf %812 : vector<4x128xf32> to vector<4x128xbf16>
    %c4_926 = arith.constant 4 : index
    %c384_927 = arith.constant 384 : index
    %814 = vector.load %arg17[%c4_926, %c384_927] : memref<32x1024xbf16, #tpu.memory_space<vmem>>, vector<4x128xbf16>
    tpu.vector_store %arg17[%c4_926, %c384_927], %813 {strides = array<i32>} : memref<32x1024xbf16, #tpu.memory_space<vmem>>, vector<4x128xbf16>,
    %c9_928 = arith.constant 9 : index
    %c0_929 = arith.constant 0 : index
    %815 = vector.load %arg16[%c9_928, %c0_929] : memref<96x128xf32, #tpu.memory_space<vmem>>, vector<4x128xf32>
    %816 = arith.truncf %815 : vector<4x128xf32> to vector<4x128xbf16>
    %c0_930 = arith.constant 0 : index
    %c512_931 = arith.constant 512 : index
    %817 = vector.load %arg17[%c0_930, %c512_931] : memref<32x1024xbf16, #tpu.memory_space<vmem>>, vector<4x128xbf16>
    tpu.vector_store %arg17[%c0_930, %c512_931], %816 {strides = array<i32>} : memref<32x1024xbf16, #tpu.memory_space<vmem>>, vector<4x128xbf16>,
    %c25_932 = arith.constant 25 : index
    %c0_933 = arith.constant 0 : index
    %818 = vector.load %arg16[%c25_932, %c0_933] : memref<96x128xf32, #tpu.memory_space<vmem>>, vector<4x128xf32>
    %819 = arith.truncf %818 : vector<4x128xf32> to vector<4x128xbf16>
    %c4_934 = arith.constant 4 : index
    %c512_935 = arith.constant 512 : index
    %820 = vector.load %arg17[%c4_934, %c512_935] : memref<32x1024xbf16, #tpu.memory_space<vmem>>, vector<4x128xbf16>
    tpu.vector_store %arg17[%c4_934, %c512_935], %819 {strides = array<i32>} : memref<32x1024xbf16, #tpu.memory_space<vmem>>, vector<4x128xbf16>,
    %c10_936 = arith.constant 10 : index
    %c0_937 = arith.constant 0 : index
    %821 = vector.load %arg16[%c10_936, %c0_937] : memref<96x128xf32, #tpu.memory_space<vmem>>, vector<4x128xf32>
    %822 = arith.truncf %821 : vector<4x128xf32> to vector<4x128xbf16>
    %c0_938 = arith.constant 0 : index
    %c640_939 = arith.constant 640 : index
    %823 = vector.load %arg17[%c0_938, %c640_939] : memref<32x1024xbf16, #tpu.memory_space<vmem>>, vector<4x128xbf16>
    tpu.vector_store %arg17[%c0_938, %c640_939], %822 {strides = array<i32>} : memref<32x1024xbf16, #tpu.memory_space<vmem>>, vector<4x128xbf16>,
    %c26_940 = arith.constant 26 : index
    %c0_941 = arith.constant 0 : index
    %824 = vector.load %arg16[%c26_940, %c0_941] : memref<96x128xf32, #tpu.memory_space<vmem>>, vector<4x128xf32>
    %825 = arith.truncf %824 : vector<4x128xf32> to vector<4x128xbf16>
    %c4_942 = arith.constant 4 : index
    %c640_943 = arith.constant 640 : index
    %826 = vector.load %arg17[%c4_942, %c640_943] : memref<32x1024xbf16, #tpu.memory_space<vmem>>, vector<4x128xbf16>
    tpu.vector_store %arg17[%c4_942, %c640_943], %825 {strides = array<i32>} : memref<32x1024xbf16, #tpu.memory_space<vmem>>, vector<4x128xbf16>,
    %c11_944 = arith.constant 11 : index
    %c0_945 = arith.constant 0 : index
    %827 = vector.load %arg16[%c11_944, %c0_945] : memref<96x128xf32, #tpu.memory_space<vmem>>, vector<4x128xf32>
    %828 = arith.truncf %827 : vector<4x128xf32> to vector<4x128xbf16>
    %c0_946 = arith.constant 0 : index
    %c768_947 = arith.constant 768 : index
    %829 = vector.load %arg17[%c0_946, %c768_947] : memref<32x1024xbf16, #tpu.memory_space<vmem>>, vector<4x128xbf16>
    tpu.vector_store %arg17[%c0_946, %c768_947], %828 {strides = array<i32>} : memref<32x1024xbf16, #tpu.memory_space<vmem>>, vector<4x128xbf16>,
    %c27_948 = arith.constant 27 : index
    %c0_949 = arith.constant 0 : index
    %830 = vector.load %arg16[%c27_948, %c0_949] : memref<96x128xf32, #tpu.memory_space<vmem>>, vector<4x128xf32>
    %831 = arith.truncf %830 : vector<4x128xf32> to vector<4x128xbf16>
    %c4_950 = arith.constant 4 : index
    %c768_951 = arith.constant 768 : index
    %832 = vector.load %arg17[%c4_950, %c768_951] : memref<32x1024xbf16, #tpu.memory_space<vmem>>, vector<4x128xbf16>
    tpu.vector_store %arg17[%c4_950, %c768_951], %831 {strides = array<i32>} : memref<32x1024xbf16, #tpu.memory_space<vmem>>, vector<4x128xbf16>,
    %c12_952 = arith.constant 12 : index
    %c0_953 = arith.constant 0 : index
    %833 = vector.load %arg16[%c12_952, %c0_953] : memref<96x128xf32, #tpu.memory_space<vmem>>, vector<4x128xf32>
    %834 = arith.truncf %833 : vector<4x128xf32> to vector<4x128xbf16>
    %c0_954 = arith.constant 0 : index
    %c896_955 = arith.constant 896 : index
    %835 = vector.load %arg17[%c0_954, %c896_955] : memref<32x1024xbf16, #tpu.memory_space<vmem>>, vector<4x128xbf16>
    tpu.vector_store %arg17[%c0_954, %c896_955], %834 {strides = array<i32>} : memref<32x1024xbf16, #tpu.memory_space<vmem>>, vector<4x128xbf16>,
    %c28_956 = arith.constant 28 : index
    %c0_957 = arith.constant 0 : index
    %836 = vector.load %arg16[%c28_956, %c0_957] : memref<96x128xf32, #tpu.memory_space<vmem>>, vector<4x128xf32>
    %837 = arith.truncf %836 : vector<4x128xf32> to vector<4x128xbf16>
    %c4_958 = arith.constant 4 : index
    %c896_959 = arith.constant 896 : index
    %838 = vector.load %arg17[%c4_958, %c896_959] : memref<32x1024xbf16, #tpu.memory_space<vmem>>, vector<4x128xbf16>
    tpu.vector_store %arg17[%c4_958, %c896_959], %837 {strides = array<i32>} : memref<32x1024xbf16, #tpu.memory_space<vmem>>, vector<4x128xbf16>,
    %c0_960 = arith.constant 0 : index
    %c0_961 = arith.constant 0 : index
    %839 = vector.load %arg17[%c0_960, %c0_961] : memref<32x1024xbf16, #tpu.memory_space<vmem>>, vector<8x1024xbf16>
    %c0_962 = arith.constant 0 : index
    %c0_963 = arith.constant 0 : index
    %840 = vector.load %arg7[%c0_962, %c0_963] : memref<1024x128xbf16, #tpu.memory_space<vmem>>, vector<1024x128xbf16>
    %cst_964 = arith.constant dense<0.000000e+00> : vector<8x128xf32>
    %841 = tpu.matmul %839, %840, %cst_964 {dimension_numbers = #tpu.dot_dimension_numbers<[1], [0], [0], [1], [0, 0, 1, 1], [], []>} : vector<8x1024xbf16>, vector<1024x128xbf16>, vector<8x128xf32> -> vector<8x128xf32>
    %842 = vector.broadcast %704 : vector<1x128xf32> to vector<8x128xf32>
    %843 = arith.addf %841, %842 : vector<8x128xf32>
    %844 = arith.truncf %698 : vector<8x64xf32> to vector<8x64xbf16>
    %c0_965 = arith.constant 0 : index
    %c0_966 = arith.constant 0 : index
    %845 = vector.load %arg10[%c0_965, %c0_966] : memref<64x128xbf16, #tpu.memory_space<vmem>>, vector<64x128xbf16>
    %cst_967 = arith.constant dense<0.000000e+00> : vector<8x128xf32>
    %846 = tpu.matmul %844, %845, %cst_967 {dimension_numbers = #tpu.dot_dimension_numbers<[1], [0], [0], [1], [0, 0, 1, 1], [], []>} : vector<8x64xbf16>, vector<64x128xbf16>, vector<8x128xf32> -> vector<8x128xf32>
    %847 = vector.broadcast %705 : vector<1x128xf32> to vector<8x128xf32>
    %848 = arith.addf %846, %847 : vector<8x128xf32>
    %849 = arith.addf %843, %848 : vector<8x128xf32>
    %cst_968 = arith.constant 0.000000e+00 : f32
    %850 = vector.broadcast %cst_968 : f32 to vector<8x128xf32>
    %851 = arith.maximumf %849, %850 : vector<8x128xf32>
    %c0_969 = arith.constant 0 : index
    %c0_970 = arith.constant 0 : index
    %852 = vector.load %arg18[%c0_969, %c0_970] : memref<32x128xf32, #tpu.memory_space<vmem>>, vector<8x128xf32>
    tpu.vector_store %arg18[%c0_969, %c0_970], %851 {strides = array<i32>} : memref<32x128xf32, #tpu.memory_space<vmem>>, vector<8x128xf32>,
    %c0_971 = arith.constant 0 : index
    %c0_972 = arith.constant 0 : index
    %853 = tpu.strided_load %arg18[%c0_971, %c0_972] {strides = array<i32: 2, 1>} : memref<32x128xf32, #tpu.memory_space<vmem>>, vector<4x128xf32>
    %c1_973 = arith.constant 1 : index
    %c0_974 = arith.constant 0 : index
    %854 = tpu.strided_load %arg18[%c1_973, %c0_974] {strides = array<i32: 2, 1>} : memref<32x128xf32, #tpu.memory_space<vmem>>, vector<4x128xf32>
    %855 = arith.maximumf %853, %854 : vector<4x128xf32>
    %856 = vector.extract_strided_slice %855 {offsets = [0, 0], sizes = [2, 128], strides = [1, 1]} : vector<4x128xf32> to vector<2x128xf32>
    %cst_975 = arith.constant dense<0.000000e+00> : vector<128xf32>
    %857 = vector.multi_reduction <add>, %856, %cst_975 [0] : vector<2x128xf32> to vector<128xf32>
    %858 = vector.shape_cast %857 : vector<128xf32> to vector<1x128xf32>
    %859 = vector.extract_strided_slice %855 {offsets = [2, 0], sizes = [2, 128], strides = [1, 1]} : vector<4x128xf32> to vector<2x128xf32>
    %cst_976 = arith.constant dense<0.000000e+00> : vector<128xf32>
    %860 = vector.multi_reduction <add>, %859, %cst_976 [0] : vector<2x128xf32> to vector<128xf32>
    %861 = vector.shape_cast %860 : vector<128xf32> to vector<1x128xf32>
    %862 = tpu.concatenate %858, %861 in 0 : vector<1x128xf32>, vector<1x128xf32> -> vector<2x128xf32>
    %cst_977 = arith.constant 5.000000e-01 : f32
    %863 = vector.broadcast %cst_977 : f32 to vector<2x128xf32>
    %864 = arith.mulf %862, %863 : vector<2x128xf32>
    %c21_978 = arith.constant 21 : index
    %c0_979 = arith.constant 0 : index
    %865 = vector.load %arg1[%c21_978, %c0_979] : memref<25x256xf32, #tpu.memory_space<vmem>>, vector<1x256xf32>
    %866 = arith.truncf %864 : vector<2x128xf32> to vector<2x128xbf16>
    %c0_980 = arith.constant 0 : index
    %c0_981 = arith.constant 0 : index
    %867 = vector.load %arg11[%c0_980, %c0_981] : memref<128x256xbf16, #tpu.memory_space<vmem>>, vector<128x256xbf16>
    %cst_982 = arith.constant dense<0.000000e+00> : vector<2x256xf32>
    %868 = tpu.matmul %866, %867, %cst_982 {dimension_numbers = #tpu.dot_dimension_numbers<[1], [0], [0], [1], [0, 0, 1, 1], [], []>} : vector<2x128xbf16>, vector<128x256xbf16>, vector<2x256xf32> -> vector<2x256xf32>
    %869 = vector.broadcast %865 : vector<1x256xf32> to vector<2x256xf32>
    %870 = arith.addf %868, %869 : vector<2x256xf32>
    %cst_983 = arith.constant 0.000000e+00 : f32
    %871 = vector.broadcast %cst_983 : f32 to vector<2x256xf32>
    %872 = arith.maximumf %870, %871 : vector<2x256xf32>
    %c22_984 = arith.constant 22 : index
    %c0_985 = arith.constant 0 : index
    %873 = vector.load %arg1[%c22_984, %c0_985] : memref<25x256xf32, #tpu.memory_space<vmem>>, vector<1x128xf32>
    %874 = arith.truncf %872 : vector<2x256xf32> to vector<2x256xbf16>
    %c0_986 = arith.constant 0 : index
    %c0_987 = arith.constant 0 : index
    %875 = vector.load %arg12[%c0_986, %c0_987] : memref<256x128xbf16, #tpu.memory_space<vmem>>, vector<256x128xbf16>
    %cst_988 = arith.constant dense<0.000000e+00> : vector<2x128xf32>
    %876 = tpu.matmul %874, %875, %cst_988 {dimension_numbers = #tpu.dot_dimension_numbers<[1], [0], [0], [1], [0, 0, 1, 1], [], []>} : vector<2x256xbf16>, vector<256x128xbf16>, vector<2x128xf32> -> vector<2x128xf32>
    %877 = vector.broadcast %873 : vector<1x128xf32> to vector<2x128xf32>
    %878 = arith.addf %876, %877 : vector<2x128xf32>
    %cst_989 = arith.constant 0.000000e+00 : f32
    %879 = vector.broadcast %cst_989 : f32 to vector<2x128xf32>
    %880 = arith.maximumf %878, %879 : vector<2x128xf32>
    %c23_990 = arith.constant 23 : index
    %c0_991 = arith.constant 0 : index
    %881 = vector.load %arg1[%c23_990, %c0_991] : memref<25x256xf32, #tpu.memory_space<vmem>>, vector<1x128xf32>
    %882 = arith.truncf %880 : vector<2x128xf32> to vector<2x128xbf16>
    %c0_992 = arith.constant 0 : index
    %c0_993 = arith.constant 0 : index
    %883 = vector.load %arg13[%c0_992, %c0_993] : memref<128x128xbf16, #tpu.memory_space<vmem>>, vector<128x128xbf16>
    %cst_994 = arith.constant dense<0.000000e+00> : vector<2x128xf32>
    %884 = tpu.matmul %882, %883, %cst_994 {dimension_numbers = #tpu.dot_dimension_numbers<[1], [0], [0], [1], [0, 0, 1, 1], [], []>} : vector<2x128xbf16>, vector<128x128xbf16>, vector<2x128xf32> -> vector<2x128xf32>
    %885 = vector.broadcast %881 : vector<1x128xf32> to vector<2x128xf32>
    %886 = arith.addf %884, %885 : vector<2x128xf32>
    %cst_995 = arith.constant 0.000000e+00 : f32
    %887 = vector.broadcast %cst_995 : f32 to vector<2x128xf32>
    %888 = arith.maximumf %886, %887 : vector<2x128xf32>
    %c24_996 = arith.constant 24 : index
    %c0_997 = arith.constant 0 : index
    %889 = vector.load %arg1[%c24_996, %c0_997] : memref<25x256xf32, #tpu.memory_space<vmem>>, vector<1x5xf32>
    %890 = arith.truncf %888 : vector<2x128xf32> to vector<2x128xbf16>
    %c0_998 = arith.constant 0 : index
    %c0_999 = arith.constant 0 : index
    %891 = vector.load %arg14[%c0_998, %c0_999] : memref<128x5xbf16, #tpu.memory_space<vmem>>, vector<128x5xbf16>
    %cst_1000 = arith.constant dense<0.000000e+00> : vector<2x5xf32>
    %892 = tpu.matmul %890, %891, %cst_1000 {dimension_numbers = #tpu.dot_dimension_numbers<[1], [0], [0], [1], [0, 0, 1, 1], [], []>} : vector<2x128xbf16>, vector<128x5xbf16>, vector<2x5xf32> -> vector<2x5xf32>
    %893 = vector.broadcast %889 : vector<1x5xf32> to vector<2x5xf32>
    %894 = arith.addf %892, %893 : vector<2x5xf32>
    %cst_1001 = arith.constant dense<0xFF800000> : vector<2xf32>
    %895 = vector.multi_reduction <maximumf>, %894, %cst_1001 [1] : vector<2x5xf32> to vector<2xf32>
    %896 = vector.shape_cast %895 : vector<2xf32> to vector<2x1xf32>
    %897 = vector.broadcast %896 : vector<2x1xf32> to vector<2x5xf32>
    %898 = arith.subf %894, %897 : vector<2x5xf32>
    %899 = math.exp %898 : vector<2x5xf32>
    %cst_1002 = arith.constant dense<0.000000e+00> : vector<2xf32>
    %900 = vector.multi_reduction <add>, %899, %cst_1002 [1] : vector<2x5xf32> to vector<2xf32>
    %901 = vector.shape_cast %900 : vector<2xf32> to vector<2x1xf32>
    %902 = vector.broadcast %901 : vector<2x1xf32> to vector<2x5xf32>
    %903 = arith.divf %899, %902 : vector<2x5xf32>
    %c0_1003 = arith.constant 0 : index
    %c0_1004 = arith.constant 0 : index
    %904 = vector.load %arg15[%c0_1003, %c0_1004] : memref<2x5xf32, #tpu.memory_space<vmem>>, vector<2x5xf32>
    tpu.vector_store %arg15[%c0_1003, %c0_1004], %903 {strides = array<i32>} : memref<2x5xf32, #tpu.memory_space<vmem>>, vector<2x5xf32>,
    return
  }
}

</mosaic_0001>

<llo_original>
// kernel: _lambda_.1
$region0: #{_lambda_.1}
  #allocation0 [shape = 'u32[]', space=smem, size = 0x4, offset = 0x4, fixed_abs, tag = 'smem constant byte address 0x4 - core index']
  #allocation1 [shape = 'u32[144,128]{1,0:T(1,128)}', space=vmem, size = 0x12000, scoped, tag = 'internal scratch']
  #allocation2 [shape = 'f32[96,128]{1,0:T(8,128)}', space=vmem, size = 0xc000, scoped, tag = 'scratch operand']
  #allocation3 [shape = 'bf16[32,1024]{1,0:T(8,128)(2,1)}', space=vmem, size = 0x10000, scoped, tag = 'scratch operand']
  #allocation4 [shape = 'f32[32,128]{1,0:T(8,128)}', space=vmem, size = 0x4000, scoped, tag = 'scratch operand']
  %s0 = inlined_call_operand.vmem [shape: f32[32,4], index: 0, kind: input, shape index: {}]
  %s1 = inlined_call_operand.hbm [shape: f32[25,256], index: 1, kind: input, shape index: {}]
  %s2 = inlined_call_operand.hbm [shape: bf16[128,32], index: 2, kind: input, shape index: {}]
  %s3 = inlined_call_operand.hbm [shape: bf16[1024,32], index: 3, kind: input, shape index: {}]
  %s4 = inlined_call_operand.hbm [shape: bf16[512,64], index: 4, kind: input, shape index: {}]
  %s5 = inlined_call_operand.hbm [shape: bf16[1024,64], index: 5, kind: input, shape index: {}]
  %s6 = inlined_call_operand.hbm [shape: bf16[512,128], index: 6, kind: input, shape index: {}]
  %s7 = inlined_call_operand.hbm [shape: bf16[1024,128], index: 7, kind: input, shape index: {}]
  %s8 = inlined_call_operand.vmem [shape: bf16[4,32], index: 8, kind: input, shape index: {}]
  %s9 = inlined_call_operand.vmem [shape: bf16[32,64], index: 9, kind: input, shape index: {}]
  %s10 = inlined_call_operand.vmem [shape: bf16[64,128], index: 10, kind: input, shape index: {}]
  %s11 = inlined_call_operand.hbm [shape: bf16[128,256], index: 11, kind: input, shape index: {}]
  %s12 = inlined_call_operand.hbm [shape: bf16[256,128], index: 12, kind: input, shape index: {}]
  %s13 = inlined_call_operand.hbm [shape: bf16[128,128], index: 13, kind: input, shape index: {}]
  %s14 = inlined_call_operand.hbm [shape: bf16[128,5], index: 14, kind: input, shape index: {}]
  %s15 = inlined_call_operand.hbm [shape: f32[2,5], index: 15, kind: output, shape index: {}]
  %s16 = sld [smem:[#allocation0]]
  $region114: #{_lambda_.1} parent=0
    _
  %s18 = ssub.s32 1, %s16
  %s19 = scalar_select 0, %s18, %s16
  $region1: #{_lambda_.1} parent=0
    #allocation5 [shape = 'u8[32768]{0}', space=vmem, size = 0x8000, scoped, tag = 'input window, operand 1, single buffered']
    #allocation6 [shape = 's32[1]{0}', space=sflag, size = 0x4, scoped, tag = 'scoped memory for _lambda_.1']
    #allocation7 [shape = 's32[1]{0}', space=sflag, size = 0x4, scoped, tag = 'scoped memory for _lambda_.1']
    #allocation8 [shape = 'u8[32768]{0}', space=vmem, size = 0x8000, scoped, tag = 'input window, operand 2, single buffered']
    #allocation9 [shape = 's32[1]{0}', space=sflag, size = 0x4, scoped, tag = 'scoped memory for _lambda_.1']
    #allocation10 [shape = 'u8[262144]{0}', space=vmem, size = 0x40000, scoped, tag = 'input window, operand 3, single buffered']
    #allocation11 [shape = 'u8[131072]{0}', space=vmem, size = 0x20000, scoped, tag = 'input window, operand 4, single buffered']
    #allocation12 [shape = 's32[1]{0}', space=sflag, size = 0x4, scoped, tag = 'scoped memory for _lambda_.1']
    #allocation13 [shape = 'u8[262144]{0}', space=vmem, size = 0x40000, scoped, tag = 'input window, operand 5, single buffered']
    #allocation14 [shape = 'u8[131072]{0}', space=vmem, size = 0x20000, scoped, tag = 'input window, operand 6, single buffered']
    #allocation15 [shape = 's32[1]{0}', space=sflag, size = 0x4, scoped, tag = 'scoped memory for _lambda_.1']
    #allocation16 [shape = 'u8[262144]{0}', space=vmem, size = 0x40000, scoped, tag = 'input window, operand 7, single buffered']
    #allocation17 [shape = 'u8[65536]{0}', space=vmem, size = 0x10000, scoped, tag = 'input window, operand 11, single buffered']
    #allocation18 [shape = 's32[1]{0}', space=sflag, size = 0x4, scoped, tag = 'scoped memory for _lambda_.1']
    #allocation19 [shape = 'u8[65536]{0}', space=vmem, size = 0x10000, scoped, tag = 'input window, operand 12, single buffered']
    #allocation20 [shape = 'u8[32768]{0}', space=vmem, size = 0x8000, scoped, tag = 'input window, operand 13, single buffered']
    #allocation21 [shape = 's32[1]{0}', space=sflag, size = 0x4, scoped, tag = 'scoped memory for _lambda_.1']
    #allocation22 [shape = 'u8[32768]{0}', space=vmem, size = 0x8000, scoped, tag = 'input window, operand 14, single buffered']
    #allocation23 [shape = 'u8[1024]{0}', space=vmem, size = 0x400, scoped, tag = 'output window, operand 0, single buffered']
    %20 = vsyncpa [#allocation6], 0
    %21 = vsyncpa [#allocation9], 0
    %22 = vsyncpa [#allocation12], 0
    %23 = vsyncpa [#allocation15], 0
    %24 = vsyncpa [#allocation18], 0
    %25 = vsyncpa [#allocation21], 0
    %26 = vsyncpa [#allocation7], 0
    // Predicated region
    $region2: #{_lambda_.1} parent=1 // pred_check
      _
    $region3: #{_lambda_.1} parent=1 // pred_check_branch
      %28 = sbr.rel (0) target = $region5
    $region4: #{_lambda_.1} parent=1 // pred_region
      _
    $region5: #{_lambda_.1} parent=1 // pred_fallthru
      _
    // Predicated region
    $region6: #{_lambda_.1} parent=1 // pred_check
      _
    $region7: #{_lambda_.1} parent=1 // pred_check_branch
      %30 = sbr.rel (0) target = $region9
    $region8: #{_lambda_.1} parent=1 // pred_region
      %s32 = ssub.s32 1024, 1024
      %33 = vsyncadd [#allocation6], %s32
      %s34 = sshll.u32 [#allocation5], 4
      %s35 = int_to_ptr.vmem [resolvable:$true] %s34
      %40 = dma.hbm_to_vmem [thread:$0]  %s1, 1024, %s35, [#allocation6], 256, 256, 16
    $region9: #{_lambda_.1} parent=1 // pred_fallthru
      _
    // Predicated region
    $region10: #{_lambda_.1} parent=1 // pred_check
      _
    $region11: #{_lambda_.1} parent=1 // pred_check_branch
      %42 = sbr.rel (0) target = $region13
    $region12: #{_lambda_.1} parent=1 // pred_region
      %s44 = ssub.s32 1024, 1024
      %45 = vsyncadd [#allocation9], %s44
      %s46 = sshll.u32 [#allocation8], 4
      %s47 = int_to_ptr.vmem [resolvable:$true] %s46
      %52 = dma.hbm_to_vmem [thread:$0]  %s2, 1024, %s47, [#allocation9], 64, 64, 4
    $region13: #{_lambda_.1} parent=1 // pred_fallthru
      _
    // Predicated region
    $region14: #{_lambda_.1} parent=1 // pred_check
      _
    $region15: #{_lambda_.1} parent=1 // pred_check_branch
      %54 = sbr.rel (0) target = $region17
    $region16: #{_lambda_.1} parent=1 // pred_region
      %s56 = ssub.s32 8192, 8192
      %57 = vsyncadd [#allocation9], %s56
      %s58 = sshll.u32 [#allocation10], 4
      %s59 = int_to_ptr.vmem [resolvable:$true] %s58
      %64 = dma.hbm_to_vmem [thread:$0]  %s3, 8192, %s59, [#allocation9], 64, 64, 4
    $region17: #{_lambda_.1} parent=1 // pred_fallthru
      _
    // Predicated region
    $region18: #{_lambda_.1} parent=1 // pred_check
      _
    $region19: #{_lambda_.1} parent=1 // pred_check_branch
      %66 = sbr.rel (0) target = $region21
    $region20: #{_lambda_.1} parent=1 // pred_region
      %s68 = ssub.s32 4096, 4096
      %69 = vsyncadd [#allocation12], %s68
      %s70 = sshll.u32 [#allocation11], 4
      %s71 = int_to_ptr.vmem [resolvable:$true] %s70
      %76 = dma.hbm_to_vmem [thread:$0]  %s4, 4096, %s71, [#allocation12], 64, 64, 4
    $region21: #{_lambda_.1} parent=1 // pred_fallthru
      _
    // Predicated region
    $region22: #{_lambda_.1} parent=1 // pred_check
      _
    $region23: #{_lambda_.1} parent=1 // pred_check_branch
      %78 = sbr.rel (0) target = $region25
    $region24: #{_lambda_.1} parent=1 // pred_region
      %s80 = ssub.s32 8192, 8192
      %81 = vsyncadd [#allocation12], %s80
      %s82 = sshll.u32 [#allocation13], 4
      %s83 = int_to_ptr.vmem [resolvable:$true] %s82
      %88 = dma.hbm_to_vmem [thread:$0]  %s5, 8192, %s83, [#allocation12], 64, 64, 4
    $region25: #{_lambda_.1} parent=1 // pred_fallthru
      _
    // Predicated region
    $region26: #{_lambda_.1} parent=1 // pred_check
      _
    $region27: #{_lambda_.1} parent=1 // pred_check_branch
      %90 = sbr.rel (0) target = $region29
    $region28: #{_lambda_.1} parent=1 // pred_region
      %s92 = ssub.s32 4096, 4096
      %93 = vsyncadd [#allocation15], %s92
      %s94 = sshll.u32 [#allocation14], 4
      %s95 = int_to_ptr.vmem [resolvable:$true] %s94
      %100 = dma.hbm_to_vmem [thread:$0]  %s6, 4096, %s95, [#allocation15], 64, 64, 4
    $region29: #{_lambda_.1} parent=1 // pred_fallthru
      _
    // Predicated region
    $region30: #{_lambda_.1} parent=1 // pred_check
      _
    $region31: #{_lambda_.1} parent=1 // pred_check_branch
      %102 = sbr.rel (0) target = $region33
    $region32: #{_lambda_.1} parent=1 // pred_region
      %s104 = ssub.s32 8192, 8192
      %105 = vsyncadd [#allocation15], %s104
      %s106 = sshll.u32 [#allocation16], 4
      %s107 = int_to_ptr.vmem [resolvable:$true] %s106
      %112 = dma.hbm_to_vmem [thread:$0]  %s7, 8192, %s107, [#allocation15], 64, 64, 4
    $region33: #{_lambda_.1} parent=1 // pred_fallthru
      _
    // Predicated region
    $region34: #{_lambda_.1} parent=1 // pred_check
      _
    $region35: #{_lambda_.1} parent=1 // pred_check_branch
      %114 = sbr.rel (0) target = $region37
    $region36: #{_lambda_.1} parent=1 // pred_region
      _
    $region37: #{_lambda_.1} parent=1 // pred_fallthru
      _
    // Predicated region
    $region38: #{_lambda_.1} parent=1 // pred_check
      _
    $region39: #{_lambda_.1} parent=1 // pred_check_branch
      %116 = sbr.rel (0) target = $region41
    $region40: #{_lambda_.1} parent=1 // pred_region
      _
    $region41: #{_lambda_.1} parent=1 // pred_fallthru
      _
    // Predicated region
    $region42: #{_lambda_.1} parent=1 // pred_check
      _
    $region43: #{_lambda_.1} parent=1 // pred_check_branch
      %118 = sbr.rel (0) target = $region45
    $region44: #{_lambda_.1} parent=1 // pred_region
      _
    $region45: #{_lambda_.1} parent=1 // pred_fallthru
      _
    // Predicated region
    $region46: #{_lambda_.1} parent=1 // pred_check
      _
    $region47: #{_lambda_.1} parent=1 // pred_check_branch
      %120 = sbr.rel (0) target = $region49
    $region48: #{_lambda_.1} parent=1 // pred_region
      %s122 = ssub.s32 2048, 2048
      %123 = vsyncadd [#allocation18], %s122
      %s124 = sshll.u32 [#allocation17], 4
      %s125 = int_to_ptr.vmem [resolvable:$true] %s124
      %130 = dma.hbm_to_vmem [thread:$0]  %s11, 2048, %s125, [#allocation18], 128, 128, 8
    $region49: #{_lambda_.1} parent=1 // pred_fallthru
      _
    // Predicated region
    $region50: #{_lambda_.1} parent=1 // pred_check
      _
    $region51: #{_lambda_.1} parent=1 // pred_check_branch
      %132 = sbr.rel (0) target = $region53
    $region52: #{_lambda_.1} parent=1 // pred_region
      %s134 = ssub.s32 2048, 2048
      %135 = vsyncadd [#allocation18], %s134
      %s136 = sshll.u32 [#allocation19], 4
      %s137 = int_to_ptr.vmem [resolvable:$true] %s136
      %142 = dma.hbm_to_vmem [thread:$0]  %s12, 2048, %s137, [#allocation18], 64, 64, 4
    $region53: #{_lambda_.1} parent=1 // pred_fallthru
      _
    // Predicated region
    $region54: #{_lambda_.1} parent=1 // pred_check
      _
    $region55: #{_lambda_.1} parent=1 // pred_check_branch
      %144 = sbr.rel (0) target = $region57
    $region56: #{_lambda_.1} parent=1 // pred_region
      %s146 = ssub.s32 1024, 1024
      %147 = vsyncadd [#allocation21], %s146
      %s148 = sshll.u32 [#allocation20], 4
      %s149 = int_to_ptr.vmem [resolvable:$true] %s148
      %154 = dma.hbm_to_vmem [thread:$0]  %s13, 1024, %s149, [#allocation21], 64, 64, 4
    $region57: #{_lambda_.1} parent=1 // pred_fallthru
      _
    // Predicated region
    $region58: #{_lambda_.1} parent=1 // pred_check
      _
    $region59: #{_lambda_.1} parent=1 // pred_check_branch
      %156 = sbr.rel (0) target = $region61
    $region60: #{_lambda_.1} parent=1 // pred_region
      %s158 = ssub.s32 1024, 1024
      %159 = vsyncadd [#allocation21], %s158
      %s160 = sshll.u32 [#allocation22], 4
      %s161 = int_to_ptr.vmem [resolvable:$true] %s160
      %166 = dma.hbm_to_vmem [thread:$0]  %s14, 1024, %s161, [#allocation21], 64, 64, 4
    $region61: #{_lambda_.1} parent=1 // pred_fallthru
      _
    // Predicated region
    $region62: #{_lambda_.1} parent=1 // pred_check
      _
    $region63: #{_lambda_.1} parent=1 // pred_check_branch
      %168 = sbr.rel (0) target = $region65
    $region64: #{_lambda_.1} parent=1 // pred_region
      %169 = dma.done [#allocation6], 1024
    $region65: #{_lambda_.1} parent=1 // pred_fallthru
      _
    // Predicated region
    $region66: #{_lambda_.1} parent=1 // pred_check
      _
    $region67: #{_lambda_.1} parent=1 // pred_check_branch
      %171 = sbr.rel (0) target = $region69
    $region68: #{_lambda_.1} parent=1 // pred_region
      %172 = dma.done [#allocation9], 1024
    $region69: #{_lambda_.1} parent=1 // pred_fallthru
      _
    // Predicated region
    $region70: #{_lambda_.1} parent=1 // pred_check
      _
    $region71: #{_lambda_.1} parent=1 // pred_check_branch
      %174 = sbr.rel (0) target = $region73
    $region72: #{_lambda_.1} parent=1 // pred_region
      %175 = dma.done [#allocation9], 8192
    $region73: #{_lambda_.1} parent=1 // pred_fallthru
      _
    // Predicated region
    $region74: #{_lambda_.1} parent=1 // pred_check
      _
    $region75: #{_lambda_.1} parent=1 // pred_check_branch
      %177 = sbr.rel (0) target = $region77
    $region76: #{_lambda_.1} parent=1 // pred_region
      %178 = dma.done [#allocation12], 4096
    $region77: #{_lambda_.1} parent=1 // pred_fallthru
      _
    // Predicated region
    $region78: #{_lambda_.1} parent=1 // pred_check
      _
    $region79: #{_lambda_.1} parent=1 // pred_check_branch
      %180 = sbr.rel (0) target = $region81
    $region80: #{_lambda_.1} parent=1 // pred_region
      %181 = dma.done [#allocation12], 8192
    $region81: #{_lambda_.1} parent=1 // pred_fallthru
      _
    // Predicated region
    $region82: #{_lambda_.1} parent=1 // pred_check
      _
    $region83: #{_lambda_.1} parent=1 // pred_check_branch
      %183 = sbr.rel (0) target = $region85
    $region84: #{_lambda_.1} parent=1 // pred_region
      %184 = dma.done [#allocation15], 4096
    $region85: #{_lambda_.1} parent=1 // pred_fallthru
      _
    // Predicated region
    $region86: #{_lambda_.1} parent=1 // pred_check
      _
    $region87: #{_lambda_.1} parent=1 // pred_check_branch
      %186 = sbr.rel (0) target = $region89
    $region88: #{_lambda_.1} parent=1 // pred_region
      %187 = dma.done [#allocation15], 8192
    $region89: #{_lambda_.1} parent=1 // pred_fallthru
      _
    // Predicated region
    $region90: #{_lambda_.1} parent=1 // pred_check
      _
    $region91: #{_lambda_.1} parent=1 // pred_check_branch
      %189 = sbr.rel (0) target = $region93
    $region92: #{_lambda_.1} parent=1 // pred_region
      %190 = dma.done [#allocation18], 2048
    $region93: #{_lambda_.1} parent=1 // pred_fallthru
      _
    // Predicated region
    $region94: #{_lambda_.1} parent=1 // pred_check
      _
    $region95: #{_lambda_.1} parent=1 // pred_check_branch
      %192 = sbr.rel (0) target = $region97
    $region96: #{_lambda_.1} parent=1 // pred_region
      %193 = dma.done [#allocation18], 2048
    $region97: #{_lambda_.1} parent=1 // pred_fallthru
      _
    // Predicated region
    $region98: #{_lambda_.1} parent=1 // pred_check
      _
    $region99: #{_lambda_.1} parent=1 // pred_check_branch
      %195 = sbr.rel (0) target = $region101
    $region100: #{_lambda_.1} parent=1 // pred_region
      %196 = dma.done [#allocation21], 1024
    $region101: #{_lambda_.1} parent=1 // pred_fallthru
      _
    // Predicated region
    $region102: #{_lambda_.1} parent=1 // pred_check
      _
    $region103: #{_lambda_.1} parent=1 // pred_check_branch
      %198 = sbr.rel (0) target = $region105
    $region104: #{_lambda_.1} parent=1 // pred_region
      %199 = dma.done [#allocation21], 1024
    $region105: #{_lambda_.1} parent=1 // pred_fallthru
      _
    %v201 = vld [vmem:[%s0] sm:$0xff]
    %v202 = vld [vmem:[%s0 + $0x8] sm:$0xff]
    %v203 = vld [vmem:[%s0 + $0x10] sm:$0xff]
    %v204 = vld [vmem:[%s0 + $0x18] sm:$0xff]
    %v205 = vld [vmem:[#allocation5] ss:$0 sm:$0xff]
    %v206 = vld [vmem:[#allocation5 + $0x1] ss:$0 sm:$0xff]
    %v207 = vld [vmem:[#allocation5 + $0x2] ss:$0 sm:$0xff]
    %v208 = vld [vmem:[#allocation5 + $0x3] ss:$0 sm:$0xff]
    %v209 = vld [vmem:[#allocation5 + $0x4] ss:$0 sm:$0xff]
    %v210 = vld [vmem:[#allocation5 + $0x5] ss:$0 sm:$0xff]
    %v211 = vld [vmem:[#allocation5 + $0x6] ss:$0 sm:$0xff]
    %v212 = vmul.f32 %v201, %v205
    %v213 = vmul.f32 %v202, %v205
    %v214 = vmul.f32 %v203, %v205
    %v215 = vmul.f32 %v204, %v205
    %v216 = vadd.f32 %v212, %v206
    %v217 = vadd.f32 %v213, %v206
    %v218 = vadd.f32 %v214, %v206
    %v219 = vadd.f32 %v215, %v206
    %v220 = vmax.f32 %v216, 0.0
    %v221 = vmax.f32 %v217, 0.0
    %v222 = vmax.f32 %v218, 0.0
    %v223 = vmax.f32 %v219, 0.0
    %vm224 = vcmask 31744
    %225 = vst.msk [vmem:[#allocation2] sm:$0xff] %vm224, 0.0
    %226 = vst.msk [vmem:[#allocation2 + $0x8] sm:$0xff] %vm224, 0.0
    %227 = vst.msk [vmem:[#allocation2 + $0x20] sm:$0xff] %vm224, 0.0
    %228 = vst.msk [vmem:[#allocation2 + $0x28] sm:$0xff] %vm224, 0.0
    %229 = vst.msk [vmem:[#allocation2 + $0x10] sm:$0xff] %vm224, %v220
    %230 = vst.msk [vmem:[#allocation2 + $0x18] sm:$0xff] %vm224, %v221
    %231 = vst.msk [vmem:[#allocation2 + $0x30] sm:$0xff] %vm224, 0.0
    %232 = vst.msk [vmem:[#allocation2 + $0x38] sm:$0xff] %vm224, 0.0
    %233 = vst.msk [vmem:[#allocation2 + $0x50] sm:$0xff] %vm224, 0.0
    %234 = vst.msk [vmem:[#allocation2 + $0x58] sm:$0xff] %vm224, 0.0
    %235 = vst.msk [vmem:[#allocation2 + $0x40] sm:$0xff] %vm224, %v222
    %236 = vst.msk [vmem:[#allocation2 + $0x48] sm:$0xff] %vm224, %v223
    %v237 = vld [vmem:[#allocation2 + $0x1] sm:$0xff]
    %v238 = vld [vmem:[#allocation2 + $0x9] sm:$0xff]
    %v239 = vpack.c.bf16 %v238, %v237
    %v241 = vunpack.c.l.b16 %v239
    %v242 = vunpack.c.h.b16 %v239
    %v243 = vpack.c.b16 %v241, %v241
    %v244 = vpack.c.b16 %v242, %v242
    %vm247 = vcmask 27648
    %248 = vst.msk [vmem:[#allocation3] sm:$0xf] %vm247, %v243
    %249 = vst.msk [vmem:[#allocation3 + $0x20] sm:$0xf] %vm247, %v244
    %v250 = vld [vmem:[#allocation2 + $0x31] sm:$0xff]
    %v251 = vld [vmem:[#allocation2 + $0x39] sm:$0xff]
    %v252 = vpack.c.bf16 %v251, %v250
    %v254 = vunpack.c.l.b16 %v252
    %v255 = vunpack.c.h.b16 %v252
    %v256 = vpack.c.b16 %v254, %v254
    %v257 = vpack.c.b16 %v255, %v255
    %260 = vst.msk [vmem:[#allocation3 + $0x40] sm:$0xf] %vm247, %v256
    %261 = vst.msk [vmem:[#allocation3 + $0x60] sm:$0xf] %vm247, %v257
    %v262 = vld [vmem:[#allocation2 + $0x2] sm:$0xff]
    %v263 = vld [vmem:[#allocation2 + $0xa] sm:$0xff]
    %v264 = vpack.c.bf16 %v263, %v262
    %v266 = vunpack.c.l.b16 %v264
    %v267 = vunpack.c.h.b16 %v264
    %v268 = vpack.c.b16 %v266, %v266
    %v269 = vpack.c.b16 %v267, %v267
    %270 = vrot.lane.b32.xlu0 %v268, 4
    %v271 = vpop.permute.xlu0 %270
    %272 = vrot.lane.b32.xlu0 %v269, 4
    %v273 = vpop.permute.xlu0 %272
    %vm276 = vcmask 60448
    %277 = vst.msk [vmem:[#allocation3] sm:$0xf] %vm276, %v271
    %278 = vst.msk [vmem:[#allocation3 + $0x20] sm:$0xf] %vm276, %v273
    %v279 = vld [vmem:[#allocation2 + $0x32] sm:$0xff]
    %v280 = vld [vmem:[#allocation2 + $0x3a] sm:$0xff]
    %v281 = vpack.c.bf16 %v280, %v279
    %v283 = vunpack.c.l.b16 %v281
    %v284 = vunpack.c.h.b16 %v281
    %v285 = vpack.c.b16 %v283, %v283
    %v286 = vpack.c.b16 %v284, %v284
    %287 = vrot.lane.b32.xlu0 %v285, 4
    %v288 = vpop.permute.xlu0 %287
    %289 = vrot.lane.b32.xlu0 %v286, 4
    %v290 = vpop.permute.xlu0 %289
    %293 = vst.msk [vmem:[#allocation3 + $0x40] sm:$0xf] %vm276, %v288
    %294 = vst.msk [vmem:[#allocation3 + $0x60] sm:$0xf] %vm276, %v290
    %v295 = vld [vmem:[#allocation2 + $0x3] sm:$0xff]
    %v296 = vld [vmem:[#allocation2 + $0xb] sm:$0xff]
    %v297 = vpack.c.bf16 %v296, %v295
    %v299 = vunpack.c.l.b16 %v297
    %v300 = vunpack.c.h.b16 %v297
    %v301 = vpack.c.b16 %v299, %v299
    %v302 = vpack.c.b16 %v300, %v300
    %303 = vrot.lane.b32.xlu0 %v301, 8
    %v304 = vpop.permute.xlu0 %303
    %305 = vrot.lane.b32.xlu0 %v302, 8
    %v306 = vpop.permute.xlu0 %305
    %vm309 = vcmask 93248
    %310 = vst.msk [vmem:[#allocation3] sm:$0xf] %vm309, %v304
    %311 = vst.msk [vmem:[#allocation3 + $0x20] sm:$0xf] %vm309, %v306
    %v312 = vld [vmem:[#allocation2 + $0x33] sm:$0xff]
    %v313 = vld [vmem:[#allocation2 + $0x3b] sm:$0xff]
    %v314 = vpack.c.bf16 %v313, %v312
    %v316 = vunpack.c.l.b16 %v314
    %v317 = vunpack.c.h.b16 %v314
    %v318 = vpack.c.b16 %v316, %v316
    %v319 = vpack.c.b16 %v317, %v317
    %320 = vrot.lane.b32.xlu0 %v318, 8
    %v321 = vpop.permute.xlu0 %320
    %322 = vrot.lane.b32.xlu0 %v319, 8
    %v323 = vpop.permute.xlu0 %322
    %326 = vst.msk [vmem:[#allocation3 + $0x40] sm:$0xf] %vm309, %v321
    %327 = vst.msk [vmem:[#allocation3 + $0x60] sm:$0xf] %vm309, %v323
    %v328 = vld [vmem:[#allocation2 + $0x4] sm:$0xff]
    %v329 = vld [vmem:[#allocation2 + $0xc] sm:$0xff]
    %v330 = vpack.c.bf16 %v329, %v328
    %v332 = vunpack.c.l.b16 %v330
    %v333 = vunpack.c.h.b16 %v330
    %v334 = vpack.c.b16 %v332, %v332
    %v335 = vpack.c.b16 %v333, %v333
    %336 = vrot.lane.b32.xlu0 %v334, 12
    %v337 = vpop.permute.xlu0 %336
    %338 = vrot.lane.b32.xlu0 %v335, 12
    %v339 = vpop.permute.xlu0 %338
    %vm342 = vcmask 126048
    %343 = vst.msk [vmem:[#allocation3] sm:$0xf] %vm342, %v337
    %344 = vst.msk [vmem:[#allocation3 + $0x20] sm:$0xf] %vm342, %v339
    %v345 = vld [vmem:[#allocation2 + $0x34] sm:$0xff]
    %v346 = vld [vmem:[#allocation2 + $0x3c] sm:$0xff]
    %v347 = vpack.c.bf16 %v346, %v345
    %v349 = vunpack.c.l.b16 %v347
    %v350 = vunpack.c.h.b16 %v347
    %v351 = vpack.c.b16 %v349, %v349
    %v352 = vpack.c.b16 %v350, %v350
    %353 = vrot.lane.b32.xlu0 %v351, 12
    %v354 = vpop.permute.xlu0 %353
    %355 = vrot.lane.b32.xlu0 %v352, 12
    %v356 = vpop.permute.xlu0 %355
    %359 = vst.msk [vmem:[#allocation3 + $0x40] sm:$0xf] %vm342, %v354
    %360 = vst.msk [vmem:[#allocation3 + $0x60] sm:$0xf] %vm342, %v356
    %v361 = vld [vmem:[#allocation2 + $0x5] sm:$0xff]
    %v362 = vld [vmem:[#allocation2 + $0xd] sm:$0xff]
    %v363 = vpack.c.bf16 %v362, %v361
    %v365 = vunpack.c.l.b16 %v363
    %v366 = vunpack.c.h.b16 %v363
    %v367 = vpack.c.b16 %v365, %v365
    %v368 = vpack.c.b16 %v366, %v366
    %369 = vrot.lane.b32.xlu0 %v367, 16
    %v370 = vpop.permute.xlu0 %369
    %371 = vrot.lane.b32.xlu0 %v368, 16
    %v372 = vpop.permute.xlu0 %371
    %vm375 = vcmask 158848
    %376 = vst.msk [vmem:[#allocation3] sm:$0xf] %vm375, %v370
    %377 = vst.msk [vmem:[#allocation3 + $0x20] sm:$0xf] %vm375, %v372
    %v378 = vld [vmem:[#allocation2 + $0x35] sm:$0xff]
    %v379 = vld [vmem:[#allocation2 + $0x3d] sm:$0xff]
    %v380 = vpack.c.bf16 %v379, %v378
    %v382 = vunpack.c.l.b16 %v380
    %v383 = vunpack.c.h.b16 %v380
    %v384 = vpack.c.b16 %v382, %v382
    %v385 = vpack.c.b16 %v383, %v383
    %386 = vrot.lane.b32.xlu0 %v384, 16
    %v387 = vpop.permute.xlu0 %386
    %388 = vrot.lane.b32.xlu0 %v385, 16
    %v389 = vpop.permute.xlu0 %388
    %392 = vst.msk [vmem:[#allocation3 + $0x40] sm:$0xf] %vm375, %v387
    %393 = vst.msk [vmem:[#allocation3 + $0x60] sm:$0xf] %vm375, %v389
    %v394 = vld [vmem:[#allocation2 + $0x6] sm:$0xff]
    %v395 = vld [vmem:[#allocation2 + $0xe] sm:$0xff]
    %v396 = vpack.c.bf16 %v395, %v394
    %v398 = vunpack.c.l.b16 %v396
    %v399 = vunpack.c.h.b16 %v396
    %v400 = vpack.c.b16 %v398, %v398
    %v401 = vpack.c.b16 %v399, %v399
    %402 = vrot.lane.b32.xlu0 %v400, 20
    %v403 = vpop.permute.xlu0 %402
    %404 = vrot.lane.b32.xlu0 %v401, 20
    %v405 = vpop.permute.xlu0 %404
    %vm408 = vcmask 191648
    %409 = vst.msk [vmem:[#allocation3] sm:$0xf] %vm408, %v403
    %410 = vst.msk [vmem:[#allocation3 + $0x20] sm:$0xf] %vm408, %v405
    %v411 = vld [vmem:[#allocation2 + $0x36] sm:$0xff]
    %v412 = vld [vmem:[#allocation2 + $0x3e] sm:$0xff]
    %v413 = vpack.c.bf16 %v412, %v411
    %v415 = vunpack.c.l.b16 %v413
    %v416 = vunpack.c.h.b16 %v413
    %v417 = vpack.c.b16 %v415, %v415
    %v418 = vpack.c.b16 %v416, %v416
    %419 = vrot.lane.b32.xlu0 %v417, 20
    %v420 = vpop.permute.xlu0 %419
    %421 = vrot.lane.b32.xlu0 %v418, 20
    %v422 = vpop.permute.xlu0 %421
    %425 = vst.msk [vmem:[#allocation3 + $0x40] sm:$0xf] %vm408, %v420
    %426 = vst.msk [vmem:[#allocation3 + $0x60] sm:$0xf] %vm408, %v422
    %v427 = vld [vmem:[#allocation2 + $0x7] sm:$0xff]
    %v428 = vld [vmem:[#allocation2 + $0xf] sm:$0xff]
    %v429 = vpack.c.bf16 %v428, %v427
    %v431 = vunpack.c.l.b16 %v429
    %v432 = vunpack.c.h.b16 %v429
    %v433 = vpack.c.b16 %v431, %v431
    %v434 = vpack.c.b16 %v432, %v432
    %435 = vrot.lane.b32.xlu0 %v433, 24
    %v436 = vpop.permute.xlu0 %435
    %437 = vrot.lane.b32.xlu0 %v434, 24
    %v438 = vpop.permute.xlu0 %437
    %vm441 = vcmask 224448
    %442 = vst.msk [vmem:[#allocation3] sm:$0xf] %vm441, %v436
    %443 = vst.msk [vmem:[#allocation3 + $0x20] sm:$0xf] %vm441, %v438
    %v444 = vld [vmem:[#allocation2 + $0x37] sm:$0xff]
    %v445 = vld [vmem:[#allocation2 + $0x3f] sm:$0xff]
    %v446 = vpack.c.bf16 %v445, %v444
    %v448 = vunpack.c.l.b16 %v446
    %v449 = vunpack.c.h.b16 %v446
    %v450 = vpack.c.b16 %v448, %v448
    %v451 = vpack.c.b16 %v449, %v449
    %452 = vrot.lane.b32.xlu0 %v450, 24
    %v453 = vpop.permute.xlu0 %452
    %454 = vrot.lane.b32.xlu0 %v451, 24
    %v455 = vpop.permute.xlu0 %454
    %458 = vst.msk [vmem:[#allocation3 + $0x40] sm:$0xf] %vm441, %v453
    %459 = vst.msk [vmem:[#allocation3 + $0x60] sm:$0xf] %vm441, %v455
    %v460 = vld [vmem:[#allocation2 + $0x8] sm:$0xff]
    %v461 = vld [vmem:[#allocation2 + $0x10] sm:$0xff]
    %v462 = vpack.c.bf16 %v461, %v460
    %v464 = vunpack.c.l.b16 %v462
    %v465 = vunpack.c.h.b16 %v462
    %v466 = vpack.c.b16 %v464, %v464
    %v467 = vpack.c.b16 %v465, %v465
    %468 = vrot.lane.b32.xlu0 %v466, 28
    %v469 = vpop.permute.xlu0 %468
    %470 = vrot.lane.b32.xlu0 %v467, 28
    %v471 = vpop.permute.xlu0 %470
    %vm474 = vcmask 257248
    %475 = vst.msk [vmem:[#allocation3] sm:$0xf] %vm474, %v469
    %476 = vst.msk [vmem:[#allocation3 + $0x20] sm:$0xf] %vm474, %v471
    %v477 = vld [vmem:[#allocation2 + $0x38] sm:$0xff]
    %v478 = vld [vmem:[#allocation2 + $0x40] sm:$0xff]
    %v479 = vpack.c.bf16 %v478, %v477
    %v481 = vunpack.c.l.b16 %v479
    %v482 = vunpack.c.h.b16 %v479
    %v483 = vpack.c.b16 %v481, %v481
    %v484 = vpack.c.b16 %v482, %v482
    %485 = vrot.lane.b32.xlu0 %v483, 28
    %v486 = vpop.permute.xlu0 %485
    %487 = vrot.lane.b32.xlu0 %v484, 28
    %v488 = vpop.permute.xlu0 %487
    %491 = vst.msk [vmem:[#allocation3 + $0x40] sm:$0xf] %vm474, %v486
    %492 = vst.msk [vmem:[#allocation3 + $0x60] sm:$0xf] %vm474, %v488
    %v493 = vld [vmem:[#allocation2 + $0x9] sm:$0xff]
    %v494 = vld [vmem:[#allocation2 + $0x11] sm:$0xff]
    %v495 = vpack.c.bf16 %v494, %v493
    %v497 = vunpack.c.l.b16 %v495
    %v498 = vunpack.c.h.b16 %v495
    %v499 = vpack.c.b16 %v497, %v497
    %v500 = vpack.c.b16 %v498, %v498
    %501 = vrot.lane.b32.xlu0 %v499, 32
    %v502 = vpop.permute.xlu0 %501
    %503 = vrot.lane.b32.xlu0 %v500, 32
    %v504 = vpop.permute.xlu0 %503
    %vm507 = vcmask 290048
    %508 = vst.msk [vmem:[#allocation3] sm:$0xf] %vm507, %v502
    %509 = vst.msk [vmem:[#allocation3 + $0x20] sm:$0xf] %vm507, %v504
    %v510 = vld [vmem:[#allocation2 + $0x39] sm:$0xff]
    %v511 = vld [vmem:[#allocation2 + $0x41] sm:$0xff]
    %v512 = vpack.c.bf16 %v511, %v510
    %v514 = vunpack.c.l.b16 %v512
    %v515 = vunpack.c.h.b16 %v512
    %v516 = vpack.c.b16 %v514, %v514
    %v517 = vpack.c.b16 %v515, %v515
    %518 = vrot.lane.b32.xlu0 %v516, 32
    %v519 = vpop.permute.xlu0 %518
    %520 = vrot.lane.b32.xlu0 %v517, 32
    %v521 = vpop.permute.xlu0 %520
    %524 = vst.msk [vmem:[#allocation3 + $0x40] sm:$0xf] %vm507, %v519
    %525 = vst.msk [vmem:[#allocation3 + $0x60] sm:$0xf] %vm507, %v521
    %v526 = vld [vmem:[#allocation2 + $0xa] sm:$0xff]
    %v527 = vld [vmem:[#allocation2 + $0x12] sm:$0xff]
    %v528 = vpack.c.bf16 %v527, %v526
    %v530 = vunpack.c.l.b16 %v528
    %v531 = vunpack.c.h.b16 %v528
    %v532 = vpack.c.b16 %v530, %v530
    %v533 = vpack.c.b16 %v531, %v531
    %534 = vrot.lane.b32.xlu0 %v532, 36
    %v535 = vpop.permute.xlu0 %534
    %536 = vrot.lane.b32.xlu0 %v533, 36
    %v537 = vpop.permute.xlu0 %536
    %vm540 = vcmask 322848
    %541 = vst.msk [vmem:[#allocation3] sm:$0xf] %vm540, %v535
    %542 = vst.msk [vmem:[#allocation3 + $0x20] sm:$0xf] %vm540, %v537
    %v543 = vld [vmem:[#allocation2 + $0x3a] sm:$0xff]
    %v544 = vld [vmem:[#allocation2 + $0x42] sm:$0xff]
    %v545 = vpack.c.bf16 %v544, %v543
    %v547 = vunpack.c.l.b16 %v545
    %v548 = vunpack.c.h.b16 %v545
    %v549 = vpack.c.b16 %v547, %v547
    %v550 = vpack.c.b16 %v548, %v548
    %551 = vrot.lane.b32.xlu0 %v549, 36
    %v552 = vpop.permute.xlu0 %551
    %553 = vrot.lane.b32.xlu0 %v550, 36
    %v554 = vpop.permute.xlu0 %553
    %557 = vst.msk [vmem:[#allocation3 + $0x40] sm:$0xf] %vm540, %v552
    %558 = vst.msk [vmem:[#allocation3 + $0x60] sm:$0xf] %vm540, %v554
    %v559 = vld [vmem:[#allocation2 + $0xb] sm:$0xff]
    %v560 = vld [vmem:[#allocation2 + $0x13] sm:$0xff]
    %v561 = vpack.c.bf16 %v560, %v559
    %v563 = vunpack.c.l.b16 %v561
    %v564 = vunpack.c.h.b16 %v561
    %v565 = vpack.c.b16 %v563, %v563
    %v566 = vpack.c.b16 %v564, %v564
    %567 = vrot.lane.b32.xlu0 %v565, 40
    %v568 = vpop.permute.xlu0 %567
    %569 = vrot.lane.b32.xlu0 %v566, 40
    %v570 = vpop.permute.xlu0 %569
    %vm573 = vcmask 355648
    %574 = vst.msk [vmem:[#allocation3] sm:$0xf] %vm573, %v568
    %575 = vst.msk [vmem:[#allocation3 + $0x20] sm:$0xf] %vm573, %v570
    %v576 = vld [vmem:[#allocation2 + $0x3b] sm:$0xff]
    %v577 = vld [vmem:[#allocation2 + $0x43] sm:$0xff]
    %v578 = vpack.c.bf16 %v577, %v576
    %v580 = vunpack.c.l.b16 %v578
    %v581 = vunpack.c.h.b16 %v578
    %v582 = vpack.c.b16 %v580, %v580
    %v583 = vpack.c.b16 %v581, %v581
    %584 = vrot.lane.b32.xlu0 %v582, 40
    %v585 = vpop.permute.xlu0 %584
    %586 = vrot.lane.b32.xlu0 %v583, 40
    %v587 = vpop.permute.xlu0 %586
    %590 = vst.msk [vmem:[#allocation3 + $0x40] sm:$0xf] %vm573, %v585
    %591 = vst.msk [vmem:[#allocation3 + $0x60] sm:$0xf] %vm573, %v587
    %v592 = vld [vmem:[#allocation2 + $0xc] sm:$0xff]
    %v593 = vld [vmem:[#allocation2 + $0x14] sm:$0xff]
    %v594 = vpack.c.bf16 %v593, %v592
    %v596 = vunpack.c.l.b16 %v594
    %v597 = vunpack.c.h.b16 %v594
    %v598 = vpack.c.b16 %v596, %v596
    %v599 = vpack.c.b16 %v597, %v597
    %600 = vrot.lane.b32.xlu0 %v598, 44
    %v601 = vpop.permute.xlu0 %600
    %602 = vrot.lane.b32.xlu0 %v599, 44
    %v603 = vpop.permute.xlu0 %602
    %vm606 = vcmask 388448
    %607 = vst.msk [vmem:[#allocation3] sm:$0xf] %vm606, %v601
    %608 = vst.msk [vmem:[#allocation3 + $0x20] sm:$0xf] %vm606, %v603
    %v609 = vld [vmem:[#allocation2 + $0x3c] sm:$0xff]
    %v610 = vld [vmem:[#allocation2 + $0x44] sm:$0xff]
    %v611 = vpack.c.bf16 %v610, %v609
    %v613 = vunpack.c.l.b16 %v611
    %v614 = vunpack.c.h.b16 %v611
    %v615 = vpack.c.b16 %v613, %v613
    %v616 = vpack.c.b16 %v614, %v614
    %617 = vrot.lane.b32.xlu0 %v615, 44
    %v618 = vpop.permute.xlu0 %617
    %619 = vrot.lane.b32.xlu0 %v616, 44
    %v620 = vpop.permute.xlu0 %619
    %623 = vst.msk [vmem:[#allocation3 + $0x40] sm:$0xf] %vm606, %v618
    %624 = vst.msk [vmem:[#allocation3 + $0x60] sm:$0xf] %vm606, %v620
    %v625 = vld [vmem:[#allocation2 + $0xd] sm:$0xff]
    %v626 = vld [vmem:[#allocation2 + $0x15] sm:$0xff]
    %v627 = vpack.c.bf16 %v626, %v625
    %v629 = vunpack.c.l.b16 %v627
    %v630 = vunpack.c.h.b16 %v627
    %v631 = vpack.c.b16 %v629, %v629
    %v632 = vpack.c.b16 %v630, %v630
    %633 = vrot.lane.b32.xlu0 %v631, 48
    %v634 = vpop.permute.xlu0 %633
    %635 = vrot.lane.b32.xlu0 %v632, 48
    %v636 = vpop.permute.xlu0 %635
    %vm639 = vcmask 421248
    %640 = vst.msk [vmem:[#allocation3] sm:$0xf] %vm639, %v634
    %641 = vst.msk [vmem:[#allocation3 + $0x20] sm:$0xf] %vm639, %v636
    %v642 = vld [vmem:[#allocation2 + $0x3d] sm:$0xff]
    %v643 = vld [vmem:[#allocation2 + $0x45] sm:$0xff]
    %v644 = vpack.c.bf16 %v643, %v642
    %v646 = vunpack.c.l.b16 %v644
    %v647 = vunpack.c.h.b16 %v644
    %v648 = vpack.c.b16 %v646, %v646
    %v649 = vpack.c.b16 %v647, %v647
    %650 = vrot.lane.b32.xlu0 %v648, 48
    %v651 = vpop.permute.xlu0 %650
    %652 = vrot.lane.b32.xlu0 %v649, 48
    %v653 = vpop.permute.xlu0 %652
    %656 = vst.msk [vmem:[#allocation3 + $0x40] sm:$0xf] %vm639, %v651
    %657 = vst.msk [vmem:[#allocation3 + $0x60] sm:$0xf] %vm639, %v653
    %v658 = vld [vmem:[#allocation2 + $0xe] sm:$0xff]
    %v659 = vld [vmem:[#allocation2 + $0x16] sm:$0xff]
    %v660 = vpack.c.bf16 %v659, %v658
    %v662 = vunpack.c.l.b16 %v660
    %v663 = vunpack.c.h.b16 %v660
    %v664 = vpack.c.b16 %v662, %v662
    %v665 = vpack.c.b16 %v663, %v663
    %666 = vrot.lane.b32.xlu0 %v664, 52
    %v667 = vpop.permute.xlu0 %666
    %668 = vrot.lane.b32.xlu0 %v665, 52
    %v669 = vpop.permute.xlu0 %668
    %vm672 = vcmask 454048
    %673 = vst.msk [vmem:[#allocation3] sm:$0xf] %vm672, %v667
    %674 = vst.msk [vmem:[#allocation3 + $0x20] sm:$0xf] %vm672, %v669
    %v675 = vld [vmem:[#allocation2 + $0x3e] sm:$0xff]
    %v676 = vld [vmem:[#allocation2 + $0x46] sm:$0xff]
    %v677 = vpack.c.bf16 %v676, %v675
    %v679 = vunpack.c.l.b16 %v677
    %v680 = vunpack.c.h.b16 %v677
    %v681 = vpack.c.b16 %v679, %v679
    %v682 = vpack.c.b16 %v680, %v680
    %683 = vrot.lane.b32.xlu0 %v681, 52
    %v684 = vpop.permute.xlu0 %683
    %685 = vrot.lane.b32.xlu0 %v682, 52
    %v686 = vpop.permute.xlu0 %685
    %689 = vst.msk [vmem:[#allocation3 + $0x40] sm:$0xf] %vm672, %v684
    %690 = vst.msk [vmem:[#allocation3 + $0x60] sm:$0xf] %vm672, %v686
    %v691 = vld [vmem:[#allocation2 + $0xf] sm:$0xff]
    %v692 = vld [vmem:[#allocation2 + $0x17] sm:$0xff]
    %v693 = vpack.c.bf16 %v692, %v691
    %v695 = vunpack.c.l.b16 %v693
    %v696 = vunpack.c.h.b16 %v693
    %v697 = vpack.c.b16 %v695, %v695
    %v698 = vpack.c.b16 %v696, %v696
    %699 = vrot.lane.b32.xlu0 %v697, 56
    %v700 = vpop.permute.xlu0 %699
    %701 = vrot.lane.b32.xlu0 %v698, 56
    %v702 = vpop.permute.xlu0 %701
    %vm705 = vcmask 486848
    %706 = vst.msk [vmem:[#allocation3] sm:$0xf] %vm705, %v700
    %707 = vst.msk [vmem:[#allocation3 + $0x20] sm:$0xf] %vm705, %v702
    %v708 = vld [vmem:[#allocation2 + $0x3f] sm:$0xff]
    %v709 = vld [vmem:[#allocation2 + $0x47] sm:$0xff]
    %v710 = vpack.c.bf16 %v709, %v708
    %v712 = vunpack.c.l.b16 %v710
    %v713 = vunpack.c.h.b16 %v710
    %v714 = vpack.c.b16 %v712, %v712
    %v715 = vpack.c.b16 %v713, %v713
    %716 = vrot.lane.b32.xlu0 %v714, 56
    %v717 = vpop.permute.xlu0 %716
    %718 = vrot.lane.b32.xlu0 %v715, 56
    %v719 = vpop.permute.xlu0 %718
    %722 = vst.msk [vmem:[#allocation3 + $0x40] sm:$0xf] %vm705, %v717
    %723 = vst.msk [vmem:[#allocation3 + $0x60] sm:$0xf] %vm705, %v719
    %v724 = vld [vmem:[#allocation2 + $0x10] sm:$0xff]
    %v725 = vld [vmem:[#allocation2 + $0x18] sm:$0xff]
    %v726 = vpack.c.bf16 %v725, %v724
    %v728 = vunpack.c.l.b16 %v726
    %v729 = vunpack.c.h.b16 %v726
    %v730 = vpack.c.b16 %v728, %v728
    %v731 = vpack.c.b16 %v729, %v729
    %732 = vrot.lane.b32.xlu0 %v730, 60
    %v733 = vpop.permute.xlu0 %732
    %734 = vrot.lane.b32.xlu0 %v731, 60
    %v735 = vpop.permute.xlu0 %734
    %vm738 = vcmask 519648
    %739 = vst.msk [vmem:[#allocation3] sm:$0xf] %vm738, %v733
    %740 = vst.msk [vmem:[#allocation3 + $0x20] sm:$0xf] %vm738, %v735
    %v741 = vld [vmem:[#allocation2 + $0x40] sm:$0xff]
    %v742 = vld [vmem:[#allocation2 + $0x48] sm:$0xff]
    %v743 = vpack.c.bf16 %v742, %v741
    %v745 = vunpack.c.l.b16 %v743
    %v746 = vunpack.c.h.b16 %v743
    %v747 = vpack.c.b16 %v745, %v745
    %v748 = vpack.c.b16 %v746, %v746
    %749 = vrot.lane.b32.xlu0 %v747, 60
    %v750 = vpop.permute.xlu0 %749
    %751 = vrot.lane.b32.xlu0 %v748, 60
    %v752 = vpop.permute.xlu0 %751
    %755 = vst.msk [vmem:[#allocation3 + $0x40] sm:$0xf] %vm738, %v750
    %756 = vst.msk [vmem:[#allocation3 + $0x60] sm:$0xf] %vm738, %v752
    %v757 = vld [vmem:[#allocation2 + $0x11] sm:$0xff]
    %v758 = vld [vmem:[#allocation2 + $0x19] sm:$0xff]
    %v759 = vpack.c.bf16 %v758, %v757
    %v761 = vunpack.c.l.b16 %v759
    %v762 = vunpack.c.h.b16 %v759
    %v763 = vpack.c.b16 %v761, %v761
    %v764 = vpack.c.b16 %v762, %v762
    %765 = vrot.lane.b32.xlu0 %v763, 64
    %v766 = vpop.permute.xlu0 %765
    %767 = vrot.lane.b32.xlu0 %v764, 64
    %v768 = vpop.permute.xlu0 %767
    %vm771 = vcmask 552448
    %772 = vst.msk [vmem:[#allocation3] sm:$0xf] %vm771, %v766
    %773 = vst.msk [vmem:[#allocation3 + $0x20] sm:$0xf] %vm771, %v768
    %v774 = vld [vmem:[#allocation2 + $0x41] sm:$0xff]
    %v775 = vld [vmem:[#allocation2 + $0x49] sm:$0xff]
    %v776 = vpack.c.bf16 %v775, %v774
    %v778 = vunpack.c.l.b16 %v776
    %v779 = vunpack.c.h.b16 %v776
    %v780 = vpack.c.b16 %v778, %v778
    %v781 = vpack.c.b16 %v779, %v779
    %782 = vrot.lane.b32.xlu0 %v780, 64
    %v783 = vpop.permute.xlu0 %782
    %784 = vrot.lane.b32.xlu0 %v781, 64
    %v785 = vpop.permute.xlu0 %784
    %788 = vst.msk [vmem:[#allocation3 + $0x40] sm:$0xf] %vm771, %v783
    %789 = vst.msk [vmem:[#allocation3 + $0x60] sm:$0xf] %vm771, %v785
    %v790 = vld [vmem:[#allocation2 + $0x12] sm:$0xff]
    %v791 = vld [vmem:[#allocation2 + $0x1a] sm:$0xff]
    %v792 = vpack.c.bf16 %v791, %v790
    %v794 = vunpack.c.l.b16 %v792
    %v795 = vunpack.c.h.b16 %v792
    %v796 = vpack.c.b16 %v794, %v794
    %v797 = vpack.c.b16 %v795, %v795
    %798 = vrot.lane.b32.xlu0 %v796, 68
    %v799 = vpop.permute.xlu0 %798
    %800 = vrot.lane.b32.xlu0 %v797, 68
    %v801 = vpop.permute.xlu0 %800
    %vm804 = vcmask 585248
    %805 = vst.msk [vmem:[#allocation3] sm:$0xf] %vm804, %v799
    %806 = vst.msk [vmem:[#allocation3 + $0x20] sm:$0xf] %vm804, %v801
    %v807 = vld [vmem:[#allocation2 + $0x42] sm:$0xff]
    %v808 = vld [vmem:[#allocation2 + $0x4a] sm:$0xff]
    %v809 = vpack.c.bf16 %v808, %v807
    %v811 = vunpack.c.l.b16 %v809
    %v812 = vunpack.c.h.b16 %v809
    %v813 = vpack.c.b16 %v811, %v811
    %v814 = vpack.c.b16 %v812, %v812
    %815 = vrot.lane.b32.xlu0 %v813, 68
    %v816 = vpop.permute.xlu0 %815
    %817 = vrot.lane.b32.xlu0 %v814, 68
    %v818 = vpop.permute.xlu0 %817
    %821 = vst.msk [vmem:[#allocation3 + $0x40] sm:$0xf] %vm804, %v816
    %822 = vst.msk [vmem:[#allocation3 + $0x60] sm:$0xf] %vm804, %v818
    %v823 = vld [vmem:[#allocation2 + $0x13] sm:$0xff]
    %v824 = vld [vmem:[#allocation2 + $0x1b] sm:$0xff]
    %v825 = vpack.c.bf16 %v824, %v823
    %v827 = vunpack.c.l.b16 %v825
    %v828 = vunpack.c.h.b16 %v825
    %v829 = vpack.c.b16 %v827, %v827
    %v830 = vpack.c.b16 %v828, %v828
    %831 = vrot.lane.b32.xlu0 %v829, 72
    %v832 = vpop.permute.xlu0 %831
    %833 = vrot.lane.b32.xlu0 %v830, 72
    %v834 = vpop.permute.xlu0 %833
    %vm837 = vcmask 618048
    %838 = vst.msk [vmem:[#allocation3] sm:$0xf] %vm837, %v832
    %839 = vst.msk [vmem:[#allocation3 + $0x20] sm:$0xf] %vm837, %v834
    %v840 = vld [vmem:[#allocation2 + $0x43] sm:$0xff]
    %v841 = vld [vmem:[#allocation2 + $0x4b] sm:$0xff]
    %v842 = vpack.c.bf16 %v841, %v840
    %v844 = vunpack.c.l.b16 %v842
    %v845 = vunpack.c.h.b16 %v842
    %v846 = vpack.c.b16 %v844, %v844
    %v847 = vpack.c.b16 %v845, %v845
    %848 = vrot.lane.b32.xlu0 %v846, 72
    %v849 = vpop.permute.xlu0 %848
    %850 = vrot.lane.b32.xlu0 %v847, 72
    %v851 = vpop.permute.xlu0 %850
    %854 = vst.msk [vmem:[#allocation3 + $0x40] sm:$0xf] %vm837, %v849
    %855 = vst.msk [vmem:[#allocation3 + $0x60] sm:$0xf] %vm837, %v851
    %v856 = vld [vmem:[#allocation2 + $0x14] sm:$0xff]
    %v857 = vld [vmem:[#allocation2 + $0x1c] sm:$0xff]
    %v858 = vpack.c.bf16 %v857, %v856
    %v860 = vunpack.c.l.b16 %v858
    %v861 = vunpack.c.h.b16 %v858
    %v862 = vpack.c.b16 %v860, %v860
    %v863 = vpack.c.b16 %v861, %v861
    %864 = vrot.lane.b32.xlu0 %v862, 76
    %v865 = vpop.permute.xlu0 %864
    %866 = vrot.lane.b32.xlu0 %v863, 76
    %v867 = vpop.permute.xlu0 %866
    %vm870 = vcmask 650848
    %871 = vst.msk [vmem:[#allocation3] sm:$0xf] %vm870, %v865
    %872 = vst.msk [vmem:[#allocation3 + $0x20] sm:$0xf] %vm870, %v867
    %v873 = vld [vmem:[#allocation2 + $0x44] sm:$0xff]
    %v874 = vld [vmem:[#allocation2 + $0x4c] sm:$0xff]
    %v875 = vpack.c.bf16 %v874, %v873
    %v877 = vunpack.c.l.b16 %v875
    %v878 = vunpack.c.h.b16 %v875
    %v879 = vpack.c.b16 %v877, %v877
    %v880 = vpack.c.b16 %v878, %v878
    %881 = vrot.lane.b32.xlu0 %v879, 76
    %v882 = vpop.permute.xlu0 %881
    %883 = vrot.lane.b32.xlu0 %v880, 76
    %v884 = vpop.permute.xlu0 %883
    %887 = vst.msk [vmem:[#allocation3 + $0x40] sm:$0xf] %vm870, %v882
    %888 = vst.msk [vmem:[#allocation3 + $0x60] sm:$0xf] %vm870, %v884
    %v889 = vld [vmem:[#allocation2 + $0x15] sm:$0xff]
    %v890 = vld [vmem:[#allocation2 + $0x1d] sm:$0xff]
    %v891 = vpack.c.bf16 %v890, %v889
    %v893 = vunpack.c.l.b16 %v891
    %v894 = vunpack.c.h.b16 %v891
    %v895 = vpack.c.b16 %v893, %v893
    %v896 = vpack.c.b16 %v894, %v894
    %897 = vrot.lane.b32.xlu0 %v895, 80
    %v898 = vpop.permute.xlu0 %897
    %899 = vrot.lane.b32.xlu0 %v896, 80
    %v900 = vpop.permute.xlu0 %899
    %vm903 = vcmask 683648
    %904 = vst.msk [vmem:[#allocation3] sm:$0xf] %vm903, %v898
    %905 = vst.msk [vmem:[#allocation3 + $0x20] sm:$0xf] %vm903, %v900
    %v906 = vld [vmem:[#allocation2 + $0x45] sm:$0xff]
    %v907 = vld [vmem:[#allocation2 + $0x4d] sm:$0xff]
    %v908 = vpack.c.bf16 %v907, %v906
    %v910 = vunpack.c.l.b16 %v908
    %v911 = vunpack.c.h.b16 %v908
    %v912 = vpack.c.b16 %v910, %v910
    %v913 = vpack.c.b16 %v911, %v911
    %914 = vrot.lane.b32.xlu0 %v912, 80
    %v915 = vpop.permute.xlu0 %914
    %916 = vrot.lane.b32.xlu0 %v913, 80
    %v917 = vpop.permute.xlu0 %916
    %920 = vst.msk [vmem:[#allocation3 + $0x40] sm:$0xf] %vm903, %v915
    %921 = vst.msk [vmem:[#allocation3 + $0x60] sm:$0xf] %vm903, %v917
    %v922 = vld [vmem:[#allocation2 + $0x16] sm:$0xff]
    %v923 = vld [vmem:[#allocation2 + $0x1e] sm:$0xff]
    %v924 = vpack.c.bf16 %v923, %v922
    %v926 = vunpack.c.l.b16 %v924
    %v927 = vunpack.c.h.b16 %v924
    %v928 = vpack.c.b16 %v926, %v926
    %v929 = vpack.c.b16 %v927, %v927
    %930 = vrot.lane.b32.xlu0 %v928, 84
    %v931 = vpop.permute.xlu0 %930
    %932 = vrot.lane.b32.xlu0 %v929, 84
    %v933 = vpop.permute.xlu0 %932
    %vm936 = vcmask 716448
    %937 = vst.msk [vmem:[#allocation3] sm:$0xf] %vm936, %v931
    %938 = vst.msk [vmem:[#allocation3 + $0x20] sm:$0xf] %vm936, %v933
    %v939 = vld [vmem:[#allocation2 + $0x46] sm:$0xff]
    %v940 = vld [vmem:[#allocation2 + $0x4e] sm:$0xff]
    %v941 = vpack.c.bf16 %v940, %v939
    %v943 = vunpack.c.l.b16 %v941
    %v944 = vunpack.c.h.b16 %v941
    %v945 = vpack.c.b16 %v943, %v943
    %v946 = vpack.c.b16 %v944, %v944
    %947 = vrot.lane.b32.xlu0 %v945, 84
    %v948 = vpop.permute.xlu0 %947
    %949 = vrot.lane.b32.xlu0 %v946, 84
    %v950 = vpop.permute.xlu0 %949
    %953 = vst.msk [vmem:[#allocation3 + $0x40] sm:$0xf] %vm936, %v948
    %954 = vst.msk [vmem:[#allocation3 + $0x60] sm:$0xf] %vm936, %v950
    %v955 = vld [vmem:[#allocation2 + $0x17] sm:$0xff]
    %v956 = vld [vmem:[#allocation2 + $0x1f] sm:$0xff]
    %v957 = vpack.c.bf16 %v956, %v955
    %v959 = vunpack.c.l.b16 %v957
    %v960 = vunpack.c.h.b16 %v957
    %v961 = vpack.c.b16 %v959, %v959
    %v962 = vpack.c.b16 %v960, %v960
    %963 = vrot.lane.b32.xlu0 %v961, 88
    %v964 = vpop.permute.xlu0 %963
    %965 = vrot.lane.b32.xlu0 %v962, 88
    %v966 = vpop.permute.xlu0 %965
    %vm969 = vcmask 749248
    %970 = vst.msk [vmem:[#allocation3] sm:$0xf] %vm969, %v964
    %971 = vst.msk [vmem:[#allocation3 + $0x20] sm:$0xf] %vm969, %v966
    %v972 = vld [vmem:[#allocation2 + $0x47] sm:$0xff]
    %v973 = vld [vmem:[#allocation2 + $0x4f] sm:$0xff]
    %v974 = vpack.c.bf16 %v973, %v972
    %v976 = vunpack.c.l.b16 %v974
    %v977 = vunpack.c.h.b16 %v974
    %v978 = vpack.c.b16 %v976, %v976
    %v979 = vpack.c.b16 %v977, %v977
    %980 = vrot.lane.b32.xlu0 %v978, 88
    %v981 = vpop.permute.xlu0 %980
    %982 = vrot.lane.b32.xlu0 %v979, 88
    %v983 = vpop.permute.xlu0 %982
    %986 = vst.msk [vmem:[#allocation3 + $0x40] sm:$0xf] %vm969, %v981
    %987 = vst.msk [vmem:[#allocation3 + $0x60] sm:$0xf] %vm969, %v983
    %v988 = vld [vmem:[#allocation2 + $0x18] sm:$0xff]
    %v989 = vld [vmem:[#allocation2 + $0x20] sm:$0xff]
    %v990 = vpack.c.bf16 %v989, %v988
    %v992 = vunpack.c.l.b16 %v990
    %v993 = vunpack.c.h.b16 %v990
    %v994 = vpack.c.b16 %v992, %v992
    %v995 = vpack.c.b16 %v993, %v993
    %996 = vrot.lane.b32.xlu0 %v994, 92
    %v997 = vpop.permute.xlu0 %996
    %998 = vrot.lane.b32.xlu0 %v995, 92
    %v999 = vpop.permute.xlu0 %998
    %vm1002 = vcmask 782048
    %1003 = vst.msk [vmem:[#allocation3] sm:$0xf] %vm1002, %v997
    %1004 = vst.msk [vmem:[#allocation3 + $0x20] sm:$0xf] %vm1002, %v999
    %v1005 = vld [vmem:[#allocation2 + $0x48] sm:$0xff]
    %v1006 = vld [vmem:[#allocation2 + $0x50] sm:$0xff]
    %v1007 = vpack.c.bf16 %v1006, %v1005
    %v1009 = vunpack.c.l.b16 %v1007
    %v1010 = vunpack.c.h.b16 %v1007
    %v1011 = vpack.c.b16 %v1009, %v1009
    %v1012 = vpack.c.b16 %v1010, %v1010
    %1013 = vrot.lane.b32.xlu0 %v1011, 92
    %v1014 = vpop.permute.xlu0 %1013
    %1015 = vrot.lane.b32.xlu0 %v1012, 92
    %v1016 = vpop.permute.xlu0 %1015
    %1019 = vst.msk [vmem:[#allocation3 + $0x40] sm:$0xf] %vm1002, %v1014
    %1020 = vst.msk [vmem:[#allocation3 + $0x60] sm:$0xf] %vm1002, %v1016
    %v1021 = vld [vmem:[#allocation2 + $0x19] sm:$0xff]
    %v1022 = vld [vmem:[#allocation2 + $0x21] sm:$0xff]
    %v1023 = vpack.c.bf16 %v1022, %v1021
    %v1025 = vunpack.c.l.b16 %v1023
    %v1026 = vunpack.c.h.b16 %v1023
    %v1027 = vpack.c.b16 %v1025, %v1025
    %v1028 = vpack.c.b16 %v1026, %v1026
    %1029 = vrot.lane.b32.xlu0 %v1027, 96
    %v1030 = vpop.permute.xlu0 %1029
    %1031 = vrot.lane.b32.xlu0 %v1028, 96
    %v1032 = vpop.permute.xlu0 %1031
    %vm1035 = vcmask 814848
    %1036 = vst.msk [vmem:[#allocation3] sm:$0xf] %vm1035, %v1030
    %1037 = vst.msk [vmem:[#allocation3 + $0x20] sm:$0xf] %vm1035, %v1032
    %v1038 = vld [vmem:[#allocation2 + $0x49] sm:$0xff]
    %v1039 = vld [vmem:[#allocation2 + $0x51] sm:$0xff]
    %v1040 = vpack.c.bf16 %v1039, %v1038
    %v1042 = vunpack.c.l.b16 %v1040
    %v1043 = vunpack.c.h.b16 %v1040
    %v1044 = vpack.c.b16 %v1042, %v1042
    %v1045 = vpack.c.b16 %v1043, %v1043
    %1046 = vrot.lane.b32.xlu0 %v1044, 96
    %v1047 = vpop.permute.xlu0 %1046
    %1048 = vrot.lane.b32.xlu0 %v1045, 96
    %v1049 = vpop.permute.xlu0 %1048
    %1052 = vst.msk [vmem:[#allocation3 + $0x40] sm:$0xf] %vm1035, %v1047
    %1053 = vst.msk [vmem:[#allocation3 + $0x60] sm:$0xf] %vm1035, %v1049
    %v1054 = vld [vmem:[#allocation2 + $0x1a] sm:$0xff]
    %v1055 = vld [vmem:[#allocation2 + $0x22] sm:$0xff]
    %v1056 = vpack.c.bf16 %v1055, %v1054
    %v1058 = vunpack.c.l.b16 %v1056
    %v1059 = vunpack.c.h.b16 %v1056
    %v1060 = vpack.c.b16 %v1058, %v1058
    %v1061 = vpack.c.b16 %v1059, %v1059
    %1062 = vrot.lane.b32.xlu0 %v1060, 100
    %v1063 = vpop.permute.xlu0 %1062
    %1064 = vrot.lane.b32.xlu0 %v1061, 100
    %v1065 = vpop.permute.xlu0 %1064
    %vm1068 = vcmask 847648
    %1069 = vst.msk [vmem:[#allocation3] sm:$0xf] %vm1068, %v1063
    %1070 = vst.msk [vmem:[#allocation3 + $0x20] sm:$0xf] %vm1068, %v1065
    %v1071 = vld [vmem:[#allocation2 + $0x4a] sm:$0xff]
    %v1072 = vld [vmem:[#allocation2 + $0x52] sm:$0xff]
    %v1073 = vpack.c.bf16 %v1072, %v1071
    %v1075 = vunpack.c.l.b16 %v1073
    %v1076 = vunpack.c.h.b16 %v1073
    %v1077 = vpack.c.b16 %v1075, %v1075
    %v1078 = vpack.c.b16 %v1076, %v1076
    %1079 = vrot.lane.b32.xlu0 %v1077, 100
    %v1080 = vpop.permute.xlu0 %1079
    %1081 = vrot.lane.b32.xlu0 %v1078, 100
    %v1082 = vpop.permute.xlu0 %1081
    %1085 = vst.msk [vmem:[#allocation3 + $0x40] sm:$0xf] %vm1068, %v1080
    %1086 = vst.msk [vmem:[#allocation3 + $0x60] sm:$0xf] %vm1068, %v1082
    %v1087 = vld [vmem:[#allocation2 + $0x1b] sm:$0xff]
    %v1088 = vld [vmem:[#allocation2 + $0x23] sm:$0xff]
    %v1089 = vpack.c.bf16 %v1088, %v1087
    %v1091 = vunpack.c.l.b16 %v1089
    %v1092 = vunpack.c.h.b16 %v1089
    %v1093 = vpack.c.b16 %v1091, %v1091
    %v1094 = vpack.c.b16 %v1092, %v1092
    %1095 = vrot.lane.b32.xlu0 %v1093, 104
    %v1096 = vpop.permute.xlu0 %1095
    %1097 = vrot.lane.b32.xlu0 %v1094, 104
    %v1098 = vpop.permute.xlu0 %1097
    %vm1101 = vcmask 880448
    %1102 = vst.msk [vmem:[#allocation3] sm:$0xf] %vm1101, %v1096
    %1103 = vst.msk [vmem:[#allocation3 + $0x20] sm:$0xf] %vm1101, %v1098
    %v1104 = vld [vmem:[#allocation2 + $0x4b] sm:$0xff]
    %v1105 = vld [vmem:[#allocation2 + $0x53] sm:$0xff]
    %v1106 = vpack.c.bf16 %v1105, %v1104
    %v1108 = vunpack.c.l.b16 %v1106
    %v1109 = vunpack.c.h.b16 %v1106
    %v1110 = vpack.c.b16 %v1108, %v1108
    %v1111 = vpack.c.b16 %v1109, %v1109
    %1112 = vrot.lane.b32.xlu0 %v1110, 104
    %v1113 = vpop.permute.xlu0 %1112
    %1114 = vrot.lane.b32.xlu0 %v1111, 104
    %v1115 = vpop.permute.xlu0 %1114
    %1118 = vst.msk [vmem:[#allocation3 + $0x40] sm:$0xf] %vm1101, %v1113
    %1119 = vst.msk [vmem:[#allocation3 + $0x60] sm:$0xf] %vm1101, %v1115
    %v1120 = vld [vmem:[#allocation2 + $0x1c] sm:$0xff]
    %v1121 = vld [vmem:[#allocation2 + $0x24] sm:$0xff]
    %v1122 = vpack.c.bf16 %v1121, %v1120
    %v1124 = vunpack.c.l.b16 %v1122
    %v1125 = vunpack.c.h.b16 %v1122
    %v1126 = vpack.c.b16 %v1124, %v1124
    %v1127 = vpack.c.b16 %v1125, %v1125
    %1128 = vrot.lane.b32.xlu0 %v1126, 108
    %v1129 = vpop.permute.xlu0 %1128
    %1130 = vrot.lane.b32.xlu0 %v1127, 108
    %v1131 = vpop.permute.xlu0 %1130
    %vm1134 = vcmask 913248
    %1135 = vst.msk [vmem:[#allocation3] sm:$0xf] %vm1134, %v1129
    %1136 = vst.msk [vmem:[#allocation3 + $0x20] sm:$0xf] %vm1134, %v1131
    %v1137 = vld [vmem:[#allocation2 + $0x4c] sm:$0xff]
    %v1138 = vld [vmem:[#allocation2 + $0x54] sm:$0xff]
    %v1139 = vpack.c.bf16 %v1138, %v1137
    %v1141 = vunpack.c.l.b16 %v1139
    %v1142 = vunpack.c.h.b16 %v1139
    %v1143 = vpack.c.b16 %v1141, %v1141
    %v1144 = vpack.c.b16 %v1142, %v1142
    %1145 = vrot.lane.b32.xlu0 %v1143, 108
    %v1146 = vpop.permute.xlu0 %1145
    %1147 = vrot.lane.b32.xlu0 %v1144, 108
    %v1148 = vpop.permute.xlu0 %1147
    %1151 = vst.msk [vmem:[#allocation3 + $0x40] sm:$0xf] %vm1134, %v1146
    %1152 = vst.msk [vmem:[#allocation3 + $0x60] sm:$0xf] %vm1134, %v1148
    %v1153 = vld [vmem:[#allocation2 + $0x1d] sm:$0xff]
    %v1154 = vld [vmem:[#allocation2 + $0x25] sm:$0xff]
    %v1155 = vpack.c.bf16 %v1154, %v1153
    %v1157 = vunpack.c.l.b16 %v1155
    %v1158 = vunpack.c.h.b16 %v1155
    %v1159 = vpack.c.b16 %v1157, %v1157
    %v1160 = vpack.c.b16 %v1158, %v1158
    %1161 = vrot.lane.b32.xlu0 %v1159, 112
    %v1162 = vpop.permute.xlu0 %1161
    %1163 = vrot.lane.b32.xlu0 %v1160, 112
    %v1164 = vpop.permute.xlu0 %1163
    %vm1167 = vcmask 946048
    %1168 = vst.msk [vmem:[#allocation3] sm:$0xf] %vm1167, %v1162
    %1169 = vst.msk [vmem:[#allocation3 + $0x20] sm:$0xf] %vm1167, %v1164
    %v1170 = vld [vmem:[#allocation2 + $0x4d] sm:$0xff]
    %v1171 = vld [vmem:[#allocation2 + $0x55] sm:$0xff]
    %v1172 = vpack.c.bf16 %v1171, %v1170
    %v1174 = vunpack.c.l.b16 %v1172
    %v1175 = vunpack.c.h.b16 %v1172
    %v1176 = vpack.c.b16 %v1174, %v1174
    %v1177 = vpack.c.b16 %v1175, %v1175
    %1178 = vrot.lane.b32.xlu0 %v1176, 112
    %v1179 = vpop.permute.xlu0 %1178
    %1180 = vrot.lane.b32.xlu0 %v1177, 112
    %v1181 = vpop.permute.xlu0 %1180
    %1184 = vst.msk [vmem:[#allocation3 + $0x40] sm:$0xf] %vm1167, %v1179
    %1185 = vst.msk [vmem:[#allocation3 + $0x60] sm:$0xf] %vm1167, %v1181
    %v1186 = vld [vmem:[#allocation2 + $0x1e] sm:$0xff]
    %v1187 = vld [vmem:[#allocation2 + $0x26] sm:$0xff]
    %v1188 = vpack.c.bf16 %v1187, %v1186
    %v1190 = vunpack.c.l.b16 %v1188
    %v1191 = vunpack.c.h.b16 %v1188
    %v1192 = vpack.c.b16 %v1190, %v1190
    %v1193 = vpack.c.b16 %v1191, %v1191
    %1194 = vrot.lane.b32.xlu0 %v1192, 116
    %v1195 = vpop.permute.xlu0 %1194
    %1196 = vrot.lane.b32.xlu0 %v1193, 116
    %v1197 = vpop.permute.xlu0 %1196
    %vm1200 = vcmask 978848
    %1201 = vst.msk [vmem:[#allocation3] sm:$0xf] %vm1200, %v1195
    %1202 = vst.msk [vmem:[#allocation3 + $0x20] sm:$0xf] %vm1200, %v1197
    %v1203 = vld [vmem:[#allocation2 + $0x4e] sm:$0xff]
    %v1204 = vld [vmem:[#allocation2 + $0x56] sm:$0xff]
    %v1205 = vpack.c.bf16 %v1204, %v1203
    %v1207 = vunpack.c.l.b16 %v1205
    %v1208 = vunpack.c.h.b16 %v1205
    %v1209 = vpack.c.b16 %v1207, %v1207
    %v1210 = vpack.c.b16 %v1208, %v1208
    %1211 = vrot.lane.b32.xlu0 %v1209, 116
    %v1212 = vpop.permute.xlu0 %1211
    %1213 = vrot.lane.b32.xlu0 %v1210, 116
    %v1214 = vpop.permute.xlu0 %1213
    %1217 = vst.msk [vmem:[#allocation3 + $0x40] sm:$0xf] %vm1200, %v1212
    %1218 = vst.msk [vmem:[#allocation3 + $0x60] sm:$0xf] %vm1200, %v1214
    %v1219 = vld [vmem:[#allocation2 + $0x1f] sm:$0xff]
    %v1220 = vld [vmem:[#allocation2 + $0x27] sm:$0xff]
    %v1221 = vpack.c.bf16 %v1220, %v1219
    %v1223 = vunpack.c.l.b16 %v1221
    %v1224 = vunpack.c.h.b16 %v1221
    %v1225 = vpack.c.b16 %v1223, %v1223
    %v1226 = vpack.c.b16 %v1224, %v1224
    %1227 = vrot.lane.b32.xlu0 %v1225, 120
    %v1228 = vpop.permute.xlu0 %1227
    %1229 = vrot.lane.b32.xlu0 %v1226, 120
    %v1230 = vpop.permute.xlu0 %1229
    %vm1233 = vcmask 1011648
    %1234 = vst.msk [vmem:[#allocation3] sm:$0xf] %vm1233, %v1228
    %1235 = vst.msk [vmem:[#allocation3 + $0x20] sm:$0xf] %vm1233, %v1230
    %v1236 = vld [vmem:[#allocation2 + $0x4f] sm:$0xff]
    %v1237 = vld [vmem:[#allocation2 + $0x57] sm:$0xff]
    %v1238 = vpack.c.bf16 %v1237, %v1236
    %v1240 = vunpack.c.l.b16 %v1238
    %v1241 = vunpack.c.h.b16 %v1238
    %v1242 = vpack.c.b16 %v1240, %v1240
    %v1243 = vpack.c.b16 %v1241, %v1241
    %1244 = vrot.lane.b32.xlu0 %v1242, 120
    %v1245 = vpop.permute.xlu0 %1244
    %1246 = vrot.lane.b32.xlu0 %v1243, 120
    %v1247 = vpop.permute.xlu0 %1246
    %1250 = vst.msk [vmem:[#allocation3 + $0x40] sm:$0xf] %vm1233, %v1245
    %1251 = vst.msk [vmem:[#allocation3 + $0x60] sm:$0xf] %vm1233, %v1247
    %v1252 = vld [vmem:[#allocation2 + $0x20] sm:$0xff]
    %v1253 = vld [vmem:[#allocation2 + $0x28] sm:$0xff]
    %v1254 = vpack.c.bf16 %v1253, %v1252
    %v1256 = vunpack.c.l.b16 %v1254
    %v1257 = vunpack.c.h.b16 %v1254
    %v1258 = vpack.c.b16 %v1256, %v1256
    %v1259 = vpack.c.b16 %v1257, %v1257
    %1260 = vrot.lane.b32.xlu0 %v1258, 124
    %v1261 = vpop.permute.xlu0 %1260
    %1262 = vrot.lane.b32.xlu0 %v1259, 124
    %v1263 = vpop.permute.xlu0 %1262
    %vm1266 = vcmask 1044448
    %1267 = vst.msk [vmem:[#allocation3] sm:$0xf] %vm1266, %v1261
    %1268 = vst.msk [vmem:[#allocation3 + $0x20] sm:$0xf] %vm1266, %v1263
    %v1269 = vld [vmem:[#allocation2 + $0x50] sm:$0xff]
    %v1270 = vld [vmem:[#allocation2 + $0x58] sm:$0xff]
    %v1271 = vpack.c.bf16 %v1270, %v1269
    %v1273 = vunpack.c.l.b16 %v1271
    %v1274 = vunpack.c.h.b16 %v1271
    %v1275 = vpack.c.b16 %v1273, %v1273
    %v1276 = vpack.c.b16 %v1274, %v1274
    %1277 = vrot.lane.b32.xlu0 %v1275, 124
    %v1278 = vpop.permute.xlu0 %1277
    %1279 = vrot.lane.b32.xlu0 %v1276, 124
    %v1280 = vpop.permute.xlu0 %1279
    %1283 = vst.msk [vmem:[#allocation3 + $0x40] sm:$0xf] %vm1266, %v1278
    %1284 = vst.msk [vmem:[#allocation3 + $0x60] sm:$0xf] %vm1266, %v1280
    %v1285 = vld [vmem:[#allocation3] sm:$0xf]
    %v1286 = vld [vmem:[#allocation3 + $0x20] sm:$0xf]
    %v1287 = vld [vmem:[#allocation3 + $0x40] sm:$0xf]
    %v1288 = vld [vmem:[#allocation3 + $0x60] sm:$0xf]
    %v1289 = vld [vmem:[#allocation8] sm:$0xf]
    %v1290 = vld [vmem:[#allocation8 + $0x4] sm:$0xf]
    %v1291 = vld [vmem:[#allocation8 + $0x8] sm:$0xf]
    %v1292 = vld [vmem:[#allocation8 + $0xc] sm:$0xf]
    %v1293 = vld [vmem:[#allocation8 + $0x10] sm:$0xf]
    %v1294 = vld [vmem:[#allocation8 + $0x14] sm:$0xf]
    %v1295 = vld [vmem:[#allocation8 + $0x18] sm:$0xf]
    %v1296 = vld [vmem:[#allocation8 + $0x1c] sm:$0xf]
    %v1297 = vld [vmem:[#allocation8 + $0x20] sm:$0xf]
    %v1298 = vld [vmem:[#allocation8 + $0x24] sm:$0xf]
    %v1299 = vld [vmem:[#allocation8 + $0x28] sm:$0xf]
    %v1300 = vld [vmem:[#allocation8 + $0x2c] sm:$0xf]
    %v1301 = vld [vmem:[#allocation8 + $0x30] sm:$0xf]
    %v1302 = vld [vmem:[#allocation8 + $0x34] sm:$0xf]
    %v1303 = vld [vmem:[#allocation8 + $0x38] sm:$0xf]
    %v1304 = vld [vmem:[#allocation8 + $0x3c] sm:$0xf]
    %v1309 = vunpack.c.l.b16 %v1285
    %v1310 = vunpack.c.l.b16 %v1286
    %v1311 = vunpack.c.l.b16 %v1287
    %v1312 = vunpack.c.l.b16 %v1288
    %v1313 = vpack.c.b16 %v1310, %v1309
    %v1314 = vpack.c.b16 %v1312, %v1311
    %v1333 = vunpack.c.l.b16 %v1289
    %v1334 = vunpack.c.l.b16 %v1290
    %v1335 = vunpack.c.l.b16 %v1291
    %v1336 = vunpack.c.l.b16 %v1292
    %v1337 = vunpack.c.l.b16 %v1293
    %v1338 = vunpack.c.l.b16 %v1294
    %v1339 = vunpack.c.l.b16 %v1295
    %v1340 = vunpack.c.l.b16 %v1296
    %v1341 = vunpack.c.l.b16 %v1297
    %v1342 = vunpack.c.l.b16 %v1298
    %v1343 = vunpack.c.l.b16 %v1299
    %v1344 = vunpack.c.l.b16 %v1300
    %v1345 = vunpack.c.l.b16 %v1301
    %v1346 = vunpack.c.l.b16 %v1302
    %v1347 = vunpack.c.l.b16 %v1303
    %v1348 = vunpack.c.l.b16 %v1304
    %v1349 = vpack.c.b16 %v1334, %v1333
    %v1350 = vpack.c.b16 %v1336, %v1335
    %v1351 = vpack.c.b16 %v1338, %v1337
    %v1352 = vpack.c.b16 %v1340, %v1339
    %v1353 = vpack.c.b16 %v1342, %v1341
    %v1354 = vpack.c.b16 %v1344, %v1343
    %v1355 = vpack.c.b16 %v1346, %v1345
    %v1356 = vpack.c.b16 %v1348, %v1347
    %1365 = vmatprep.subr.bf16.mxu0 0
    %1366 = vmatpush1.bf16.msra.mxu0 %v1356
    %1367 = vmatprep.subr.bf16.mxu0 0
    %1368 = vmatpush1.bf16.msra.mxu0 %v1355
    %1369 = vmatprep.subr.bf16.mxu0 0
    %1370 = vmatpush1.bf16.msra.mxu0 %v1354
    %1371 = vmatprep.subr.bf16.mxu0 0
    %1372 = vmatpush1.bf16.msra.mxu0 %v1353
    %1373 = vmatprep.subr.bf16.mxu0 0
    %1374 = vmatpush1.bf16.msra.mxu0 %v1352
    %1375 = vmatprep.subr.bf16.mxu0 0
    %1376 = vmatpush1.bf16.msra.mxu0 %v1351
    %1377 = vmatprep.subr.bf16.mxu0 0
    %1378 = vmatpush1.bf16.msra.mxu0 %v1350
    %1379 = vmatprep.subr.bf16.mxu0 0
    %1380 = vmatpush1.bf16.msra.mxu0 %v1349
    %1381 = vmatprep.subr.bf16.mxu0 0
    %1382 = vmatpush2.bf16.msra.mxu0 0
    %1383 = vmatprep.subr.bf16.mxu0 0
    %1384 = vmatpush2.bf16.msra.mxu0 0
    %1385 = vmatprep.subr.bf16.mxu0 0
    %1386 = vmatpush2.bf16.msra.mxu0 0
    %1387 = vmatprep.subr.bf16.mxu0 0
    %1388 = vmatpush2.bf16.msra.mxu0 0
    %1389 = vmatprep.subr.bf16.mxu0 0
    %1390 = vmatpush2.bf16.msra.mxu0 0
    %1391 = vmatprep.subr.bf16.mxu0 0
    %1392 = vmatpush2.bf16.msra.mxu0 0
    %1393 = vmatprep.subr.bf16.mxu0 0
    %1394 = vmatpush2.bf16.msra.mxu0 0
    %1395 = vmatprep.subr.bf16.mxu0 0
    %1396 = vmatpush2.bf16.msra.mxu0 0
    %1397 = vmatprep.mubr.bf16.mxu0 0
    %1398 = vmatmul.mubr.bf16.gmra.mxu0 %v1313
    %v1399 = vpop.f32.mrf.mxu0
    %v1400 = vadd.f32 %v207, %v1399
    %v1401 = vpop.f32.mrf.mxu0
    %v1402 = vpop.f32.mrf.mxu0
    %v1403 = vadd.f32 %v207, %v1402
    %v1404 = vpop.f32.mrf.mxu0
    %1405 = vmatprep.mubr.bf16.mxu0 0
    %1406 = vmatmul.mubr.bf16.gmra.mxu0 %v1314
    %v1407 = vpop.f32.mrf.mxu0
    %v1408 = vadd.f32 %v207, %v1407
    %v1409 = vpop.f32.mrf.mxu0
    %v1410 = vpop.f32.mrf.mxu0
    %v1411 = vadd.f32 %v207, %v1410
    %v1412 = vpop.f32.mrf.mxu0
    %1413 = vdwg.mxu0
    %v1414 = vmul.f32 %v1400, %v208
    %v1415 = vmul.f32 %v1403, %v208
    %v1416 = vmul.f32 %v1408, %v208
    %v1417 = vmul.f32 %v1411, %v208
    %v1418 = vadd.f32 %v1414, %v209
    %v1419 = vadd.f32 %v1415, %v209
    %v1420 = vadd.f32 %v1416, %v209
    %v1421 = vadd.f32 %v1417, %v209
    %v1422 = vmax.f32 %v1418, 0.0
    %v1423 = vmax.f32 %v1419, 0.0
    %v1424 = vmax.f32 %v1420, 0.0
    %v1425 = vmax.f32 %v1421, 0.0
    %vm1426 = vcmask 261120
    %1427 = vst.msk [vmem:[#allocation2] sm:$0xff] %vm1426, 0.0
    %1428 = vst.msk [vmem:[#allocation2 + $0x8] sm:$0xff] %vm1426, 0.0
    %1429 = vst.msk [vmem:[#allocation2 + $0x20] sm:$0xff] %vm1426, 0.0
    %1430 = vst.msk [vmem:[#allocation2 + $0x28] sm:$0xff] %vm1426, 0.0
    %1431 = vst.msk [vmem:[#allocation2 + $0x10] sm:$0xff] %vm1426, %v1422
    %1432 = vst.msk [vmem:[#allocation2 + $0x18] sm:$0xff] %vm1426, %v1423
    %1433 = vst.msk [vmem:[#allocation2 + $0x30] sm:$0xff] %vm1426, 0.0
    %1434 = vst.msk [vmem:[#allocation2 + $0x38] sm:$0xff] %vm1426, 0.0
    %1435 = vst.msk [vmem:[#allocation2 + $0x50] sm:$0xff] %vm1426, 0.0
    %1436 = vst.msk [vmem:[#allocation2 + $0x58] sm:$0xff] %vm1426, 0.0
    %1437 = vst.msk [vmem:[#allocation2 + $0x40] sm:$0xff] %vm1426, %v1424
    %1438 = vst.msk [vmem:[#allocation2 + $0x48] sm:$0xff] %vm1426, %v1425
    %v1439 = vld [vmem:[#allocation2 + $0x1] sm:$0xff]
    %v1440 = vld [vmem:[#allocation2 + $0x9] sm:$0xff]
    %v1441 = vpack.c.bf16 %v1440, %v1439
    %v1443 = vunpack.c.l.b16 %v1441
    %v1444 = vunpack.c.h.b16 %v1441
    %v1445 = vpack.c.b16 %v1443, %v1443
    %v1446 = vpack.c.b16 %v1444, %v1444
    %vm1449 = vcmask 257024
    %1450 = vst.msk [vmem:[#allocation3] sm:$0xf] %vm1449, %v1445
    %1451 = vst.msk [vmem:[#allocation3 + $0x20] sm:$0xf] %vm1449, %v1446
    %v1452 = vld [vmem:[#allocation2 + $0x31] sm:$0xff]
    %v1453 = vld [vmem:[#allocation2 + $0x39] sm:$0xff]
    %v1454 = vpack.c.bf16 %v1453, %v1452
    %v1456 = vunpack.c.l.b16 %v1454
    %v1457 = vunpack.c.h.b16 %v1454
    %v1458 = vpack.c.b16 %v1456, %v1456
    %v1459 = vpack.c.b16 %v1457, %v1457
    %1462 = vst.msk [vmem:[#allocation3 + $0x40] sm:$0xf] %vm1449, %v1458
    %1463 = vst.msk [vmem:[#allocation3 + $0x60] sm:$0xf] %vm1449, %v1459
    %v1464 = vld [vmem:[#allocation2 + $0x2] sm:$0xff]
    %v1465 = vld [vmem:[#allocation2 + $0xa] sm:$0xff]
    %v1466 = vpack.c.bf16 %v1465, %v1464
    %v1468 = vunpack.c.l.b16 %v1466
    %v1469 = vunpack.c.h.b16 %v1466
    %v1470 = vpack.c.b16 %v1468, %v1468
    %v1471 = vpack.c.b16 %v1469, %v1469
    %1472 = vrot.lane.b32.xlu0 %v1470, 32
    %v1473 = vpop.permute.xlu0 %1472
    %1474 = vrot.lane.b32.xlu0 %v1471, 32
    %v1475 = vpop.permute.xlu0 %1474
    %vm1478 = vcmask 519424
    %1479 = vst.msk [vmem:[#allocation3] sm:$0xf] %vm1478, %v1473
    %1480 = vst.msk [vmem:[#allocation3 + $0x20] sm:$0xf] %vm1478, %v1475
    %v1481 = vld [vmem:[#allocation2 + $0x32] sm:$0xff]
    %v1482 = vld [vmem:[#allocation2 + $0x3a] sm:$0xff]
    %v1483 = vpack.c.bf16 %v1482, %v1481
    %v1485 = vunpack.c.l.b16 %v1483
    %v1486 = vunpack.c.h.b16 %v1483
    %v1487 = vpack.c.b16 %v1485, %v1485
    %v1488 = vpack.c.b16 %v1486, %v1486
    %1489 = vrot.lane.b32.xlu0 %v1487, 32
    %v1490 = vpop.permute.xlu0 %1489
    %1491 = vrot.lane.b32.xlu0 %v1488, 32
    %v1492 = vpop.permute.xlu0 %1491
    %1495 = vst.msk [vmem:[#allocation3 + $0x40] sm:$0xf] %vm1478, %v1490
    %1496 = vst.msk [vmem:[#allocation3 + $0x60] sm:$0xf] %vm1478, %v1492
    %v1497 = vld [vmem:[#allocation2 + $0x3] sm:$0xff]
    %v1498 = vld [vmem:[#allocation2 + $0xb] sm:$0xff]
    %v1499 = vpack.c.bf16 %v1498, %v1497
    %v1501 = vunpack.c.l.b16 %v1499
    %v1502 = vunpack.c.h.b16 %v1499
    %v1503 = vpack.c.b16 %v1501, %v1501
    %v1504 = vpack.c.b16 %v1502, %v1502
    %1505 = vrot.lane.b32.xlu0 %v1503, 64
    %v1506 = vpop.permute.xlu0 %1505
    %1507 = vrot.lane.b32.xlu0 %v1504, 64
    %v1508 = vpop.permute.xlu0 %1507
    %vm1511 = vcmask 781824
    %1512 = vst.msk [vmem:[#allocation3] sm:$0xf] %vm1511, %v1506
    %1513 = vst.msk [vmem:[#allocation3 + $0x20] sm:$0xf] %vm1511, %v1508
    %v1514 = vld [vmem:[#allocation2 + $0x33] sm:$0xff]
    %v1515 = vld [vmem:[#allocation2 + $0x3b] sm:$0xff]
    %v1516 = vpack.c.bf16 %v1515, %v1514
    %v1518 = vunpack.c.l.b16 %v1516
    %v1519 = vunpack.c.h.b16 %v1516
    %v1520 = vpack.c.b16 %v1518, %v1518
    %v1521 = vpack.c.b16 %v1519, %v1519
    %1522 = vrot.lane.b32.xlu0 %v1520, 64
    %v1523 = vpop.permute.xlu0 %1522
    %1524 = vrot.lane.b32.xlu0 %v1521, 64
    %v1525 = vpop.permute.xlu0 %1524
    %1528 = vst.msk [vmem:[#allocation3 + $0x40] sm:$0xf] %vm1511, %v1523
    %1529 = vst.msk [vmem:[#allocation3 + $0x60] sm:$0xf] %vm1511, %v1525
    %v1530 = vld [vmem:[#allocation2 + $0x4] sm:$0xff]
    %v1531 = vld [vmem:[#allocation2 + $0xc] sm:$0xff]
    %v1532 = vpack.c.bf16 %v1531, %v1530
    %v1534 = vunpack.c.l.b16 %v1532
    %v1535 = vunpack.c.h.b16 %v1532
    %v1536 = vpack.c.b16 %v1534, %v1534
    %v1537 = vpack.c.b16 %v1535, %v1535
    %1538 = vrot.lane.b32.xlu0 %v1536, 96
    %v1539 = vpop.permute.xlu0 %1538
    %1540 = vrot.lane.b32.xlu0 %v1537, 96
    %v1541 = vpop.permute.xlu0 %1540
    %vm1544 = vcmask 1044224
    %1545 = vst.msk [vmem:[#allocation3] sm:$0xf] %vm1544, %v1539
    %1546 = vst.msk [vmem:[#allocation3 + $0x20] sm:$0xf] %vm1544, %v1541
    %v1547 = vld [vmem:[#allocation2 + $0x34] sm:$0xff]
    %v1548 = vld [vmem:[#allocation2 + $0x3c] sm:$0xff]
    %v1549 = vpack.c.bf16 %v1548, %v1547
    %v1551 = vunpack.c.l.b16 %v1549
    %v1552 = vunpack.c.h.b16 %v1549
    %v1553 = vpack.c.b16 %v1551, %v1551
    %v1554 = vpack.c.b16 %v1552, %v1552
    %1555 = vrot.lane.b32.xlu0 %v1553, 96
    %v1556 = vpop.permute.xlu0 %1555
    %1557 = vrot.lane.b32.xlu0 %v1554, 96
    %v1558 = vpop.permute.xlu0 %1557
    %1561 = vst.msk [vmem:[#allocation3 + $0x40] sm:$0xf] %vm1544, %v1556
    %1562 = vst.msk [vmem:[#allocation3 + $0x60] sm:$0xf] %vm1544, %v1558
    %v1563 = vld [vmem:[#allocation2 + $0x5] sm:$0xff]
    %v1564 = vld [vmem:[#allocation2 + $0xd] sm:$0xff]
    %v1565 = vpack.c.bf16 %v1564, %v1563
    %v1567 = vunpack.c.l.b16 %v1565
    %v1568 = vunpack.c.h.b16 %v1565
    %v1569 = vpack.c.b16 %v1567, %v1567
    %v1570 = vpack.c.b16 %v1568, %v1568
    %1573 = vst.msk [vmem:[#allocation3 + $0x4] sm:$0xf] %vm1449, %v1569
    %1574 = vst.msk [vmem:[#allocation3 + $0x24] sm:$0xf] %vm1449, %v1570
    %v1575 = vld [vmem:[#allocation2 + $0x35] sm:$0xff]
    %v1576 = vld [vmem:[#allocation2 + $0x3d] sm:$0xff]
    %v1577 = vpack.c.bf16 %v1576, %v1575
    %v1579 = vunpack.c.l.b16 %v1577
    %v1580 = vunpack.c.h.b16 %v1577
    %v1581 = vpack.c.b16 %v1579, %v1579
    %v1582 = vpack.c.b16 %v1580, %v1580
    %1585 = vst.msk [vmem:[#allocation3 + $0x44] sm:$0xf] %vm1449, %v1581
    %1586 = vst.msk [vmem:[#allocation3 + $0x64] sm:$0xf] %vm1449, %v1582
    %v1587 = vld [vmem:[#allocation2 + $0x6] sm:$0xff]
    %v1588 = vld [vmem:[#allocation2 + $0xe] sm:$0xff]
    %v1589 = vpack.c.bf16 %v1588, %v1587
    %v1591 = vunpack.c.l.b16 %v1589
    %v1592 = vunpack.c.h.b16 %v1589
    %v1593 = vpack.c.b16 %v1591, %v1591
    %v1594 = vpack.c.b16 %v1592, %v1592
    %1595 = vrot.lane.b32.xlu0 %v1593, 32
    %v1596 = vpop.permute.xlu0 %1595
    %1597 = vrot.lane.b32.xlu0 %v1594, 32
    %v1598 = vpop.permute.xlu0 %1597
    %1601 = vst.msk [vmem:[#allocation3 + $0x4] sm:$0xf] %vm1478, %v1596
    %1602 = vst.msk [vmem:[#allocation3 + $0x24] sm:$0xf] %vm1478, %v1598
    %v1603 = vld [vmem:[#allocation2 + $0x36] sm:$0xff]
    %v1604 = vld [vmem:[#allocation2 + $0x3e] sm:$0xff]
    %v1605 = vpack.c.bf16 %v1604, %v1603
    %v1607 = vunpack.c.l.b16 %v1605
    %v1608 = vunpack.c.h.b16 %v1605
    %v1609 = vpack.c.b16 %v1607, %v1607
    %v1610 = vpack.c.b16 %v1608, %v1608
    %1611 = vrot.lane.b32.xlu0 %v1609, 32
    %v1612 = vpop.permute.xlu0 %1611
    %1613 = vrot.lane.b32.xlu0 %v1610, 32
    %v1614 = vpop.permute.xlu0 %1613
    %1617 = vst.msk [vmem:[#allocation3 + $0x44] sm:$0xf] %vm1478, %v1612
    %1618 = vst.msk [vmem:[#allocation3 + $0x64] sm:$0xf] %vm1478, %v1614
    %v1619 = vld [vmem:[#allocation2 + $0x7] sm:$0xff]
    %v1620 = vld [vmem:[#allocation2 + $0xf] sm:$0xff]
    %v1621 = vpack.c.bf16 %v1620, %v1619
    %v1623 = vunpack.c.l.b16 %v1621
    %v1624 = vunpack.c.h.b16 %v1621
    %v1625 = vpack.c.b16 %v1623, %v1623
    %v1626 = vpack.c.b16 %v1624, %v1624
    %1627 = vrot.lane.b32.xlu0 %v1625, 64
    %v1628 = vpop.permute.xlu0 %1627
    %1629 = vrot.lane.b32.xlu0 %v1626, 64
    %v1630 = vpop.permute.xlu0 %1629
    %1633 = vst.msk [vmem:[#allocation3 + $0x4] sm:$0xf] %vm1511, %v1628
    %1634 = vst.msk [vmem:[#allocation3 + $0x24] sm:$0xf] %vm1511, %v1630
    %v1635 = vld [vmem:[#allocation2 + $0x37] sm:$0xff]
    %v1636 = vld [vmem:[#allocation2 + $0x3f] sm:$0xff]
    %v1637 = vpack.c.bf16 %v1636, %v1635
    %v1639 = vunpack.c.l.b16 %v1637
    %v1640 = vunpack.c.h.b16 %v1637
    %v1641 = vpack.c.b16 %v1639, %v1639
    %v1642 = vpack.c.b16 %v1640, %v1640
    %1643 = vrot.lane.b32.xlu0 %v1641, 64
    %v1644 = vpop.permute.xlu0 %1643
    %1645 = vrot.lane.b32.xlu0 %v1642, 64
    %v1646 = vpop.permute.xlu0 %1645
    %1649 = vst.msk [vmem:[#allocation3 + $0x44] sm:$0xf] %vm1511, %v1644
    %1650 = vst.msk [vmem:[#allocation3 + $0x64] sm:$0xf] %vm1511, %v1646
    %v1651 = vld [vmem:[#allocation2 + $0x8] sm:$0xff]
    %v1652 = vld [vmem:[#allocation2 + $0x10] sm:$0xff]
    %v1653 = vpack.c.bf16 %v1652, %v1651
    %v1655 = vunpack.c.l.b16 %v1653
    %v1656 = vunpack.c.h.b16 %v1653
    %v1657 = vpack.c.b16 %v1655, %v1655
    %v1658 = vpack.c.b16 %v1656, %v1656
    %1659 = vrot.lane.b32.xlu0 %v1657, 96
    %v1660 = vpop.permute.xlu0 %1659
    %1661 = vrot.lane.b32.xlu0 %v1658, 96
    %v1662 = vpop.permute.xlu0 %1661
    %1665 = vst.msk [vmem:[#allocation3 + $0x4] sm:$0xf] %vm1544, %v1660
    %1666 = vst.msk [vmem:[#allocation3 + $0x24] sm:$0xf] %vm1544, %v1662
    %v1667 = vld [vmem:[#allocation2 + $0x38] sm:$0xff]
    %v1668 = vld [vmem:[#allocation2 + $0x40] sm:$0xff]
    %v1669 = vpack.c.bf16 %v1668, %v1667
    %v1671 = vunpack.c.l.b16 %v1669
    %v1672 = vunpack.c.h.b16 %v1669
    %v1673 = vpack.c.b16 %v1671, %v1671
    %v1674 = vpack.c.b16 %v1672, %v1672
    %1675 = vrot.lane.b32.xlu0 %v1673, 96
    %v1676 = vpop.permute.xlu0 %1675
    %1677 = vrot.lane.b32.xlu0 %v1674, 96
    %v1678 = vpop.permute.xlu0 %1677
    %1681 = vst.msk [vmem:[#allocation3 + $0x44] sm:$0xf] %vm1544, %v1676
    %1682 = vst.msk [vmem:[#allocation3 + $0x64] sm:$0xf] %vm1544, %v1678
    %v1683 = vld [vmem:[#allocation2 + $0x9] sm:$0xff]
    %v1684 = vld [vmem:[#allocation2 + $0x11] sm:$0xff]
    %v1685 = vpack.c.bf16 %v1684, %v1683
    %v1687 = vunpack.c.l.b16 %v1685
    %v1688 = vunpack.c.h.b16 %v1685
    %v1689 = vpack.c.b16 %v1687, %v1687
    %v1690 = vpack.c.b16 %v1688, %v1688
    %1693 = vst.msk [vmem:[#allocation3 + $0x8] sm:$0xf] %vm1449, %v1689
    %1694 = vst.msk [vmem:[#allocation3 + $0x28] sm:$0xf] %vm1449, %v1690
    %v1695 = vld [vmem:[#allocation2 + $0x39] sm:$0xff]
    %v1696 = vld [vmem:[#allocation2 + $0x41] sm:$0xff]
    %v1697 = vpack.c.bf16 %v1696, %v1695
    %v1699 = vunpack.c.l.b16 %v1697
    %v1700 = vunpack.c.h.b16 %v1697
    %v1701 = vpack.c.b16 %v1699, %v1699
    %v1702 = vpack.c.b16 %v1700, %v1700
    %1705 = vst.msk [vmem:[#allocation3 + $0x48] sm:$0xf] %vm1449, %v1701
    %1706 = vst.msk [vmem:[#allocation3 + $0x68] sm:$0xf] %vm1449, %v1702
    %v1707 = vld [vmem:[#allocation2 + $0xa] sm:$0xff]
    %v1708 = vld [vmem:[#allocation2 + $0x12] sm:$0xff]
    %v1709 = vpack.c.bf16 %v1708, %v1707
    %v1711 = vunpack.c.l.b16 %v1709
    %v1712 = vunpack.c.h.b16 %v1709
    %v1713 = vpack.c.b16 %v1711, %v1711
    %v1714 = vpack.c.b16 %v1712, %v1712
    %1715 = vrot.lane.b32.xlu0 %v1713, 32
    %v1716 = vpop.permute.xlu0 %1715
    %1717 = vrot.lane.b32.xlu0 %v1714, 32
    %v1718 = vpop.permute.xlu0 %1717
    %1721 = vst.msk [vmem:[#allocation3 + $0x8] sm:$0xf] %vm1478, %v1716
    %1722 = vst.msk [vmem:[#allocation3 + $0x28] sm:$0xf] %vm1478, %v1718
    %v1723 = vld [vmem:[#allocation2 + $0x3a] sm:$0xff]
    %v1724 = vld [vmem:[#allocation2 + $0x42] sm:$0xff]
    %v1725 = vpack.c.bf16 %v1724, %v1723
    %v1727 = vunpack.c.l.b16 %v1725
    %v1728 = vunpack.c.h.b16 %v1725
    %v1729 = vpack.c.b16 %v1727, %v1727
    %v1730 = vpack.c.b16 %v1728, %v1728
    %1731 = vrot.lane.b32.xlu0 %v1729, 32
    %v1732 = vpop.permute.xlu0 %1731
    %1733 = vrot.lane.b32.xlu0 %v1730, 32
    %v1734 = vpop.permute.xlu0 %1733
    %1737 = vst.msk [vmem:[#allocation3 + $0x48] sm:$0xf] %vm1478, %v1732
    %1738 = vst.msk [vmem:[#allocation3 + $0x68] sm:$0xf] %vm1478, %v1734
    %v1739 = vld [vmem:[#allocation2 + $0xb] sm:$0xff]
    %v1740 = vld [vmem:[#allocation2 + $0x13] sm:$0xff]
    %v1741 = vpack.c.bf16 %v1740, %v1739
    %v1743 = vunpack.c.l.b16 %v1741
    %v1744 = vunpack.c.h.b16 %v1741
    %v1745 = vpack.c.b16 %v1743, %v1743
    %v1746 = vpack.c.b16 %v1744, %v1744
    %1747 = vrot.lane.b32.xlu0 %v1745, 64
    %v1748 = vpop.permute.xlu0 %1747
    %1749 = vrot.lane.b32.xlu0 %v1746, 64
    %v1750 = vpop.permute.xlu0 %1749
    %1753 = vst.msk [vmem:[#allocation3 + $0x8] sm:$0xf] %vm1511, %v1748
    %1754 = vst.msk [vmem:[#allocation3 + $0x28] sm:$0xf] %vm1511, %v1750
    %v1755 = vld [vmem:[#allocation2 + $0x3b] sm:$0xff]
    %v1756 = vld [vmem:[#allocation2 + $0x43] sm:$0xff]
    %v1757 = vpack.c.bf16 %v1756, %v1755
    %v1759 = vunpack.c.l.b16 %v1757
    %v1760 = vunpack.c.h.b16 %v1757
    %v1761 = vpack.c.b16 %v1759, %v1759
    %v1762 = vpack.c.b16 %v1760, %v1760
    %1763 = vrot.lane.b32.xlu0 %v1761, 64
    %v1764 = vpop.permute.xlu0 %1763
    %1765 = vrot.lane.b32.xlu0 %v1762, 64
    %v1766 = vpop.permute.xlu0 %1765
    %1769 = vst.msk [vmem:[#allocation3 + $0x48] sm:$0xf] %vm1511, %v1764
    %1770 = vst.msk [vmem:[#allocation3 + $0x68] sm:$0xf] %vm1511, %v1766
    %v1771 = vld [vmem:[#allocation2 + $0xc] sm:$0xff]
    %v1772 = vld [vmem:[#allocation2 + $0x14] sm:$0xff]
    %v1773 = vpack.c.bf16 %v1772, %v1771
    %v1775 = vunpack.c.l.b16 %v1773
    %v1776 = vunpack.c.h.b16 %v1773
    %v1777 = vpack.c.b16 %v1775, %v1775
    %v1778 = vpack.c.b16 %v1776, %v1776
    %1779 = vrot.lane.b32.xlu0 %v1777, 96
    %v1780 = vpop.permute.xlu0 %1779
    %1781 = vrot.lane.b32.xlu0 %v1778, 96
    %v1782 = vpop.permute.xlu0 %1781
    %1785 = vst.msk [vmem:[#allocation3 + $0x8] sm:$0xf] %vm1544, %v1780
    %1786 = vst.msk [vmem:[#allocation3 + $0x28] sm:$0xf] %vm1544, %v1782
    %v1787 = vld [vmem:[#allocation2 + $0x3c] sm:$0xff]
    %v1788 = vld [vmem:[#allocation2 + $0x44] sm:$0xff]
    %v1789 = vpack.c.bf16 %v1788, %v1787
    %v1791 = vunpack.c.l.b16 %v1789
    %v1792 = vunpack.c.h.b16 %v1789
    %v1793 = vpack.c.b16 %v1791, %v1791
    %v1794 = vpack.c.b16 %v1792, %v1792
    %1795 = vrot.lane.b32.xlu0 %v1793, 96
    %v1796 = vpop.permute.xlu0 %1795
    %1797 = vrot.lane.b32.xlu0 %v1794, 96
    %v1798 = vpop.permute.xlu0 %1797
    %1801 = vst.msk [vmem:[#allocation3 + $0x48] sm:$0xf] %vm1544, %v1796
    %1802 = vst.msk [vmem:[#allocation3 + $0x68] sm:$0xf] %vm1544, %v1798
    %v1803 = vld [vmem:[#allocation2 + $0xd] sm:$0xff]
    %v1804 = vld [vmem:[#allocation2 + $0x15] sm:$0xff]
    %v1805 = vpack.c.bf16 %v1804, %v1803
    %v1807 = vunpack.c.l.b16 %v1805
    %v1808 = vunpack.c.h.b16 %v1805
    %v1809 = vpack.c.b16 %v1807, %v1807
    %v1810 = vpack.c.b16 %v1808, %v1808
    %1813 = vst.msk [vmem:[#allocation3 + $0xc] sm:$0xf] %vm1449, %v1809
    %1814 = vst.msk [vmem:[#allocation3 + $0x2c] sm:$0xf] %vm1449, %v1810
    %v1815 = vld [vmem:[#allocation2 + $0x3d] sm:$0xff]
    %v1816 = vld [vmem:[#allocation2 + $0x45] sm:$0xff]
    %v1817 = vpack.c.bf16 %v1816, %v1815
    %v1819 = vunpack.c.l.b16 %v1817
    %v1820 = vunpack.c.h.b16 %v1817
    %v1821 = vpack.c.b16 %v1819, %v1819
    %v1822 = vpack.c.b16 %v1820, %v1820
    %1825 = vst.msk [vmem:[#allocation3 + $0x4c] sm:$0xf] %vm1449, %v1821
    %1826 = vst.msk [vmem:[#allocation3 + $0x6c] sm:$0xf] %vm1449, %v1822
    %v1827 = vld [vmem:[#allocation2 + $0xe] sm:$0xff]
    %v1828 = vld [vmem:[#allocation2 + $0x16] sm:$0xff]
    %v1829 = vpack.c.bf16 %v1828, %v1827
    %v1831 = vunpack.c.l.b16 %v1829
    %v1832 = vunpack.c.h.b16 %v1829
    %v1833 = vpack.c.b16 %v1831, %v1831
    %v1834 = vpack.c.b16 %v1832, %v1832
    %1835 = vrot.lane.b32.xlu0 %v1833, 32
    %v1836 = vpop.permute.xlu0 %1835
    %1837 = vrot.lane.b32.xlu0 %v1834, 32
    %v1838 = vpop.permute.xlu0 %1837
    %1841 = vst.msk [vmem:[#allocation3 + $0xc] sm:$0xf] %vm1478, %v1836
    %1842 = vst.msk [vmem:[#allocation3 + $0x2c] sm:$0xf] %vm1478, %v1838
    %v1843 = vld [vmem:[#allocation2 + $0x3e] sm:$0xff]
    %v1844 = vld [vmem:[#allocation2 + $0x46] sm:$0xff]
    %v1845 = vpack.c.bf16 %v1844, %v1843
    %v1847 = vunpack.c.l.b16 %v1845
    %v1848 = vunpack.c.h.b16 %v1845
    %v1849 = vpack.c.b16 %v1847, %v1847
    %v1850 = vpack.c.b16 %v1848, %v1848
    %1851 = vrot.lane.b32.xlu0 %v1849, 32
    %v1852 = vpop.permute.xlu0 %1851
    %1853 = vrot.lane.b32.xlu0 %v1850, 32
    %v1854 = vpop.permute.xlu0 %1853
    %1857 = vst.msk [vmem:[#allocation3 + $0x4c] sm:$0xf] %vm1478, %v1852
    %1858 = vst.msk [vmem:[#allocation3 + $0x6c] sm:$0xf] %vm1478, %v1854
    %v1859 = vld [vmem:[#allocation2 + $0xf] sm:$0xff]
    %v1860 = vld [vmem:[#allocation2 + $0x17] sm:$0xff]
    %v1861 = vpack.c.bf16 %v1860, %v1859
    %v1863 = vunpack.c.l.b16 %v1861
    %v1864 = vunpack.c.h.b16 %v1861
    %v1865 = vpack.c.b16 %v1863, %v1863
    %v1866 = vpack.c.b16 %v1864, %v1864
    %1867 = vrot.lane.b32.xlu0 %v1865, 64
    %v1868 = vpop.permute.xlu0 %1867
    %1869 = vrot.lane.b32.xlu0 %v1866, 64
    %v1870 = vpop.permute.xlu0 %1869
    %1873 = vst.msk [vmem:[#allocation3 + $0xc] sm:$0xf] %vm1511, %v1868
    %1874 = vst.msk [vmem:[#allocation3 + $0x2c] sm:$0xf] %vm1511, %v1870
    %v1875 = vld [vmem:[#allocation2 + $0x3f] sm:$0xff]
    %v1876 = vld [vmem:[#allocation2 + $0x47] sm:$0xff]
    %v1877 = vpack.c.bf16 %v1876, %v1875
    %v1879 = vunpack.c.l.b16 %v1877
    %v1880 = vunpack.c.h.b16 %v1877
    %v1881 = vpack.c.b16 %v1879, %v1879
    %v1882 = vpack.c.b16 %v1880, %v1880
    %1883 = vrot.lane.b32.xlu0 %v1881, 64
    %v1884 = vpop.permute.xlu0 %1883
    %1885 = vrot.lane.b32.xlu0 %v1882, 64
    %v1886 = vpop.permute.xlu0 %1885
    %1889 = vst.msk [vmem:[#allocation3 + $0x4c] sm:$0xf] %vm1511, %v1884
    %1890 = vst.msk [vmem:[#allocation3 + $0x6c] sm:$0xf] %vm1511, %v1886
    %v1891 = vld [vmem:[#allocation2 + $0x10] sm:$0xff]
    %v1892 = vld [vmem:[#allocation2 + $0x18] sm:$0xff]
    %v1893 = vpack.c.bf16 %v1892, %v1891
    %v1895 = vunpack.c.l.b16 %v1893
    %v1896 = vunpack.c.h.b16 %v1893
    %v1897 = vpack.c.b16 %v1895, %v1895
    %v1898 = vpack.c.b16 %v1896, %v1896
    %1899 = vrot.lane.b32.xlu0 %v1897, 96
    %v1900 = vpop.permute.xlu0 %1899
    %1901 = vrot.lane.b32.xlu0 %v1898, 96
    %v1902 = vpop.permute.xlu0 %1901
    %1905 = vst.msk [vmem:[#allocation3 + $0xc] sm:$0xf] %vm1544, %v1900
    %1906 = vst.msk [vmem:[#allocation3 + $0x2c] sm:$0xf] %vm1544, %v1902
    %v1907 = vld [vmem:[#allocation2 + $0x40] sm:$0xff]
    %v1908 = vld [vmem:[#allocation2 + $0x48] sm:$0xff]
    %v1909 = vpack.c.bf16 %v1908, %v1907
    %v1911 = vunpack.c.l.b16 %v1909
    %v1912 = vunpack.c.h.b16 %v1909
    %v1913 = vpack.c.b16 %v1911, %v1911
    %v1914 = vpack.c.b16 %v1912, %v1912
    %1915 = vrot.lane.b32.xlu0 %v1913, 96
    %v1916 = vpop.permute.xlu0 %1915
    %1917 = vrot.lane.b32.xlu0 %v1914, 96
    %v1918 = vpop.permute.xlu0 %1917
    %1921 = vst.msk [vmem:[#allocation3 + $0x4c] sm:$0xf] %vm1544, %v1916
    %1922 = vst.msk [vmem:[#allocation3 + $0x6c] sm:$0xf] %vm1544, %v1918
    %v1923 = vld [vmem:[#allocation2 + $0x11] sm:$0xff]
    %v1924 = vld [vmem:[#allocation2 + $0x19] sm:$0xff]
    %v1925 = vpack.c.bf16 %v1924, %v1923
    %v1927 = vunpack.c.l.b16 %v1925
    %v1928 = vunpack.c.h.b16 %v1925
    %v1929 = vpack.c.b16 %v1927, %v1927
    %v1930 = vpack.c.b16 %v1928, %v1928
    %1933 = vst.msk [vmem:[#allocation3 + $0x10] sm:$0xf] %vm1449, %v1929
    %1934 = vst.msk [vmem:[#allocation3 + $0x30] sm:$0xf] %vm1449, %v1930
    %v1935 = vld [vmem:[#allocation2 + $0x41] sm:$0xff]
    %v1936 = vld [vmem:[#allocation2 + $0x49] sm:$0xff]
    %v1937 = vpack.c.bf16 %v1936, %v1935
    %v1939 = vunpack.c.l.b16 %v1937
    %v1940 = vunpack.c.h.b16 %v1937
    %v1941 = vpack.c.b16 %v1939, %v1939
    %v1942 = vpack.c.b16 %v1940, %v1940
    %1945 = vst.msk [vmem:[#allocation3 + $0x50] sm:$0xf] %vm1449, %v1941
    %1946 = vst.msk [vmem:[#allocation3 + $0x70] sm:$0xf] %vm1449, %v1942
    %v1947 = vld [vmem:[#allocation2 + $0x12] sm:$0xff]
    %v1948 = vld [vmem:[#allocation2 + $0x1a] sm:$0xff]
    %v1949 = vpack.c.bf16 %v1948, %v1947
    %v1951 = vunpack.c.l.b16 %v1949
    %v1952 = vunpack.c.h.b16 %v1949
    %v1953 = vpack.c.b16 %v1951, %v1951
    %v1954 = vpack.c.b16 %v1952, %v1952
    %1955 = vrot.lane.b32.xlu0 %v1953, 32
    %v1956 = vpop.permute.xlu0 %1955
    %1957 = vrot.lane.b32.xlu0 %v1954, 32
    %v1958 = vpop.permute.xlu0 %1957
    %1961 = vst.msk [vmem:[#allocation3 + $0x10] sm:$0xf] %vm1478, %v1956
    %1962 = vst.msk [vmem:[#allocation3 + $0x30] sm:$0xf] %vm1478, %v1958
    %v1963 = vld [vmem:[#allocation2 + $0x42] sm:$0xff]
    %v1964 = vld [vmem:[#allocation2 + $0x4a] sm:$0xff]
    %v1965 = vpack.c.bf16 %v1964, %v1963
    %v1967 = vunpack.c.l.b16 %v1965
    %v1968 = vunpack.c.h.b16 %v1965
    %v1969 = vpack.c.b16 %v1967, %v1967
    %v1970 = vpack.c.b16 %v1968, %v1968
    %1971 = vrot.lane.b32.xlu0 %v1969, 32
    %v1972 = vpop.permute.xlu0 %1971
    %1973 = vrot.lane.b32.xlu0 %v1970, 32
    %v1974 = vpop.permute.xlu0 %1973
    %1977 = vst.msk [vmem:[#allocation3 + $0x50] sm:$0xf] %vm1478, %v1972
    %1978 = vst.msk [vmem:[#allocation3 + $0x70] sm:$0xf] %vm1478, %v1974
    %v1979 = vld [vmem:[#allocation2 + $0x13] sm:$0xff]
    %v1980 = vld [vmem:[#allocation2 + $0x1b] sm:$0xff]
    %v1981 = vpack.c.bf16 %v1980, %v1979
    %v1983 = vunpack.c.l.b16 %v1981
    %v1984 = vunpack.c.h.b16 %v1981
    %v1985 = vpack.c.b16 %v1983, %v1983
    %v1986 = vpack.c.b16 %v1984, %v1984
    %1987 = vrot.lane.b32.xlu0 %v1985, 64
    %v1988 = vpop.permute.xlu0 %1987
    %1989 = vrot.lane.b32.xlu0 %v1986, 64
    %v1990 = vpop.permute.xlu0 %1989
    %1993 = vst.msk [vmem:[#allocation3 + $0x10] sm:$0xf] %vm1511, %v1988
    %1994 = vst.msk [vmem:[#allocation3 + $0x30] sm:$0xf] %vm1511, %v1990
    %v1995 = vld [vmem:[#allocation2 + $0x43] sm:$0xff]
    %v1996 = vld [vmem:[#allocation2 + $0x4b] sm:$0xff]
    %v1997 = vpack.c.bf16 %v1996, %v1995
    %v1999 = vunpack.c.l.b16 %v1997
    %v2000 = vunpack.c.h.b16 %v1997
    %v2001 = vpack.c.b16 %v1999, %v1999
    %v2002 = vpack.c.b16 %v2000, %v2000
    %2003 = vrot.lane.b32.xlu0 %v2001, 64
    %v2004 = vpop.permute.xlu0 %2003
    %2005 = vrot.lane.b32.xlu0 %v2002, 64
    %v2006 = vpop.permute.xlu0 %2005
    %2009 = vst.msk [vmem:[#allocation3 + $0x50] sm:$0xf] %vm1511, %v2004
    %2010 = vst.msk [vmem:[#allocation3 + $0x70] sm:$0xf] %vm1511, %v2006
    %v2011 = vld [vmem:[#allocation2 + $0x14] sm:$0xff]
    %v2012 = vld [vmem:[#allocation2 + $0x1c] sm:$0xff]
    %v2013 = vpack.c.bf16 %v2012, %v2011
    %v2015 = vunpack.c.l.b16 %v2013
    %v2016 = vunpack.c.h.b16 %v2013
    %v2017 = vpack.c.b16 %v2015, %v2015
    %v2018 = vpack.c.b16 %v2016, %v2016
    %2019 = vrot.lane.b32.xlu0 %v2017, 96
    %v2020 = vpop.permute.xlu0 %2019
    %2021 = vrot.lane.b32.xlu0 %v2018, 96
    %v2022 = vpop.permute.xlu0 %2021
    %2025 = vst.msk [vmem:[#allocation3 + $0x10] sm:$0xf] %vm1544, %v2020
    %2026 = vst.msk [vmem:[#allocation3 + $0x30] sm:$0xf] %vm1544, %v2022
    %v2027 = vld [vmem:[#allocation2 + $0x44] sm:$0xff]
    %v2028 = vld [vmem:[#allocation2 + $0x4c] sm:$0xff]
    %v2029 = vpack.c.bf16 %v2028, %v2027
    %v2031 = vunpack.c.l.b16 %v2029
    %v2032 = vunpack.c.h.b16 %v2029
    %v2033 = vpack.c.b16 %v2031, %v2031
    %v2034 = vpack.c.b16 %v2032, %v2032
    %2035 = vrot.lane.b32.xlu0 %v2033, 96
    %v2036 = vpop.permute.xlu0 %2035
    %2037 = vrot.lane.b32.xlu0 %v2034, 96
    %v2038 = vpop.permute.xlu0 %2037
    %2041 = vst.msk [vmem:[#allocation3 + $0x50] sm:$0xf] %vm1544, %v2036
    %2042 = vst.msk [vmem:[#allocation3 + $0x70] sm:$0xf] %vm1544, %v2038
    %v2043 = vld [vmem:[#allocation2 + $0x15] sm:$0xff]
    %v2044 = vld [vmem:[#allocation2 + $0x1d] sm:$0xff]
    %v2045 = vpack.c.bf16 %v2044, %v2043
    %v2047 = vunpack.c.l.b16 %v2045
    %v2048 = vunpack.c.h.b16 %v2045
    %v2049 = vpack.c.b16 %v2047, %v2047
    %v2050 = vpack.c.b16 %v2048, %v2048
    %2053 = vst.msk [vmem:[#allocation3 + $0x14] sm:$0xf] %vm1449, %v2049
    %2054 = vst.msk [vmem:[#allocation3 + $0x34] sm:$0xf] %vm1449, %v2050
    %v2055 = vld [vmem:[#allocation2 + $0x45] sm:$0xff]
    %v2056 = vld [vmem:[#allocation2 + $0x4d] sm:$0xff]
    %v2057 = vpack.c.bf16 %v2056, %v2055
    %v2059 = vunpack.c.l.b16 %v2057
    %v2060 = vunpack.c.h.b16 %v2057
    %v2061 = vpack.c.b16 %v2059, %v2059
    %v2062 = vpack.c.b16 %v2060, %v2060
    %2065 = vst.msk [vmem:[#allocation3 + $0x54] sm:$0xf] %vm1449, %v2061
    %2066 = vst.msk [vmem:[#allocation3 + $0x74] sm:$0xf] %vm1449, %v2062
    %v2067 = vld [vmem:[#allocation2 + $0x16] sm:$0xff]
    %v2068 = vld [vmem:[#allocation2 + $0x1e] sm:$0xff]
    %v2069 = vpack.c.bf16 %v2068, %v2067
    %v2071 = vunpack.c.l.b16 %v2069
    %v2072 = vunpack.c.h.b16 %v2069
    %v2073 = vpack.c.b16 %v2071, %v2071
    %v2074 = vpack.c.b16 %v2072, %v2072
    %2075 = vrot.lane.b32.xlu0 %v2073, 32
    %v2076 = vpop.permute.xlu0 %2075
    %2077 = vrot.lane.b32.xlu0 %v2074, 32
    %v2078 = vpop.permute.xlu0 %2077
    %2081 = vst.msk [vmem:[#allocation3 + $0x14] sm:$0xf] %vm1478, %v2076
    %2082 = vst.msk [vmem:[#allocation3 + $0x34] sm:$0xf] %vm1478, %v2078
    %v2083 = vld [vmem:[#allocation2 + $0x46] sm:$0xff]
    %v2084 = vld [vmem:[#allocation2 + $0x4e] sm:$0xff]
    %v2085 = vpack.c.bf16 %v2084, %v2083
    %v2087 = vunpack.c.l.b16 %v2085
    %v2088 = vunpack.c.h.b16 %v2085
    %v2089 = vpack.c.b16 %v2087, %v2087
    %v2090 = vpack.c.b16 %v2088, %v2088
    %2091 = vrot.lane.b32.xlu0 %v2089, 32
    %v2092 = vpop.permute.xlu0 %2091
    %2093 = vrot.lane.b32.xlu0 %v2090, 32
    %v2094 = vpop.permute.xlu0 %2093
    %2097 = vst.msk [vmem:[#allocation3 + $0x54] sm:$0xf] %vm1478, %v2092
    %2098 = vst.msk [vmem:[#allocation3 + $0x74] sm:$0xf] %vm1478, %v2094
    %v2099 = vld [vmem:[#allocation2 + $0x17] sm:$0xff]
    %v2100 = vld [vmem:[#allocation2 + $0x1f] sm:$0xff]
    %v2101 = vpack.c.bf16 %v2100, %v2099
    %v2103 = vunpack.c.l.b16 %v2101
    %v2104 = vunpack.c.h.b16 %v2101
    %v2105 = vpack.c.b16 %v2103, %v2103
    %v2106 = vpack.c.b16 %v2104, %v2104
    %2107 = vrot.lane.b32.xlu0 %v2105, 64
    %v2108 = vpop.permute.xlu0 %2107
    %2109 = vrot.lane.b32.xlu0 %v2106, 64
    %v2110 = vpop.permute.xlu0 %2109
    %2113 = vst.msk [vmem:[#allocation3 + $0x14] sm:$0xf] %vm1511, %v2108
    %2114 = vst.msk [vmem:[#allocation3 + $0x34] sm:$0xf] %vm1511, %v2110
    %v2115 = vld [vmem:[#allocation2 + $0x47] sm:$0xff]
    %v2116 = vld [vmem:[#allocation2 + $0x4f] sm:$0xff]
    %v2117 = vpack.c.bf16 %v2116, %v2115
    %v2119 = vunpack.c.l.b16 %v2117
    %v2120 = vunpack.c.h.b16 %v2117
    %v2121 = vpack.c.b16 %v2119, %v2119
    %v2122 = vpack.c.b16 %v2120, %v2120
    %2123 = vrot.lane.b32.xlu0 %v2121, 64
    %v2124 = vpop.permute.xlu0 %2123
    %2125 = vrot.lane.b32.xlu0 %v2122, 64
    %v2126 = vpop.permute.xlu0 %2125
    %2129 = vst.msk [vmem:[#allocation3 + $0x54] sm:$0xf] %vm1511, %v2124
    %2130 = vst.msk [vmem:[#allocation3 + $0x74] sm:$0xf] %vm1511, %v2126
    %v2131 = vld [vmem:[#allocation2 + $0x18] sm:$0xff]
    %v2132 = vld [vmem:[#allocation2 + $0x20] sm:$0xff]
    %v2133 = vpack.c.bf16 %v2132, %v2131
    %v2135 = vunpack.c.l.b16 %v2133
    %v2136 = vunpack.c.h.b16 %v2133
    %v2137 = vpack.c.b16 %v2135, %v2135
    %v2138 = vpack.c.b16 %v2136, %v2136
    %2139 = vrot.lane.b32.xlu0 %v2137, 96
    %v2140 = vpop.permute.xlu0 %2139
    %2141 = vrot.lane.b32.xlu0 %v2138, 96
    %v2142 = vpop.permute.xlu0 %2141
    %2145 = vst.msk [vmem:[#allocation3 + $0x14] sm:$0xf] %vm1544, %v2140
    %2146 = vst.msk [vmem:[#allocation3 + $0x34] sm:$0xf] %vm1544, %v2142
    %v2147 = vld [vmem:[#allocation2 + $0x48] sm:$0xff]
    %v2148 = vld [vmem:[#allocation2 + $0x50] sm:$0xff]
    %v2149 = vpack.c.bf16 %v2148, %v2147
    %v2151 = vunpack.c.l.b16 %v2149
    %v2152 = vunpack.c.h.b16 %v2149
    %v2153 = vpack.c.b16 %v2151, %v2151
    %v2154 = vpack.c.b16 %v2152, %v2152
    %2155 = vrot.lane.b32.xlu0 %v2153, 96
    %v2156 = vpop.permute.xlu0 %2155
    %2157 = vrot.lane.b32.xlu0 %v2154, 96
    %v2158 = vpop.permute.xlu0 %2157
    %2161 = vst.msk [vmem:[#allocation3 + $0x54] sm:$0xf] %vm1544, %v2156
    %2162 = vst.msk [vmem:[#allocation3 + $0x74] sm:$0xf] %vm1544, %v2158
    %v2163 = vld [vmem:[#allocation2 + $0x19] sm:$0xff]
    %v2164 = vld [vmem:[#allocation2 + $0x21] sm:$0xff]
    %v2165 = vpack.c.bf16 %v2164, %v2163
    %v2167 = vunpack.c.l.b16 %v2165
    %v2168 = vunpack.c.h.b16 %v2165
    %v2169 = vpack.c.b16 %v2167, %v2167
    %v2170 = vpack.c.b16 %v2168, %v2168
    %2173 = vst.msk [vmem:[#allocation3 + $0x18] sm:$0xf] %vm1449, %v2169
    %2174 = vst.msk [vmem:[#allocation3 + $0x38] sm:$0xf] %vm1449, %v2170
    %v2175 = vld [vmem:[#allocation2 + $0x49] sm:$0xff]
    %v2176 = vld [vmem:[#allocation2 + $0x51] sm:$0xff]
    %v2177 = vpack.c.bf16 %v2176, %v2175
    %v2179 = vunpack.c.l.b16 %v2177
    %v2180 = vunpack.c.h.b16 %v2177
    %v2181 = vpack.c.b16 %v2179, %v2179
    %v2182 = vpack.c.b16 %v2180, %v2180
    %2185 = vst.msk [vmem:[#allocation3 + $0x58] sm:$0xf] %vm1449, %v2181
    %2186 = vst.msk [vmem:[#allocation3 + $0x78] sm:$0xf] %vm1449, %v2182
    %v2187 = vld [vmem:[#allocation2 + $0x1a] sm:$0xff]
    %v2188 = vld [vmem:[#allocation2 + $0x22] sm:$0xff]
    %v2189 = vpack.c.bf16 %v2188, %v2187
    %v2191 = vunpack.c.l.b16 %v2189
    %v2192 = vunpack.c.h.b16 %v2189
    %v2193 = vpack.c.b16 %v2191, %v2191
    %v2194 = vpack.c.b16 %v2192, %v2192
    %2195 = vrot.lane.b32.xlu0 %v2193, 32
    %v2196 = vpop.permute.xlu0 %2195
    %2197 = vrot.lane.b32.xlu0 %v2194, 32
    %v2198 = vpop.permute.xlu0 %2197
    %2201 = vst.msk [vmem:[#allocation3 + $0x18] sm:$0xf] %vm1478, %v2196
    %2202 = vst.msk [vmem:[#allocation3 + $0x38] sm:$0xf] %vm1478, %v2198
    %v2203 = vld [vmem:[#allocation2 + $0x4a] sm:$0xff]
    %v2204 = vld [vmem:[#allocation2 + $0x52] sm:$0xff]
    %v2205 = vpack.c.bf16 %v2204, %v2203
    %v2207 = vunpack.c.l.b16 %v2205
    %v2208 = vunpack.c.h.b16 %v2205
    %v2209 = vpack.c.b16 %v2207, %v2207
    %v2210 = vpack.c.b16 %v2208, %v2208
    %2211 = vrot.lane.b32.xlu0 %v2209, 32
    %v2212 = vpop.permute.xlu0 %2211
    %2213 = vrot.lane.b32.xlu0 %v2210, 32
    %v2214 = vpop.permute.xlu0 %2213
    %2217 = vst.msk [vmem:[#allocation3 + $0x58] sm:$0xf] %vm1478, %v2212
    %2218 = vst.msk [vmem:[#allocation3 + $0x78] sm:$0xf] %vm1478, %v2214
    %v2219 = vld [vmem:[#allocation2 + $0x1b] sm:$0xff]
    %v2220 = vld [vmem:[#allocation2 + $0x23] sm:$0xff]
    %v2221 = vpack.c.bf16 %v2220, %v2219
    %v2223 = vunpack.c.l.b16 %v2221
    %v2224 = vunpack.c.h.b16 %v2221
    %v2225 = vpack.c.b16 %v2223, %v2223
    %v2226 = vpack.c.b16 %v2224, %v2224
    %2227 = vrot.lane.b32.xlu0 %v2225, 64
    %v2228 = vpop.permute.xlu0 %2227
    %2229 = vrot.lane.b32.xlu0 %v2226, 64
    %v2230 = vpop.permute.xlu0 %2229
    %2233 = vst.msk [vmem:[#allocation3 + $0x18] sm:$0xf] %vm1511, %v2228
    %2234 = vst.msk [vmem:[#allocation3 + $0x38] sm:$0xf] %vm1511, %v2230
    %v2235 = vld [vmem:[#allocation2 + $0x4b] sm:$0xff]
    %v2236 = vld [vmem:[#allocation2 + $0x53] sm:$0xff]
    %v2237 = vpack.c.bf16 %v2236, %v2235
    %v2239 = vunpack.c.l.b16 %v2237
    %v2240 = vunpack.c.h.b16 %v2237
    %v2241 = vpack.c.b16 %v2239, %v2239
    %v2242 = vpack.c.b16 %v2240, %v2240
    %2243 = vrot.lane.b32.xlu0 %v2241, 64
    %v2244 = vpop.permute.xlu0 %2243
    %2245 = vrot.lane.b32.xlu0 %v2242, 64
    %v2246 = vpop.permute.xlu0 %2245
    %2249 = vst.msk [vmem:[#allocation3 + $0x58] sm:$0xf] %vm1511, %v2244
    %2250 = vst.msk [vmem:[#allocation3 + $0x78] sm:$0xf] %vm1511, %v2246
    %v2251 = vld [vmem:[#allocation2 + $0x1c] sm:$0xff]
    %v2252 = vld [vmem:[#allocation2 + $0x24] sm:$0xff]
    %v2253 = vpack.c.bf16 %v2252, %v2251
    %v2255 = vunpack.c.l.b16 %v2253
    %v2256 = vunpack.c.h.b16 %v2253
    %v2257 = vpack.c.b16 %v2255, %v2255
    %v2258 = vpack.c.b16 %v2256, %v2256
    %2259 = vrot.lane.b32.xlu0 %v2257, 96
    %v2260 = vpop.permute.xlu0 %2259
    %2261 = vrot.lane.b32.xlu0 %v2258, 96
    %v2262 = vpop.permute.xlu0 %2261
    %2265 = vst.msk [vmem:[#allocation3 + $0x18] sm:$0xf] %vm1544, %v2260
    %2266 = vst.msk [vmem:[#allocation3 + $0x38] sm:$0xf] %vm1544, %v2262
    %v2267 = vld [vmem:[#allocation2 + $0x4c] sm:$0xff]
    %v2268 = vld [vmem:[#allocation2 + $0x54] sm:$0xff]
    %v2269 = vpack.c.bf16 %v2268, %v2267
    %v2271 = vunpack.c.l.b16 %v2269
    %v2272 = vunpack.c.h.b16 %v2269
    %v2273 = vpack.c.b16 %v2271, %v2271
    %v2274 = vpack.c.b16 %v2272, %v2272
    %2275 = vrot.lane.b32.xlu0 %v2273, 96
    %v2276 = vpop.permute.xlu0 %2275
    %2277 = vrot.lane.b32.xlu0 %v2274, 96
    %v2278 = vpop.permute.xlu0 %2277
    %2281 = vst.msk [vmem:[#allocation3 + $0x58] sm:$0xf] %vm1544, %v2276
    %2282 = vst.msk [vmem:[#allocation3 + $0x78] sm:$0xf] %vm1544, %v2278
    %v2283 = vld [vmem:[#allocation2 + $0x1d] sm:$0xff]
    %v2284 = vld [vmem:[#allocation2 + $0x25] sm:$0xff]
    %v2285 = vpack.c.bf16 %v2284, %v2283
    %v2287 = vunpack.c.l.b16 %v2285
    %v2288 = vunpack.c.h.b16 %v2285
    %v2289 = vpack.c.b16 %v2287, %v2287
    %v2290 = vpack.c.b16 %v2288, %v2288
    %2293 = vst.msk [vmem:[#allocation3 + $0x1c] sm:$0xf] %vm1449, %v2289
    %2294 = vst.msk [vmem:[#allocation3 + $0x3c] sm:$0xf] %vm1449, %v2290
    %v2295 = vld [vmem:[#allocation2 + $0x4d] sm:$0xff]
    %v2296 = vld [vmem:[#allocation2 + $0x55] sm:$0xff]
    %v2297 = vpack.c.bf16 %v2296, %v2295
    %v2299 = vunpack.c.l.b16 %v2297
    %v2300 = vunpack.c.h.b16 %v2297
    %v2301 = vpack.c.b16 %v2299, %v2299
    %v2302 = vpack.c.b16 %v2300, %v2300
    %2305 = vst.msk [vmem:[#allocation3 + $0x5c] sm:$0xf] %vm1449, %v2301
    %2306 = vst.msk [vmem:[#allocation3 + $0x7c] sm:$0xf] %vm1449, %v2302
    %v2307 = vld [vmem:[#allocation2 + $0x1e] sm:$0xff]
    %v2308 = vld [vmem:[#allocation2 + $0x26] sm:$0xff]
    %v2309 = vpack.c.bf16 %v2308, %v2307
    %v2311 = vunpack.c.l.b16 %v2309
    %v2312 = vunpack.c.h.b16 %v2309
    %v2313 = vpack.c.b16 %v2311, %v2311
    %v2314 = vpack.c.b16 %v2312, %v2312
    %2315 = vrot.lane.b32.xlu0 %v2313, 32
    %v2316 = vpop.permute.xlu0 %2315
    %2317 = vrot.lane.b32.xlu0 %v2314, 32
    %v2318 = vpop.permute.xlu0 %2317
    %2321 = vst.msk [vmem:[#allocation3 + $0x1c] sm:$0xf] %vm1478, %v2316
    %2322 = vst.msk [vmem:[#allocation3 + $0x3c] sm:$0xf] %vm1478, %v2318
    %v2323 = vld [vmem:[#allocation2 + $0x4e] sm:$0xff]
    %v2324 = vld [vmem:[#allocation2 + $0x56] sm:$0xff]
    %v2325 = vpack.c.bf16 %v2324, %v2323
    %v2327 = vunpack.c.l.b16 %v2325
    %v2328 = vunpack.c.h.b16 %v2325
    %v2329 = vpack.c.b16 %v2327, %v2327
    %v2330 = vpack.c.b16 %v2328, %v2328
    %2331 = vrot.lane.b32.xlu0 %v2329, 32
    %v2332 = vpop.permute.xlu0 %2331
    %2333 = vrot.lane.b32.xlu0 %v2330, 32
    %v2334 = vpop.permute.xlu0 %2333
    %2337 = vst.msk [vmem:[#allocation3 + $0x5c] sm:$0xf] %vm1478, %v2332
    %2338 = vst.msk [vmem:[#allocation3 + $0x7c] sm:$0xf] %vm1478, %v2334
    %v2339 = vld [vmem:[#allocation2 + $0x1f] sm:$0xff]
    %v2340 = vld [vmem:[#allocation2 + $0x27] sm:$0xff]
    %v2341 = vpack.c.bf16 %v2340, %v2339
    %v2343 = vunpack.c.l.b16 %v2341
    %v2344 = vunpack.c.h.b16 %v2341
    %v2345 = vpack.c.b16 %v2343, %v2343
    %v2346 = vpack.c.b16 %v2344, %v2344
    %2347 = vrot.lane.b32.xlu0 %v2345, 64
    %v2348 = vpop.permute.xlu0 %2347
    %2349 = vrot.lane.b32.xlu0 %v2346, 64
    %v2350 = vpop.permute.xlu0 %2349
    %2353 = vst.msk [vmem:[#allocation3 + $0x1c] sm:$0xf] %vm1511, %v2348
    %2354 = vst.msk [vmem:[#allocation3 + $0x3c] sm:$0xf] %vm1511, %v2350
    %v2355 = vld [vmem:[#allocation2 + $0x4f] sm:$0xff]
    %v2356 = vld [vmem:[#allocation2 + $0x57] sm:$0xff]
    %v2357 = vpack.c.bf16 %v2356, %v2355
    %v2359 = vunpack.c.l.b16 %v2357
    %v2360 = vunpack.c.h.b16 %v2357
    %v2361 = vpack.c.b16 %v2359, %v2359
    %v2362 = vpack.c.b16 %v2360, %v2360
    %2363 = vrot.lane.b32.xlu0 %v2361, 64
    %v2364 = vpop.permute.xlu0 %2363
    %2365 = vrot.lane.b32.xlu0 %v2362, 64
    %v2366 = vpop.permute.xlu0 %2365
    %2369 = vst.msk [vmem:[#allocation3 + $0x5c] sm:$0xf] %vm1511, %v2364
    %2370 = vst.msk [vmem:[#allocation3 + $0x7c] sm:$0xf] %vm1511, %v2366
    %v2371 = vld [vmem:[#allocation2 + $0x20] sm:$0xff]
    %v2372 = vld [vmem:[#allocation2 + $0x28] sm:$0xff]
    %v2373 = vpack.c.bf16 %v2372, %v2371
    %v2375 = vunpack.c.l.b16 %v2373
    %v2376 = vunpack.c.h.b16 %v2373
    %v2377 = vpack.c.b16 %v2375, %v2375
    %v2378 = vpack.c.b16 %v2376, %v2376
    %2379 = vrot.lane.b32.xlu0 %v2377, 96
    %v2380 = vpop.permute.xlu0 %2379
    %2381 = vrot.lane.b32.xlu0 %v2378, 96
    %v2382 = vpop.permute.xlu0 %2381
    %2385 = vst.msk [vmem:[#allocation3 + $0x1c] sm:$0xf] %vm1544, %v2380
    %2386 = vst.msk [vmem:[#allocation3 + $0x3c] sm:$0xf] %vm1544, %v2382
    %v2387 = vld [vmem:[#allocation2 + $0x50] sm:$0xff]
    %v2388 = vld [vmem:[#allocation2 + $0x58] sm:$0xff]
    %v2389 = vpack.c.bf16 %v2388, %v2387
    %v2391 = vunpack.c.l.b16 %v2389
    %v2392 = vunpack.c.h.b16 %v2389
    %v2393 = vpack.c.b16 %v2391, %v2391
    %v2394 = vpack.c.b16 %v2392, %v2392
    %2395 = vrot.lane.b32.xlu0 %v2393, 96
    %v2396 = vpop.permute.xlu0 %2395
    %2397 = vrot.lane.b32.xlu0 %v2394, 96
    %v2398 = vpop.permute.xlu0 %2397
    %2401 = vst.msk [vmem:[#allocation3 + $0x5c] sm:$0xf] %vm1544, %v2396
    %2402 = vst.msk [vmem:[#allocation3 + $0x7c] sm:$0xf] %vm1544, %v2398
    %v2403 = vld [vmem:[#allocation3] sm:$0xff]
    %v2404 = vld [vmem:[#allocation3 + $0x8] sm:$0xff]
    %v2405 = vld [vmem:[#allocation3 + $0x10] sm:$0xff]
    %v2406 = vld [vmem:[#allocation3 + $0x18] sm:$0xff]
    %v2407 = vld [vmem:[#allocation3 + $0x20] sm:$0xff]
    %v2408 = vld [vmem:[#allocation3 + $0x28] sm:$0xff]
    %v2409 = vld [vmem:[#allocation3 + $0x30] sm:$0xff]
    %v2410 = vld [vmem:[#allocation3 + $0x38] sm:$0xff]
    %v2411 = vld [vmem:[#allocation3 + $0x40] sm:$0xff]
    %v2412 = vld [vmem:[#allocation3 + $0x48] sm:$0xff]
    %v2413 = vld [vmem:[#allocation3 + $0x50] sm:$0xff]
    %v2414 = vld [vmem:[#allocation3 + $0x58] sm:$0xff]
    %v2415 = vld [vmem:[#allocation3 + $0x60] sm:$0xff]
    %v2416 = vld [vmem:[#allocation3 + $0x68] sm:$0xff]
    %v2417 = vld [vmem:[#allocation3 + $0x70] sm:$0xff]
    %v2418 = vld [vmem:[#allocation3 + $0x78] sm:$0xff]
    %v2419 = vld [vmem:[#allocation10] sm:$0xf]
    %v2420 = vld [vmem:[#allocation10 + $0x4] sm:$0xf]
    %v2421 = vld [vmem:[#allocation10 + $0x8] sm:$0xf]
    %v2422 = vld [vmem:[#allocation10 + $0xc] sm:$0xf]
    %v2423 = vld [vmem:[#allocation10 + $0x10] sm:$0xf]
    %v2424 = vld [vmem:[#allocation10 + $0x14] sm:$0xf]
    %v2425 = vld [vmem:[#allocation10 + $0x18] sm:$0xf]
    %v2426 = vld [vmem:[#allocation10 + $0x1c] sm:$0xf]
    %v2427 = vld [vmem:[#allocation10 + $0x20] sm:$0xf]
    %v2428 = vld [vmem:[#allocation10 + $0x24] sm:$0xf]
    %v2429 = vld [vmem:[#allocation10 + $0x28] sm:$0xf]
    %v2430 = vld [vmem:[#allocation10 + $0x2c] sm:$0xf]
    %v2431 = vld [vmem:[#allocation10 + $0x30] sm:$0xf]
    %v2432 = vld [vmem:[#allocation10 + $0x34] sm:$0xf]
    %v2433 = vld [vmem:[#allocation10 + $0x38] sm:$0xf]
    %v2434 = vld [vmem:[#allocation10 + $0x3c] sm:$0xf]
    %v2435 = vld [vmem:[#allocation10 + $0x40] sm:$0xf]
    %v2436 = vld [vmem:[#allocation10 + $0x44] sm:$0xf]
    %v2437 = vld [vmem:[#allocation10 + $0x48] sm:$0xf]
    %v2438 = vld [vmem:[#allocation10 + $0x4c] sm:$0xf]
    %v2439 = vld [vmem:[#allocation10 + $0x50] sm:$0xf]
    %v2440 = vld [vmem:[#allocation10 + $0x54] sm:$0xf]
    %v2441 = vld [vmem:[#allocation10 + $0x58] sm:$0xf]
    %v2442 = vld [vmem:[#allocation10 + $0x5c] sm:$0xf]
    %v2443 = vld [vmem:[#allocation10 + $0x60] sm:$0xf]
    %v2444 = vld [vmem:[#allocation10 + $0x64] sm:$0xf]
    %v2445 = vld [vmem:[#allocation10 + $0x68] sm:$0xf]
    %v2446 = vld [vmem:[#allocation10 + $0x6c] sm:$0xf]
    %v2447 = vld [vmem:[#allocation10 + $0x70] sm:$0xf]
    %v2448 = vld [vmem:[#allocation10 + $0x74] sm:$0xf]
    %v2449 = vld [vmem:[#allocation10 + $0x78] sm:$0xf]
    %v2450 = vld [vmem:[#allocation10 + $0x7c] sm:$0xf]
    %v2451 = vld [vmem:[#allocation10 + $0x80] sm:$0xf]
    %v2452 = vld [vmem:[#allocation10 + $0x84] sm:$0xf]
    %v2453 = vld [vmem:[#allocation10 + $0x88] sm:$0xf]
    %v2454 = vld [vmem:[#allocation10 + $0x8c] sm:$0xf]
    %v2455 = vld [vmem:[#allocation10 + $0x90] sm:$0xf]
    %v2456 = vld [vmem:[#allocation10 + $0x94] sm:$0xf]
    %v2457 = vld [vmem:[#allocation10 + $0x98] sm:$0xf]
    %v2458 = vld [vmem:[#allocation10 + $0x9c] sm:$0xf]
    %v2459 = vld [vmem:[#allocation10 + $0xa0] sm:$0xf]
    %v2460 = vld [vmem:[#allocation10 + $0xa4] sm:$0xf]
    %v2461 = vld [vmem:[#allocation10 + $0xa8] sm:$0xf]
    %v2462 = vld [vmem:[#allocation10 + $0xac] sm:$0xf]
    %v2463 = vld [vmem:[#allocation10 + $0xb0] sm:$0xf]
    %v2464 = vld [vmem:[#allocation10 + $0xb4] sm:$0xf]
    %v2465 = vld [vmem:[#allocation10 + $0xb8] sm:$0xf]
    %v2466 = vld [vmem:[#allocation10 + $0xbc] sm:$0xf]
    %v2467 = vld [vmem:[#allocation10 + $0xc0] sm:$0xf]
    %v2468 = vld [vmem:[#allocation10 + $0xc4] sm:$0xf]
    %v2469 = vld [vmem:[#allocation10 + $0xc8] sm:$0xf]
    %v2470 = vld [vmem:[#allocation10 + $0xcc] sm:$0xf]
    %v2471 = vld [vmem:[#allocation10 + $0xd0] sm:$0xf]
    %v2472 = vld [vmem:[#allocation10 + $0xd4] sm:$0xf]
    %v2473 = vld [vmem:[#allocation10 + $0xd8] sm:$0xf]
    %v2474 = vld [vmem:[#allocation10 + $0xdc] sm:$0xf]
    %v2475 = vld [vmem:[#allocation10 + $0xe0] sm:$0xf]
    %v2476 = vld [vmem:[#allocation10 + $0xe4] sm:$0xf]
    %v2477 = vld [vmem:[#allocation10 + $0xe8] sm:$0xf]
    %v2478 = vld [vmem:[#allocation10 + $0xec] sm:$0xf]
    %v2479 = vld [vmem:[#allocation10 + $0xf0] sm:$0xf]
    %v2480 = vld [vmem:[#allocation10 + $0xf4] sm:$0xf]
    %v2481 = vld [vmem:[#allocation10 + $0xf8] sm:$0xf]
    %v2482 = vld [vmem:[#allocation10 + $0xfc] sm:$0xf]
    %v2483 = vld [vmem:[#allocation10 + $0x100] sm:$0xf]
    %v2484 = vld [vmem:[#allocation10 + $0x104] sm:$0xf]
    %v2485 = vld [vmem:[#allocation10 + $0x108] sm:$0xf]
    %v2486 = vld [vmem:[#allocation10 + $0x10c] sm:$0xf]
    %v2487 = vld [vmem:[#allocation10 + $0x110] sm:$0xf]
    %v2488 = vld [vmem:[#allocation10 + $0x114] sm:$0xf]
    %v2489 = vld [vmem:[#allocation10 + $0x118] sm:$0xf]
    %v2490 = vld [vmem:[#allocation10 + $0x11c] sm:$0xf]
    %v2491 = vld [vmem:[#allocation10 + $0x120] sm:$0xf]
    %v2492 = vld [vmem:[#allocation10 + $0x124] sm:$0xf]
    %v2493 = vld [vmem:[#allocation10 + $0x128] sm:$0xf]
    %v2494 = vld [vmem:[#allocation10 + $0x12c] sm:$0xf]
    %v2495 = vld [vmem:[#allocation10 + $0x130] sm:$0xf]
    %v2496 = vld [vmem:[#allocation10 + $0x134] sm:$0xf]
    %v2497 = vld [vmem:[#allocation10 + $0x138] sm:$0xf]
    %v2498 = vld [vmem:[#allocation10 + $0x13c] sm:$0xf]
    %v2499 = vld [vmem:[#allocation10 + $0x140] sm:$0xf]
    %v2500 = vld [vmem:[#allocation10 + $0x144] sm:$0xf]
    %v2501 = vld [vmem:[#allocation10 + $0x148] sm:$0xf]
    %v2502 = vld [vmem:[#allocation10 + $0x14c] sm:$0xf]
    %v2503 = vld [vmem:[#allocation10 + $0x150] sm:$0xf]
    %v2504 = vld [vmem:[#allocation10 + $0x154] sm:$0xf]
    %v2505 = vld [vmem:[#allocation10 + $0x158] sm:$0xf]
    %v2506 = vld [vmem:[#allocation10 + $0x15c] sm:$0xf]
    %v2507 = vld [vmem:[#allocation10 + $0x160] sm:$0xf]
    %v2508 = vld [vmem:[#allocation10 + $0x164] sm:$0xf]
    %v2509 = vld [vmem:[#allocation10 + $0x168] sm:$0xf]
    %v2510 = vld [vmem:[#allocation10 + $0x16c] sm:$0xf]
    %v2511 = vld [vmem:[#allocation10 + $0x170] sm:$0xf]
    %v2512 = vld [vmem:[#allocation10 + $0x174] sm:$0xf]
    %v2513 = vld [vmem:[#allocation10 + $0x178] sm:$0xf]
    %v2514 = vld [vmem:[#allocation10 + $0x17c] sm:$0xf]
    %v2515 = vld [vmem:[#allocation10 + $0x180] sm:$0xf]
    %v2516 = vld [vmem:[#allocation10 + $0x184] sm:$0xf]
    %v2517 = vld [vmem:[#allocation10 + $0x188] sm:$0xf]
    %v2518 = vld [vmem:[#allocation10 + $0x18c] sm:$0xf]
    %v2519 = vld [vmem:[#allocation10 + $0x190] sm:$0xf]
    %v2520 = vld [vmem:[#allocation10 + $0x194] sm:$0xf]
    %v2521 = vld [vmem:[#allocation10 + $0x198] sm:$0xf]
    %v2522 = vld [vmem:[#allocation10 + $0x19c] sm:$0xf]
    %v2523 = vld [vmem:[#allocation10 + $0x1a0] sm:$0xf]
    %v2524 = vld [vmem:[#allocation10 + $0x1a4] sm:$0xf]
    %v2525 = vld [vmem:[#allocation10 + $0x1a8] sm:$0xf]
    %v2526 = vld [vmem:[#allocation10 + $0x1ac] sm:$0xf]
    %v2527 = vld [vmem:[#allocation10 + $0x1b0] sm:$0xf]
    %v2528 = vld [vmem:[#allocation10 + $0x1b4] sm:$0xf]
    %v2529 = vld [vmem:[#allocation10 + $0x1b8] sm:$0xf]
    %v2530 = vld [vmem:[#allocation10 + $0x1bc] sm:$0xf]
    %v2531 = vld [vmem:[#allocation10 + $0x1c0] sm:$0xf]
    %v2532 = vld [vmem:[#allocation10 + $0x1c4] sm:$0xf]
    %v2533 = vld [vmem:[#allocation10 + $0x1c8] sm:$0xf]
    %v2534 = vld [vmem:[#allocation10 + $0x1cc] sm:$0xf]
    %v2535 = vld [vmem:[#allocation10 + $0x1d0] sm:$0xf]
    %v2536 = vld [vmem:[#allocation10 + $0x1d4] sm:$0xf]
    %v2537 = vld [vmem:[#allocation10 + $0x1d8] sm:$0xf]
    %v2538 = vld [vmem:[#allocation10 + $0x1dc] sm:$0xf]
    %v2539 = vld [vmem:[#allocation10 + $0x1e0] sm:$0xf]
    %v2540 = vld [vmem:[#allocation10 + $0x1e4] sm:$0xf]
    %v2541 = vld [vmem:[#allocation10 + $0x1e8] sm:$0xf]
    %v2542 = vld [vmem:[#allocation10 + $0x1ec] sm:$0xf]
    %v2543 = vld [vmem:[#allocation10 + $0x1f0] sm:$0xf]
    %v2544 = vld [vmem:[#allocation10 + $0x1f4] sm:$0xf]
    %v2545 = vld [vmem:[#allocation10 + $0x1f8] sm:$0xf]
    %v2546 = vld [vmem:[#allocation10 + $0x1fc] sm:$0xf]
    %v2563 = vunpack.c.l.b16 %v2403
    %v2564 = vunpack.c.h.b16 %v2403
    %v2565 = vunpack.c.l.b16 %v2404
    %v2566 = vunpack.c.h.b16 %v2404
    %v2567 = vunpack.c.l.b16 %v2405
    %v2568 = vunpack.c.h.b16 %v2405
    %v2569 = vunpack.c.l.b16 %v2406
    %v2570 = vunpack.c.h.b16 %v2406
    %v2571 = vunpack.c.l.b16 %v2407
    %v2572 = vunpack.c.h.b16 %v2407
    %v2573 = vunpack.c.l.b16 %v2408
    %v2574 = vunpack.c.h.b16 %v2408
    %v2575 = vunpack.c.l.b16 %v2409
    %v2576 = vunpack.c.h.b16 %v2409
    %v2577 = vunpack.c.l.b16 %v2410
    %v2578 = vunpack.c.h.b16 %v2410
    %v2579 = vunpack.c.l.b16 %v2411
    %v2580 = vunpack.c.h.b16 %v2411
    %v2581 = vunpack.c.l.b16 %v2412
    %v2582 = vunpack.c.h.b16 %v2412
    %v2583 = vunpack.c.l.b16 %v2413
    %v2584 = vunpack.c.h.b16 %v2413
    %v2585 = vunpack.c.l.b16 %v2414
    %v2586 = vunpack.c.h.b16 %v2414
    %v2587 = vunpack.c.l.b16 %v2415
    %v2588 = vunpack.c.h.b16 %v2415
    %v2589 = vunpack.c.l.b16 %v2416
    %v2590 = vunpack.c.h.b16 %v2416
    %v2591 = vunpack.c.l.b16 %v2417
    %v2592 = vunpack.c.h.b16 %v2417
    %v2593 = vunpack.c.l.b16 %v2418
    %v2594 = vunpack.c.h.b16 %v2418
    %v2595 = vpack.c.b16 %v2571, %v2563
    %v2596 = vpack.c.b16 %v2572, %v2564
    %v2597 = vpack.c.b16 %v2573, %v2565
    %v2598 = vpack.c.b16 %v2574, %v2566
    %v2599 = vpack.c.b16 %v2575, %v2567
    %v2600 = vpack.c.b16 %v2576, %v2568
    %v2601 = vpack.c.b16 %v2577, %v2569
    %v2602 = vpack.c.b16 %v2578, %v2570
    %v2603 = vpack.c.b16 %v2587, %v2579
    %v2604 = vpack.c.b16 %v2588, %v2580
    %v2605 = vpack.c.b16 %v2589, %v2581
    %v2606 = vpack.c.b16 %v2590, %v2582
    %v2607 = vpack.c.b16 %v2591, %v2583
    %v2608 = vpack.c.b16 %v2592, %v2584
    %v2609 = vpack.c.b16 %v2593, %v2585
    %v2610 = vpack.c.b16 %v2594, %v2586
    %v2755 = vunpack.c.l.b16 %v2419
    %v2756 = vunpack.c.l.b16 %v2420
    %v2757 = vunpack.c.l.b16 %v2421
    %v2758 = vunpack.c.l.b16 %v2422
    %v2759 = vunpack.c.l.b16 %v2423
    %v2760 = vunpack.c.l.b16 %v2424
    %v2761 = vunpack.c.l.b16 %v2425
    %v2762 = vunpack.c.l.b16 %v2426
    %v2763 = vunpack.c.l.b16 %v2427
    %v2764 = vunpack.c.l.b16 %v2428
    %v2765 = vunpack.c.l.b16 %v2429
    %v2766 = vunpack.c.l.b16 %v2430
    %v2767 = vunpack.c.l.b16 %v2431
    %v2768 = vunpack.c.l.b16 %v2432
    %v2769 = vunpack.c.l.b16 %v2433
    %v2770 = vunpack.c.l.b16 %v2434
    %v2771 = vunpack.c.l.b16 %v2435
    %v2772 = vunpack.c.l.b16 %v2436
    %v2773 = vunpack.c.l.b16 %v2437
    %v2774 = vunpack.c.l.b16 %v2438
    %v2775 = vunpack.c.l.b16 %v2439
    %v2776 = vunpack.c.l.b16 %v2440
    %v2777 = vunpack.c.l.b16 %v2441
    %v2778 = vunpack.c.l.b16 %v2442
    %v2779 = vunpack.c.l.b16 %v2443
    %v2780 = vunpack.c.l.b16 %v2444
    %v2781 = vunpack.c.l.b16 %v2445
    %v2782 = vunpack.c.l.b16 %v2446
    %v2783 = vunpack.c.l.b16 %v2447
    %v2784 = vunpack.c.l.b16 %v2448
    %v2785 = vunpack.c.l.b16 %v2449
    %v2786 = vunpack.c.l.b16 %v2450
    %v2787 = vunpack.c.l.b16 %v2451
    %v2788 = vunpack.c.l.b16 %v2452
    %v2789 = vunpack.c.l.b16 %v2453
    %v2790 = vunpack.c.l.b16 %v2454
    %v2791 = vunpack.c.l.b16 %v2455
    %v2792 = vunpack.c.l.b16 %v2456
    %v2793 = vunpack.c.l.b16 %v2457
    %v2794 = vunpack.c.l.b16 %v2458
    %v2795 = vunpack.c.l.b16 %v2459
    %v2796 = vunpack.c.l.b16 %v2460
    %v2797 = vunpack.c.l.b16 %v2461
    %v2798 = vunpack.c.l.b16 %v2462
    %v2799 = vunpack.c.l.b16 %v2463
    %v2800 = vunpack.c.l.b16 %v2464
    %v2801 = vunpack.c.l.b16 %v2465
    %v2802 = vunpack.c.l.b16 %v2466
    %v2803 = vunpack.c.l.b16 %v2467
    %v2804 = vunpack.c.l.b16 %v2468
    %v2805 = vunpack.c.l.b16 %v2469
    %v2806 = vunpack.c.l.b16 %v2470
    %v2807 = vunpack.c.l.b16 %v2471
    %v2808 = vunpack.c.l.b16 %v2472
    %v2809 = vunpack.c.l.b16 %v2473
    %v2810 = vunpack.c.l.b16 %v2474
    %v2811 = vunpack.c.l.b16 %v2475
    %v2812 = vunpack.c.l.b16 %v2476
    %v2813 = vunpack.c.l.b16 %v2477
    %v2814 = vunpack.c.l.b16 %v2478
    %v2815 = vunpack.c.l.b16 %v2479
    %v2816 = vunpack.c.l.b16 %v2480
    %v2817 = vunpack.c.l.b16 %v2481
    %v2818 = vunpack.c.l.b16 %v2482
    %v2819 = vunpack.c.l.b16 %v2483
    %v2820 = vunpack.c.l.b16 %v2484
    %v2821 = vunpack.c.l.b16 %v2485
    %v2822 = vunpack.c.l.b16 %v2486
    %v2823 = vunpack.c.l.b16 %v2487
    %v2824 = vunpack.c.l.b16 %v2488
    %v2825 = vunpack.c.l.b16 %v2489
    %v2826 = vunpack.c.l.b16 %v2490
    %v2827 = vunpack.c.l.b16 %v2491
    %v2828 = vunpack.c.l.b16 %v2492
    %v2829 = vunpack.c.l.b16 %v2493
    %v2830 = vunpack.c.l.b16 %v2494
    %v2831 = vunpack.c.l.b16 %v2495
    %v2832 = vunpack.c.l.b16 %v2496
    %v2833 = vunpack.c.l.b16 %v2497
    %v2834 = vunpack.c.l.b16 %v2498
    %v2835 = vunpack.c.l.b16 %v2499
    %v2836 = vunpack.c.l.b16 %v2500
    %v2837 = vunpack.c.l.b16 %v2501
    %v2838 = vunpack.c.l.b16 %v2502
    %v2839 = vunpack.c.l.b16 %v2503
    %v2840 = vunpack.c.l.b16 %v2504
    %v2841 = vunpack.c.l.b16 %v2505
    %v2842 = vunpack.c.l.b16 %v2506
    %v2843 = vunpack.c.l.b16 %v2507
    %v2844 = vunpack.c.l.b16 %v2508
    %v2845 = vunpack.c.l.b16 %v2509
    %v2846 = vunpack.c.l.b16 %v2510
    %v2847 = vunpack.c.l.b16 %v2511
    %v2848 = vunpack.c.l.b16 %v2512
    %v2849 = vunpack.c.l.b16 %v2513
    %v2850 = vunpack.c.l.b16 %v2514
    %v2851 = vunpack.c.l.b16 %v2515
    %v2852 = vunpack.c.l.b16 %v2516
    %v2853 = vunpack.c.l.b16 %v2517
    %v2854 = vunpack.c.l.b16 %v2518
    %v2855 = vunpack.c.l.b16 %v2519
    %v2856 = vunpack.c.l.b16 %v2520
    %v2857 = vunpack.c.l.b16 %v2521
    %v2858 = vunpack.c.l.b16 %v2522
    %v2859 = vunpack.c.l.b16 %v2523
    %v2860 = vunpack.c.l.b16 %v2524
    %v2861 = vunpack.c.l.b16 %v2525
    %v2862 = vunpack.c.l.b16 %v2526
    %v2863 = vunpack.c.l.b16 %v2527
    %v2864 = vunpack.c.l.b16 %v2528
    %v2865 = vunpack.c.l.b16 %v2529
    %v2866 = vunpack.c.l.b16 %v2530
    %v2867 = vunpack.c.l.b16 %v2531
    %v2868 = vunpack.c.l.b16 %v2532
    %v2869 = vunpack.c.l.b16 %v2533
    %v2870 = vunpack.c.l.b16 %v2534
    %v2871 = vunpack.c.l.b16 %v2535
    %v2872 = vunpack.c.l.b16 %v2536
    %v2873 = vunpack.c.l.b16 %v2537
    %v2874 = vunpack.c.l.b16 %v2538
    %v2875 = vunpack.c.l.b16 %v2539
    %v2876 = vunpack.c.l.b16 %v2540
    %v2877 = vunpack.c.l.b16 %v2541
    %v2878 = vunpack.c.l.b16 %v2542
    %v2879 = vunpack.c.l.b16 %v2543
    %v2880 = vunpack.c.l.b16 %v2544
    %v2881 = vunpack.c.l.b16 %v2545
    %v2882 = vunpack.c.l.b16 %v2546
    %v2883 = vpack.c.b16 %v2756, %v2755
    %v2884 = vpack.c.b16 %v2758, %v2757
    %v2885 = vpack.c.b16 %v2760, %v2759
    %v2886 = vpack.c.b16 %v2762, %v2761
    %v2887 = vpack.c.b16 %v2764, %v2763
    %v2888 = vpack.c.b16 %v2766, %v2765
    %v2889 = vpack.c.b16 %v2768, %v2767
    %v2890 = vpack.c.b16 %v2770, %v2769
    %v2891 = vpack.c.b16 %v2772, %v2771
    %v2892 = vpack.c.b16 %v2774, %v2773
    %v2893 = vpack.c.b16 %v2776, %v2775
    %v2894 = vpack.c.b16 %v2778, %v2777
    %v2895 = vpack.c.b16 %v2780, %v2779
    %v2896 = vpack.c.b16 %v2782, %v2781
    %v2897 = vpack.c.b16 %v2784, %v2783
    %v2898 = vpack.c.b16 %v2786, %v2785
    %v2899 = vpack.c.b16 %v2788, %v2787
    %v2900 = vpack.c.b16 %v2790, %v2789
    %v2901 = vpack.c.b16 %v2792, %v2791
    %v2902 = vpack.c.b16 %v2794, %v2793
    %v2903 = vpack.c.b16 %v2796, %v2795
    %v2904 = vpack.c.b16 %v2798, %v2797
    %v2905 = vpack.c.b16 %v2800, %v2799
    %v2906 = vpack.c.b16 %v2802, %v2801
    %v2907 = vpack.c.b16 %v2804, %v2803
    %v2908 = vpack.c.b16 %v2806, %v2805
    %v2909 = vpack.c.b16 %v2808, %v2807
    %v2910 = vpack.c.b16 %v2810, %v2809
    %v2911 = vpack.c.b16 %v2812, %v2811
    %v2912 = vpack.c.b16 %v2814, %v2813
    %v2913 = vpack.c.b16 %v2816, %v2815
    %v2914 = vpack.c.b16 %v2818, %v2817
    %v2915 = vpack.c.b16 %v2820, %v2819
    %v2916 = vpack.c.b16 %v2822, %v2821
    %v2917 = vpack.c.b16 %v2824, %v2823
    %v2918 = vpack.c.b16 %v2826, %v2825
    %v2919 = vpack.c.b16 %v2828, %v2827
    %v2920 = vpack.c.b16 %v2830, %v2829
    %v2921 = vpack.c.b16 %v2832, %v2831
    %v2922 = vpack.c.b16 %v2834, %v2833
    %v2923 = vpack.c.b16 %v2836, %v2835
    %v2924 = vpack.c.b16 %v2838, %v2837
    %v2925 = vpack.c.b16 %v2840, %v2839
    %v2926 = vpack.c.b16 %v2842, %v2841
    %v2927 = vpack.c.b16 %v2844, %v2843
    %v2928 = vpack.c.b16 %v2846, %v2845
    %v2929 = vpack.c.b16 %v2848, %v2847
    %v2930 = vpack.c.b16 %v2850, %v2849
    %v2931 = vpack.c.b16 %v2852, %v2851
    %v2932 = vpack.c.b16 %v2854, %v2853
    %v2933 = vpack.c.b16 %v2856, %v2855
    %v2934 = vpack.c.b16 %v2858, %v2857
    %v2935 = vpack.c.b16 %v2860, %v2859
    %v2936 = vpack.c.b16 %v2862, %v2861
    %v2937 = vpack.c.b16 %v2864, %v2863
    %v2938 = vpack.c.b16 %v2866, %v2865
    %v2939 = vpack.c.b16 %v2868, %v2867
    %v2940 = vpack.c.b16 %v2870, %v2869
    %v2941 = vpack.c.b16 %v2872, %v2871
    %v2942 = vpack.c.b16 %v2874, %v2873
    %v2943 = vpack.c.b16 %v2876, %v2875
    %v2944 = vpack.c.b16 %v2878, %v2877
    %v2945 = vpack.c.b16 %v2880, %v2879
    %v2946 = vpack.c.b16 %v2882, %v2881
    %3011 = vmatprep.subr.bf16.mxu0 0
    %3012 = vmatpush1.bf16.msra.mxu0 %v2890
    %3013 = vmatprep.subr.bf16.mxu0 0
    %3014 = vmatpush1.bf16.msra.mxu0 %v2889
    %3015 = vmatprep.subr.bf16.mxu0 0
    %3016 = vmatpush1.bf16.msra.mxu0 %v2888
    %3017 = vmatprep.subr.bf16.mxu0 0
    %3018 = vmatpush1.bf16.msra.mxu0 %v2887
    %3019 = vmatprep.subr.bf16.mxu0 0
    %3020 = vmatpush1.bf16.msra.mxu0 %v2886
    %3021 = vmatprep.subr.bf16.mxu0 0
    %3022 = vmatpush1.bf16.msra.mxu0 %v2885
    %3023 = vmatprep.subr.bf16.mxu0 0
    %3024 = vmatpush1.bf16.msra.mxu0 %v2884
    %3025 = vmatprep.subr.bf16.mxu0 0
    %3026 = vmatpush1.bf16.msra.mxu0 %v2883
    %3027 = vmatprep.subr.bf16.mxu0 0
    %3028 = vmatpush2.bf16.msra.mxu0 %v2898
    %3029 = vmatprep.subr.bf16.mxu0 0
    %3030 = vmatpush2.bf16.msra.mxu0 %v2897
    %3031 = vmatprep.subr.bf16.mxu0 0
    %3032 = vmatpush2.bf16.msra.mxu0 %v2896
    %3033 = vmatprep.subr.bf16.mxu0 0
    %3034 = vmatpush2.bf16.msra.mxu0 %v2895
    %3035 = vmatprep.subr.bf16.mxu0 0
    %3036 = vmatpush2.bf16.msra.mxu0 %v2894
    %3037 = vmatprep.subr.bf16.mxu0 0
    %3038 = vmatpush2.bf16.msra.mxu0 %v2893
    %3039 = vmatprep.subr.bf16.mxu0 0
    %3040 = vmatpush2.bf16.msra.mxu0 %v2892
    %3041 = vmatprep.subr.bf16.mxu0 0
    %3042 = vmatpush2.bf16.msra.mxu0 %v2891
    %3043 = vmatprep.mubr.bf16.mxu0 %v2596
    %3044 = vmatmul.mubr.bf16.gmra.mxu0 %v2595
    %v3045 = vpop.f32.mrf.mxu0
    %v3046 = vadd.f32 %v210, %v3045
    %v3047 = vpop.f32.mrf.mxu0
    %v3048 = vpop.f32.mrf.mxu0
    %v3049 = vadd.f32 %v210, %v3048
    %v3050 = vpop.f32.mrf.mxu0
    %3051 = vmatprep.mubr.bf16.mxu0 %v2604
    %3052 = vmatmul.mubr.bf16.gmra.mxu0 %v2603
    %v3053 = vpop.f32.mrf.mxu0
    %v3054 = vadd.f32 %v210, %v3053
    %v3055 = vpop.f32.mrf.mxu0
    %v3056 = vpop.f32.mrf.mxu0
    %v3057 = vadd.f32 %v210, %v3056
    %v3058 = vpop.f32.mrf.mxu0
    %3059 = vdwg.mxu0
    %3060 = vmatprep.subr.bf16.mxu0 0
    %3061 = vmatpush1.bf16.msra.mxu0 %v2906
    %3062 = vmatprep.subr.bf16.mxu0 0
    %3063 = vmatpush1.bf16.msra.mxu0 %v2905
    %3064 = vmatprep.subr.bf16.mxu0 0
    %3065 = vmatpush1.bf16.msra.mxu0 %v2904
    %3066 = vmatprep.subr.bf16.mxu0 0
    %3067 = vmatpush1.bf16.msra.mxu0 %v2903
    %3068 = vmatprep.subr.bf16.mxu0 0
    %3069 = vmatpush1.bf16.msra.mxu0 %v2902
    %3070 = vmatprep.subr.bf16.mxu0 0
    %3071 = vmatpush1.bf16.msra.mxu0 %v2901
    %3072 = vmatprep.subr.bf16.mxu0 0
    %3073 = vmatpush1.bf16.msra.mxu0 %v2900
    %3074 = vmatprep.subr.bf16.mxu0 0
    %3075 = vmatpush1.bf16.msra.mxu0 %v2899
    %3076 = vmatprep.subr.bf16.mxu0 0
    %3077 = vmatpush2.bf16.msra.mxu0 %v2914
    %3078 = vmatprep.subr.bf16.mxu0 0
    %3079 = vmatpush2.bf16.msra.mxu0 %v2913
    %3080 = vmatprep.subr.bf16.mxu0 0
    %3081 = vmatpush2.bf16.msra.mxu0 %v2912
    %3082 = vmatprep.subr.bf16.mxu0 0
    %3083 = vmatpush2.bf16.msra.mxu0 %v2911
    %3084 = vmatprep.subr.bf16.mxu0 0
    %3085 = vmatpush2.bf16.msra.mxu0 %v2910
    %3086 = vmatprep.subr.bf16.mxu0 0
    %3087 = vmatpush2.bf16.msra.mxu0 %v2909
    %3088 = vmatprep.subr.bf16.mxu0 0
    %3089 = vmatpush2.bf16.msra.mxu0 %v2908
    %3090 = vmatprep.subr.bf16.mxu0 0
    %3091 = vmatpush2.bf16.msra.mxu0 %v2907
    %3092 = vmatprep.mubr.bf16.mxu0 %v2598
    %3093 = vmatmul.mubr.bf16.gmra.mxu0 %v2597
    %v3094 = vpop.f32.mrf.mxu0
    %v3095 = vadd.f32 %v3046, %v3094
    %v3096 = vpop.f32.mrf.mxu0
    %v3097 = vpop.f32.mrf.mxu0
    %v3098 = vadd.f32 %v3049, %v3097
    %v3099 = vpop.f32.mrf.mxu0
    %3100 = vmatprep.mubr.bf16.mxu0 %v2606
    %3101 = vmatmul.mubr.bf16.gmra.mxu0 %v2605
    %v3102 = vpop.f32.mrf.mxu0
    %v3103 = vadd.f32 %v3054, %v3102
    %v3104 = vpop.f32.mrf.mxu0
    %v3105 = vpop.f32.mrf.mxu0
    %v3106 = vadd.f32 %v3057, %v3105
    %v3107 = vpop.f32.mrf.mxu0
    %3108 = vdwg.mxu0
    %3109 = vmatprep.subr.bf16.mxu0 0
    %3110 = vmatpush1.bf16.msra.mxu0 %v2922
    %3111 = vmatprep.subr.bf16.mxu0 0
    %3112 = vmatpush1.bf16.msra.mxu0 %v2921
    %3113 = vmatprep.subr.bf16.mxu0 0
    %3114 = vmatpush1.bf16.msra.mxu0 %v2920
    %3115 = vmatprep.subr.bf16.mxu0 0
    %3116 = vmatpush1.bf16.msra.mxu0 %v2919
    %3117 = vmatprep.subr.bf16.mxu0 0
    %3118 = vmatpush1.bf16.msra.mxu0 %v2918
    %3119 = vmatprep.subr.bf16.mxu0 0
    %3120 = vmatpush1.bf16.msra.mxu0 %v2917
    %3121 = vmatprep.subr.bf16.mxu0 0
    %3122 = vmatpush1.bf16.msra.mxu0 %v2916
    %3123 = vmatprep.subr.bf16.mxu0 0
    %3124 = vmatpush1.bf16.msra.mxu0 %v2915
    %3125 = vmatprep.subr.bf16.mxu0 0
    %3126 = vmatpush2.bf16.msra.mxu0 %v2930
    %3127 = vmatprep.subr.bf16.mxu0 0
    %3128 = vmatpush2.bf16.msra.mxu0 %v2929
    %3129 = vmatprep.subr.bf16.mxu0 0
    %3130 = vmatpush2.bf16.msra.mxu0 %v2928
    %3131 = vmatprep.subr.bf16.mxu0 0
    %3132 = vmatpush2.bf16.msra.mxu0 %v2927
    %3133 = vmatprep.subr.bf16.mxu0 0
    %3134 = vmatpush2.bf16.msra.mxu0 %v2926
    %3135 = vmatprep.subr.bf16.mxu0 0
    %3136 = vmatpush2.bf16.msra.mxu0 %v2925
    %3137 = vmatprep.subr.bf16.mxu0 0
    %3138 = vmatpush2.bf16.msra.mxu0 %v2924
    %3139 = vmatprep.subr.bf16.mxu0 0
    %3140 = vmatpush2.bf16.msra.mxu0 %v2923
    %3141 = vmatprep.mubr.bf16.mxu0 %v2600
    %3142 = vmatmul.mubr.bf16.gmra.mxu0 %v2599
    %v3143 = vpop.f32.mrf.mxu0
    %v3144 = vadd.f32 %v3095, %v3143
    %v3145 = vpop.f32.mrf.mxu0
    %v3146 = vpop.f32.mrf.mxu0
    %v3147 = vadd.f32 %v3098, %v3146
    %v3148 = vpop.f32.mrf.mxu0
    %3149 = vmatprep.mubr.bf16.mxu0 %v2608
    %3150 = vmatmul.mubr.bf16.gmra.mxu0 %v2607
    %v3151 = vpop.f32.mrf.mxu0
    %v3152 = vadd.f32 %v3103, %v3151
    %v3153 = vpop.f32.mrf.mxu0
    %v3154 = vpop.f32.mrf.mxu0
    %v3155 = vadd.f32 %v3106, %v3154
    %v3156 = vpop.f32.mrf.mxu0
    %3157 = vdwg.mxu0
    %3158 = vmatprep.subr.bf16.mxu0 0
    %3159 = vmatpush1.bf16.msra.mxu0 %v2938
    %3160 = vmatprep.subr.bf16.mxu0 0
    %3161 = vmatpush1.bf16.msra.mxu0 %v2937
    %3162 = vmatprep.subr.bf16.mxu0 0
    %3163 = vmatpush1.bf16.msra.mxu0 %v2936
    %3164 = vmatprep.subr.bf16.mxu0 0
    %3165 = vmatpush1.bf16.msra.mxu0 %v2935
    %3166 = vmatprep.subr.bf16.mxu0 0
    %3167 = vmatpush1.bf16.msra.mxu0 %v2934
    %3168 = vmatprep.subr.bf16.mxu0 0
    %3169 = vmatpush1.bf16.msra.mxu0 %v2933
    %3170 = vmatprep.subr.bf16.mxu0 0
    %3171 = vmatpush1.bf16.msra.mxu0 %v2932
    %3172 = vmatprep.subr.bf16.mxu0 0
    %3173 = vmatpush1.bf16.msra.mxu0 %v2931
    %3174 = vmatprep.subr.bf16.mxu0 0
    %3175 = vmatpush2.bf16.msra.mxu0 %v2946
    %3176 = vmatprep.subr.bf16.mxu0 0
    %3177 = vmatpush2.bf16.msra.mxu0 %v2945
    %3178 = vmatprep.subr.bf16.mxu0 0
    %3179 = vmatpush2.bf16.msra.mxu0 %v2944
    %3180 = vmatprep.subr.bf16.mxu0 0
    %3181 = vmatpush2.bf16.msra.mxu0 %v2943
    %3182 = vmatprep.subr.bf16.mxu0 0
    %3183 = vmatpush2.bf16.msra.mxu0 %v2942
    %3184 = vmatprep.subr.bf16.mxu0 0
    %3185 = vmatpush2.bf16.msra.mxu0 %v2941
    %3186 = vmatprep.subr.bf16.mxu0 0
    %3187 = vmatpush2.bf16.msra.mxu0 %v2940
    %3188 = vmatprep.subr.bf16.mxu0 0
    %3189 = vmatpush2.bf16.msra.mxu0 %v2939
    %3190 = vmatprep.mubr.bf16.mxu0 %v2602
    %3191 = vmatmul.mubr.bf16.gmra.mxu0 %v2601
    %v3192 = vpop.f32.mrf.mxu0
    %v3193 = vadd.f32 %v3144, %v3192
    %v3194 = vpop.f32.mrf.mxu0
    %v3195 = vpop.f32.mrf.mxu0
    %v3196 = vadd.f32 %v3147, %v3195
    %v3197 = vpop.f32.mrf.mxu0
    %3198 = vmatprep.mubr.bf16.mxu0 %v2610
    %3199 = vmatmul.mubr.bf16.gmra.mxu0 %v2609
    %v3200 = vpop.f32.mrf.mxu0
    %v3201 = vadd.f32 %v3152, %v3200
    %v3202 = vpop.f32.mrf.mxu0
    %v3203 = vpop.f32.mrf.mxu0
    %v3204 = vadd.f32 %v3155, %v3203
    %v3205 = vpop.f32.mrf.mxu0
    %3206 = vdwg.mxu0
    %v3207 = vpack.c.bf16 %v202, %v201
    %v3208 = vpack.c.bf16 %v204, %v203
    %v3209 = vld [vmem:[%s8] sm:$0x3]
    %v3211 = vsel %vm224, %v3207, 0
    %v3214 = vsel %vm224, %v3208, 0
    %vm3216 = vcmask 1041408
    %v3218 = vsel %vm3216, %v3209, 0
    %3220 = vmatprep.subr.bf16.mxu0 0
    %3221 = vmatpush1.bf16.msra.mxu0 0
    %3222 = vmatprep.subr.bf16.mxu0 0
    %3223 = vmatpush1.bf16.msra.mxu0 0
    %3224 = vmatprep.subr.bf16.mxu0 0
    %3225 = vmatpush1.bf16.msra.mxu0 0
    %3226 = vmatprep.subr.bf16.mxu0 0
    %3227 = vmatpush1.bf16.msra.mxu0 0
    %3228 = vmatprep.subr.bf16.mxu0 0
    %3229 = vmatpush1.bf16.msra.mxu0 0
    %3230 = vmatprep.subr.bf16.mxu0 0
    %3231 = vmatpush1.bf16.msra.mxu0 0
    %3232 = vmatprep.subr.bf16.mxu0 0
    %3233 = vmatpush1.bf16.msra.mxu0 0
    %3234 = vmatprep.subr.bf16.mxu0 0
    %3235 = vmatpush1.bf16.msra.mxu0 %v3218
    %3236 = vmatprep.subr.bf16.mxu0 0
    %3237 = vmatpush2.bf16.msra.mxu0 0
    %3238 = vmatprep.subr.bf16.mxu0 0
    %3239 = vmatpush2.bf16.msra.mxu0 0
    %3240 = vmatprep.subr.bf16.mxu0 0
    %3241 = vmatpush2.bf16.msra.mxu0 0
    %3242 = vmatprep.subr.bf16.mxu0 0
    %3243 = vmatpush2.bf16.msra.mxu0 0
    %3244 = vmatprep.subr.bf16.mxu0 0
    %3245 = vmatpush2.bf16.msra.mxu0 0
    %3246 = vmatprep.subr.bf16.mxu0 0
    %3247 = vmatpush2.bf16.msra.mxu0 0
    %3248 = vmatprep.subr.bf16.mxu0 0
    %3249 = vmatpush2.bf16.msra.mxu0 0
    %3250 = vmatprep.subr.bf16.mxu0 0
    %3251 = vmatpush2.bf16.msra.mxu0 0
    %3252 = vmatprep.mubr.bf16.mxu0 0
    %3253 = vmatmul.mubr.bf16.gmra.mxu0 %v3211
    %v3254 = vpop.f32.mrf.mxu0
    %v3255 = vadd.f32 %v211, %v3254
    %v3256 = vpop.f32.mrf.mxu0
    %v3257 = vpop.f32.mrf.mxu0
    %v3258 = vadd.f32 %v211, %v3257
    %v3259 = vpop.f32.mrf.mxu0
    %3260 = vmatprep.mubr.bf16.mxu0 0
    %3261 = vmatmul.mubr.bf16.gmra.mxu0 %v3214
    %v3262 = vpop.f32.mrf.mxu0
    %v3263 = vadd.f32 %v211, %v3262
    %v3264 = vpop.f32.mrf.mxu0
    %v3265 = vpop.f32.mrf.mxu0
    %v3266 = vadd.f32 %v211, %v3265
    %v3267 = vpop.f32.mrf.mxu0
    %3268 = vdwg.mxu0
    %v3269 = vadd.f32 %v3193, %v3255
    %v3270 = vadd.f32 %v3196, %v3258
    %v3271 = vadd.f32 %v3201, %v3263
    %v3272 = vadd.f32 %v3204, %v3266
    %v3273 = vmax.f32 %v3269, 0.0
    %v3274 = vmax.f32 %v3270, 0.0
    %v3275 = vmax.f32 %v3271, 0.0
    %v3276 = vmax.f32 %v3272, 0.0
    %3277 = vst.msk [vmem:[#allocation4] sm:$0xff] %vm1426, %v3273
    %3278 = vst.msk [vmem:[#allocation4 + $0x8] sm:$0xff] %vm1426, %v3274
    %3279 = vst.msk [vmem:[#allocation4 + $0x10] sm:$0xff] %vm1426, %v3275
    %3280 = vst.msk [vmem:[#allocation4 + $0x18] sm:$0xff] %vm1426, %v3276
    %v3281 = vld [vmem:[#allocation4] ss:$2 sm:$0xff]
    %s3282 = scalar_lea.vmem [#allocation4], 16
    %v3283 = vld [vmem:[%s3282] ss:$2 sm:$0xff]
    %s3284 = scalar_lea.vmem [#allocation4], 1
    %v3285 = vld [vmem:[%s3284] ss:$2 sm:$0xff]
    %s3286 = scalar_lea.vmem [#allocation4], 17
    %v3287 = vld [vmem:[%s3286] ss:$2 sm:$0xff]
    %v3288 = vmax.f32 %v3281, %v3285
    %v3289 = vmax.f32 %v3283, %v3287
    %v3290 = vld [vmem:[#allocation5 + $0x7] ss:$0 sm:$0xff]
    %v3291 = vld [vmem:[#allocation5 + $0x10] ss:$0 sm:$0xff]
    %v3292 = vld [vmem:[#allocation5 + $0x11] ss:$0 sm:$0xff]
    %v3293 = vld [vmem:[#allocation5 + $0x12] ss:$0 sm:$0xff]
    %v3294 = vld [vmem:[#allocation5 + $0x13] ss:$0 sm:$0xff]
    %v3295 = vld [vmem:[#allocation5 + $0x14] ss:$0 sm:$0xff]
    %v3296 = vld [vmem:[#allocation5 + $0x15] ss:$0 sm:$0xff]
    %v3297 = vmul.f32 %v3288, %v3290
    %v3298 = vmul.f32 %v3289, %v3290
    %v3299 = vadd.f32 %v3297, %v3291
    %v3300 = vadd.f32 %v3298, %v3291
    %v3301 = vmax.f32 %v3299, 0.0
    %v3302 = vmax.f32 %v3300, 0.0
    %3303 = vst.msk [vmem:[#allocation2] sm:$0xff] %vm1426, 0.0
    %3304 = vst.msk [vmem:[#allocation2 + $0x10] sm:$0xff] %vm1426, 0.0
    %3305 = vst.msk [vmem:[#allocation2 + $0x8] sm:$0xff] %vm1426, %v3301
    %3306 = vst.msk [vmem:[#allocation2 + $0x18] sm:$0xff] %vm1426, 0.0
    %3307 = vst.msk [vmem:[#allocation2 + $0x28] sm:$0xff] %vm1426, 0.0
    %3308 = vst.msk [vmem:[#allocation2 + $0x20] sm:$0xff] %vm1426, %v3302
    %v3309 = vld [vmem:[#allocation2 + $0x1] sm:$0xff]
    %v3310 = vpack.c.bf16 %v3309, %v3309
    %3311 = vst.msk [vmem:[#allocation3] sm:$0xf] %vm1449, %v3310
    %v3312 = vld [vmem:[#allocation2 + $0x19] sm:$0xff]
    %v3313 = vpack.c.bf16 %v3312, %v3312
    %3314 = vst.msk [vmem:[#allocation3 + $0x20] sm:$0xf] %vm1449, %v3313
    %v3315 = vld [vmem:[#allocation2 + $0x2] sm:$0xff]
    %v3316 = vpack.c.bf16 %v3315, %v3315
    %v3318 = vunpack.c.l.b16 %v3316
    %v3319 = vpack.c.b16 %v3318, %v3318
    %3320 = vrot.lane.b32.xlu0 %v3319, 32
    %v3321 = vpop.permute.xlu0 %3320
    %3323 = vst.msk [vmem:[#allocation3] sm:$0xf] %vm1478, %v3321
    %v3324 = vld [vmem:[#allocation2 + $0x1a] sm:$0xff]
    %v3325 = vpack.c.bf16 %v3324, %v3324
    %v3327 = vunpack.c.l.b16 %v3325
    %v3328 = vpack.c.b16 %v3327, %v3327
    %3329 = vrot.lane.b32.xlu0 %v3328, 32
    %v3330 = vpop.permute.xlu0 %3329
    %3332 = vst.msk [vmem:[#allocation3 + $0x20] sm:$0xf] %vm1478, %v3330
    %v3333 = vld [vmem:[#allocation2 + $0x3] sm:$0xff]
    %v3334 = vpack.c.bf16 %v3333, %v3333
    %v3336 = vunpack.c.l.b16 %v3334
    %v3337 = vpack.c.b16 %v3336, %v3336
    %3338 = vrot.lane.b32.xlu0 %v3337, 64
    %v3339 = vpop.permute.xlu0 %3338
    %3341 = vst.msk [vmem:[#allocation3] sm:$0xf] %vm1511, %v3339
    %v3342 = vld [vmem:[#allocation2 + $0x1b] sm:$0xff]
    %v3343 = vpack.c.bf16 %v3342, %v3342
    %v3345 = vunpack.c.l.b16 %v3343
    %v3346 = vpack.c.b16 %v3345, %v3345
    %3347 = vrot.lane.b32.xlu0 %v3346, 64
    %v3348 = vpop.permute.xlu0 %3347
    %3350 = vst.msk [vmem:[#allocation3 + $0x20] sm:$0xf] %vm1511, %v3348
    %v3351 = vld [vmem:[#allocation2 + $0x4] sm:$0xff]
    %v3352 = vpack.c.bf16 %v3351, %v3351
    %v3354 = vunpack.c.l.b16 %v3352
    %v3355 = vpack.c.b16 %v3354, %v3354
    %3356 = vrot.lane.b32.xlu0 %v3355, 96
    %v3357 = vpop.permute.xlu0 %3356
    %3359 = vst.msk [vmem:[#allocation3] sm:$0xf] %vm1544, %v3357
    %v3360 = vld [vmem:[#allocation2 + $0x1c] sm:$0xff]
    %v3361 = vpack.c.bf16 %v3360, %v3360
    %v3363 = vunpack.c.l.b16 %v3361
    %v3364 = vpack.c.b16 %v3363, %v3363
    %3365 = vrot.lane.b32.xlu0 %v3364, 96
    %v3366 = vpop.permute.xlu0 %3365
    %3368 = vst.msk [vmem:[#allocation3 + $0x20] sm:$0xf] %vm1544, %v3366
    %v3369 = vld [vmem:[#allocation2 + $0x5] sm:$0xff]
    %v3370 = vpack.c.bf16 %v3369, %v3369
    %3371 = vst.msk [vmem:[#allocation3 + $0x4] sm:$0xf] %vm1449, %v3370
    %v3372 = vld [vmem:[#allocation2 + $0x1d] sm:$0xff]
    %v3373 = vpack.c.bf16 %v3372, %v3372
    %3374 = vst.msk [vmem:[#allocation3 + $0x24] sm:$0xf] %vm1449, %v3373
    %v3375 = vld [vmem:[#allocation2 + $0x6] sm:$0xff]
    %v3376 = vpack.c.bf16 %v3375, %v3375
    %v3378 = vunpack.c.l.b16 %v3376
    %v3379 = vpack.c.b16 %v3378, %v3378
    %3380 = vrot.lane.b32.xlu0 %v3379, 32
    %v3381 = vpop.permute.xlu0 %3380
    %3383 = vst.msk [vmem:[#allocation3 + $0x4] sm:$0xf] %vm1478, %v3381
    %v3384 = vld [vmem:[#allocation2 + $0x1e] sm:$0xff]
    %v3385 = vpack.c.bf16 %v3384, %v3384
    %v3387 = vunpack.c.l.b16 %v3385
    %v3388 = vpack.c.b16 %v3387, %v3387
    %3389 = vrot.lane.b32.xlu0 %v3388, 32
    %v3390 = vpop.permute.xlu0 %3389
    %3392 = vst.msk [vmem:[#allocation3 + $0x24] sm:$0xf] %vm1478, %v3390
    %v3393 = vld [vmem:[#allocation2 + $0x7] sm:$0xff]
    %v3394 = vpack.c.bf16 %v3393, %v3393
    %v3396 = vunpack.c.l.b16 %v3394
    %v3397 = vpack.c.b16 %v3396, %v3396
    %3398 = vrot.lane.b32.xlu0 %v3397, 64
    %v3399 = vpop.permute.xlu0 %3398
    %3401 = vst.msk [vmem:[#allocation3 + $0x4] sm:$0xf] %vm1511, %v3399
    %v3402 = vld [vmem:[#allocation2 + $0x1f] sm:$0xff]
    %v3403 = vpack.c.bf16 %v3402, %v3402
    %v3405 = vunpack.c.l.b16 %v3403
    %v3406 = vpack.c.b16 %v3405, %v3405
    %3407 = vrot.lane.b32.xlu0 %v3406, 64
    %v3408 = vpop.permute.xlu0 %3407
    %3410 = vst.msk [vmem:[#allocation3 + $0x24] sm:$0xf] %vm1511, %v3408
    %v3411 = vld [vmem:[#allocation2 + $0x8] sm:$0xff]
    %v3412 = vpack.c.bf16 %v3411, %v3411
    %v3414 = vunpack.c.l.b16 %v3412
    %v3415 = vpack.c.b16 %v3414, %v3414
    %3416 = vrot.lane.b32.xlu0 %v3415, 96
    %v3417 = vpop.permute.xlu0 %3416
    %3419 = vst.msk [vmem:[#allocation3 + $0x4] sm:$0xf] %vm1544, %v3417
    %v3420 = vld [vmem:[#allocation2 + $0x20] sm:$0xff]
    %v3421 = vpack.c.bf16 %v3420, %v3420
    %v3423 = vunpack.c.l.b16 %v3421
    %v3424 = vpack.c.b16 %v3423, %v3423
    %3425 = vrot.lane.b32.xlu0 %v3424, 96
    %v3426 = vpop.permute.xlu0 %3425
    %3428 = vst.msk [vmem:[#allocation3 + $0x24] sm:$0xf] %vm1544, %v3426
    %v3429 = vld [vmem:[#allocation2 + $0x9] sm:$0xff]
    %v3430 = vpack.c.bf16 %v3429, %v3429
    %3431 = vst.msk [vmem:[#allocation3 + $0x8] sm:$0xf] %vm1449, %v3430
    %v3432 = vld [vmem:[#allocation2 + $0x21] sm:$0xff]
    %v3433 = vpack.c.bf16 %v3432, %v3432
    %3434 = vst.msk [vmem:[#allocation3 + $0x28] sm:$0xf] %vm1449, %v3433
    %v3435 = vld [vmem:[#allocation2 + $0xa] sm:$0xff]
    %v3436 = vpack.c.bf16 %v3435, %v3435
    %v3438 = vunpack.c.l.b16 %v3436
    %v3439 = vpack.c.b16 %v3438, %v3438
    %3440 = vrot.lane.b32.xlu0 %v3439, 32
    %v3441 = vpop.permute.xlu0 %3440
    %3443 = vst.msk [vmem:[#allocation3 + $0x8] sm:$0xf] %vm1478, %v3441
    %v3444 = vld [vmem:[#allocation2 + $0x22] sm:$0xff]
    %v3445 = vpack.c.bf16 %v3444, %v3444
    %v3447 = vunpack.c.l.b16 %v3445
    %v3448 = vpack.c.b16 %v3447, %v3447
    %3449 = vrot.lane.b32.xlu0 %v3448, 32
    %v3450 = vpop.permute.xlu0 %3449
    %3452 = vst.msk [vmem:[#allocation3 + $0x28] sm:$0xf] %vm1478, %v3450
    %v3453 = vld [vmem:[#allocation2 + $0xb] sm:$0xff]
    %v3454 = vpack.c.bf16 %v3453, %v3453
    %v3456 = vunpack.c.l.b16 %v3454
    %v3457 = vpack.c.b16 %v3456, %v3456
    %3458 = vrot.lane.b32.xlu0 %v3457, 64
    %v3459 = vpop.permute.xlu0 %3458
    %3461 = vst.msk [vmem:[#allocation3 + $0x8] sm:$0xf] %vm1511, %v3459
    %v3462 = vld [vmem:[#allocation2 + $0x23] sm:$0xff]
    %v3463 = vpack.c.bf16 %v3462, %v3462
    %v3465 = vunpack.c.l.b16 %v3463
    %v3466 = vpack.c.b16 %v3465, %v3465
    %3467 = vrot.lane.b32.xlu0 %v3466, 64
    %v3468 = vpop.permute.xlu0 %3467
    %3470 = vst.msk [vmem:[#allocation3 + $0x28] sm:$0xf] %vm1511, %v3468
    %v3471 = vld [vmem:[#allocation2 + $0xc] sm:$0xff]
    %v3472 = vpack.c.bf16 %v3471, %v3471
    %v3474 = vunpack.c.l.b16 %v3472
    %v3475 = vpack.c.b16 %v3474, %v3474
    %3476 = vrot.lane.b32.xlu0 %v3475, 96
    %v3477 = vpop.permute.xlu0 %3476
    %3479 = vst.msk [vmem:[#allocation3 + $0x8] sm:$0xf] %vm1544, %v3477
    %v3480 = vld [vmem:[#allocation2 + $0x24] sm:$0xff]
    %v3481 = vpack.c.bf16 %v3480, %v3480
    %v3483 = vunpack.c.l.b16 %v3481
    %v3484 = vpack.c.b16 %v3483, %v3483
    %3485 = vrot.lane.b32.xlu0 %v3484, 96
    %v3486 = vpop.permute.xlu0 %3485
    %3488 = vst.msk [vmem:[#allocation3 + $0x28] sm:$0xf] %vm1544, %v3486
    %v3489 = vld [vmem:[#allocation2 + $0xd] sm:$0xff]
    %v3490 = vpack.c.bf16 %v3489, %v3489
    %3491 = vst.msk [vmem:[#allocation3 + $0xc] sm:$0xf] %vm1449, %v3490
    %v3492 = vld [vmem:[#allocation2 + $0x25] sm:$0xff]
    %v3493 = vpack.c.bf16 %v3492, %v3492
    %3494 = vst.msk [vmem:[#allocation3 + $0x2c] sm:$0xf] %vm1449, %v3493
    %v3495 = vld [vmem:[#allocation2 + $0xe] sm:$0xff]
    %v3496 = vpack.c.bf16 %v3495, %v3495
    %v3498 = vunpack.c.l.b16 %v3496
    %v3499 = vpack.c.b16 %v3498, %v3498
    %3500 = vrot.lane.b32.xlu0 %v3499, 32
    %v3501 = vpop.permute.xlu0 %3500
    %3503 = vst.msk [vmem:[#allocation3 + $0xc] sm:$0xf] %vm1478, %v3501
    %v3504 = vld [vmem:[#allocation2 + $0x26] sm:$0xff]
    %v3505 = vpack.c.bf16 %v3504, %v3504
    %v3507 = vunpack.c.l.b16 %v3505
    %v3508 = vpack.c.b16 %v3507, %v3507
    %3509 = vrot.lane.b32.xlu0 %v3508, 32
    %v3510 = vpop.permute.xlu0 %3509
    %3512 = vst.msk [vmem:[#allocation3 + $0x2c] sm:$0xf] %vm1478, %v3510
    %v3513 = vld [vmem:[#allocation2 + $0xf] sm:$0xff]
    %v3514 = vpack.c.bf16 %v3513, %v3513
    %v3516 = vunpack.c.l.b16 %v3514
    %v3517 = vpack.c.b16 %v3516, %v3516
    %3518 = vrot.lane.b32.xlu0 %v3517, 64
    %v3519 = vpop.permute.xlu0 %3518
    %3521 = vst.msk [vmem:[#allocation3 + $0xc] sm:$0xf] %vm1511, %v3519
    %v3522 = vld [vmem:[#allocation2 + $0x27] sm:$0xff]
    %v3523 = vpack.c.bf16 %v3522, %v3522
    %v3525 = vunpack.c.l.b16 %v3523
    %v3526 = vpack.c.b16 %v3525, %v3525
    %3527 = vrot.lane.b32.xlu0 %v3526, 64
    %v3528 = vpop.permute.xlu0 %3527
    %3530 = vst.msk [vmem:[#allocation3 + $0x2c] sm:$0xf] %vm1511, %v3528
    %v3531 = vld [vmem:[#allocation2 + $0x10] sm:$0xff]
    %v3532 = vpack.c.bf16 %v3531, %v3531
    %v3534 = vunpack.c.l.b16 %v3532
    %v3535 = vpack.c.b16 %v3534, %v3534
    %3536 = vrot.lane.b32.xlu0 %v3535, 96
    %v3537 = vpop.permute.xlu0 %3536
    %3539 = vst.msk [vmem:[#allocation3 + $0xc] sm:$0xf] %vm1544, %v3537
    %v3540 = vld [vmem:[#allocation2 + $0x28] sm:$0xff]
    %v3541 = vpack.c.bf16 %v3540, %v3540
    %v3543 = vunpack.c.l.b16 %v3541
    %v3544 = vpack.c.b16 %v3543, %v3543
    %3545 = vrot.lane.b32.xlu0 %v3544, 96
    %v3546 = vpop.permute.xlu0 %3545
    %3548 = vst.msk [vmem:[#allocation3 + $0x2c] sm:$0xf] %vm1544, %v3546
    %v3549 = vld [vmem:[#allocation3] sm:$0xff]
    %v3550 = vld [vmem:[#allocation3 + $0x8] sm:$0xff]
    %v3551 = vld [vmem:[#allocation3 + $0x20] sm:$0xff]
    %v3552 = vld [vmem:[#allocation3 + $0x28] sm:$0xff]
    %v3553 = vld [vmem:[#allocation11] sm:$0xf]
    %v3554 = vld [vmem:[#allocation11 + $0x4] sm:$0xf]
    %v3555 = vld [vmem:[#allocation11 + $0x8] sm:$0xf]
    %v3556 = vld [vmem:[#allocation11 + $0xc] sm:$0xf]
    %v3557 = vld [vmem:[#allocation11 + $0x10] sm:$0xf]
    %v3558 = vld [vmem:[#allocation11 + $0x14] sm:$0xf]
    %v3559 = vld [vmem:[#allocation11 + $0x18] sm:$0xf]
    %v3560 = vld [vmem:[#allocation11 + $0x1c] sm:$0xf]
    %v3561 = vld [vmem:[#allocation11 + $0x20] sm:$0xf]
    %v3562 = vld [vmem:[#allocation11 + $0x24] sm:$0xf]
    %v3563 = vld [vmem:[#allocation11 + $0x28] sm:$0xf]
    %v3564 = vld [vmem:[#allocation11 + $0x2c] sm:$0xf]
    %v3565 = vld [vmem:[#allocation11 + $0x30] sm:$0xf]
    %v3566 = vld [vmem:[#allocation11 + $0x34] sm:$0xf]
    %v3567 = vld [vmem:[#allocation11 + $0x38] sm:$0xf]
    %v3568 = vld [vmem:[#allocation11 + $0x3c] sm:$0xf]
    %v3569 = vld [vmem:[#allocation11 + $0x40] sm:$0xf]
    %v3570 = vld [vmem:[#allocation11 + $0x44] sm:$0xf]
    %v3571 = vld [vmem:[#allocation11 + $0x48] sm:$0xf]
    %v3572 = vld [vmem:[#allocation11 + $0x4c] sm:$0xf]
    %v3573 = vld [vmem:[#allocation11 + $0x50] sm:$0xf]
    %v3574 = vld [vmem:[#allocation11 + $0x54] sm:$0xf]
    %v3575 = vld [vmem:[#allocation11 + $0x58] sm:$0xf]
    %v3576 = vld [vmem:[#allocation11 + $0x5c] sm:$0xf]
    %v3577 = vld [vmem:[#allocation11 + $0x60] sm:$0xf]
    %v3578 = vld [vmem:[#allocation11 + $0x64] sm:$0xf]
    %v3579 = vld [vmem:[#allocation11 + $0x68] sm:$0xf]
    %v3580 = vld [vmem:[#allocation11 + $0x6c] sm:$0xf]
    %v3581 = vld [vmem:[#allocation11 + $0x70] sm:$0xf]
    %v3582 = vld [vmem:[#allocation11 + $0x74] sm:$0xf]
    %v3583 = vld [vmem:[#allocation11 + $0x78] sm:$0xf]
    %v3584 = vld [vmem:[#allocation11 + $0x7c] sm:$0xf]
    %v3585 = vld [vmem:[#allocation11 + $0x80] sm:$0xf]
    %v3586 = vld [vmem:[#allocation11 + $0x84] sm:$0xf]
    %v3587 = vld [vmem:[#allocation11 + $0x88] sm:$0xf]
    %v3588 = vld [vmem:[#allocation11 + $0x8c] sm:$0xf]
    %v3589 = vld [vmem:[#allocation11 + $0x90] sm:$0xf]
    %v3590 = vld [vmem:[#allocation11 + $0x94] sm:$0xf]
    %v3591 = vld [vmem:[#allocation11 + $0x98] sm:$0xf]
    %v3592 = vld [vmem:[#allocation11 + $0x9c] sm:$0xf]
    %v3593 = vld [vmem:[#allocation11 + $0xa0] sm:$0xf]
    %v3594 = vld [vmem:[#allocation11 + $0xa4] sm:$0xf]
    %v3595 = vld [vmem:[#allocation11 + $0xa8] sm:$0xf]
    %v3596 = vld [vmem:[#allocation11 + $0xac] sm:$0xf]
    %v3597 = vld [vmem:[#allocation11 + $0xb0] sm:$0xf]
    %v3598 = vld [vmem:[#allocation11 + $0xb4] sm:$0xf]
    %v3599 = vld [vmem:[#allocation11 + $0xb8] sm:$0xf]
    %v3600 = vld [vmem:[#allocation11 + $0xbc] sm:$0xf]
    %v3601 = vld [vmem:[#allocation11 + $0xc0] sm:$0xf]
    %v3602 = vld [vmem:[#allocation11 + $0xc4] sm:$0xf]
    %v3603 = vld [vmem:[#allocation11 + $0xc8] sm:$0xf]
    %v3604 = vld [vmem:[#allocation11 + $0xcc] sm:$0xf]
    %v3605 = vld [vmem:[#allocation11 + $0xd0] sm:$0xf]
    %v3606 = vld [vmem:[#allocation11 + $0xd4] sm:$0xf]
    %v3607 = vld [vmem:[#allocation11 + $0xd8] sm:$0xf]
    %v3608 = vld [vmem:[#allocation11 + $0xdc] sm:$0xf]
    %v3609 = vld [vmem:[#allocation11 + $0xe0] sm:$0xf]
    %v3610 = vld [vmem:[#allocation11 + $0xe4] sm:$0xf]
    %v3611 = vld [vmem:[#allocation11 + $0xe8] sm:$0xf]
    %v3612 = vld [vmem:[#allocation11 + $0xec] sm:$0xf]
    %v3613 = vld [vmem:[#allocation11 + $0xf0] sm:$0xf]
    %v3614 = vld [vmem:[#allocation11 + $0xf4] sm:$0xf]
    %v3615 = vld [vmem:[#allocation11 + $0xf8] sm:$0xf]
    %v3616 = vld [vmem:[#allocation11 + $0xfc] sm:$0xf]
    %v3621 = vunpack.c.l.b16 %v3549
    %v3622 = vunpack.c.h.b16 %v3549
    %v3623 = vunpack.c.l.b16 %v3550
    %v3624 = vunpack.c.h.b16 %v3550
    %v3625 = vunpack.c.l.b16 %v3551
    %v3626 = vunpack.c.h.b16 %v3551
    %v3627 = vunpack.c.l.b16 %v3552
    %v3628 = vunpack.c.h.b16 %v3552
    %v3629 = vpack.c.b16 %v3625, %v3621
    %v3630 = vpack.c.b16 %v3626, %v3622
    %v3631 = vpack.c.b16 %v3627, %v3623
    %v3632 = vpack.c.b16 %v3628, %v3624
    %v3701 = vunpack.c.l.b16 %v3553
    %v3702 = vunpack.c.l.b16 %v3554
    %v3703 = vunpack.c.l.b16 %v3555
    %v3704 = vunpack.c.l.b16 %v3556
    %v3705 = vunpack.c.l.b16 %v3557
    %v3706 = vunpack.c.l.b16 %v3558
    %v3707 = vunpack.c.l.b16 %v3559
    %v3708 = vunpack.c.l.b16 %v3560
    %v3709 = vunpack.c.l.b16 %v3561
    %v3710 = vunpack.c.l.b16 %v3562
    %v3711 = vunpack.c.l.b16 %v3563
    %v3712 = vunpack.c.l.b16 %v3564
    %v3713 = vunpack.c.l.b16 %v3565
    %v3714 = vunpack.c.l.b16 %v3566
    %v3715 = vunpack.c.l.b16 %v3567
    %v3716 = vunpack.c.l.b16 %v3568
    %v3717 = vunpack.c.l.b16 %v3569
    %v3718 = vunpack.c.l.b16 %v3570
    %v3719 = vunpack.c.l.b16 %v3571
    %v3720 = vunpack.c.l.b16 %v3572
    %v3721 = vunpack.c.l.b16 %v3573
    %v3722 = vunpack.c.l.b16 %v3574
    %v3723 = vunpack.c.l.b16 %v3575
    %v3724 = vunpack.c.l.b16 %v3576
    %v3725 = vunpack.c.l.b16 %v3577
    %v3726 = vunpack.c.l.b16 %v3578
    %v3727 = vunpack.c.l.b16 %v3579
    %v3728 = vunpack.c.l.b16 %v3580
    %v3729 = vunpack.c.l.b16 %v3581
    %v3730 = vunpack.c.l.b16 %v3582
    %v3731 = vunpack.c.l.b16 %v3583
    %v3732 = vunpack.c.l.b16 %v3584
    %v3733 = vunpack.c.l.b16 %v3585
    %v3734 = vunpack.c.l.b16 %v3586
    %v3735 = vunpack.c.l.b16 %v3587
    %v3736 = vunpack.c.l.b16 %v3588
    %v3737 = vunpack.c.l.b16 %v3589
    %v3738 = vunpack.c.l.b16 %v3590
    %v3739 = vunpack.c.l.b16 %v3591
    %v3740 = vunpack.c.l.b16 %v3592
    %v3741 = vunpack.c.l.b16 %v3593
    %v3742 = vunpack.c.l.b16 %v3594
    %v3743 = vunpack.c.l.b16 %v3595
    %v3744 = vunpack.c.l.b16 %v3596
    %v3745 = vunpack.c.l.b16 %v3597
    %v3746 = vunpack.c.l.b16 %v3598
    %v3747 = vunpack.c.l.b16 %v3599
    %v3748 = vunpack.c.l.b16 %v3600
    %v3749 = vunpack.c.l.b16 %v3601
    %v3750 = vunpack.c.l.b16 %v3602
    %v3751 = vunpack.c.l.b16 %v3603
    %v3752 = vunpack.c.l.b16 %v3604
    %v3753 = vunpack.c.l.b16 %v3605
    %v3754 = vunpack.c.l.b16 %v3606
    %v3755 = vunpack.c.l.b16 %v3607
    %v3756 = vunpack.c.l.b16 %v3608
    %v3757 = vunpack.c.l.b16 %v3609
    %v3758 = vunpack.c.l.b16 %v3610
    %v3759 = vunpack.c.l.b16 %v3611
    %v3760 = vunpack.c.l.b16 %v3612
    %v3761 = vunpack.c.l.b16 %v3613
    %v3762 = vunpack.c.l.b16 %v3614
    %v3763 = vunpack.c.l.b16 %v3615
    %v3764 = vunpack.c.l.b16 %v3616
    %v3765 = vpack.c.b16 %v3702, %v3701
    %v3766 = vpack.c.b16 %v3704, %v3703
    %v3767 = vpack.c.b16 %v3706, %v3705
    %v3768 = vpack.c.b16 %v3708, %v3707
    %v3769 = vpack.c.b16 %v3710, %v3709
    %v3770 = vpack.c.b16 %v3712, %v3711
    %v3771 = vpack.c.b16 %v3714, %v3713
    %v3772 = vpack.c.b16 %v3716, %v3715
    %v3773 = vpack.c.b16 %v3718, %v3717
    %v3774 = vpack.c.b16 %v3720, %v3719
    %v3775 = vpack.c.b16 %v3722, %v3721
    %v3776 = vpack.c.b16 %v3724, %v3723
    %v3777 = vpack.c.b16 %v3726, %v3725
    %v3778 = vpack.c.b16 %v3728, %v3727
    %v3779 = vpack.c.b16 %v3730, %v3729
    %v3780 = vpack.c.b16 %v3732, %v3731
    %v3781 = vpack.c.b16 %v3734, %v3733
    %v3782 = vpack.c.b16 %v3736, %v3735
    %v3783 = vpack.c.b16 %v3738, %v3737
    %v3784 = vpack.c.b16 %v3740, %v3739
    %v3785 = vpack.c.b16 %v3742, %v3741
    %v3786 = vpack.c.b16 %v3744, %v3743
    %v3787 = vpack.c.b16 %v3746, %v3745
    %v3788 = vpack.c.b16 %v3748, %v3747
    %v3789 = vpack.c.b16 %v3750, %v3749
    %v3790 = vpack.c.b16 %v3752, %v3751
    %v3791 = vpack.c.b16 %v3754, %v3753
    %v3792 = vpack.c.b16 %v3756, %v3755
    %v3793 = vpack.c.b16 %v3758, %v3757
    %v3794 = vpack.c.b16 %v3760, %v3759
    %v3795 = vpack.c.b16 %v3762, %v3761
    %v3796 = vpack.c.b16 %v3764, %v3763
    %3829 = vmatprep.subr.bf16.mxu0 0
    %3830 = vmatpush1.bf16.msra.mxu0 %v3772
    %3831 = vmatprep.subr.bf16.mxu0 0
    %3832 = vmatpush1.bf16.msra.mxu0 %v3771
    %3833 = vmatprep.subr.bf16.mxu0 0
    %3834 = vmatpush1.bf16.msra.mxu0 %v3770
    %3835 = vmatprep.subr.bf16.mxu0 0
    %3836 = vmatpush1.bf16.msra.mxu0 %v3769
    %3837 = vmatprep.subr.bf16.mxu0 0
    %3838 = vmatpush1.bf16.msra.mxu0 %v3768
    %3839 = vmatprep.subr.bf16.mxu0 0
    %3840 = vmatpush1.bf16.msra.mxu0 %v3767
    %3841 = vmatprep.subr.bf16.mxu0 0
    %3842 = vmatpush1.bf16.msra.mxu0 %v3766
    %3843 = vmatprep.subr.bf16.mxu0 0
    %3844 = vmatpush1.bf16.msra.mxu0 %v3765
    %3845 = vmatprep.subr.bf16.mxu0 0
    %3846 = vmatpush2.bf16.msra.mxu0 %v3780
    %3847 = vmatprep.subr.bf16.mxu0 0
    %3848 = vmatpush2.bf16.msra.mxu0 %v3779
    %3849 = vmatprep.subr.bf16.mxu0 0
    %3850 = vmatpush2.bf16.msra.mxu0 %v3778
    %3851 = vmatprep.subr.bf16.mxu0 0
    %3852 = vmatpush2.bf16.msra.mxu0 %v3777
    %3853 = vmatprep.subr.bf16.mxu0 0
    %3854 = vmatpush2.bf16.msra.mxu0 %v3776
    %3855 = vmatprep.subr.bf16.mxu0 0
    %3856 = vmatpush2.bf16.msra.mxu0 %v3775
    %3857 = vmatprep.subr.bf16.mxu0 0
    %3858 = vmatpush2.bf16.msra.mxu0 %v3774
    %3859 = vmatprep.subr.bf16.mxu0 0
    %3860 = vmatpush2.bf16.msra.mxu0 %v3773
    %3861 = vmatprep.mubr.bf16.mxu0 %v3630
    %3862 = vmatmul.mubr.bf16.gmra.mxu0 %v3629
    %v3863 = vpop.f32.mrf.mxu0
    %v3864 = vadd.f32 %v3292, %v3863
    %v3865 = vpop.f32.mrf.mxu0
    %v3866 = vpop.f32.mrf.mxu0
    %v3867 = vadd.f32 %v3292, %v3866
    %v3868 = vpop.f32.mrf.mxu0
    %3869 = vdwg.mxu0
    %3870 = vmatprep.subr.bf16.mxu0 0
    %3871 = vmatpush1.bf16.msra.mxu0 %v3788
    %3872 = vmatprep.subr.bf16.mxu0 0
    %3873 = vmatpush1.bf16.msra.mxu0 %v3787
    %3874 = vmatprep.subr.bf16.mxu0 0
    %3875 = vmatpush1.bf16.msra.mxu0 %v3786
    %3876 = vmatprep.subr.bf16.mxu0 0
    %3877 = vmatpush1.bf16.msra.mxu0 %v3785
    %3878 = vmatprep.subr.bf16.mxu0 0
    %3879 = vmatpush1.bf16.msra.mxu0 %v3784
    %3880 = vmatprep.subr.bf16.mxu0 0
    %3881 = vmatpush1.bf16.msra.mxu0 %v3783
    %3882 = vmatprep.subr.bf16.mxu0 0
    %3883 = vmatpush1.bf16.msra.mxu0 %v3782
    %3884 = vmatprep.subr.bf16.mxu0 0
    %3885 = vmatpush1.bf16.msra.mxu0 %v3781
    %3886 = vmatprep.subr.bf16.mxu0 0
    %3887 = vmatpush2.bf16.msra.mxu0 %v3796
    %3888 = vmatprep.subr.bf16.mxu0 0
    %3889 = vmatpush2.bf16.msra.mxu0 %v3795
    %3890 = vmatprep.subr.bf16.mxu0 0
    %3891 = vmatpush2.bf16.msra.mxu0 %v3794
    %3892 = vmatprep.subr.bf16.mxu0 0
    %3893 = vmatpush2.bf16.msra.mxu0 %v3793
    %3894 = vmatprep.subr.bf16.mxu0 0
    %3895 = vmatpush2.bf16.msra.mxu0 %v3792
    %3896 = vmatprep.subr.bf16.mxu0 0
    %3897 = vmatpush2.bf16.msra.mxu0 %v3791
    %3898 = vmatprep.subr.bf16.mxu0 0
    %3899 = vmatpush2.bf16.msra.mxu0 %v3790
    %3900 = vmatprep.subr.bf16.mxu0 0
    %3901 = vmatpush2.bf16.msra.mxu0 %v3789
    %3902 = vmatprep.mubr.bf16.mxu0 %v3632
    %3903 = vmatmul.mubr.bf16.gmra.mxu0 %v3631
    %v3904 = vpop.f32.mrf.mxu0
    %v3905 = vadd.f32 %v3864, %v3904
    %v3906 = vpop.f32.mrf.mxu0
    %v3907 = vpop.f32.mrf.mxu0
    %v3908 = vadd.f32 %v3867, %v3907
    %v3909 = vpop.f32.mrf.mxu0
    %3910 = vdwg.mxu0
    %v3911 = vmul.f32 %v3905, %v3293
    %v3912 = vmul.f32 %v3908, %v3293
    %v3913 = vadd.f32 %v3911, %v3294
    %v3914 = vadd.f32 %v3912, %v3294
    %v3915 = vmax.f32 %v3913, 0.0
    %v3916 = vmax.f32 %v3914, 0.0
    %vm3917 = vcmask 523264
    %3918 = vst.msk [vmem:[#allocation2] sm:$0xff] %vm3917, 0.0
    %3919 = vst.msk [vmem:[#allocation2 + $0x10] sm:$0xff] %vm3917, 0.0
    %3920 = vst.msk [vmem:[#allocation2 + $0x8] sm:$0xff] %vm3917, %v3915
    %3921 = vst.msk [vmem:[#allocation2 + $0x18] sm:$0xff] %vm3917, 0.0
    %3922 = vst.msk [vmem:[#allocation2 + $0x28] sm:$0xff] %vm3917, 0.0
    %3923 = vst.msk [vmem:[#allocation2 + $0x20] sm:$0xff] %vm3917, %v3916
    %v3924 = vld [vmem:[#allocation2 + $0x1] sm:$0xff]
    %v3925 = vpack.c.bf16 %v3924, %v3924
    %vm3926 = vcmask 519168
    %3927 = vst.msk [vmem:[#allocation3] sm:$0xf] %vm3926, %v3925
    %v3928 = vld [vmem:[#allocation2 + $0x19] sm:$0xff]
    %v3929 = vpack.c.bf16 %v3928, %v3928
    %3930 = vst.msk [vmem:[#allocation3 + $0x20] sm:$0xf] %vm3926, %v3929
    %v3931 = vld [vmem:[#allocation2 + $0x2] sm:$0xff]
    %v3932 = vpack.c.bf16 %v3931, %v3931
    %v3934 = vunpack.c.l.b16 %v3932
    %v3935 = vpack.c.b16 %v3934, %v3934
    %3936 = vrot.lane.b32.xlu0 %v3935, 64
    %v3937 = vpop.permute.xlu0 %3936
    %vm3939 = vcmask 1043968
    %3940 = vst.msk [vmem:[#allocation3] sm:$0xf] %vm3939, %v3937
    %v3941 = vld [vmem:[#allocation2 + $0x1a] sm:$0xff]
    %v3942 = vpack.c.bf16 %v3941, %v3941
    %v3944 = vunpack.c.l.b16 %v3942
    %v3945 = vpack.c.b16 %v3944, %v3944
    %3946 = vrot.lane.b32.xlu0 %v3945, 64
    %v3947 = vpop.permute.xlu0 %3946
    %3949 = vst.msk [vmem:[#allocation3 + $0x20] sm:$0xf] %vm3939, %v3947
    %v3950 = vld [vmem:[#allocation2 + $0x3] sm:$0xff]
    %v3951 = vpack.c.bf16 %v3950, %v3950
    %3952 = vst.msk [vmem:[#allocation3 + $0x4] sm:$0xf] %vm3926, %v3951
    %v3953 = vld [vmem:[#allocation2 + $0x1b] sm:$0xff]
    %v3954 = vpack.c.bf16 %v3953, %v3953
    %3955 = vst.msk [vmem:[#allocation3 + $0x24] sm:$0xf] %vm3926, %v3954
    %v3956 = vld [vmem:[#allocation2 + $0x4] sm:$0xff]
    %v3957 = vpack.c.bf16 %v3956, %v3956
    %v3959 = vunpack.c.l.b16 %v3957
    %v3960 = vpack.c.b16 %v3959, %v3959
    %3961 = vrot.lane.b32.xlu0 %v3960, 64
    %v3962 = vpop.permute.xlu0 %3961
    %3964 = vst.msk [vmem:[#allocation3 + $0x4] sm:$0xf] %vm3939, %v3962
    %v3965 = vld [vmem:[#allocation2 + $0x1c] sm:$0xff]
    %v3966 = vpack.c.bf16 %v3965, %v3965
    %v3968 = vunpack.c.l.b16 %v3966
    %v3969 = vpack.c.b16 %v3968, %v3968
    %3970 = vrot.lane.b32.xlu0 %v3969, 64
    %v3971 = vpop.permute.xlu0 %3970
    %3973 = vst.msk [vmem:[#allocation3 + $0x24] sm:$0xf] %vm3939, %v3971
    %v3974 = vld [vmem:[#allocation2 + $0x5] sm:$0xff]
    %v3975 = vpack.c.bf16 %v3974, %v3974
    %3976 = vst.msk [vmem:[#allocation3 + $0x8] sm:$0xf] %vm3926, %v3975
    %v3977 = vld [vmem:[#allocation2 + $0x1d] sm:$0xff]
    %v3978 = vpack.c.bf16 %v3977, %v3977
    %3979 = vst.msk [vmem:[#allocation3 + $0x28] sm:$0xf] %vm3926, %v3978
    %v3980 = vld [vmem:[#allocation2 + $0x6] sm:$0xff]
    %v3981 = vpack.c.bf16 %v3980, %v3980
    %v3983 = vunpack.c.l.b16 %v3981
    %v3984 = vpack.c.b16 %v3983, %v3983
    %3985 = vrot.lane.b32.xlu0 %v3984, 64
    %v3986 = vpop.permute.xlu0 %3985
    %3988 = vst.msk [vmem:[#allocation3 + $0x8] sm:$0xf] %vm3939, %v3986
    %v3989 = vld [vmem:[#allocation2 + $0x1e] sm:$0xff]
    %v3990 = vpack.c.bf16 %v3989, %v3989
    %v3992 = vunpack.c.l.b16 %v3990
    %v3993 = vpack.c.b16 %v3992, %v3992
    %3994 = vrot.lane.b32.xlu0 %v3993, 64
    %v3995 = vpop.permute.xlu0 %3994
    %3997 = vst.msk [vmem:[#allocation3 + $0x28] sm:$0xf] %vm3939, %v3995
    %v3998 = vld [vmem:[#allocation2 + $0x7] sm:$0xff]
    %v3999 = vpack.c.bf16 %v3998, %v3998
    %4000 = vst.msk [vmem:[#allocation3 + $0xc] sm:$0xf] %vm3926, %v3999
    %v4001 = vld [vmem:[#allocation2 + $0x1f] sm:$0xff]
    %v4002 = vpack.c.bf16 %v4001, %v4001
    %4003 = vst.msk [vmem:[#allocation3 + $0x2c] sm:$0xf] %vm3926, %v4002
    %v4004 = vld [vmem:[#allocation2 + $0x8] sm:$0xff]
    %v4005 = vpack.c.bf16 %v4004, %v4004
    %v4007 = vunpack.c.l.b16 %v4005
    %v4008 = vpack.c.b16 %v4007, %v4007
    %4009 = vrot.lane.b32.xlu0 %v4008, 64
    %v4010 = vpop.permute.xlu0 %4009
    %4012 = vst.msk [vmem:[#allocation3 + $0xc] sm:$0xf] %vm3939, %v4010
    %v4013 = vld [vmem:[#allocation2 + $0x20] sm:$0xff]
    %v4014 = vpack.c.bf16 %v4013, %v4013
    %v4016 = vunpack.c.l.b16 %v4014
    %v4017 = vpack.c.b16 %v4016, %v4016
    %4018 = vrot.lane.b32.xlu0 %v4017, 64
    %v4019 = vpop.permute.xlu0 %4018
    %4021 = vst.msk [vmem:[#allocation3 + $0x2c] sm:$0xf] %vm3939, %v4019
    %v4022 = vld [vmem:[#allocation2 + $0x9] sm:$0xff]
    %v4023 = vpack.c.bf16 %v4022, %v4022
    %4024 = vst.msk [vmem:[#allocation3 + $0x10] sm:$0xf] %vm3926, %v4023
    %v4025 = vld [vmem:[#allocation2 + $0x21] sm:$0xff]
    %v4026 = vpack.c.bf16 %v4025, %v4025
    %4027 = vst.msk [vmem:[#allocation3 + $0x30] sm:$0xf] %vm3926, %v4026
    %v4028 = vld [vmem:[#allocation2 + $0xa] sm:$0xff]
    %v4029 = vpack.c.bf16 %v4028, %v4028
    %v4031 = vunpack.c.l.b16 %v4029
    %v4032 = vpack.c.b16 %v4031, %v4031
    %4033 = vrot.lane.b32.xlu0 %v4032, 64
    %v4034 = vpop.permute.xlu0 %4033
    %4036 = vst.msk [vmem:[#allocation3 + $0x10] sm:$0xf] %vm3939, %v4034
    %v4037 = vld [vmem:[#allocation2 + $0x22] sm:$0xff]
    %v4038 = vpack.c.bf16 %v4037, %v4037
    %v4040 = vunpack.c.l.b16 %v4038
    %v4041 = vpack.c.b16 %v4040, %v4040
    %4042 = vrot.lane.b32.xlu0 %v4041, 64
    %v4043 = vpop.permute.xlu0 %4042
    %4045 = vst.msk [vmem:[#allocation3 + $0x30] sm:$0xf] %vm3939, %v4043
    %v4046 = vld [vmem:[#allocation2 + $0xb] sm:$0xff]
    %v4047 = vpack.c.bf16 %v4046, %v4046
    %4048 = vst.msk [vmem:[#allocation3 + $0x14] sm:$0xf] %vm3926, %v4047
    %v4049 = vld [vmem:[#allocation2 + $0x23] sm:$0xff]
    %v4050 = vpack.c.bf16 %v4049, %v4049
    %4051 = vst.msk [vmem:[#allocation3 + $0x34] sm:$0xf] %vm3926, %v4050
    %v4052 = vld [vmem:[#allocation2 + $0xc] sm:$0xff]
    %v4053 = vpack.c.bf16 %v4052, %v4052
    %v4055 = vunpack.c.l.b16 %v4053
    %v4056 = vpack.c.b16 %v4055, %v4055
    %4057 = vrot.lane.b32.xlu0 %v4056, 64
    %v4058 = vpop.permute.xlu0 %4057
    %4060 = vst.msk [vmem:[#allocation3 + $0x14] sm:$0xf] %vm3939, %v4058
    %v4061 = vld [vmem:[#allocation2 + $0x24] sm:$0xff]
    %v4062 = vpack.c.bf16 %v4061, %v4061
    %v4064 = vunpack.c.l.b16 %v4062
    %v4065 = vpack.c.b16 %v4064, %v4064
    %4066 = vrot.lane.b32.xlu0 %v4065, 64
    %v4067 = vpop.permute.xlu0 %4066
    %4069 = vst.msk [vmem:[#allocation3 + $0x34] sm:$0xf] %vm3939, %v4067
    %v4070 = vld [vmem:[#allocation2 + $0xd] sm:$0xff]
    %v4071 = vpack.c.bf16 %v4070, %v4070
    %4072 = vst.msk [vmem:[#allocation3 + $0x18] sm:$0xf] %vm3926, %v4071
    %v4073 = vld [vmem:[#allocation2 + $0x25] sm:$0xff]
    %v4074 = vpack.c.bf16 %v4073, %v4073
    %4075 = vst.msk [vmem:[#allocation3 + $0x38] sm:$0xf] %vm3926, %v4074
    %v4076 = vld [vmem:[#allocation2 + $0xe] sm:$0xff]
    %v4077 = vpack.c.bf16 %v4076, %v4076
    %v4079 = vunpack.c.l.b16 %v4077
    %v4080 = vpack.c.b16 %v4079, %v4079
    %4081 = vrot.lane.b32.xlu0 %v4080, 64
    %v4082 = vpop.permute.xlu0 %4081
    %4084 = vst.msk [vmem:[#allocation3 + $0x18] sm:$0xf] %vm3939, %v4082
    %v4085 = vld [vmem:[#allocation2 + $0x26] sm:$0xff]
    %v4086 = vpack.c.bf16 %v4085, %v4085
    %v4088 = vunpack.c.l.b16 %v4086
    %v4089 = vpack.c.b16 %v4088, %v4088
    %4090 = vrot.lane.b32.xlu0 %v4089, 64
    %v4091 = vpop.permute.xlu0 %4090
    %4093 = vst.msk [vmem:[#allocation3 + $0x38] sm:$0xf] %vm3939, %v4091
    %v4094 = vld [vmem:[#allocation2 + $0xf] sm:$0xff]
    %v4095 = vpack.c.bf16 %v4094, %v4094
    %4096 = vst.msk [vmem:[#allocation3 + $0x1c] sm:$0xf] %vm3926, %v4095
    %v4097 = vld [vmem:[#allocation2 + $0x27] sm:$0xff]
    %v4098 = vpack.c.bf16 %v4097, %v4097
    %4099 = vst.msk [vmem:[#allocation3 + $0x3c] sm:$0xf] %vm3926, %v4098
    %v4100 = vld [vmem:[#allocation2 + $0x10] sm:$0xff]
    %v4101 = vpack.c.bf16 %v4100, %v4100
    %v4103 = vunpack.c.l.b16 %v4101
    %v4104 = vpack.c.b16 %v4103, %v4103
    %4105 = vrot.lane.b32.xlu0 %v4104, 64
    %v4106 = vpop.permute.xlu0 %4105
    %4108 = vst.msk [vmem:[#allocation3 + $0x1c] sm:$0xf] %vm3939, %v4106
    %v4109 = vld [vmem:[#allocation2 + $0x28] sm:$0xff]
    %v4110 = vpack.c.bf16 %v4109, %v4109
    %v4112 = vunpack.c.l.b16 %v4110
    %v4113 = vpack.c.b16 %v4112, %v4112
    %4114 = vrot.lane.b32.xlu0 %v4113, 64
    %v4115 = vpop.permute.xlu0 %4114
    %4117 = vst.msk [vmem:[#allocation3 + $0x3c] sm:$0xf] %vm3939, %v4115
    %v4118 = vld [vmem:[#allocation3] sm:$0xff]
    %v4119 = vld [vmem:[#allocation3 + $0x8] sm:$0xff]
    %v4120 = vld [vmem:[#allocation3 + $0x10] sm:$0xff]
    %v4121 = vld [vmem:[#allocation3 + $0x18] sm:$0xff]
    %v4122 = vld [vmem:[#allocation3 + $0x20] sm:$0xff]
    %v4123 = vld [vmem:[#allocation3 + $0x28] sm:$0xff]
    %v4124 = vld [vmem:[#allocation3 + $0x30] sm:$0xff]
    %v4125 = vld [vmem:[#allocation3 + $0x38] sm:$0xff]
    %v4126 = vld [vmem:[#allocation13] sm:$0xf]
    %v4127 = vld [vmem:[#allocation13 + $0x4] sm:$0xf]
    %v4128 = vld [vmem:[#allocation13 + $0x8] sm:$0xf]
    %v4129 = vld [vmem:[#allocation13 + $0xc] sm:$0xf]
    %v4130 = vld [vmem:[#allocation13 + $0x10] sm:$0xf]
    %v4131 = vld [vmem:[#allocation13 + $0x14] sm:$0xf]
    %v4132 = vld [vmem:[#allocation13 + $0x18] sm:$0xf]
    %v4133 = vld [vmem:[#allocation13 + $0x1c] sm:$0xf]
    %v4134 = vld [vmem:[#allocation13 + $0x20] sm:$0xf]
    %v4135 = vld [vmem:[#allocation13 + $0x24] sm:$0xf]
    %v4136 = vld [vmem:[#allocation13 + $0x28] sm:$0xf]
    %v4137 = vld [vmem:[#allocation13 + $0x2c] sm:$0xf]
    %v4138 = vld [vmem:[#allocation13 + $0x30] sm:$0xf]
    %v4139 = vld [vmem:[#allocation13 + $0x34] sm:$0xf]
    %v4140 = vld [vmem:[#allocation13 + $0x38] sm:$0xf]
    %v4141 = vld [vmem:[#allocation13 + $0x3c] sm:$0xf]
    %v4142 = vld [vmem:[#allocation13 + $0x40] sm:$0xf]
    %v4143 = vld [vmem:[#allocation13 + $0x44] sm:$0xf]
    %v4144 = vld [vmem:[#allocation13 + $0x48] sm:$0xf]
    %v4145 = vld [vmem:[#allocation13 + $0x4c] sm:$0xf]
    %v4146 = vld [vmem:[#allocation13 + $0x50] sm:$0xf]
    %v4147 = vld [vmem:[#allocation13 + $0x54] sm:$0xf]
    %v4148 = vld [vmem:[#allocation13 + $0x58] sm:$0xf]
    %v4149 = vld [vmem:[#allocation13 + $0x5c] sm:$0xf]
    %v4150 = vld [vmem:[#allocation13 + $0x60] sm:$0xf]
    %v4151 = vld [vmem:[#allocation13 + $0x64] sm:$0xf]
    %v4152 = vld [vmem:[#allocation13 + $0x68] sm:$0xf]
    %v4153 = vld [vmem:[#allocation13 + $0x6c] sm:$0xf]
    %v4154 = vld [vmem:[#allocation13 + $0x70] sm:$0xf]
    %v4155 = vld [vmem:[#allocation13 + $0x74] sm:$0xf]
    %v4156 = vld [vmem:[#allocation13 + $0x78] sm:$0xf]
    %v4157 = vld [vmem:[#allocation13 + $0x7c] sm:$0xf]
    %v4158 = vld [vmem:[#allocation13 + $0x80] sm:$0xf]
    %v4159 = vld [vmem:[#allocation13 + $0x84] sm:$0xf]
    %v4160 = vld [vmem:[#allocation13 + $0x88] sm:$0xf]
    %v4161 = vld [vmem:[#allocation13 + $0x8c] sm:$0xf]
    %v4162 = vld [vmem:[#allocation13 + $0x90] sm:$0xf]
    %v4163 = vld [vmem:[#allocation13 + $0x94] sm:$0xf]
    %v4164 = vld [vmem:[#allocation13 + $0x98] sm:$0xf]
    %v4165 = vld [vmem:[#allocation13 + $0x9c] sm:$0xf]
    %v4166 = vld [vmem:[#allocation13 + $0xa0] sm:$0xf]
    %v4167 = vld [vmem:[#allocation13 + $0xa4] sm:$0xf]
    %v4168 = vld [vmem:[#allocation13 + $0xa8] sm:$0xf]
    %v4169 = vld [vmem:[#allocation13 + $0xac] sm:$0xf]
    %v4170 = vld [vmem:[#allocation13 + $0xb0] sm:$0xf]
    %v4171 = vld [vmem:[#allocation13 + $0xb4] sm:$0xf]
    %v4172 = vld [vmem:[#allocation13 + $0xb8] sm:$0xf]
    %v4173 = vld [vmem:[#allocation13 + $0xbc] sm:$0xf]
    %v4174 = vld [vmem:[#allocation13 + $0xc0] sm:$0xf]
    %v4175 = vld [vmem:[#allocation13 + $0xc4] sm:$0xf]
    %v4176 = vld [vmem:[#allocation13 + $0xc8] sm:$0xf]
    %v4177 = vld [vmem:[#allocation13 + $0xcc] sm:$0xf]
    %v4178 = vld [vmem:[#allocation13 + $0xd0] sm:$0xf]
    %v4179 = vld [vmem:[#allocation13 + $0xd4] sm:$0xf]
    %v4180 = vld [vmem:[#allocation13 + $0xd8] sm:$0xf]
    %v4181 = vld [vmem:[#allocation13 + $0xdc] sm:$0xf]
    %v4182 = vld [vmem:[#allocation13 + $0xe0] sm:$0xf]
    %v4183 = vld [vmem:[#allocation13 + $0xe4] sm:$0xf]
    %v4184 = vld [vmem:[#allocation13 + $0xe8] sm:$0xf]
    %v4185 = vld [vmem:[#allocation13 + $0xec] sm:$0xf]
    %v4186 = vld [vmem:[#allocation13 + $0xf0] sm:$0xf]
    %v4187 = vld [vmem:[#allocation13 + $0xf4] sm:$0xf]
    %v4188 = vld [vmem:[#allocation13 + $0xf8] sm:$0xf]
    %v4189 = vld [vmem:[#allocation13 + $0xfc] sm:$0xf]
    %v4190 = vld [vmem:[#allocation13 + $0x100] sm:$0xf]
    %v4191 = vld [vmem:[#allocation13 + $0x104] sm:$0xf]
    %v4192 = vld [vmem:[#allocation13 + $0x108] sm:$0xf]
    %v4193 = vld [vmem:[#allocation13 + $0x10c] sm:$0xf]
    %v4194 = vld [vmem:[#allocation13 + $0x110] sm:$0xf]
    %v4195 = vld [vmem:[#allocation13 + $0x114] sm:$0xf]
    %v4196 = vld [vmem:[#allocation13 + $0x118] sm:$0xf]
    %v4197 = vld [vmem:[#allocation13 + $0x11c] sm:$0xf]
    %v4198 = vld [vmem:[#allocation13 + $0x120] sm:$0xf]
    %v4199 = vld [vmem:[#allocation13 + $0x124] sm:$0xf]
    %v4200 = vld [vmem:[#allocation13 + $0x128] sm:$0xf]
    %v4201 = vld [vmem:[#allocation13 + $0x12c] sm:$0xf]
    %v4202 = vld [vmem:[#allocation13 + $0x130] sm:$0xf]
    %v4203 = vld [vmem:[#allocation13 + $0x134] sm:$0xf]
    %v4204 = vld [vmem:[#allocation13 + $0x138] sm:$0xf]
    %v4205 = vld [vmem:[#allocation13 + $0x13c] sm:$0xf]
    %v4206 = vld [vmem:[#allocation13 + $0x140] sm:$0xf]
    %v4207 = vld [vmem:[#allocation13 + $0x144] sm:$0xf]
    %v4208 = vld [vmem:[#allocation13 + $0x148] sm:$0xf]
    %v4209 = vld [vmem:[#allocation13 + $0x14c] sm:$0xf]
    %v4210 = vld [vmem:[#allocation13 + $0x150] sm:$0xf]
    %v4211 = vld [vmem:[#allocation13 + $0x154] sm:$0xf]
    %v4212 = vld [vmem:[#allocation13 + $0x158] sm:$0xf]
    %v4213 = vld [vmem:[#allocation13 + $0x15c] sm:$0xf]
    %v4214 = vld [vmem:[#allocation13 + $0x160] sm:$0xf]
    %v4215 = vld [vmem:[#allocation13 + $0x164] sm:$0xf]
    %v4216 = vld [vmem:[#allocation13 + $0x168] sm:$0xf]
    %v4217 = vld [vmem:[#allocation13 + $0x16c] sm:$0xf]
    %v4218 = vld [vmem:[#allocation13 + $0x170] sm:$0xf]
    %v4219 = vld [vmem:[#allocation13 + $0x174] sm:$0xf]
    %v4220 = vld [vmem:[#allocation13 + $0x178] sm:$0xf]
    %v4221 = vld [vmem:[#allocation13 + $0x17c] sm:$0xf]
    %v4222 = vld [vmem:[#allocation13 + $0x180] sm:$0xf]
    %v4223 = vld [vmem:[#allocation13 + $0x184] sm:$0xf]
    %v4224 = vld [vmem:[#allocation13 + $0x188] sm:$0xf]
    %v4225 = vld [vmem:[#allocation13 + $0x18c] sm:$0xf]
    %v4226 = vld [vmem:[#allocation13 + $0x190] sm:$0xf]
    %v4227 = vld [vmem:[#allocation13 + $0x194] sm:$0xf]
    %v4228 = vld [vmem:[#allocation13 + $0x198] sm:$0xf]
    %v4229 = vld [vmem:[#allocation13 + $0x19c] sm:$0xf]
    %v4230 = vld [vmem:[#allocation13 + $0x1a0] sm:$0xf]
    %v4231 = vld [vmem:[#allocation13 + $0x1a4] sm:$0xf]
    %v4232 = vld [vmem:[#allocation13 + $0x1a8] sm:$0xf]
    %v4233 = vld [vmem:[#allocation13 + $0x1ac] sm:$0xf]
    %v4234 = vld [vmem:[#allocation13 + $0x1b0] sm:$0xf]
    %v4235 = vld [vmem:[#allocation13 + $0x1b4] sm:$0xf]
    %v4236 = vld [vmem:[#allocation13 + $0x1b8] sm:$0xf]
    %v4237 = vld [vmem:[#allocation13 + $0x1bc] sm:$0xf]
    %v4238 = vld [vmem:[#allocation13 + $0x1c0] sm:$0xf]
    %v4239 = vld [vmem:[#allocation13 + $0x1c4] sm:$0xf]
    %v4240 = vld [vmem:[#allocation13 + $0x1c8] sm:$0xf]
    %v4241 = vld [vmem:[#allocation13 + $0x1cc] sm:$0xf]
    %v4242 = vld [vmem:[#allocation13 + $0x1d0] sm:$0xf]
    %v4243 = vld [vmem:[#allocation13 + $0x1d4] sm:$0xf]
    %v4244 = vld [vmem:[#allocation13 + $0x1d8] sm:$0xf]
    %v4245 = vld [vmem:[#allocation13 + $0x1dc] sm:$0xf]
    %v4246 = vld [vmem:[#allocation13 + $0x1e0] sm:$0xf]
    %v4247 = vld [vmem:[#allocation13 + $0x1e4] sm:$0xf]
    %v4248 = vld [vmem:[#allocation13 + $0x1e8] sm:$0xf]
    %v4249 = vld [vmem:[#allocation13 + $0x1ec] sm:$0xf]
    %v4250 = vld [vmem:[#allocation13 + $0x1f0] sm:$0xf]
    %v4251 = vld [vmem:[#allocation13 + $0x1f4] sm:$0xf]
    %v4252 = vld [vmem:[#allocation13 + $0x1f8] sm:$0xf]
    %v4253 = vld [vmem:[#allocation13 + $0x1fc] sm:$0xf]
    %v4262 = vunpack.c.l.b16 %v4118
    %v4263 = vunpack.c.h.b16 %v4118
    %v4264 = vunpack.c.l.b16 %v4119
    %v4265 = vunpack.c.h.b16 %v4119
    %v4266 = vunpack.c.l.b16 %v4120
    %v4267 = vunpack.c.h.b16 %v4120
    %v4268 = vunpack.c.l.b16 %v4121
    %v4269 = vunpack.c.h.b16 %v4121
    %v4270 = vunpack.c.l.b16 %v4122
    %v4271 = vunpack.c.h.b16 %v4122
    %v4272 = vunpack.c.l.b16 %v4123
    %v4273 = vunpack.c.h.b16 %v4123
    %v4274 = vunpack.c.l.b16 %v4124
    %v4275 = vunpack.c.h.b16 %v4124
    %v4276 = vunpack.c.l.b16 %v4125
    %v4277 = vunpack.c.h.b16 %v4125
    %v4278 = vpack.c.b16 %v4270, %v4262
    %v4279 = vpack.c.b16 %v4271, %v4263
    %v4280 = vpack.c.b16 %v4272, %v4264
    %v4281 = vpack.c.b16 %v4273, %v4265
    %v4282 = vpack.c.b16 %v4274, %v4266
    %v4283 = vpack.c.b16 %v4275, %v4267
    %v4284 = vpack.c.b16 %v4276, %v4268
    %v4285 = vpack.c.b16 %v4277, %v4269
    %v4422 = vunpack.c.l.b16 %v4126
    %v4423 = vunpack.c.l.b16 %v4127
    %v4424 = vunpack.c.l.b16 %v4128
    %v4425 = vunpack.c.l.b16 %v4129
    %v4426 = vunpack.c.l.b16 %v4130
    %v4427 = vunpack.c.l.b16 %v4131
    %v4428 = vunpack.c.l.b16 %v4132
    %v4429 = vunpack.c.l.b16 %v4133
    %v4430 = vunpack.c.l.b16 %v4134
    %v4431 = vunpack.c.l.b16 %v4135
    %v4432 = vunpack.c.l.b16 %v4136
    %v4433 = vunpack.c.l.b16 %v4137
    %v4434 = vunpack.c.l.b16 %v4138
    %v4435 = vunpack.c.l.b16 %v4139
    %v4436 = vunpack.c.l.b16 %v4140
    %v4437 = vunpack.c.l.b16 %v4141
    %v4438 = vunpack.c.l.b16 %v4142
    %v4439 = vunpack.c.l.b16 %v4143
    %v4440 = vunpack.c.l.b16 %v4144
    %v4441 = vunpack.c.l.b16 %v4145
    %v4442 = vunpack.c.l.b16 %v4146
    %v4443 = vunpack.c.l.b16 %v4147
    %v4444 = vunpack.c.l.b16 %v4148
    %v4445 = vunpack.c.l.b16 %v4149
    %v4446 = vunpack.c.l.b16 %v4150
    %v4447 = vunpack.c.l.b16 %v4151
    %v4448 = vunpack.c.l.b16 %v4152
    %v4449 = vunpack.c.l.b16 %v4153
    %v4450 = vunpack.c.l.b16 %v4154
    %v4451 = vunpack.c.l.b16 %v4155
    %v4452 = vunpack.c.l.b16 %v4156
    %v4453 = vunpack.c.l.b16 %v4157
    %v4454 = vunpack.c.l.b16 %v4158
    %v4455 = vunpack.c.l.b16 %v4159
    %v4456 = vunpack.c.l.b16 %v4160
    %v4457 = vunpack.c.l.b16 %v4161
    %v4458 = vunpack.c.l.b16 %v4162
    %v4459 = vunpack.c.l.b16 %v4163
    %v4460 = vunpack.c.l.b16 %v4164
    %v4461 = vunpack.c.l.b16 %v4165
    %v4462 = vunpack.c.l.b16 %v4166
    %v4463 = vunpack.c.l.b16 %v4167
    %v4464 = vunpack.c.l.b16 %v4168
    %v4465 = vunpack.c.l.b16 %v4169
    %v4466 = vunpack.c.l.b16 %v4170
    %v4467 = vunpack.c.l.b16 %v4171
    %v4468 = vunpack.c.l.b16 %v4172
    %v4469 = vunpack.c.l.b16 %v4173
    %v4470 = vunpack.c.l.b16 %v4174
    %v4471 = vunpack.c.l.b16 %v4175
    %v4472 = vunpack.c.l.b16 %v4176
    %v4473 = vunpack.c.l.b16 %v4177
    %v4474 = vunpack.c.l.b16 %v4178
    %v4475 = vunpack.c.l.b16 %v4179
    %v4476 = vunpack.c.l.b16 %v4180
    %v4477 = vunpack.c.l.b16 %v4181
    %v4478 = vunpack.c.l.b16 %v4182
    %v4479 = vunpack.c.l.b16 %v4183
    %v4480 = vunpack.c.l.b16 %v4184
    %v4481 = vunpack.c.l.b16 %v4185
    %v4482 = vunpack.c.l.b16 %v4186
    %v4483 = vunpack.c.l.b16 %v4187
    %v4484 = vunpack.c.l.b16 %v4188
    %v4485 = vunpack.c.l.b16 %v4189
    %v4486 = vunpack.c.l.b16 %v4190
    %v4487 = vunpack.c.l.b16 %v4191
    %v4488 = vunpack.c.l.b16 %v4192
    %v4489 = vunpack.c.l.b16 %v4193
    %v4490 = vunpack.c.l.b16 %v4194
    %v4491 = vunpack.c.l.b16 %v4195
    %v4492 = vunpack.c.l.b16 %v4196
    %v4493 = vunpack.c.l.b16 %v4197
    %v4494 = vunpack.c.l.b16 %v4198
    %v4495 = vunpack.c.l.b16 %v4199
    %v4496 = vunpack.c.l.b16 %v4200
    %v4497 = vunpack.c.l.b16 %v4201
    %v4498 = vunpack.c.l.b16 %v4202
    %v4499 = vunpack.c.l.b16 %v4203
    %v4500 = vunpack.c.l.b16 %v4204
    %v4501 = vunpack.c.l.b16 %v4205
    %v4502 = vunpack.c.l.b16 %v4206
    %v4503 = vunpack.c.l.b16 %v4207
    %v4504 = vunpack.c.l.b16 %v4208
    %v4505 = vunpack.c.l.b16 %v4209
    %v4506 = vunpack.c.l.b16 %v4210
    %v4507 = vunpack.c.l.b16 %v4211
    %v4508 = vunpack.c.l.b16 %v4212
    %v4509 = vunpack.c.l.b16 %v4213
    %v4510 = vunpack.c.l.b16 %v4214
    %v4511 = vunpack.c.l.b16 %v4215
    %v4512 = vunpack.c.l.b16 %v4216
    %v4513 = vunpack.c.l.b16 %v4217
    %v4514 = vunpack.c.l.b16 %v4218
    %v4515 = vunpack.c.l.b16 %v4219
    %v4516 = vunpack.c.l.b16 %v4220
    %v4517 = vunpack.c.l.b16 %v4221
    %v4518 = vunpack.c.l.b16 %v4222
    %v4519 = vunpack.c.l.b16 %v4223
    %v4520 = vunpack.c.l.b16 %v4224
    %v4521 = vunpack.c.l.b16 %v4225
    %v4522 = vunpack.c.l.b16 %v4226
    %v4523 = vunpack.c.l.b16 %v4227
    %v4524 = vunpack.c.l.b16 %v4228
    %v4525 = vunpack.c.l.b16 %v4229
    %v4526 = vunpack.c.l.b16 %v4230
    %v4527 = vunpack.c.l.b16 %v4231
    %v4528 = vunpack.c.l.b16 %v4232
    %v4529 = vunpack.c.l.b16 %v4233
    %v4530 = vunpack.c.l.b16 %v4234
    %v4531 = vunpack.c.l.b16 %v4235
    %v4532 = vunpack.c.l.b16 %v4236
    %v4533 = vunpack.c.l.b16 %v4237
    %v4534 = vunpack.c.l.b16 %v4238
    %v4535 = vunpack.c.l.b16 %v4239
    %v4536 = vunpack.c.l.b16 %v4240
    %v4537 = vunpack.c.l.b16 %v4241
    %v4538 = vunpack.c.l.b16 %v4242
    %v4539 = vunpack.c.l.b16 %v4243
    %v4540 = vunpack.c.l.b16 %v4244
    %v4541 = vunpack.c.l.b16 %v4245
    %v4542 = vunpack.c.l.b16 %v4246
    %v4543 = vunpack.c.l.b16 %v4247
    %v4544 = vunpack.c.l.b16 %v4248
    %v4545 = vunpack.c.l.b16 %v4249
    %v4546 = vunpack.c.l.b16 %v4250
    %v4547 = vunpack.c.l.b16 %v4251
    %v4548 = vunpack.c.l.b16 %v4252
    %v4549 = vunpack.c.l.b16 %v4253
    %v4550 = vpack.c.b16 %v4423, %v4422
    %v4551 = vpack.c.b16 %v4425, %v4424
    %v4552 = vpack.c.b16 %v4427, %v4426
    %v4553 = vpack.c.b16 %v4429, %v4428
    %v4554 = vpack.c.b16 %v4431, %v4430
    %v4555 = vpack.c.b16 %v4433, %v4432
    %v4556 = vpack.c.b16 %v4435, %v4434
    %v4557 = vpack.c.b16 %v4437, %v4436
    %v4558 = vpack.c.b16 %v4439, %v4438
    %v4559 = vpack.c.b16 %v4441, %v4440
    %v4560 = vpack.c.b16 %v4443, %v4442
    %v4561 = vpack.c.b16 %v4445, %v4444
    %v4562 = vpack.c.b16 %v4447, %v4446
    %v4563 = vpack.c.b16 %v4449, %v4448
    %v4564 = vpack.c.b16 %v4451, %v4450
    %v4565 = vpack.c.b16 %v4453, %v4452
    %v4566 = vpack.c.b16 %v4455, %v4454
    %v4567 = vpack.c.b16 %v4457, %v4456
    %v4568 = vpack.c.b16 %v4459, %v4458
    %v4569 = vpack.c.b16 %v4461, %v4460
    %v4570 = vpack.c.b16 %v4463, %v4462
    %v4571 = vpack.c.b16 %v4465, %v4464
    %v4572 = vpack.c.b16 %v4467, %v4466
    %v4573 = vpack.c.b16 %v4469, %v4468
    %v4574 = vpack.c.b16 %v4471, %v4470
    %v4575 = vpack.c.b16 %v4473, %v4472
    %v4576 = vpack.c.b16 %v4475, %v4474
    %v4577 = vpack.c.b16 %v4477, %v4476
    %v4578 = vpack.c.b16 %v4479, %v4478
    %v4579 = vpack.c.b16 %v4481, %v4480
    %v4580 = vpack.c.b16 %v4483, %v4482
    %v4581 = vpack.c.b16 %v4485, %v4484
    %v4582 = vpack.c.b16 %v4487, %v4486
    %v4583 = vpack.c.b16 %v4489, %v4488
    %v4584 = vpack.c.b16 %v4491, %v4490
    %v4585 = vpack.c.b16 %v4493, %v4492
    %v4586 = vpack.c.b16 %v4495, %v4494
    %v4587 = vpack.c.b16 %v4497, %v4496
    %v4588 = vpack.c.b16 %v4499, %v4498
    %v4589 = vpack.c.b16 %v4501, %v4500
    %v4590 = vpack.c.b16 %v4503, %v4502
    %v4591 = vpack.c.b16 %v4505, %v4504
    %v4592 = vpack.c.b16 %v4507, %v4506
    %v4593 = vpack.c.b16 %v4509, %v4508
    %v4594 = vpack.c.b16 %v4511, %v4510
    %v4595 = vpack.c.b16 %v4513, %v4512
    %v4596 = vpack.c.b16 %v4515, %v4514
    %v4597 = vpack.c.b16 %v4517, %v4516
    %v4598 = vpack.c.b16 %v4519, %v4518
    %v4599 = vpack.c.b16 %v4521, %v4520
    %v4600 = vpack.c.b16 %v4523, %v4522
    %v4601 = vpack.c.b16 %v4525, %v4524
    %v4602 = vpack.c.b16 %v4527, %v4526
    %v4603 = vpack.c.b16 %v4529, %v4528
    %v4604 = vpack.c.b16 %v4531, %v4530
    %v4605 = vpack.c.b16 %v4533, %v4532
    %v4606 = vpack.c.b16 %v4535, %v4534
    %v4607 = vpack.c.b16 %v4537, %v4536
    %v4608 = vpack.c.b16 %v4539, %v4538
    %v4609 = vpack.c.b16 %v4541, %v4540
    %v4610 = vpack.c.b16 %v4543, %v4542
    %v4611 = vpack.c.b16 %v4545, %v4544
    %v4612 = vpack.c.b16 %v4547, %v4546
    %v4613 = vpack.c.b16 %v4549, %v4548
    %4678 = vmatprep.subr.bf16.mxu0 0
    %4679 = vmatpush1.bf16.msra.mxu0 %v4557
    %4680 = vmatprep.subr.bf16.mxu0 0
    %4681 = vmatpush1.bf16.msra.mxu0 %v4556
    %4682 = vmatprep.subr.bf16.mxu0 0
    %4683 = vmatpush1.bf16.msra.mxu0 %v4555
    %4684 = vmatprep.subr.bf16.mxu0 0
    %4685 = vmatpush1.bf16.msra.mxu0 %v4554
    %4686 = vmatprep.subr.bf16.mxu0 0
    %4687 = vmatpush1.bf16.msra.mxu0 %v4553
    %4688 = vmatprep.subr.bf16.mxu0 0
    %4689 = vmatpush1.bf16.msra.mxu0 %v4552
    %4690 = vmatprep.subr.bf16.mxu0 0
    %4691 = vmatpush1.bf16.msra.mxu0 %v4551
    %4692 = vmatprep.subr.bf16.mxu0 0
    %4693 = vmatpush1.bf16.msra.mxu0 %v4550
    %4694 = vmatprep.subr.bf16.mxu0 0
    %4695 = vmatpush2.bf16.msra.mxu0 %v4565
    %4696 = vmatprep.subr.bf16.mxu0 0
    %4697 = vmatpush2.bf16.msra.mxu0 %v4564
    %4698 = vmatprep.subr.bf16.mxu0 0
    %4699 = vmatpush2.bf16.msra.mxu0 %v4563
    %4700 = vmatprep.subr.bf16.mxu0 0
    %4701 = vmatpush2.bf16.msra.mxu0 %v4562
    %4702 = vmatprep.subr.bf16.mxu0 0
    %4703 = vmatpush2.bf16.msra.mxu0 %v4561
    %4704 = vmatprep.subr.bf16.mxu0 0
    %4705 = vmatpush2.bf16.msra.mxu0 %v4560
    %4706 = vmatprep.subr.bf16.mxu0 0
    %4707 = vmatpush2.bf16.msra.mxu0 %v4559
    %4708 = vmatprep.subr.bf16.mxu0 0
    %4709 = vmatpush2.bf16.msra.mxu0 %v4558
    %4710 = vmatprep.mubr.bf16.mxu0 %v4279
    %4711 = vmatmul.mubr.bf16.gmra.mxu0 %v4278
    %v4712 = vpop.f32.mrf.mxu0
    %v4713 = vadd.f32 %v3295, %v4712
    %v4714 = vpop.f32.mrf.mxu0
    %v4715 = vpop.f32.mrf.mxu0
    %v4716 = vadd.f32 %v3295, %v4715
    %v4717 = vpop.f32.mrf.mxu0
    %4718 = vdwg.mxu0
    %4719 = vmatprep.subr.bf16.mxu0 0
    %4720 = vmatpush1.bf16.msra.mxu0 %v4573
    %4721 = vmatprep.subr.bf16.mxu0 0
    %4722 = vmatpush1.bf16.msra.mxu0 %v4572
    %4723 = vmatprep.subr.bf16.mxu0 0
    %4724 = vmatpush1.bf16.msra.mxu0 %v4571
    %4725 = vmatprep.subr.bf16.mxu0 0
    %4726 = vmatpush1.bf16.msra.mxu0 %v4570
    %4727 = vmatprep.subr.bf16.mxu0 0
    %4728 = vmatpush1.bf16.msra.mxu0 %v4569
    %4729 = vmatprep.subr.bf16.mxu0 0
    %4730 = vmatpush1.bf16.msra.mxu0 %v4568
    %4731 = vmatprep.subr.bf16.mxu0 0
    %4732 = vmatpush1.bf16.msra.mxu0 %v4567
    %4733 = vmatprep.subr.bf16.mxu0 0
    %4734 = vmatpush1.bf16.msra.mxu0 %v4566
    %4735 = vmatprep.subr.bf16.mxu0 0
    %4736 = vmatpush2.bf16.msra.mxu0 %v4581
    %4737 = vmatprep.subr.bf16.mxu0 0
    %4738 = vmatpush2.bf16.msra.mxu0 %v4580
    %4739 = vmatprep.subr.bf16.mxu0 0
    %4740 = vmatpush2.bf16.msra.mxu0 %v4579
    %4741 = vmatprep.subr.bf16.mxu0 0
    %4742 = vmatpush2.bf16.msra.mxu0 %v4578
    %4743 = vmatprep.subr.bf16.mxu0 0
    %4744 = vmatpush2.bf16.msra.mxu0 %v4577
    %4745 = vmatprep.subr.bf16.mxu0 0
    %4746 = vmatpush2.bf16.msra.mxu0 %v4576
    %4747 = vmatprep.subr.bf16.mxu0 0
    %4748 = vmatpush2.bf16.msra.mxu0 %v4575
    %4749 = vmatprep.subr.bf16.mxu0 0
    %4750 = vmatpush2.bf16.msra.mxu0 %v4574
    %4751 = vmatprep.mubr.bf16.mxu0 %v4281
    %4752 = vmatmul.mubr.bf16.gmra.mxu0 %v4280
    %v4753 = vpop.f32.mrf.mxu0
    %v4754 = vadd.f32 %v4713, %v4753
    %v4755 = vpop.f32.mrf.mxu0
    %v4756 = vpop.f32.mrf.mxu0
    %v4757 = vadd.f32 %v4716, %v4756
    %v4758 = vpop.f32.mrf.mxu0
    %4759 = vdwg.mxu0
    %4760 = vmatprep.subr.bf16.mxu0 0
    %4761 = vmatpush1.bf16.msra.mxu0 %v4589
    %4762 = vmatprep.subr.bf16.mxu0 0
    %4763 = vmatpush1.bf16.msra.mxu0 %v4588
    %4764 = vmatprep.subr.bf16.mxu0 0
    %4765 = vmatpush1.bf16.msra.mxu0 %v4587
    %4766 = vmatprep.subr.bf16.mxu0 0
    %4767 = vmatpush1.bf16.msra.mxu0 %v4586
    %4768 = vmatprep.subr.bf16.mxu0 0
    %4769 = vmatpush1.bf16.msra.mxu0 %v4585
    %4770 = vmatprep.subr.bf16.mxu0 0
    %4771 = vmatpush1.bf16.msra.mxu0 %v4584
    %4772 = vmatprep.subr.bf16.mxu0 0
    %4773 = vmatpush1.bf16.msra.mxu0 %v4583
    %4774 = vmatprep.subr.bf16.mxu0 0
    %4775 = vmatpush1.bf16.msra.mxu0 %v4582
    %4776 = vmatprep.subr.bf16.mxu0 0
    %4777 = vmatpush2.bf16.msra.mxu0 %v4597
    %4778 = vmatprep.subr.bf16.mxu0 0
    %4779 = vmatpush2.bf16.msra.mxu0 %v4596
    %4780 = vmatprep.subr.bf16.mxu0 0
    %4781 = vmatpush2.bf16.msra.mxu0 %v4595
    %4782 = vmatprep.subr.bf16.mxu0 0
    %4783 = vmatpush2.bf16.msra.mxu0 %v4594
    %4784 = vmatprep.subr.bf16.mxu0 0
    %4785 = vmatpush2.bf16.msra.mxu0 %v4593
    %4786 = vmatprep.subr.bf16.mxu0 0
    %4787 = vmatpush2.bf16.msra.mxu0 %v4592
    %4788 = vmatprep.subr.bf16.mxu0 0
    %4789 = vmatpush2.bf16.msra.mxu0 %v4591
    %4790 = vmatprep.subr.bf16.mxu0 0
    %4791 = vmatpush2.bf16.msra.mxu0 %v4590
    %4792 = vmatprep.mubr.bf16.mxu0 %v4283
    %4793 = vmatmul.mubr.bf16.gmra.mxu0 %v4282
    %v4794 = vpop.f32.mrf.mxu0
    %v4795 = vadd.f32 %v4754, %v4794
    %v4796 = vpop.f32.mrf.mxu0
    %v4797 = vpop.f32.mrf.mxu0
    %v4798 = vadd.f32 %v4757, %v4797
    %v4799 = vpop.f32.mrf.mxu0
    %4800 = vdwg.mxu0
    %4801 = vmatprep.subr.bf16.mxu0 0
    %4802 = vmatpush1.bf16.msra.mxu0 %v4605
    %4803 = vmatprep.subr.bf16.mxu0 0
    %4804 = vmatpush1.bf16.msra.mxu0 %v4604
    %4805 = vmatprep.subr.bf16.mxu0 0
    %4806 = vmatpush1.bf16.msra.mxu0 %v4603
    %4807 = vmatprep.subr.bf16.mxu0 0
    %4808 = vmatpush1.bf16.msra.mxu0 %v4602
    %4809 = vmatprep.subr.bf16.mxu0 0
    %4810 = vmatpush1.bf16.msra.mxu0 %v4601
    %4811 = vmatprep.subr.bf16.mxu0 0
    %4812 = vmatpush1.bf16.msra.mxu0 %v4600
    %4813 = vmatprep.subr.bf16.mxu0 0
    %4814 = vmatpush1.bf16.msra.mxu0 %v4599
    %4815 = vmatprep.subr.bf16.mxu0 0
    %4816 = vmatpush1.bf16.msra.mxu0 %v4598
    %4817 = vmatprep.subr.bf16.mxu0 0
    %4818 = vmatpush2.bf16.msra.mxu0 %v4613
    %4819 = vmatprep.subr.bf16.mxu0 0
    %4820 = vmatpush2.bf16.msra.mxu0 %v4612
    %4821 = vmatprep.subr.bf16.mxu0 0
    %4822 = vmatpush2.bf16.msra.mxu0 %v4611
    %4823 = vmatprep.subr.bf16.mxu0 0
    %4824 = vmatpush2.bf16.msra.mxu0 %v4610
    %4825 = vmatprep.subr.bf16.mxu0 0
    %4826 = vmatpush2.bf16.msra.mxu0 %v4609
    %4827 = vmatprep.subr.bf16.mxu0 0
    %4828 = vmatpush2.bf16.msra.mxu0 %v4608
    %4829 = vmatprep.subr.bf16.mxu0 0
    %4830 = vmatpush2.bf16.msra.mxu0 %v4607
    %4831 = vmatprep.subr.bf16.mxu0 0
    %4832 = vmatpush2.bf16.msra.mxu0 %v4606
    %4833 = vmatprep.mubr.bf16.mxu0 %v4285
    %4834 = vmatmul.mubr.bf16.gmra.mxu0 %v4284
    %v4835 = vpop.f32.mrf.mxu0
    %v4836 = vadd.f32 %v4795, %v4835
    %v4837 = vpop.f32.mrf.mxu0
    %v4838 = vpop.f32.mrf.mxu0
    %v4839 = vadd.f32 %v4798, %v4838
    %v4840 = vpop.f32.mrf.mxu0
    %4841 = vdwg.mxu0
    %v4842 = vpack.c.bf16 %v3289, %v3288
    %v4843 = vld [vmem:[%s9] sm:$0xf]
    %v4844 = vld [vmem:[%s9 + $0x4] sm:$0xf]
    %v4845 = vld [vmem:[%s9 + $0x8] sm:$0xf]
    %v4846 = vld [vmem:[%s9 + $0xc] sm:$0xf]
    %v4851 = vunpack.c.l.b16 %v4843
    %v4852 = vunpack.c.l.b16 %v4844
    %v4853 = vunpack.c.l.b16 %v4845
    %v4854 = vunpack.c.l.b16 %v4846
    %v4855 = vpack.c.b16 %v4852, %v4851
    %v4856 = vpack.c.b16 %v4854, %v4853
    %v4860 = vsel %vm1426, %v4842, 0
    %4862 = vmatprep.subr.bf16.mxu0 0
    %4863 = vmatpush1.bf16.msra.mxu0 0
    %4864 = vmatprep.subr.bf16.mxu0 0
    %4865 = vmatpush1.bf16.msra.mxu0 0
    %4866 = vmatprep.subr.bf16.mxu0 0
    %4867 = vmatpush1.bf16.msra.mxu0 0
    %4868 = vmatprep.subr.bf16.mxu0 0
    %4869 = vmatpush1.bf16.msra.mxu0 0
    %4870 = vmatprep.subr.bf16.mxu0 0
    %4871 = vmatpush1.bf16.msra.mxu0 0
    %4872 = vmatprep.subr.bf16.mxu0 0
    %4873 = vmatpush1.bf16.msra.mxu0 0
    %4874 = vmatprep.subr.bf16.mxu0 0
    %4875 = vmatpush1.bf16.msra.mxu0 %v4856
    %4876 = vmatprep.subr.bf16.mxu0 0
    %4877 = vmatpush1.bf16.msra.mxu0 %v4855
    %4878 = vmatprep.subr.bf16.mxu0 0
    %4879 = vmatpush2.bf16.msra.mxu0 0
    %4880 = vmatprep.subr.bf16.mxu0 0
    %4881 = vmatpush2.bf16.msra.mxu0 0
    %4882 = vmatprep.subr.bf16.mxu0 0
    %4883 = vmatpush2.bf16.msra.mxu0 0
    %4884 = vmatprep.subr.bf16.mxu0 0
    %4885 = vmatpush2.bf16.msra.mxu0 0
    %4886 = vmatprep.subr.bf16.mxu0 0
    %4887 = vmatpush2.bf16.msra.mxu0 0
    %4888 = vmatprep.subr.bf16.mxu0 0
    %4889 = vmatpush2.bf16.msra.mxu0 0
    %4890 = vmatprep.subr.bf16.mxu0 0
    %4891 = vmatpush2.bf16.msra.mxu0 0
    %4892 = vmatprep.subr.bf16.mxu0 0
    %4893 = vmatpush2.bf16.msra.mxu0 0
    %4894 = vmatprep.mubr.bf16.mxu0 0
    %4895 = vmatmul.mubr.bf16.gmra.mxu0 %v4860
    %v4896 = vpop.f32.mrf.mxu0
    %v4897 = vadd.f32 %v3296, %v4896
    %v4898 = vpop.f32.mrf.mxu0
    %v4899 = vpop.f32.mrf.mxu0
    %v4900 = vadd.f32 %v3296, %v4899
    %v4901 = vpop.f32.mrf.mxu0
    %4902 = vdwg.mxu0
    %v4903 = vadd.f32 %v4836, %v4897
    %v4904 = vadd.f32 %v4839, %v4900
    %v4905 = vmax.f32 %v4903, 0.0
    %v4906 = vmax.f32 %v4904, 0.0
    %4907 = vst.msk [vmem:[#allocation4] sm:$0xff] %vm3917, %v4905
    %4908 = vst.msk [vmem:[#allocation4 + $0x8] sm:$0xff] %vm3917, %v4906
    %v4909 = vld [vmem:[#allocation4] ss:$2 sm:$0xff]
    %v4910 = vld [vmem:[%s3284] ss:$2 sm:$0xff]
    %v4911 = vmax.f32 %v4909, %v4910
    %v4912 = vld [vmem:[#allocation5 + $0x16] ss:$0 sm:$0xff]
    %v4913 = vld [vmem:[#allocation5 + $0x17] ss:$0 sm:$0xff]
    %v4914 = vld [vmem:[#allocation5 + $0x20] ss:$0 sm:$0xff]
    %v4915 = vld [vmem:[#allocation5 + $0x21] ss:$0 sm:$0xff]
    %v4916 = vld [vmem:[#allocation5 + $0x22] ss:$0 sm:$0xff]
    %v4917 = vld [vmem:[#allocation5 + $0x23] ss:$0 sm:$0xff]
    %v4918 = vld [vmem:[#allocation5 + $0x24] ss:$0 sm:$0xff]
    %v4919 = vmul.f32 %v4911, %v4912
    %v4920 = vadd.f32 %v4919, %v4913
    %v4921 = vmax.f32 %v4920, 0.0
    %4922 = vst.msk [vmem:[#allocation2] sm:$0xff] %vm3917, 0.0
    %4923 = vst.msk [vmem:[#allocation2 + $0xc] sm:$0xf] %vm3926, 0.0
    %4924 = vst.msk [vmem:[#allocation2 + $0x8] sm:$0xf] %vm3926, %v4921
    %4925 = vst.msk [vmem:[#allocation2 + $0x10] sm:$0xff] %vm3917, 0.0
    %4926 = vst.msk [vmem:[#allocation2 + $0x1c] sm:$0xf] %vm3926, 0.0
    %vm4927 = vcmask 523268
    %4928 = vst.msk [vmem:[#allocation2 + $0x14] sm:$0xf0] %vm4927, %v4921
    %v4929 = vld [vmem:[#allocation2 + $0x5] sm:$0xf]
    %v4930 = vpack.c.bf16 %v4929, %v4929
    %vm4931 = vcmask 517120
    %4932 = vst.msk [vmem:[#allocation3] sm:$0x3] %vm4931, %v4930
    %v4933 = vld [vmem:[#allocation2 + $0x15] sm:$0xf]
    %v4934 = vpack.c.bf16 %v4933, %v4933
    %v4936 = vunpack.c.l.b16 %v4934
    %v4937 = vpack.c.b16 %v4936, %v4936
    %v4938 = vrot.slane %v4937, 6
    %vm4940 = vcmask 519170
    %4941 = vst.msk [vmem:[#allocation3] sm:$0xc] %vm4940, %v4938
    %v4942 = vld [vmem:[#allocation2 + $0x6] sm:$0xf]
    %v4943 = vpack.c.bf16 %v4942, %v4942
    %v4945 = vunpack.c.l.b16 %v4943
    %v4946 = vpack.c.b16 %v4945, %v4945
    %4947 = vrot.lane.b32.xlu0 %v4946, 64
    %v4948 = vpop.permute.xlu0 %4947
    %vm4950 = vcmask 1041920
    %4951 = vst.msk [vmem:[#allocation3] sm:$0x3] %vm4950, %v4948
    %v4952 = vld [vmem:[#allocation2 + $0x16] sm:$0xf]
    %v4953 = vpack.c.bf16 %v4952, %v4952
    %v4955 = vunpack.c.l.b16 %v4953
    %v4956 = vpack.c.b16 %v4955, %v4955
    %v4957 = vrot.slane %v4956, 6
    %4958 = vrot.lane.b32.xlu0 %v4957, 64
    %v4959 = vpop.permute.xlu0 %4958
    %vm4961 = vcmask 1043970
    %4962 = vst.msk [vmem:[#allocation3] sm:$0xc] %vm4961, %v4959
    %v4963 = vld [vmem:[#allocation2 + $0x7] sm:$0xf]
    %v4964 = vpack.c.bf16 %v4963, %v4963
    %4965 = vst.msk [vmem:[#allocation3 + $0x4] sm:$0x3] %vm4931, %v4964
    %v4966 = vld [vmem:[#allocation2 + $0x17] sm:$0xf]
    %v4967 = vpack.c.bf16 %v4966, %v4966
    %v4969 = vunpack.c.l.b16 %v4967
    %v4970 = vpack.c.b16 %v4969, %v4969
    %v4971 = vrot.slane %v4970, 6
    %4973 = vst.msk [vmem:[#allocation3 + $0x4] sm:$0xc] %vm4940, %v4971
    %v4974 = vld [vmem:[#allocation2 + $0x8] sm:$0xf]
    %v4975 = vpack.c.bf16 %v4974, %v4974
    %v4977 = vunpack.c.l.b16 %v4975
    %v4978 = vpack.c.b16 %v4977, %v4977
    %4979 = vrot.lane.b32.xlu0 %v4978, 64
    %v4980 = vpop.permute.xlu0 %4979
    %4982 = vst.msk [vmem:[#allocation3 + $0x4] sm:$0x3] %vm4950, %v4980
    %v4983 = vld [vmem:[#allocation2 + $0x18] sm:$0xf]
    %v4984 = vpack.c.bf16 %v4983, %v4983
    %v4986 = vunpack.c.l.b16 %v4984
    %v4987 = vpack.c.b16 %v4986, %v4986
    %v4988 = vrot.slane %v4987, 6
    %4989 = vrot.lane.b32.xlu0 %v4988, 64
    %v4990 = vpop.permute.xlu0 %4989
    %4992 = vst.msk [vmem:[#allocation3 + $0x4] sm:$0xc] %vm4961, %v4990
    %v4993 = vld [vmem:[#allocation2 + $0x9] sm:$0xf]
    %v4994 = vpack.c.bf16 %v4993, %v4993
    %4995 = vst.msk [vmem:[#allocation3 + $0x8] sm:$0x3] %vm4931, %v4994
    %v4996 = vld [vmem:[#allocation2 + $0x19] sm:$0xf]
    %v4997 = vpack.c.bf16 %v4996, %v4996
    %v4999 = vunpack.c.l.b16 %v4997
    %v5000 = vpack.c.b16 %v4999, %v4999
    %v5001 = vrot.slane %v5000, 6
    %5003 = vst.msk [vmem:[#allocation3 + $0x8] sm:$0xc] %vm4940, %v5001
    %v5004 = vld [vmem:[#allocation2 + $0xa] sm:$0xf]
    %v5005 = vpack.c.bf16 %v5004, %v5004
    %v5007 = vunpack.c.l.b16 %v5005
    %v5008 = vpack.c.b16 %v5007, %v5007
    %5009 = vrot.lane.b32.xlu0 %v5008, 64
    %v5010 = vpop.permute.xlu0 %5009
    %5012 = vst.msk [vmem:[#allocation3 + $0x8] sm:$0x3] %vm4950, %v5010
    %v5013 = vld [vmem:[#allocation2 + $0x1a] sm:$0xf]
    %v5014 = vpack.c.bf16 %v5013, %v5013
    %v5016 = vunpack.c.l.b16 %v5014
    %v5017 = vpack.c.b16 %v5016, %v5016
    %v5018 = vrot.slane %v5017, 6
    %5019 = vrot.lane.b32.xlu0 %v5018, 64
    %v5020 = vpop.permute.xlu0 %5019
    %5022 = vst.msk [vmem:[#allocation3 + $0x8] sm:$0xc] %vm4961, %v5020
    %v5023 = vld [vmem:[#allocation2 + $0xb] sm:$0xf]
    %v5024 = vpack.c.bf16 %v5023, %v5023
    %5025 = vst.msk [vmem:[#allocation3 + $0xc] sm:$0x3] %vm4931, %v5024
    %v5026 = vld [vmem:[#allocation2 + $0x1b] sm:$0xf]
    %v5027 = vpack.c.bf16 %v5026, %v5026
    %v5029 = vunpack.c.l.b16 %v5027
    %v5030 = vpack.c.b16 %v5029, %v5029
    %v5031 = vrot.slane %v5030, 6
    %5033 = vst.msk [vmem:[#allocation3 + $0xc] sm:$0xc] %vm4940, %v5031
    %v5034 = vld [vmem:[#allocation2 + $0xc] sm:$0xf]
    %v5035 = vpack.c.bf16 %v5034, %v5034
    %v5037 = vunpack.c.l.b16 %v5035
    %v5038 = vpack.c.b16 %v5037, %v5037
    %5039 = vrot.lane.b32.xlu0 %v5038, 64
    %v5040 = vpop.permute.xlu0 %5039
    %5042 = vst.msk [vmem:[#allocation3 + $0xc] sm:$0x3] %vm4950, %v5040
    %v5043 = vld [vmem:[#allocation2 + $0x1c] sm:$0xf]
    %v5044 = vpack.c.bf16 %v5043, %v5043
    %v5046 = vunpack.c.l.b16 %v5044
    %v5047 = vpack.c.b16 %v5046, %v5046
    %v5048 = vrot.slane %v5047, 6
    %5049 = vrot.lane.b32.xlu0 %v5048, 64
    %v5050 = vpop.permute.xlu0 %5049
    %5052 = vst.msk [vmem:[#allocation3 + $0xc] sm:$0xc] %vm4961, %v5050
    %v5053 = vld [vmem:[#allocation3] sm:$0xff]
    %v5054 = vld [vmem:[#allocation3 + $0x8] sm:$0xff]
    %v5055 = vld [vmem:[#allocation14] sm:$0xf]
    %v5056 = vld [vmem:[#allocation14 + $0x4] sm:$0xf]
    %v5057 = vld [vmem:[#allocation14 + $0x8] sm:$0xf]
    %v5058 = vld [vmem:[#allocation14 + $0xc] sm:$0xf]
    %v5059 = vld [vmem:[#allocation14 + $0x10] sm:$0xf]
    %v5060 = vld [vmem:[#allocation14 + $0x14] sm:$0xf]
    %v5061 = vld [vmem:[#allocation14 + $0x18] sm:$0xf]
    %v5062 = vld [vmem:[#allocation14 + $0x1c] sm:$0xf]
    %v5063 = vld [vmem:[#allocation14 + $0x20] sm:$0xf]
    %v5064 = vld [vmem:[#allocation14 + $0x24] sm:$0xf]
    %v5065 = vld [vmem:[#allocation14 + $0x28] sm:$0xf]
    %v5066 = vld [vmem:[#allocation14 + $0x2c] sm:$0xf]
    %v5067 = vld [vmem:[#allocation14 + $0x30] sm:$0xf]
    %v5068 = vld [vmem:[#allocation14 + $0x34] sm:$0xf]
    %v5069 = vld [vmem:[#allocation14 + $0x38] sm:$0xf]
    %v5070 = vld [vmem:[#allocation14 + $0x3c] sm:$0xf]
    %v5071 = vld [vmem:[#allocation14 + $0x40] sm:$0xf]
    %v5072 = vld [vmem:[#allocation14 + $0x44] sm:$0xf]
    %v5073 = vld [vmem:[#allocation14 + $0x48] sm:$0xf]
    %v5074 = vld [vmem:[#allocation14 + $0x4c] sm:$0xf]
    %v5075 = vld [vmem:[#allocation14 + $0x50] sm:$0xf]
    %v5076 = vld [vmem:[#allocation14 + $0x54] sm:$0xf]
    %v5077 = vld [vmem:[#allocation14 + $0x58] sm:$0xf]
    %v5078 = vld [vmem:[#allocation14 + $0x5c] sm:$0xf]
    %v5079 = vld [vmem:[#allocation14 + $0x60] sm:$0xf]
    %v5080 = vld [vmem:[#allocation14 + $0x64] sm:$0xf]
    %v5081 = vld [vmem:[#allocation14 + $0x68] sm:$0xf]
    %v5082 = vld [vmem:[#allocation14 + $0x6c] sm:$0xf]
    %v5083 = vld [vmem:[#allocation14 + $0x70] sm:$0xf]
    %v5084 = vld [vmem:[#allocation14 + $0x74] sm:$0xf]
    %v5085 = vld [vmem:[#allocation14 + $0x78] sm:$0xf]
    %v5086 = vld [vmem:[#allocation14 + $0x7c] sm:$0xf]
    %v5087 = vld [vmem:[#allocation14 + $0x80] sm:$0xf]
    %v5088 = vld [vmem:[#allocation14 + $0x84] sm:$0xf]
    %v5089 = vld [vmem:[#allocation14 + $0x88] sm:$0xf]
    %v5090 = vld [vmem:[#allocation14 + $0x8c] sm:$0xf]
    %v5091 = vld [vmem:[#allocation14 + $0x90] sm:$0xf]
    %v5092 = vld [vmem:[#allocation14 + $0x94] sm:$0xf]
    %v5093 = vld [vmem:[#allocation14 + $0x98] sm:$0xf]
    %v5094 = vld [vmem:[#allocation14 + $0x9c] sm:$0xf]
    %v5095 = vld [vmem:[#allocation14 + $0xa0] sm:$0xf]
    %v5096 = vld [vmem:[#allocation14 + $0xa4] sm:$0xf]
    %v5097 = vld [vmem:[#allocation14 + $0xa8] sm:$0xf]
    %v5098 = vld [vmem:[#allocation14 + $0xac] sm:$0xf]
    %v5099 = vld [vmem:[#allocation14 + $0xb0] sm:$0xf]
    %v5100 = vld [vmem:[#allocation14 + $0xb4] sm:$0xf]
    %v5101 = vld [vmem:[#allocation14 + $0xb8] sm:$0xf]
    %v5102 = vld [vmem:[#allocation14 + $0xbc] sm:$0xf]
    %v5103 = vld [vmem:[#allocation14 + $0xc0] sm:$0xf]
    %v5104 = vld [vmem:[#allocation14 + $0xc4] sm:$0xf]
    %v5105 = vld [vmem:[#allocation14 + $0xc8] sm:$0xf]
    %v5106 = vld [vmem:[#allocation14 + $0xcc] sm:$0xf]
    %v5107 = vld [vmem:[#allocation14 + $0xd0] sm:$0xf]
    %v5108 = vld [vmem:[#allocation14 + $0xd4] sm:$0xf]
    %v5109 = vld [vmem:[#allocation14 + $0xd8] sm:$0xf]
    %v5110 = vld [vmem:[#allocation14 + $0xdc] sm:$0xf]
    %v5111 = vld [vmem:[#allocation14 + $0xe0] sm:$0xf]
    %v5112 = vld [vmem:[#allocation14 + $0xe4] sm:$0xf]
    %v5113 = vld [vmem:[#allocation14 + $0xe8] sm:$0xf]
    %v5114 = vld [vmem:[#allocation14 + $0xec] sm:$0xf]
    %v5115 = vld [vmem:[#allocation14 + $0xf0] sm:$0xf]
    %v5116 = vld [vmem:[#allocation14 + $0xf4] sm:$0xf]
    %v5117 = vld [vmem:[#allocation14 + $0xf8] sm:$0xf]
    %v5118 = vld [vmem:[#allocation14 + $0xfc] sm:$0xf]
    %v5121 = vunpack.c.l.b16 %v5053
    %v5122 = vunpack.c.h.b16 %v5053
    %v5123 = vunpack.c.l.b16 %v5054
    %v5124 = vunpack.c.h.b16 %v5054
    %v5125 = vpack.c.b16 %v5121, %v5121
    %v5126 = vpack.c.b16 %v5122, %v5122
    %v5127 = vpack.c.b16 %v5123, %v5123
    %v5128 = vpack.c.b16 %v5124, %v5124
    %v5197 = vunpack.c.l.b16 %v5055
    %v5198 = vunpack.c.l.b16 %v5056
    %v5199 = vunpack.c.l.b16 %v5057
    %v5200 = vunpack.c.l.b16 %v5058
    %v5201 = vunpack.c.l.b16 %v5059
    %v5202 = vunpack.c.l.b16 %v5060
    %v5203 = vunpack.c.l.b16 %v5061
    %v5204 = vunpack.c.l.b16 %v5062
    %v5205 = vunpack.c.l.b16 %v5063
    %v5206 = vunpack.c.l.b16 %v5064
    %v5207 = vunpack.c.l.b16 %v5065
    %v5208 = vunpack.c.l.b16 %v5066
    %v5209 = vunpack.c.l.b16 %v5067
    %v5210 = vunpack.c.l.b16 %v5068
    %v5211 = vunpack.c.l.b16 %v5069
    %v5212 = vunpack.c.l.b16 %v5070
    %v5213 = vunpack.c.l.b16 %v5071
    %v5214 = vunpack.c.l.b16 %v5072
    %v5215 = vunpack.c.l.b16 %v5073
    %v5216 = vunpack.c.l.b16 %v5074
    %v5217 = vunpack.c.l.b16 %v5075
    %v5218 = vunpack.c.l.b16 %v5076
    %v5219 = vunpack.c.l.b16 %v5077
    %v5220 = vunpack.c.l.b16 %v5078
    %v5221 = vunpack.c.l.b16 %v5079
    %v5222 = vunpack.c.l.b16 %v5080
    %v5223 = vunpack.c.l.b16 %v5081
    %v5224 = vunpack.c.l.b16 %v5082
    %v5225 = vunpack.c.l.b16 %v5083
    %v5226 = vunpack.c.l.b16 %v5084
    %v5227 = vunpack.c.l.b16 %v5085
    %v5228 = vunpack.c.l.b16 %v5086
    %v5229 = vunpack.c.l.b16 %v5087
    %v5230 = vunpack.c.l.b16 %v5088
    %v5231 = vunpack.c.l.b16 %v5089
    %v5232 = vunpack.c.l.b16 %v5090
    %v5233 = vunpack.c.l.b16 %v5091
    %v5234 = vunpack.c.l.b16 %v5092
    %v5235 = vunpack.c.l.b16 %v5093
    %v5236 = vunpack.c.l.b16 %v5094
    %v5237 = vunpack.c.l.b16 %v5095
    %v5238 = vunpack.c.l.b16 %v5096
    %v5239 = vunpack.c.l.b16 %v5097
    %v5240 = vunpack.c.l.b16 %v5098
    %v5241 = vunpack.c.l.b16 %v5099
    %v5242 = vunpack.c.l.b16 %v5100
    %v5243 = vunpack.c.l.b16 %v5101
    %v5244 = vunpack.c.l.b16 %v5102
    %v5245 = vunpack.c.l.b16 %v5103
    %v5246 = vunpack.c.l.b16 %v5104
    %v5247 = vunpack.c.l.b16 %v5105
    %v5248 = vunpack.c.l.b16 %v5106
    %v5249 = vunpack.c.l.b16 %v5107
    %v5250 = vunpack.c.l.b16 %v5108
    %v5251 = vunpack.c.l.b16 %v5109
    %v5252 = vunpack.c.l.b16 %v5110
    %v5253 = vunpack.c.l.b16 %v5111
    %v5254 = vunpack.c.l.b16 %v5112
    %v5255 = vunpack.c.l.b16 %v5113
    %v5256 = vunpack.c.l.b16 %v5114
    %v5257 = vunpack.c.l.b16 %v5115
    %v5258 = vunpack.c.l.b16 %v5116
    %v5259 = vunpack.c.l.b16 %v5117
    %v5260 = vunpack.c.l.b16 %v5118
    %v5261 = vpack.c.b16 %v5198, %v5197
    %v5262 = vpack.c.b16 %v5200, %v5199
    %v5263 = vpack.c.b16 %v5202, %v5201
    %v5264 = vpack.c.b16 %v5204, %v5203
    %v5265 = vpack.c.b16 %v5206, %v5205
    %v5266 = vpack.c.b16 %v5208, %v5207
    %v5267 = vpack.c.b16 %v5210, %v5209
    %v5268 = vpack.c.b16 %v5212, %v5211
    %v5269 = vpack.c.b16 %v5214, %v5213
    %v5270 = vpack.c.b16 %v5216, %v5215
    %v5271 = vpack.c.b16 %v5218, %v5217
    %v5272 = vpack.c.b16 %v5220, %v5219
    %v5273 = vpack.c.b16 %v5222, %v5221
    %v5274 = vpack.c.b16 %v5224, %v5223
    %v5275 = vpack.c.b16 %v5226, %v5225
    %v5276 = vpack.c.b16 %v5228, %v5227
    %v5277 = vpack.c.b16 %v5230, %v5229
    %v5278 = vpack.c.b16 %v5232, %v5231
    %v5279 = vpack.c.b16 %v5234, %v5233
    %v5280 = vpack.c.b16 %v5236, %v5235
    %v5281 = vpack.c.b16 %v5238, %v5237
    %v5282 = vpack.c.b16 %v5240, %v5239
    %v5283 = vpack.c.b16 %v5242, %v5241
    %v5284 = vpack.c.b16 %v5244, %v5243
    %v5285 = vpack.c.b16 %v5246, %v5245
    %v5286 = vpack.c.b16 %v5248, %v5247
    %v5287 = vpack.c.b16 %v5250, %v5249
    %v5288 = vpack.c.b16 %v5252, %v5251
    %v5289 = vpack.c.b16 %v5254, %v5253
    %v5290 = vpack.c.b16 %v5256, %v5255
    %v5291 = vpack.c.b16 %v5258, %v5257
    %v5292 = vpack.c.b16 %v5260, %v5259
    %5325 = vmatprep.subr.bf16.mxu0 0
    %5326 = vmatpush1.bf16.msra.mxu0 %v5268
    %5327 = vmatprep.subr.bf16.mxu0 0
    %5328 = vmatpush1.bf16.msra.mxu0 %v5267
    %5329 = vmatprep.subr.bf16.mxu0 0
    %5330 = vmatpush1.bf16.msra.mxu0 %v5266
    %5331 = vmatprep.subr.bf16.mxu0 0
    %5332 = vmatpush1.bf16.msra.mxu0 %v5265
    %5333 = vmatprep.subr.bf16.mxu0 0
    %5334 = vmatpush1.bf16.msra.mxu0 %v5264
    %5335 = vmatprep.subr.bf16.mxu0 0
    %5336 = vmatpush1.bf16.msra.mxu0 %v5263
    %5337 = vmatprep.subr.bf16.mxu0 0
    %5338 = vmatpush1.bf16.msra.mxu0 %v5262
    %5339 = vmatprep.subr.bf16.mxu0 0
    %5340 = vmatpush1.bf16.msra.mxu0 %v5261
    %5341 = vmatprep.subr.bf16.mxu0 0
    %5342 = vmatpush2.bf16.msra.mxu0 %v5276
    %5343 = vmatprep.subr.bf16.mxu0 0
    %5344 = vmatpush2.bf16.msra.mxu0 %v5275
    %5345 = vmatprep.subr.bf16.mxu0 0
    %5346 = vmatpush2.bf16.msra.mxu0 %v5274
    %5347 = vmatprep.subr.bf16.mxu0 0
    %5348 = vmatpush2.bf16.msra.mxu0 %v5273
    %5349 = vmatprep.subr.bf16.mxu0 0
    %5350 = vmatpush2.bf16.msra.mxu0 %v5272
    %5351 = vmatprep.subr.bf16.mxu0 0
    %5352 = vmatpush2.bf16.msra.mxu0 %v5271
    %5353 = vmatprep.subr.bf16.mxu0 0
    %5354 = vmatpush2.bf16.msra.mxu0 %v5270
    %5355 = vmatprep.subr.bf16.mxu0 0
    %5356 = vmatpush2.bf16.msra.mxu0 %v5269
    %5357 = vmatprep.mubr.bf16.mxu0 %v5126
    %5358 = vmatmul.mubr.bf16.gmra.mxu0 %v5125
    %v5359 = vpop.f32.mrf.mxu0
    %v5360 = vadd.f32 %v4914, %v5359
    %v5361 = vpop.f32.mrf.mxu0
    %v5362 = vpop.f32.mrf.mxu0
    %v5363 = vpop.f32.mrf.mxu0
    %5364 = vdwg.mxu0
    %5365 = vmatprep.subr.bf16.mxu0 0
    %5366 = vmatpush1.bf16.msra.mxu0 %v5284
    %5367 = vmatprep.subr.bf16.mxu0 0
    %5368 = vmatpush1.bf16.msra.mxu0 %v5283
    %5369 = vmatprep.subr.bf16.mxu0 0
    %5370 = vmatpush1.bf16.msra.mxu0 %v5282
    %5371 = vmatprep.subr.bf16.mxu0 0
    %5372 = vmatpush1.bf16.msra.mxu0 %v5281
    %5373 = vmatprep.subr.bf16.mxu0 0
    %5374 = vmatpush1.bf16.msra.mxu0 %v5280
    %5375 = vmatprep.subr.bf16.mxu0 0
    %5376 = vmatpush1.bf16.msra.mxu0 %v5279
    %5377 = vmatprep.subr.bf16.mxu0 0
    %5378 = vmatpush1.bf16.msra.mxu0 %v5278
    %5379 = vmatprep.subr.bf16.mxu0 0
    %5380 = vmatpush1.bf16.msra.mxu0 %v5277
    %5381 = vmatprep.subr.bf16.mxu0 0
    %5382 = vmatpush2.bf16.msra.mxu0 %v5292
    %5383 = vmatprep.subr.bf16.mxu0 0
    %5384 = vmatpush2.bf16.msra.mxu0 %v5291
    %5385 = vmatprep.subr.bf16.mxu0 0
    %5386 = vmatpush2.bf16.msra.mxu0 %v5290
    %5387 = vmatprep.subr.bf16.mxu0 0
    %5388 = vmatpush2.bf16.msra.mxu0 %v5289
    %5389 = vmatprep.subr.bf16.mxu0 0
    %5390 = vmatpush2.bf16.msra.mxu0 %v5288
    %5391 = vmatprep.subr.bf16.mxu0 0
    %5392 = vmatpush2.bf16.msra.mxu0 %v5287
    %5393 = vmatprep.subr.bf16.mxu0 0
    %5394 = vmatpush2.bf16.msra.mxu0 %v5286
    %5395 = vmatprep.subr.bf16.mxu0 0
    %5396 = vmatpush2.bf16.msra.mxu0 %v5285
    %5397 = vmatprep.mubr.bf16.mxu0 %v5128
    %5398 = vmatmul.mubr.bf16.gmra.mxu0 %v5127
    %v5399 = vpop.f32.mrf.mxu0
    %v5400 = vadd.f32 %v5360, %v5399
    %v5401 = vpop.f32.mrf.mxu0
    %v5402 = vpop.f32.mrf.mxu0
    %v5403 = vpop.f32.mrf.mxu0
    %5404 = vdwg.mxu0
    %v5405 = vmul.f32 %v5400, %v4915
    %v5406 = vadd.f32 %v5405, %v4916
    %v5407 = vmax.f32 %v5406, 0.0
    %5408 = vst [vmem:[#allocation2] sm:$0xff] 0.0
    %5409 = vst [vmem:[#allocation2 + $0xc] sm:$0xf] 0.0
    %5410 = vst [vmem:[#allocation2 + $0x8] sm:$0xf] %v5407
    %5411 = vst [vmem:[#allocation2 + $0x10] sm:$0xff] 0.0
    %5412 = vst [vmem:[#allocation2 + $0x1c] sm:$0xf] 0.0
    %5413 = vst [vmem:[#allocation2 + $0x14] sm:$0xf0] %v5407
    %v5414 = vld [vmem:[#allocation2 + $0x5] sm:$0xf]
    %v5415 = vpack.c.bf16 %v5414, %v5414
    %5416 = vst [vmem:[#allocation3] sm:$0x3] %v5415
    %v5417 = vld [vmem:[#allocation2 + $0x15] sm:$0xf]
    %v5418 = vpack.c.bf16 %v5417, %v5417
    %v5420 = vunpack.c.l.b16 %v5418
    %v5421 = vpack.c.b16 %v5420, %v5420
    %v5422 = vrot.slane %v5421, 6
    %5424 = vst [vmem:[#allocation3] sm:$0xc] %v5422
    %v5425 = vld [vmem:[#allocation2 + $0x6] sm:$0xf]
    %v5426 = vpack.c.bf16 %v5425, %v5425
    %5427 = vst [vmem:[#allocation3 + $0x4] sm:$0x3] %v5426
    %v5428 = vld [vmem:[#allocation2 + $0x16] sm:$0xf]
    %v5429 = vpack.c.bf16 %v5428, %v5428
    %v5431 = vunpack.c.l.b16 %v5429
    %v5432 = vpack.c.b16 %v5431, %v5431
    %v5433 = vrot.slane %v5432, 6
    %5435 = vst [vmem:[#allocation3 + $0x4] sm:$0xc] %v5433
    %v5436 = vld [vmem:[#allocation2 + $0x7] sm:$0xf]
    %v5437 = vpack.c.bf16 %v5436, %v5436
    %5438 = vst [vmem:[#allocation3 + $0x8] sm:$0x3] %v5437
    %v5439 = vld [vmem:[#allocation2 + $0x17] sm:$0xf]
    %v5440 = vpack.c.bf16 %v5439, %v5439
    %v5442 = vunpack.c.l.b16 %v5440
    %v5443 = vpack.c.b16 %v5442, %v5442
    %v5444 = vrot.slane %v5443, 6
    %5446 = vst [vmem:[#allocation3 + $0x8] sm:$0xc] %v5444
    %v5447 = vld [vmem:[#allocation2 + $0x8] sm:$0xf]
    %v5448 = vpack.c.bf16 %v5447, %v5447
    %5449 = vst [vmem:[#allocation3 + $0xc] sm:$0x3] %v5448
    %v5450 = vld [vmem:[#allocation2 + $0x18] sm:$0xf]
    %v5451 = vpack.c.bf16 %v5450, %v5450
    %v5453 = vunpack.c.l.b16 %v5451
    %v5454 = vpack.c.b16 %v5453, %v5453
    %v5455 = vrot.slane %v5454, 6
    %5457 = vst [vmem:[#allocation3 + $0xc] sm:$0xc] %v5455
    %v5458 = vld [vmem:[#allocation2 + $0x9] sm:$0xf]
    %v5459 = vpack.c.bf16 %v5458, %v5458
    %5460 = vst [vmem:[#allocation3 + $0x10] sm:$0x3] %v5459
    %v5461 = vld [vmem:[#allocation2 + $0x19] sm:$0xf]
    %v5462 = vpack.c.bf16 %v5461, %v5461
    %v5464 = vunpack.c.l.b16 %v5462
    %v5465 = vpack.c.b16 %v5464, %v5464
    %v5466 = vrot.slane %v5465, 6
    %5468 = vst [vmem:[#allocation3 + $0x10] sm:$0xc] %v5466
    %v5469 = vld [vmem:[#allocation2 + $0xa] sm:$0xf]
    %v5470 = vpack.c.bf16 %v5469, %v5469
    %5471 = vst [vmem:[#allocation3 + $0x14] sm:$0x3] %v5470
    %v5472 = vld [vmem:[#allocation2 + $0x1a] sm:$0xf]
    %v5473 = vpack.c.bf16 %v5472, %v5472
    %v5475 = vunpack.c.l.b16 %v5473
    %v5476 = vpack.c.b16 %v5475, %v5475
    %v5477 = vrot.slane %v5476, 6
    %5479 = vst [vmem:[#allocation3 + $0x14] sm:$0xc] %v5477
    %v5480 = vld [vmem:[#allocation2 + $0xb] sm:$0xf]
    %v5481 = vpack.c.bf16 %v5480, %v5480
    %5482 = vst [vmem:[#allocation3 + $0x18] sm:$0x3] %v5481
    %v5483 = vld [vmem:[#allocation2 + $0x1b] sm:$0xf]
    %v5484 = vpack.c.bf16 %v5483, %v5483
    %v5486 = vunpack.c.l.b16 %v5484
    %v5487 = vpack.c.b16 %v5486, %v5486
    %v5488 = vrot.slane %v5487, 6
    %5490 = vst [vmem:[#allocation3 + $0x18] sm:$0xc] %v5488
    %v5491 = vld [vmem:[#allocation2 + $0xc] sm:$0xf]
    %v5492 = vpack.c.bf16 %v5491, %v5491
    %5493 = vst [vmem:[#allocation3 + $0x1c] sm:$0x3] %v5492
    %v5494 = vld [vmem:[#allocation2 + $0x1c] sm:$0xf]
    %v5495 = vpack.c.bf16 %v5494, %v5494
    %v5497 = vunpack.c.l.b16 %v5495
    %v5498 = vpack.c.b16 %v5497, %v5497
    %v5499 = vrot.slane %v5498, 6
    %5501 = vst [vmem:[#allocation3 + $0x1c] sm:$0xc] %v5499
    %v5502 = vld [vmem:[#allocation3] sm:$0xff]
    %v5503 = vld [vmem:[#allocation3 + $0x8] sm:$0xff]
    %v5504 = vld [vmem:[#allocation3 + $0x10] sm:$0xff]
    %v5505 = vld [vmem:[#allocation3 + $0x18] sm:$0xff]
    %v5506 = vld [vmem:[#allocation16] sm:$0xf]
    %v5507 = vld [vmem:[#allocation16 + $0x4] sm:$0xf]
    %v5508 = vld [vmem:[#allocation16 + $0x8] sm:$0xf]
    %v5509 = vld [vmem:[#allocation16 + $0xc] sm:$0xf]
    %v5510 = vld [vmem:[#allocation16 + $0x10] sm:$0xf]
    %v5511 = vld [vmem:[#allocation16 + $0x14] sm:$0xf]
    %v5512 = vld [vmem:[#allocation16 + $0x18] sm:$0xf]
    %v5513 = vld [vmem:[#allocation16 + $0x1c] sm:$0xf]
    %v5514 = vld [vmem:[#allocation16 + $0x20] sm:$0xf]
    %v5515 = vld [vmem:[#allocation16 + $0x24] sm:$0xf]
    %v5516 = vld [vmem:[#allocation16 + $0x28] sm:$0xf]
    %v5517 = vld [vmem:[#allocation16 + $0x2c] sm:$0xf]
    %v5518 = vld [vmem:[#allocation16 + $0x30] sm:$0xf]
    %v5519 = vld [vmem:[#allocation16 + $0x34] sm:$0xf]
    %v5520 = vld [vmem:[#allocation16 + $0x38] sm:$0xf]
    %v5521 = vld [vmem:[#allocation16 + $0x3c] sm:$0xf]
    %v5522 = vld [vmem:[#allocation16 + $0x40] sm:$0xf]
    %v5523 = vld [vmem:[#allocation16 + $0x44] sm:$0xf]
    %v5524 = vld [vmem:[#allocation16 + $0x48] sm:$0xf]
    %v5525 = vld [vmem:[#allocation16 + $0x4c] sm:$0xf]
    %v5526 = vld [vmem:[#allocation16 + $0x50] sm:$0xf]
    %v5527 = vld [vmem:[#allocation16 + $0x54] sm:$0xf]
    %v5528 = vld [vmem:[#allocation16 + $0x58] sm:$0xf]
    %v5529 = vld [vmem:[#allocation16 + $0x5c] sm:$0xf]
    %v5530 = vld [vmem:[#allocation16 + $0x60] sm:$0xf]
    %v5531 = vld [vmem:[#allocation16 + $0x64] sm:$0xf]
    %v5532 = vld [vmem:[#allocation16 + $0x68] sm:$0xf]
    %v5533 = vld [vmem:[#allocation16 + $0x6c] sm:$0xf]
    %v5534 = vld [vmem:[#allocation16 + $0x70] sm:$0xf]
    %v5535 = vld [vmem:[#allocation16 + $0x74] sm:$0xf]
    %v5536 = vld [vmem:[#allocation16 + $0x78] sm:$0xf]
    %v5537 = vld [vmem:[#allocation16 + $0x7c] sm:$0xf]
    %v5538 = vld [vmem:[#allocation16 + $0x80] sm:$0xf]
    %v5539 = vld [vmem:[#allocation16 + $0x84] sm:$0xf]
    %v5540 = vld [vmem:[#allocation16 + $0x88] sm:$0xf]
    %v5541 = vld [vmem:[#allocation16 + $0x8c] sm:$0xf]
    %v5542 = vld [vmem:[#allocation16 + $0x90] sm:$0xf]
    %v5543 = vld [vmem:[#allocation16 + $0x94] sm:$0xf]
    %v5544 = vld [vmem:[#allocation16 + $0x98] sm:$0xf]
    %v5545 = vld [vmem:[#allocation16 + $0x9c] sm:$0xf]
    %v5546 = vld [vmem:[#allocation16 + $0xa0] sm:$0xf]
    %v5547 = vld [vmem:[#allocation16 + $0xa4] sm:$0xf]
    %v5548 = vld [vmem:[#allocation16 + $0xa8] sm:$0xf]
    %v5549 = vld [vmem:[#allocation16 + $0xac] sm:$0xf]
    %v5550 = vld [vmem:[#allocation16 + $0xb0] sm:$0xf]
    %v5551 = vld [vmem:[#allocation16 + $0xb4] sm:$0xf]
    %v5552 = vld [vmem:[#allocation16 + $0xb8] sm:$0xf]
    %v5553 = vld [vmem:[#allocation16 + $0xbc] sm:$0xf]
    %v5554 = vld [vmem:[#allocation16 + $0xc0] sm:$0xf]
    %v5555 = vld [vmem:[#allocation16 + $0xc4] sm:$0xf]
    %v5556 = vld [vmem:[#allocation16 + $0xc8] sm:$0xf]
    %v5557 = vld [vmem:[#allocation16 + $0xcc] sm:$0xf]
    %v5558 = vld [vmem:[#allocation16 + $0xd0] sm:$0xf]
    %v5559 = vld [vmem:[#allocation16 + $0xd4] sm:$0xf]
    %v5560 = vld [vmem:[#allocation16 + $0xd8] sm:$0xf]
    %v5561 = vld [vmem:[#allocation16 + $0xdc] sm:$0xf]
    %v5562 = vld [vmem:[#allocation16 + $0xe0] sm:$0xf]
    %v5563 = vld [vmem:[#allocation16 + $0xe4] sm:$0xf]
    %v5564 = vld [vmem:[#allocation16 + $0xe8] sm:$0xf]
    %v5565 = vld [vmem:[#allocation16 + $0xec] sm:$0xf]
    %v5566 = vld [vmem:[#allocation16 + $0xf0] sm:$0xf]
    %v5567 = vld [vmem:[#allocation16 + $0xf4] sm:$0xf]
    %v5568 = vld [vmem:[#allocation16 + $0xf8] sm:$0xf]
    %v5569 = vld [vmem:[#allocation16 + $0xfc] sm:$0xf]
    %v5570 = vld [vmem:[#allocation16 + $0x100] sm:$0xf]
    %v5571 = vld [vmem:[#allocation16 + $0x104] sm:$0xf]
    %v5572 = vld [vmem:[#allocation16 + $0x108] sm:$0xf]
    %v5573 = vld [vmem:[#allocation16 + $0x10c] sm:$0xf]
    %v5574 = vld [vmem:[#allocation16 + $0x110] sm:$0xf]
    %v5575 = vld [vmem:[#allocation16 + $0x114] sm:$0xf]
    %v5576 = vld [vmem:[#allocation16 + $0x118] sm:$0xf]
    %v5577 = vld [vmem:[#allocation16 + $0x11c] sm:$0xf]
    %v5578 = vld [vmem:[#allocation16 + $0x120] sm:$0xf]
    %v5579 = vld [vmem:[#allocation16 + $0x124] sm:$0xf]
    %v5580 = vld [vmem:[#allocation16 + $0x128] sm:$0xf]
    %v5581 = vld [vmem:[#allocation16 + $0x12c] sm:$0xf]
    %v5582 = vld [vmem:[#allocation16 + $0x130] sm:$0xf]
    %v5583 = vld [vmem:[#allocation16 + $0x134] sm:$0xf]
    %v5584 = vld [vmem:[#allocation16 + $0x138] sm:$0xf]
    %v5585 = vld [vmem:[#allocation16 + $0x13c] sm:$0xf]
    %v5586 = vld [vmem:[#allocation16 + $0x140] sm:$0xf]
    %v5587 = vld [vmem:[#allocation16 + $0x144] sm:$0xf]
    %v5588 = vld [vmem:[#allocation16 + $0x148] sm:$0xf]
    %v5589 = vld [vmem:[#allocation16 + $0x14c] sm:$0xf]
    %v5590 = vld [vmem:[#allocation16 + $0x150] sm:$0xf]
    %v5591 = vld [vmem:[#allocation16 + $0x154] sm:$0xf]
    %v5592 = vld [vmem:[#allocation16 + $0x158] sm:$0xf]
    %v5593 = vld [vmem:[#allocation16 + $0x15c] sm:$0xf]
    %v5594 = vld [vmem:[#allocation16 + $0x160] sm:$0xf]
    %v5595 = vld [vmem:[#allocation16 + $0x164] sm:$0xf]
    %v5596 = vld [vmem:[#allocation16 + $0x168] sm:$0xf]
    %v5597 = vld [vmem:[#allocation16 + $0x16c] sm:$0xf]
    %v5598 = vld [vmem:[#allocation16 + $0x170] sm:$0xf]
    %v5599 = vld [vmem:[#allocation16 + $0x174] sm:$0xf]
    %v5600 = vld [vmem:[#allocation16 + $0x178] sm:$0xf]
    %v5601 = vld [vmem:[#allocation16 + $0x17c] sm:$0xf]
    %v5602 = vld [vmem:[#allocation16 + $0x180] sm:$0xf]
    %v5603 = vld [vmem:[#allocation16 + $0x184] sm:$0xf]
    %v5604 = vld [vmem:[#allocation16 + $0x188] sm:$0xf]
    %v5605 = vld [vmem:[#allocation16 + $0x18c] sm:$0xf]
    %v5606 = vld [vmem:[#allocation16 + $0x190] sm:$0xf]
    %v5607 = vld [vmem:[#allocation16 + $0x194] sm:$0xf]
    %v5608 = vld [vmem:[#allocation16 + $0x198] sm:$0xf]
    %v5609 = vld [vmem:[#allocation16 + $0x19c] sm:$0xf]
    %v5610 = vld [vmem:[#allocation16 + $0x1a0] sm:$0xf]
    %v5611 = vld [vmem:[#allocation16 + $0x1a4] sm:$0xf]
    %v5612 = vld [vmem:[#allocation16 + $0x1a8] sm:$0xf]
    %v5613 = vld [vmem:[#allocation16 + $0x1ac] sm:$0xf]
    %v5614 = vld [vmem:[#allocation16 + $0x1b0] sm:$0xf]
    %v5615 = vld [vmem:[#allocation16 + $0x1b4] sm:$0xf]
    %v5616 = vld [vmem:[#allocation16 + $0x1b8] sm:$0xf]
    %v5617 = vld [vmem:[#allocation16 + $0x1bc] sm:$0xf]
    %v5618 = vld [vmem:[#allocation16 + $0x1c0] sm:$0xf]
    %v5619 = vld [vmem:[#allocation16 + $0x1c4] sm:$0xf]
    %v5620 = vld [vmem:[#allocation16 + $0x1c8] sm:$0xf]
    %v5621 = vld [vmem:[#allocation16 + $0x1cc] sm:$0xf]
    %v5622 = vld [vmem:[#allocation16 + $0x1d0] sm:$0xf]
    %v5623 = vld [vmem:[#allocation16 + $0x1d4] sm:$0xf]
    %v5624 = vld [vmem:[#allocation16 + $0x1d8] sm:$0xf]
    %v5625 = vld [vmem:[#allocation16 + $0x1dc] sm:$0xf]
    %v5626 = vld [vmem:[#allocation16 + $0x1e0] sm:$0xf]
    %v5627 = vld [vmem:[#allocation16 + $0x1e4] sm:$0xf]
    %v5628 = vld [vmem:[#allocation16 + $0x1e8] sm:$0xf]
    %v5629 = vld [vmem:[#allocation16 + $0x1ec] sm:$0xf]
    %v5630 = vld [vmem:[#allocation16 + $0x1f0] sm:$0xf]
    %v5631 = vld [vmem:[#allocation16 + $0x1f4] sm:$0xf]
    %v5632 = vld [vmem:[#allocation16 + $0x1f8] sm:$0xf]
    %v5633 = vld [vmem:[#allocation16 + $0x1fc] sm:$0xf]
    %v5638 = vunpack.c.l.b16 %v5502
    %v5639 = vunpack.c.h.b16 %v5502
    %v5640 = vunpack.c.l.b16 %v5503
    %v5641 = vunpack.c.h.b16 %v5503
    %v5642 = vunpack.c.l.b16 %v5504
    %v5643 = vunpack.c.h.b16 %v5504
    %v5644 = vunpack.c.l.b16 %v5505
    %v5645 = vunpack.c.h.b16 %v5505
    %v5646 = vpack.c.b16 %v5638, %v5638
    %v5647 = vpack.c.b16 %v5639, %v5639
    %v5648 = vpack.c.b16 %v5640, %v5640
    %v5649 = vpack.c.b16 %v5641, %v5641
    %v5650 = vpack.c.b16 %v5642, %v5642
    %v5651 = vpack.c.b16 %v5643, %v5643
    %v5652 = vpack.c.b16 %v5644, %v5644
    %v5653 = vpack.c.b16 %v5645, %v5645
    %v5790 = vunpack.c.l.b16 %v5506
    %v5791 = vunpack.c.l.b16 %v5507
    %v5792 = vunpack.c.l.b16 %v5508
    %v5793 = vunpack.c.l.b16 %v5509
    %v5794 = vunpack.c.l.b16 %v5510
    %v5795 = vunpack.c.l.b16 %v5511
    %v5796 = vunpack.c.l.b16 %v5512
    %v5797 = vunpack.c.l.b16 %v5513
    %v5798 = vunpack.c.l.b16 %v5514
    %v5799 = vunpack.c.l.b16 %v5515
    %v5800 = vunpack.c.l.b16 %v5516
    %v5801 = vunpack.c.l.b16 %v5517
    %v5802 = vunpack.c.l.b16 %v5518
    %v5803 = vunpack.c.l.b16 %v5519
    %v5804 = vunpack.c.l.b16 %v5520
    %v5805 = vunpack.c.l.b16 %v5521
    %v5806 = vunpack.c.l.b16 %v5522
    %v5807 = vunpack.c.l.b16 %v5523
    %v5808 = vunpack.c.l.b16 %v5524
    %v5809 = vunpack.c.l.b16 %v5525
    %v5810 = vunpack.c.l.b16 %v5526
    %v5811 = vunpack.c.l.b16 %v5527
    %v5812 = vunpack.c.l.b16 %v5528
    %v5813 = vunpack.c.l.b16 %v5529
    %v5814 = vunpack.c.l.b16 %v5530
    %v5815 = vunpack.c.l.b16 %v5531
    %v5816 = vunpack.c.l.b16 %v5532
    %v5817 = vunpack.c.l.b16 %v5533
    %v5818 = vunpack.c.l.b16 %v5534
    %v5819 = vunpack.c.l.b16 %v5535
    %v5820 = vunpack.c.l.b16 %v5536
    %v5821 = vunpack.c.l.b16 %v5537
    %v5822 = vunpack.c.l.b16 %v5538
    %v5823 = vunpack.c.l.b16 %v5539
    %v5824 = vunpack.c.l.b16 %v5540
    %v5825 = vunpack.c.l.b16 %v5541
    %v5826 = vunpack.c.l.b16 %v5542
    %v5827 = vunpack.c.l.b16 %v5543
    %v5828 = vunpack.c.l.b16 %v5544
    %v5829 = vunpack.c.l.b16 %v5545
    %v5830 = vunpack.c.l.b16 %v5546
    %v5831 = vunpack.c.l.b16 %v5547
    %v5832 = vunpack.c.l.b16 %v5548
    %v5833 = vunpack.c.l.b16 %v5549
    %v5834 = vunpack.c.l.b16 %v5550
    %v5835 = vunpack.c.l.b16 %v5551
    %v5836 = vunpack.c.l.b16 %v5552
    %v5837 = vunpack.c.l.b16 %v5553
    %v5838 = vunpack.c.l.b16 %v5554
    %v5839 = vunpack.c.l.b16 %v5555
    %v5840 = vunpack.c.l.b16 %v5556
    %v5841 = vunpack.c.l.b16 %v5557
    %v5842 = vunpack.c.l.b16 %v5558
    %v5843 = vunpack.c.l.b16 %v5559
    %v5844 = vunpack.c.l.b16 %v5560
    %v5845 = vunpack.c.l.b16 %v5561
    %v5846 = vunpack.c.l.b16 %v5562
    %v5847 = vunpack.c.l.b16 %v5563
    %v5848 = vunpack.c.l.b16 %v5564
    %v5849 = vunpack.c.l.b16 %v5565
    %v5850 = vunpack.c.l.b16 %v5566
    %v5851 = vunpack.c.l.b16 %v5567
    %v5852 = vunpack.c.l.b16 %v5568
    %v5853 = vunpack.c.l.b16 %v5569
    %v5854 = vunpack.c.l.b16 %v5570
    %v5855 = vunpack.c.l.b16 %v5571
    %v5856 = vunpack.c.l.b16 %v5572
    %v5857 = vunpack.c.l.b16 %v5573
    %v5858 = vunpack.c.l.b16 %v5574
    %v5859 = vunpack.c.l.b16 %v5575
    %v5860 = vunpack.c.l.b16 %v5576
    %v5861 = vunpack.c.l.b16 %v5577
    %v5862 = vunpack.c.l.b16 %v5578
    %v5863 = vunpack.c.l.b16 %v5579
    %v5864 = vunpack.c.l.b16 %v5580
    %v5865 = vunpack.c.l.b16 %v5581
    %v5866 = vunpack.c.l.b16 %v5582
    %v5867 = vunpack.c.l.b16 %v5583
    %v5868 = vunpack.c.l.b16 %v5584
    %v5869 = vunpack.c.l.b16 %v5585
    %v5870 = vunpack.c.l.b16 %v5586
    %v5871 = vunpack.c.l.b16 %v5587
    %v5872 = vunpack.c.l.b16 %v5588
    %v5873 = vunpack.c.l.b16 %v5589
    %v5874 = vunpack.c.l.b16 %v5590
    %v5875 = vunpack.c.l.b16 %v5591
    %v5876 = vunpack.c.l.b16 %v5592
    %v5877 = vunpack.c.l.b16 %v5593
    %v5878 = vunpack.c.l.b16 %v5594
    %v5879 = vunpack.c.l.b16 %v5595
    %v5880 = vunpack.c.l.b16 %v5596
    %v5881 = vunpack.c.l.b16 %v5597
    %v5882 = vunpack.c.l.b16 %v5598
    %v5883 = vunpack.c.l.b16 %v5599
    %v5884 = vunpack.c.l.b16 %v5600
    %v5885 = vunpack.c.l.b16 %v5601
    %v5886 = vunpack.c.l.b16 %v5602
    %v5887 = vunpack.c.l.b16 %v5603
    %v5888 = vunpack.c.l.b16 %v5604
    %v5889 = vunpack.c.l.b16 %v5605
    %v5890 = vunpack.c.l.b16 %v5606
    %v5891 = vunpack.c.l.b16 %v5607
    %v5892 = vunpack.c.l.b16 %v5608
    %v5893 = vunpack.c.l.b16 %v5609
    %v5894 = vunpack.c.l.b16 %v5610
    %v5895 = vunpack.c.l.b16 %v5611
    %v5896 = vunpack.c.l.b16 %v5612
    %v5897 = vunpack.c.l.b16 %v5613
    %v5898 = vunpack.c.l.b16 %v5614
    %v5899 = vunpack.c.l.b16 %v5615
    %v5900 = vunpack.c.l.b16 %v5616
    %v5901 = vunpack.c.l.b16 %v5617
    %v5902 = vunpack.c.l.b16 %v5618
    %v5903 = vunpack.c.l.b16 %v5619
    %v5904 = vunpack.c.l.b16 %v5620
    %v5905 = vunpack.c.l.b16 %v5621
    %v5906 = vunpack.c.l.b16 %v5622
    %v5907 = vunpack.c.l.b16 %v5623
    %v5908 = vunpack.c.l.b16 %v5624
    %v5909 = vunpack.c.l.b16 %v5625
    %v5910 = vunpack.c.l.b16 %v5626
    %v5911 = vunpack.c.l.b16 %v5627
    %v5912 = vunpack.c.l.b16 %v5628
    %v5913 = vunpack.c.l.b16 %v5629
    %v5914 = vunpack.c.l.b16 %v5630
    %v5915 = vunpack.c.l.b16 %v5631
    %v5916 = vunpack.c.l.b16 %v5632
    %v5917 = vunpack.c.l.b16 %v5633
    %v5918 = vpack.c.b16 %v5791, %v5790
    %v5919 = vpack.c.b16 %v5793, %v5792
    %v5920 = vpack.c.b16 %v5795, %v5794
    %v5921 = vpack.c.b16 %v5797, %v5796
    %v5922 = vpack.c.b16 %v5799, %v5798
    %v5923 = vpack.c.b16 %v5801, %v5800
    %v5924 = vpack.c.b16 %v5803, %v5802
    %v5925 = vpack.c.b16 %v5805, %v5804
    %v5926 = vpack.c.b16 %v5807, %v5806
    %v5927 = vpack.c.b16 %v5809, %v5808
    %v5928 = vpack.c.b16 %v5811, %v5810
    %v5929 = vpack.c.b16 %v5813, %v5812
    %v5930 = vpack.c.b16 %v5815, %v5814
    %v5931 = vpack.c.b16 %v5817, %v5816
    %v5932 = vpack.c.b16 %v5819, %v5818
    %v5933 = vpack.c.b16 %v5821, %v5820
    %v5934 = vpack.c.b16 %v5823, %v5822
    %v5935 = vpack.c.b16 %v5825, %v5824
    %v5936 = vpack.c.b16 %v5827, %v5826
    %v5937 = vpack.c.b16 %v5829, %v5828
    %v5938 = vpack.c.b16 %v5831, %v5830
    %v5939 = vpack.c.b16 %v5833, %v5832
    %v5940 = vpack.c.b16 %v5835, %v5834
    %v5941 = vpack.c.b16 %v5837, %v5836
    %v5942 = vpack.c.b16 %v5839, %v5838
    %v5943 = vpack.c.b16 %v5841, %v5840
    %v5944 = vpack.c.b16 %v5843, %v5842
    %v5945 = vpack.c.b16 %v5845, %v5844
    %v5946 = vpack.c.b16 %v5847, %v5846
    %v5947 = vpack.c.b16 %v5849, %v5848
    %v5948 = vpack.c.b16 %v5851, %v5850
    %v5949 = vpack.c.b16 %v5853, %v5852
    %v5950 = vpack.c.b16 %v5855, %v5854
    %v5951 = vpack.c.b16 %v5857, %v5856
    %v5952 = vpack.c.b16 %v5859, %v5858
    %v5953 = vpack.c.b16 %v5861, %v5860
    %v5954 = vpack.c.b16 %v5863, %v5862
    %v5955 = vpack.c.b16 %v5865, %v5864
    %v5956 = vpack.c.b16 %v5867, %v5866
    %v5957 = vpack.c.b16 %v5869, %v5868
    %v5958 = vpack.c.b16 %v5871, %v5870
    %v5959 = vpack.c.b16 %v5873, %v5872
    %v5960 = vpack.c.b16 %v5875, %v5874
    %v5961 = vpack.c.b16 %v5877, %v5876
    %v5962 = vpack.c.b16 %v5879, %v5878
    %v5963 = vpack.c.b16 %v5881, %v5880
    %v5964 = vpack.c.b16 %v5883, %v5882
    %v5965 = vpack.c.b16 %v5885, %v5884
    %v5966 = vpack.c.b16 %v5887, %v5886
    %v5967 = vpack.c.b16 %v5889, %v5888
    %v5968 = vpack.c.b16 %v5891, %v5890
    %v5969 = vpack.c.b16 %v5893, %v5892
    %v5970 = vpack.c.b16 %v5895, %v5894
    %v5971 = vpack.c.b16 %v5897, %v5896
    %v5972 = vpack.c.b16 %v5899, %v5898
    %v5973 = vpack.c.b16 %v5901, %v5900
    %v5974 = vpack.c.b16 %v5903, %v5902
    %v5975 = vpack.c.b16 %v5905, %v5904
    %v5976 = vpack.c.b16 %v5907, %v5906
    %v5977 = vpack.c.b16 %v5909, %v5908
    %v5978 = vpack.c.b16 %v5911, %v5910
    %v5979 = vpack.c.b16 %v5913, %v5912
    %v5980 = vpack.c.b16 %v5915, %v5914
    %v5981 = vpack.c.b16 %v5917, %v5916
    %6046 = vmatprep.subr.bf16.mxu0 0
    %6047 = vmatpush1.bf16.msra.mxu0 %v5925
    %6048 = vmatprep.subr.bf16.mxu0 0
    %6049 = vmatpush1.bf16.msra.mxu0 %v5924
    %6050 = vmatprep.subr.bf16.mxu0 0
    %6051 = vmatpush1.bf16.msra.mxu0 %v5923
    %6052 = vmatprep.subr.bf16.mxu0 0
    %6053 = vmatpush1.bf16.msra.mxu0 %v5922
    %6054 = vmatprep.subr.bf16.mxu0 0
    %6055 = vmatpush1.bf16.msra.mxu0 %v5921
    %6056 = vmatprep.subr.bf16.mxu0 0
    %6057 = vmatpush1.bf16.msra.mxu0 %v5920
    %6058 = vmatprep.subr.bf16.mxu0 0
    %6059 = vmatpush1.bf16.msra.mxu0 %v5919
    %6060 = vmatprep.subr.bf16.mxu0 0
    %6061 = vmatpush1.bf16.msra.mxu0 %v5918
    %6062 = vmatprep.subr.bf16.mxu0 0
    %6063 = vmatpush2.bf16.msra.mxu0 %v5933
    %6064 = vmatprep.subr.bf16.mxu0 0
    %6065 = vmatpush2.bf16.msra.mxu0 %v5932
    %6066 = vmatprep.subr.bf16.mxu0 0
    %6067 = vmatpush2.bf16.msra.mxu0 %v5931
    %6068 = vmatprep.subr.bf16.mxu0 0
    %6069 = vmatpush2.bf16.msra.mxu0 %v5930
    %6070 = vmatprep.subr.bf16.mxu0 0
    %6071 = vmatpush2.bf16.msra.mxu0 %v5929
    %6072 = vmatprep.subr.bf16.mxu0 0
    %6073 = vmatpush2.bf16.msra.mxu0 %v5928
    %6074 = vmatprep.subr.bf16.mxu0 0
    %6075 = vmatpush2.bf16.msra.mxu0 %v5927
    %6076 = vmatprep.subr.bf16.mxu0 0
    %6077 = vmatpush2.bf16.msra.mxu0 %v5926
    %6078 = vmatprep.mubr.bf16.mxu0 %v5647
    %6079 = vmatmul.mubr.bf16.gmra.mxu0 %v5646
    %v6080 = vpop.f32.mrf.mxu0
    %v6081 = vadd.f32 %v4917, %v6080
    %v6082 = vpop.f32.mrf.mxu0
    %v6083 = vpop.f32.mrf.mxu0
    %v6084 = vpop.f32.mrf.mxu0
    %6085 = vdwg.mxu0
    %6086 = vmatprep.subr.bf16.mxu0 0
    %6087 = vmatpush1.bf16.msra.mxu0 %v5941
    %6088 = vmatprep.subr.bf16.mxu0 0
    %6089 = vmatpush1.bf16.msra.mxu0 %v5940
    %6090 = vmatprep.subr.bf16.mxu0 0
    %6091 = vmatpush1.bf16.msra.mxu0 %v5939
    %6092 = vmatprep.subr.bf16.mxu0 0
    %6093 = vmatpush1.bf16.msra.mxu0 %v5938
    %6094 = vmatprep.subr.bf16.mxu0 0
    %6095 = vmatpush1.bf16.msra.mxu0 %v5937
    %6096 = vmatprep.subr.bf16.mxu0 0
    %6097 = vmatpush1.bf16.msra.mxu0 %v5936
    %6098 = vmatprep.subr.bf16.mxu0 0
    %6099 = vmatpush1.bf16.msra.mxu0 %v5935
    %6100 = vmatprep.subr.bf16.mxu0 0
    %6101 = vmatpush1.bf16.msra.mxu0 %v5934
    %6102 = vmatprep.subr.bf16.mxu0 0
    %6103 = vmatpush2.bf16.msra.mxu0 %v5949
    %6104 = vmatprep.subr.bf16.mxu0 0
    %6105 = vmatpush2.bf16.msra.mxu0 %v5948
    %6106 = vmatprep.subr.bf16.mxu0 0
    %6107 = vmatpush2.bf16.msra.mxu0 %v5947
    %6108 = vmatprep.subr.bf16.mxu0 0
    %6109 = vmatpush2.bf16.msra.mxu0 %v5946
    %6110 = vmatprep.subr.bf16.mxu0 0
    %6111 = vmatpush2.bf16.msra.mxu0 %v5945
    %6112 = vmatprep.subr.bf16.mxu0 0
    %6113 = vmatpush2.bf16.msra.mxu0 %v5944
    %6114 = vmatprep.subr.bf16.mxu0 0
    %6115 = vmatpush2.bf16.msra.mxu0 %v5943
    %6116 = vmatprep.subr.bf16.mxu0 0
    %6117 = vmatpush2.bf16.msra.mxu0 %v5942
    %6118 = vmatprep.mubr.bf16.mxu0 %v5649
    %6119 = vmatmul.mubr.bf16.gmra.mxu0 %v5648
    %v6120 = vpop.f32.mrf.mxu0
    %v6121 = vadd.f32 %v6081, %v6120
    %v6122 = vpop.f32.mrf.mxu0
    %v6123 = vpop.f32.mrf.mxu0
    %v6124 = vpop.f32.mrf.mxu0
    %6125 = vdwg.mxu0
    %6126 = vmatprep.subr.bf16.mxu0 0
    %6127 = vmatpush1.bf16.msra.mxu0 %v5957
    %6128 = vmatprep.subr.bf16.mxu0 0
    %6129 = vmatpush1.bf16.msra.mxu0 %v5956
    %6130 = vmatprep.subr.bf16.mxu0 0
    %6131 = vmatpush1.bf16.msra.mxu0 %v5955
    %6132 = vmatprep.subr.bf16.mxu0 0
    %6133 = vmatpush1.bf16.msra.mxu0 %v5954
    %6134 = vmatprep.subr.bf16.mxu0 0
    %6135 = vmatpush1.bf16.msra.mxu0 %v5953
    %6136 = vmatprep.subr.bf16.mxu0 0
    %6137 = vmatpush1.bf16.msra.mxu0 %v5952
    %6138 = vmatprep.subr.bf16.mxu0 0
    %6139 = vmatpush1.bf16.msra.mxu0 %v5951
    %6140 = vmatprep.subr.bf16.mxu0 0
    %6141 = vmatpush1.bf16.msra.mxu0 %v5950
    %6142 = vmatprep.subr.bf16.mxu0 0
    %6143 = vmatpush2.bf16.msra.mxu0 %v5965
    %6144 = vmatprep.subr.bf16.mxu0 0
    %6145 = vmatpush2.bf16.msra.mxu0 %v5964
    %6146 = vmatprep.subr.bf16.mxu0 0
    %6147 = vmatpush2.bf16.msra.mxu0 %v5963
    %6148 = vmatprep.subr.bf16.mxu0 0
    %6149 = vmatpush2.bf16.msra.mxu0 %v5962
    %6150 = vmatprep.subr.bf16.mxu0 0
    %6151 = vmatpush2.bf16.msra.mxu0 %v5961
    %6152 = vmatprep.subr.bf16.mxu0 0
    %6153 = vmatpush2.bf16.msra.mxu0 %v5960
    %6154 = vmatprep.subr.bf16.mxu0 0
    %6155 = vmatpush2.bf16.msra.mxu0 %v5959
    %6156 = vmatprep.subr.bf16.mxu0 0
    %6157 = vmatpush2.bf16.msra.mxu0 %v5958
    %6158 = vmatprep.mubr.bf16.mxu0 %v5651
    %6159 = vmatmul.mubr.bf16.gmra.mxu0 %v5650
    %v6160 = vpop.f32.mrf.mxu0
    %v6161 = vadd.f32 %v6121, %v6160
    %v6162 = vpop.f32.mrf.mxu0
    %v6163 = vpop.f32.mrf.mxu0
    %v6164 = vpop.f32.mrf.mxu0
    %6165 = vdwg.mxu0
    %6166 = vmatprep.subr.bf16.mxu0 0
    %6167 = vmatpush1.bf16.msra.mxu0 %v5973
    %6168 = vmatprep.subr.bf16.mxu0 0
    %6169 = vmatpush1.bf16.msra.mxu0 %v5972
    %6170 = vmatprep.subr.bf16.mxu0 0
    %6171 = vmatpush1.bf16.msra.mxu0 %v5971
    %6172 = vmatprep.subr.bf16.mxu0 0
    %6173 = vmatpush1.bf16.msra.mxu0 %v5970
    %6174 = vmatprep.subr.bf16.mxu0 0
    %6175 = vmatpush1.bf16.msra.mxu0 %v5969
    %6176 = vmatprep.subr.bf16.mxu0 0
    %6177 = vmatpush1.bf16.msra.mxu0 %v5968
    %6178 = vmatprep.subr.bf16.mxu0 0
    %6179 = vmatpush1.bf16.msra.mxu0 %v5967
    %6180 = vmatprep.subr.bf16.mxu0 0
    %6181 = vmatpush1.bf16.msra.mxu0 %v5966
    %6182 = vmatprep.subr.bf16.mxu0 0
    %6183 = vmatpush2.bf16.msra.mxu0 %v5981
    %6184 = vmatprep.subr.bf16.mxu0 0
    %6185 = vmatpush2.bf16.msra.mxu0 %v5980
    %6186 = vmatprep.subr.bf16.mxu0 0
    %6187 = vmatpush2.bf16.msra.mxu0 %v5979
    %6188 = vmatprep.subr.bf16.mxu0 0
    %6189 = vmatpush2.bf16.msra.mxu0 %v5978
    %6190 = vmatprep.subr.bf16.mxu0 0
    %6191 = vmatpush2.bf16.msra.mxu0 %v5977
    %6192 = vmatprep.subr.bf16.mxu0 0
    %6193 = vmatpush2.bf16.msra.mxu0 %v5976
    %6194 = vmatprep.subr.bf16.mxu0 0
    %6195 = vmatpush2.bf16.msra.mxu0 %v5975
    %6196 = vmatprep.subr.bf16.mxu0 0
    %6197 = vmatpush2.bf16.msra.mxu0 %v5974
    %6198 = vmatprep.mubr.bf16.mxu0 %v5653
    %6199 = vmatmul.mubr.bf16.gmra.mxu0 %v5652
    %v6200 = vpop.f32.mrf.mxu0
    %v6201 = vadd.f32 %v6161, %v6200
    %v6202 = vpop.f32.mrf.mxu0
    %v6203 = vpop.f32.mrf.mxu0
    %v6204 = vpop.f32.mrf.mxu0
    %6205 = vdwg.mxu0
    %v6206 = vpack.c.bf16 %v4911, %v4911
    %v6207 = vld [vmem:[%s10] sm:$0xf]
    %v6208 = vld [vmem:[%s10 + $0x4] sm:$0xf]
    %v6209 = vld [vmem:[%s10 + $0x8] sm:$0xf]
    %v6210 = vld [vmem:[%s10 + $0xc] sm:$0xf]
    %v6211 = vld [vmem:[%s10 + $0x10] sm:$0xf]
    %v6212 = vld [vmem:[%s10 + $0x14] sm:$0xf]
    %v6213 = vld [vmem:[%s10 + $0x18] sm:$0xf]
    %v6214 = vld [vmem:[%s10 + $0x1c] sm:$0xf]
    %v6223 = vunpack.c.l.b16 %v6207
    %v6224 = vunpack.c.l.b16 %v6208
    %v6225 = vunpack.c.l.b16 %v6209
    %v6226 = vunpack.c.l.b16 %v6210
    %v6227 = vunpack.c.l.b16 %v6211
    %v6228 = vunpack.c.l.b16 %v6212
    %v6229 = vunpack.c.l.b16 %v6213
    %v6230 = vunpack.c.l.b16 %v6214
    %v6231 = vpack.c.b16 %v6224, %v6223
    %v6232 = vpack.c.b16 %v6226, %v6225
    %v6233 = vpack.c.b16 %v6228, %v6227
    %v6234 = vpack.c.b16 %v6230, %v6229
    %v6240 = vsel %vm3917, %v6206, 0
    %6242 = vmatprep.subr.bf16.mxu0 0
    %6243 = vmatpush1.bf16.msra.mxu0 0
    %6244 = vmatprep.subr.bf16.mxu0 0
    %6245 = vmatpush1.bf16.msra.mxu0 0
    %6246 = vmatprep.subr.bf16.mxu0 0
    %6247 = vmatpush1.bf16.msra.mxu0 0
    %6248 = vmatprep.subr.bf16.mxu0 0
    %6249 = vmatpush1.bf16.msra.mxu0 0
    %6250 = vmatprep.subr.bf16.mxu0 0
    %6251 = vmatpush1.bf16.msra.mxu0 %v6234
    %6252 = vmatprep.subr.bf16.mxu0 0
    %6253 = vmatpush1.bf16.msra.mxu0 %v6233
    %6254 = vmatprep.subr.bf16.mxu0 0
    %6255 = vmatpush1.bf16.msra.mxu0 %v6232
    %6256 = vmatprep.subr.bf16.mxu0 0
    %6257 = vmatpush1.bf16.msra.mxu0 %v6231
    %6258 = vmatprep.subr.bf16.mxu0 0
    %6259 = vmatpush2.bf16.msra.mxu0 0
    %6260 = vmatprep.subr.bf16.mxu0 0
    %6261 = vmatpush2.bf16.msra.mxu0 0
    %6262 = vmatprep.subr.bf16.mxu0 0
    %6263 = vmatpush2.bf16.msra.mxu0 0
    %6264 = vmatprep.subr.bf16.mxu0 0
    %6265 = vmatpush2.bf16.msra.mxu0 0
    %6266 = vmatprep.subr.bf16.mxu0 0
    %6267 = vmatpush2.bf16.msra.mxu0 0
    %6268 = vmatprep.subr.bf16.mxu0 0
    %6269 = vmatpush2.bf16.msra.mxu0 0
    %6270 = vmatprep.subr.bf16.mxu0 0
    %6271 = vmatpush2.bf16.msra.mxu0 0
    %6272 = vmatprep.subr.bf16.mxu0 0
    %6273 = vmatpush2.bf16.msra.mxu0 0
    %6274 = vmatprep.mubr.bf16.mxu0 0
    %6275 = vmatmul.mubr.bf16.gmra.mxu0 %v6240
    %v6276 = vpop.f32.mrf.mxu0
    %v6277 = vadd.f32 %v4918, %v6276
    %v6278 = vpop.f32.mrf.mxu0
    %v6279 = vpop.f32.mrf.mxu0
    %v6280 = vpop.f32.mrf.mxu0
    %6281 = vdwg.mxu0
    %v6282 = vadd.f32 %v6201, %v6277
    %v6283 = vmax.f32 %v6282, 0.0
    %6284 = vst [vmem:[#allocation4] sm:$0xff] %v6283
    %v6285 = vld [vmem:[#allocation4] ss:$2 sm:$0xf]
    %v6286 = vld [vmem:[%s3284] ss:$2 sm:$0xf]
    %v6287 = vmax.f32 %v6285, %v6286
    %v6288 = vsel %vm3216, %v6287, 0.0
    %v6289 = vrot.slane %v6288, 4
    %v6290 = vadd.f32 %v6288, %v6289
    %v6291 = vrot.slane %v6290, 2
    %v6292 = vadd.f32 %v6290, %v6291
    %v6293 = vrot.slane %v6292, 1
    %v6294 = vadd.f32 %v6292, %v6293
    %v6296 = vrot.slane %v6287, 2
    %v6298 = vsel %vm3216, %v6296, 0.0
    %v6299 = vrot.slane %v6298, 4
    %v6300 = vadd.f32 %v6298, %v6299
    %v6301 = vrot.slane %v6300, 2
    %v6302 = vadd.f32 %v6300, %v6301
    %v6303 = vrot.slane %v6302, 1
    %v6304 = vadd.f32 %v6302, %v6303
    %vm6305 = vcmask 1040384
    %v6306 = vsel %vm6305, %v6294, %v6304
    %v6307 = vmul.f32 %v6306, 0.5
    %s6308 = scalar_lea.vmem [#allocation5], 37
    %v6309 = vld [vmem:[%s6308] ss:$8 sm:$0x3]
    %v6310 = vpack.c.bf16 %v6307, %v6307
    %v6311 = vld [vmem:[#allocation17] sm:$0xff]
    %v6312 = vld [vmem:[#allocation17 + $0x8] sm:$0xff]
    %v6313 = vld [vmem:[#allocation17 + $0x10] sm:$0xff]
    %v6314 = vld [vmem:[#allocation17 + $0x18] sm:$0xff]
    %v6315 = vld [vmem:[#allocation17 + $0x20] sm:$0xff]
    %v6316 = vld [vmem:[#allocation17 + $0x28] sm:$0xff]
    %v6317 = vld [vmem:[#allocation17 + $0x30] sm:$0xff]
    %v6318 = vld [vmem:[#allocation17 + $0x38] sm:$0xff]
    %v6319 = vld [vmem:[#allocation17 + $0x40] sm:$0xff]
    %v6320 = vld [vmem:[#allocation17 + $0x48] sm:$0xff]
    %v6321 = vld [vmem:[#allocation17 + $0x50] sm:$0xff]
    %v6322 = vld [vmem:[#allocation17 + $0x58] sm:$0xff]
    %v6323 = vld [vmem:[#allocation17 + $0x60] sm:$0xff]
    %v6324 = vld [vmem:[#allocation17 + $0x68] sm:$0xff]
    %v6325 = vld [vmem:[#allocation17 + $0x70] sm:$0xff]
    %v6326 = vld [vmem:[#allocation17 + $0x78] sm:$0xff]
    %v6328 = vlaneseq
    %v6329 = vshrl.u32 %v6328, 7
    %v6330 = vsub.s32 0, %v6329
    %v6331 = vrot.slane %v6309, %v6330
    %v6332 = vlaneseq
    %v6333 = vshrl.u32 %v6332, 7
    %v6334 = vsub.s32 1, %v6333
    %v6335 = vrot.slane %v6309, %v6334
    %v6354 = vunpack.c.l.b16 %v6311
    %v6355 = vunpack.c.h.b16 %v6311
    %v6356 = vunpack.c.l.b16 %v6312
    %v6357 = vunpack.c.h.b16 %v6312
    %v6358 = vunpack.c.l.b16 %v6313
    %v6359 = vunpack.c.h.b16 %v6313
    %v6360 = vunpack.c.l.b16 %v6314
    %v6361 = vunpack.c.h.b16 %v6314
    %v6362 = vunpack.c.l.b16 %v6315
    %v6363 = vunpack.c.h.b16 %v6315
    %v6364 = vunpack.c.l.b16 %v6316
    %v6365 = vunpack.c.h.b16 %v6316
    %v6366 = vunpack.c.l.b16 %v6317
    %v6367 = vunpack.c.h.b16 %v6317
    %v6368 = vunpack.c.l.b16 %v6318
    %v6369 = vunpack.c.h.b16 %v6318
    %v6370 = vunpack.c.l.b16 %v6319
    %v6371 = vunpack.c.h.b16 %v6319
    %v6372 = vunpack.c.l.b16 %v6320
    %v6373 = vunpack.c.h.b16 %v6320
    %v6374 = vunpack.c.l.b16 %v6321
    %v6375 = vunpack.c.h.b16 %v6321
    %v6376 = vunpack.c.l.b16 %v6322
    %v6377 = vunpack.c.h.b16 %v6322
    %v6378 = vunpack.c.l.b16 %v6323
    %v6379 = vunpack.c.h.b16 %v6323
    %v6380 = vunpack.c.l.b16 %v6324
    %v6381 = vunpack.c.h.b16 %v6324
    %v6382 = vunpack.c.l.b16 %v6325
    %v6383 = vunpack.c.h.b16 %v6325
    %v6384 = vunpack.c.l.b16 %v6326
    %v6385 = vunpack.c.h.b16 %v6326
    %v6386 = vpack.c.b16 %v6356, %v6354
    %v6387 = vpack.c.b16 %v6357, %v6355
    %v6388 = vpack.c.b16 %v6360, %v6358
    %v6389 = vpack.c.b16 %v6361, %v6359
    %v6390 = vpack.c.b16 %v6364, %v6362
    %v6391 = vpack.c.b16 %v6365, %v6363
    %v6392 = vpack.c.b16 %v6368, %v6366
    %v6393 = vpack.c.b16 %v6369, %v6367
    %v6394 = vpack.c.b16 %v6372, %v6370
    %v6395 = vpack.c.b16 %v6373, %v6371
    %v6396 = vpack.c.b16 %v6376, %v6374
    %v6397 = vpack.c.b16 %v6377, %v6375
    %v6398 = vpack.c.b16 %v6380, %v6378
    %v6399 = vpack.c.b16 %v6381, %v6379
    %v6400 = vpack.c.b16 %v6384, %v6382
    %v6401 = vpack.c.b16 %v6385, %v6383
    %6418 = vmatprep.subr.bf16.mxu0 %v6401
    %6419 = vmatpush1.bf16.msra.mxu0 %v6400
    %6420 = vmatprep.subr.bf16.mxu0 %v6399
    %6421 = vmatpush1.bf16.msra.mxu0 %v6398
    %6422 = vmatprep.subr.bf16.mxu0 %v6397
    %6423 = vmatpush1.bf16.msra.mxu0 %v6396
    %6424 = vmatprep.subr.bf16.mxu0 %v6395
    %6425 = vmatpush1.bf16.msra.mxu0 %v6394
    %6426 = vmatprep.subr.bf16.mxu0 %v6393
    %6427 = vmatpush1.bf16.msra.mxu0 %v6392
    %6428 = vmatprep.subr.bf16.mxu0 %v6391
    %6429 = vmatpush1.bf16.msra.mxu0 %v6390
    %6430 = vmatprep.subr.bf16.mxu0 %v6389
    %6431 = vmatpush1.bf16.msra.mxu0 %v6388
    %6432 = vmatprep.subr.bf16.mxu0 %v6387
    %6433 = vmatpush1.bf16.msra.mxu0 %v6386
    %6434 = vmatprep.subr.bf16.mxu0 0
    %6435 = vmatpush2.bf16.msra.mxu0 0
    %6436 = vmatprep.subr.bf16.mxu0 0
    %6437 = vmatpush2.bf16.msra.mxu0 0
    %6438 = vmatprep.subr.bf16.mxu0 0
    %6439 = vmatpush2.bf16.msra.mxu0 0
    %6440 = vmatprep.subr.bf16.mxu0 0
    %6441 = vmatpush2.bf16.msra.mxu0 0
    %6442 = vmatprep.subr.bf16.mxu0 0
    %6443 = vmatpush2.bf16.msra.mxu0 0
    %6444 = vmatprep.subr.bf16.mxu0 0
    %6445 = vmatpush2.bf16.msra.mxu0 0
    %6446 = vmatprep.subr.bf16.mxu0 0
    %6447 = vmatpush2.bf16.msra.mxu0 0
    %6448 = vmatprep.subr.bf16.mxu0 0
    %6449 = vmatpush2.bf16.msra.mxu0 0
    %6450 = vmatprep.mubr.bf16.mxu0 0
    %6451 = vmatmul.mubr.bf16.gmra.mxu0 %v6310
    %v6452 = vpop.f32.mrf.mxu0
    %v6453 = vadd.f32 %v6331, %v6452
    %v6454 = vpop.f32.mrf.mxu0
    %v6455 = vadd.f32 %v6335, %v6454
    %v6456 = vpop.f32.mrf.mxu0
    %v6457 = vpop.f32.mrf.mxu0
    %6458 = vdwg.mxu0
    %v6459 = vmax.f32 %v6453, 0.0
    %v6460 = vmax.f32 %v6455, 0.0
    %v6461 = vld [vmem:[#allocation5 + $0x26] ss:$0 sm:$0xff]
    %v6462 = vpack.c.bf16 %v6459, %v6459
    %v6463 = vpack.c.bf16 %v6460, %v6460
    %v6464 = vld [vmem:[#allocation19] sm:$0xf]
    %v6465 = vld [vmem:[#allocation19 + $0x4] sm:$0xf]
    %v6466 = vld [vmem:[#allocation19 + $0x8] sm:$0xf]
    %v6467 = vld [vmem:[#allocation19 + $0xc] sm:$0xf]
    %v6468 = vld [vmem:[#allocation19 + $0x10] sm:$0xf]
    %v6469 = vld [vmem:[#allocation19 + $0x14] sm:$0xf]
    %v6470 = vld [vmem:[#allocation19 + $0x18] sm:$0xf]
    %v6471 = vld [vmem:[#allocation19 + $0x1c] sm:$0xf]
    %v6472 = vld [vmem:[#allocation19 + $0x20] sm:$0xf]
    %v6473 = vld [vmem:[#allocation19 + $0x24] sm:$0xf]
    %v6474 = vld [vmem:[#allocation19 + $0x28] sm:$0xf]
    %v6475 = vld [vmem:[#allocation19 + $0x2c] sm:$0xf]
    %v6476 = vld [vmem:[#allocation19 + $0x30] sm:$0xf]
    %v6477 = vld [vmem:[#allocation19 + $0x34] sm:$0xf]
    %v6478 = vld [vmem:[#allocation19 + $0x38] sm:$0xf]
    %v6479 = vld [vmem:[#allocation19 + $0x3c] sm:$0xf]
    %v6480 = vld [vmem:[#allocation19 + $0x40] sm:$0xf]
    %v6481 = vld [vmem:[#allocation19 + $0x44] sm:$0xf]
    %v6482 = vld [vmem:[#allocation19 + $0x48] sm:$0xf]
    %v6483 = vld [vmem:[#allocation19 + $0x4c] sm:$0xf]
    %v6484 = vld [vmem:[#allocation19 + $0x50] sm:$0xf]
    %v6485 = vld [vmem:[#allocation19 + $0x54] sm:$0xf]
    %v6486 = vld [vmem:[#allocation19 + $0x58] sm:$0xf]
    %v6487 = vld [vmem:[#allocation19 + $0x5c] sm:$0xf]
    %v6488 = vld [vmem:[#allocation19 + $0x60] sm:$0xf]
    %v6489 = vld [vmem:[#allocation19 + $0x64] sm:$0xf]
    %v6490 = vld [vmem:[#allocation19 + $0x68] sm:$0xf]
    %v6491 = vld [vmem:[#allocation19 + $0x6c] sm:$0xf]
    %v6492 = vld [vmem:[#allocation19 + $0x70] sm:$0xf]
    %v6493 = vld [vmem:[#allocation19 + $0x74] sm:$0xf]
    %v6494 = vld [vmem:[#allocation19 + $0x78] sm:$0xf]
    %v6495 = vld [vmem:[#allocation19 + $0x7c] sm:$0xf]
    %v6528 = vunpack.c.l.b16 %v6464
    %v6529 = vunpack.c.l.b16 %v6465
    %v6530 = vunpack.c.l.b16 %v6466
    %v6531 = vunpack.c.l.b16 %v6467
    %v6532 = vunpack.c.l.b16 %v6468
    %v6533 = vunpack.c.l.b16 %v6469
    %v6534 = vunpack.c.l.b16 %v6470
    %v6535 = vunpack.c.l.b16 %v6471
    %v6536 = vunpack.c.l.b16 %v6472
    %v6537 = vunpack.c.l.b16 %v6473
    %v6538 = vunpack.c.l.b16 %v6474
    %v6539 = vunpack.c.l.b16 %v6475
    %v6540 = vunpack.c.l.b16 %v6476
    %v6541 = vunpack.c.l.b16 %v6477
    %v6542 = vunpack.c.l.b16 %v6478
    %v6543 = vunpack.c.l.b16 %v6479
    %v6544 = vunpack.c.l.b16 %v6480
    %v6545 = vunpack.c.l.b16 %v6481
    %v6546 = vunpack.c.l.b16 %v6482
    %v6547 = vunpack.c.l.b16 %v6483
    %v6548 = vunpack.c.l.b16 %v6484
    %v6549 = vunpack.c.l.b16 %v6485
    %v6550 = vunpack.c.l.b16 %v6486
    %v6551 = vunpack.c.l.b16 %v6487
    %v6552 = vunpack.c.l.b16 %v6488
    %v6553 = vunpack.c.l.b16 %v6489
    %v6554 = vunpack.c.l.b16 %v6490
    %v6555 = vunpack.c.l.b16 %v6491
    %v6556 = vunpack.c.l.b16 %v6492
    %v6557 = vunpack.c.l.b16 %v6493
    %v6558 = vunpack.c.l.b16 %v6494
    %v6559 = vunpack.c.l.b16 %v6495
    %v6560 = vpack.c.b16 %v6529, %v6528
    %v6561 = vpack.c.b16 %v6531, %v6530
    %v6562 = vpack.c.b16 %v6533, %v6532
    %v6563 = vpack.c.b16 %v6535, %v6534
    %v6564 = vpack.c.b16 %v6537, %v6536
    %v6565 = vpack.c.b16 %v6539, %v6538
    %v6566 = vpack.c.b16 %v6541, %v6540
    %v6567 = vpack.c.b16 %v6543, %v6542
    %v6568 = vpack.c.b16 %v6545, %v6544
    %v6569 = vpack.c.b16 %v6547, %v6546
    %v6570 = vpack.c.b16 %v6549, %v6548
    %v6571 = vpack.c.b16 %v6551, %v6550
    %v6572 = vpack.c.b16 %v6553, %v6552
    %v6573 = vpack.c.b16 %v6555, %v6554
    %v6574 = vpack.c.b16 %v6557, %v6556
    %v6575 = vpack.c.b16 %v6559, %v6558
    %6592 = vmatprep.subr.bf16.mxu0 0
    %6593 = vmatpush1.bf16.msra.mxu0 %v6567
    %6594 = vmatprep.subr.bf16.mxu0 0
    %6595 = vmatpush1.bf16.msra.mxu0 %v6566
    %6596 = vmatprep.subr.bf16.mxu0 0
    %6597 = vmatpush1.bf16.msra.mxu0 %v6565
    %6598 = vmatprep.subr.bf16.mxu0 0
    %6599 = vmatpush1.bf16.msra.mxu0 %v6564
    %6600 = vmatprep.subr.bf16.mxu0 0
    %6601 = vmatpush1.bf16.msra.mxu0 %v6563
    %6602 = vmatprep.subr.bf16.mxu0 0
    %6603 = vmatpush1.bf16.msra.mxu0 %v6562
    %6604 = vmatprep.subr.bf16.mxu0 0
    %6605 = vmatpush1.bf16.msra.mxu0 %v6561
    %6606 = vmatprep.subr.bf16.mxu0 0
    %6607 = vmatpush1.bf16.msra.mxu0 %v6560
    %6608 = vmatprep.subr.bf16.mxu0 0
    %6609 = vmatpush2.bf16.msra.mxu0 %v6575
    %6610 = vmatprep.subr.bf16.mxu0 0
    %6611 = vmatpush2.bf16.msra.mxu0 %v6574
    %6612 = vmatprep.subr.bf16.mxu0 0
    %6613 = vmatpush2.bf16.msra.mxu0 %v6573
    %6614 = vmatprep.subr.bf16.mxu0 0
    %6615 = vmatpush2.bf16.msra.mxu0 %v6572
    %6616 = vmatprep.subr.bf16.mxu0 0
    %6617 = vmatpush2.bf16.msra.mxu0 %v6571
    %6618 = vmatprep.subr.bf16.mxu0 0
    %6619 = vmatpush2.bf16.msra.mxu0 %v6570
    %6620 = vmatprep.subr.bf16.mxu0 0
    %6621 = vmatpush2.bf16.msra.mxu0 %v6569
    %6622 = vmatprep.subr.bf16.mxu0 0
    %6623 = vmatpush2.bf16.msra.mxu0 %v6568
    %6624 = vmatprep.mubr.bf16.mxu0 %v6463
    %6625 = vmatmul.mubr.bf16.gmra.mxu0 %v6462
    %v6626 = vpop.f32.mrf.mxu0
    %v6627 = vadd.f32 %v6461, %v6626
    %v6628 = vpop.f32.mrf.mxu0
    %v6629 = vpop.f32.mrf.mxu0
    %v6630 = vpop.f32.mrf.mxu0
    %6631 = vdwg.mxu0
    %v6632 = vmax.f32 %v6627, 0.0
    %v6633 = vld [vmem:[#allocation5 + $0x27] ss:$0 sm:$0xff]
    %v6634 = vpack.c.bf16 %v6632, %v6632
    %v6635 = vld [vmem:[#allocation20] sm:$0xf]
    %v6636 = vld [vmem:[#allocation20 + $0x4] sm:$0xf]
    %v6637 = vld [vmem:[#allocation20 + $0x8] sm:$0xf]
    %v6638 = vld [vmem:[#allocation20 + $0xc] sm:$0xf]
    %v6639 = vld [vmem:[#allocation20 + $0x10] sm:$0xf]
    %v6640 = vld [vmem:[#allocation20 + $0x14] sm:$0xf]
    %v6641 = vld [vmem:[#allocation20 + $0x18] sm:$0xf]
    %v6642 = vld [vmem:[#allocation20 + $0x1c] sm:$0xf]
    %v6643 = vld [vmem:[#allocation20 + $0x20] sm:$0xf]
    %v6644 = vld [vmem:[#allocation20 + $0x24] sm:$0xf]
    %v6645 = vld [vmem:[#allocation20 + $0x28] sm:$0xf]
    %v6646 = vld [vmem:[#allocation20 + $0x2c] sm:$0xf]
    %v6647 = vld [vmem:[#allocation20 + $0x30] sm:$0xf]
    %v6648 = vld [vmem:[#allocation20 + $0x34] sm:$0xf]
    %v6649 = vld [vmem:[#allocation20 + $0x38] sm:$0xf]
    %v6650 = vld [vmem:[#allocation20 + $0x3c] sm:$0xf]
    %v6667 = vunpack.c.l.b16 %v6635
    %v6668 = vunpack.c.l.b16 %v6636
    %v6669 = vunpack.c.l.b16 %v6637
    %v6670 = vunpack.c.l.b16 %v6638
    %v6671 = vunpack.c.l.b16 %v6639
    %v6672 = vunpack.c.l.b16 %v6640
    %v6673 = vunpack.c.l.b16 %v6641
    %v6674 = vunpack.c.l.b16 %v6642
    %v6675 = vunpack.c.l.b16 %v6643
    %v6676 = vunpack.c.l.b16 %v6644
    %v6677 = vunpack.c.l.b16 %v6645
    %v6678 = vunpack.c.l.b16 %v6646
    %v6679 = vunpack.c.l.b16 %v6647
    %v6680 = vunpack.c.l.b16 %v6648
    %v6681 = vunpack.c.l.b16 %v6649
    %v6682 = vunpack.c.l.b16 %v6650
    %v6683 = vpack.c.b16 %v6668, %v6667
    %v6684 = vpack.c.b16 %v6670, %v6669
    %v6685 = vpack.c.b16 %v6672, %v6671
    %v6686 = vpack.c.b16 %v6674, %v6673
    %v6687 = vpack.c.b16 %v6676, %v6675
    %v6688 = vpack.c.b16 %v6678, %v6677
    %v6689 = vpack.c.b16 %v6680, %v6679
    %v6690 = vpack.c.b16 %v6682, %v6681
    %6699 = vmatprep.subr.bf16.mxu0 0
    %6700 = vmatpush1.bf16.msra.mxu0 %v6690
    %6701 = vmatprep.subr.bf16.mxu0 0
    %6702 = vmatpush1.bf16.msra.mxu0 %v6689
    %6703 = vmatprep.subr.bf16.mxu0 0
    %6704 = vmatpush1.bf16.msra.mxu0 %v6688
    %6705 = vmatprep.subr.bf16.mxu0 0
    %6706 = vmatpush1.bf16.msra.mxu0 %v6687
    %6707 = vmatprep.subr.bf16.mxu0 0
    %6708 = vmatpush1.bf16.msra.mxu0 %v6686
    %6709 = vmatprep.subr.bf16.mxu0 0
    %6710 = vmatpush1.bf16.msra.mxu0 %v6685
    %6711 = vmatprep.subr.bf16.mxu0 0
    %6712 = vmatpush1.bf16.msra.mxu0 %v6684
    %6713 = vmatprep.subr.bf16.mxu0 0
    %6714 = vmatpush1.bf16.msra.mxu0 %v6683
    %6715 = vmatprep.subr.bf16.mxu0 0
    %6716 = vmatpush2.bf16.msra.mxu0 0
    %6717 = vmatprep.subr.bf16.mxu0 0
    %6718 = vmatpush2.bf16.msra.mxu0 0
    %6719 = vmatprep.subr.bf16.mxu0 0
    %6720 = vmatpush2.bf16.msra.mxu0 0
    %6721 = vmatprep.subr.bf16.mxu0 0
    %6722 = vmatpush2.bf16.msra.mxu0 0
    %6723 = vmatprep.subr.bf16.mxu0 0
    %6724 = vmatpush2.bf16.msra.mxu0 0
    %6725 = vmatprep.subr.bf16.mxu0 0
    %6726 = vmatpush2.bf16.msra.mxu0 0
    %6727 = vmatprep.subr.bf16.mxu0 0
    %6728 = vmatpush2.bf16.msra.mxu0 0
    %6729 = vmatprep.subr.bf16.mxu0 0
    %6730 = vmatpush2.bf16.msra.mxu0 0
    %6731 = vmatprep.mubr.bf16.mxu0 0
    %6732 = vmatmul.mubr.bf16.gmra.mxu0 %v6634
    %v6733 = vpop.f32.mrf.mxu0
    %v6734 = vadd.f32 %v6633, %v6733
    %v6735 = vpop.f32.mrf.mxu0
    %v6736 = vpop.f32.mrf.mxu0
    %v6737 = vpop.f32.mrf.mxu0
    %6738 = vdwg.mxu0
    %v6739 = vmax.f32 %v6734, 0.0
    %v6740 = vld [vmem:[#allocation5 + $0x30] ss:$0 sm:$0xff]
    %v6741 = vpack.c.bf16 %v6739, %v6739
    %v6742 = vld [vmem:[#allocation22] sm:$0xf]
    %v6743 = vld [vmem:[#allocation22 + $0x4] sm:$0xf]
    %v6744 = vld [vmem:[#allocation22 + $0x8] sm:$0xf]
    %v6745 = vld [vmem:[#allocation22 + $0xc] sm:$0xf]
    %v6746 = vld [vmem:[#allocation22 + $0x10] sm:$0xf]
    %v6747 = vld [vmem:[#allocation22 + $0x14] sm:$0xf]
    %v6748 = vld [vmem:[#allocation22 + $0x18] sm:$0xf]
    %v6749 = vld [vmem:[#allocation22 + $0x1c] sm:$0xf]
    %v6750 = vld [vmem:[#allocation22 + $0x20] sm:$0xf]
    %v6751 = vld [vmem:[#allocation22 + $0x24] sm:$0xf]
    %v6752 = vld [vmem:[#allocation22 + $0x28] sm:$0xf]
    %v6753 = vld [vmem:[#allocation22 + $0x2c] sm:$0xf]
    %v6754 = vld [vmem:[#allocation22 + $0x30] sm:$0xf]
    %v6755 = vld [vmem:[#allocation22 + $0x34] sm:$0xf]
    %v6756 = vld [vmem:[#allocation22 + $0x38] sm:$0xf]
    %v6757 = vld [vmem:[#allocation22 + $0x3c] sm:$0xf]
    %v6774 = vunpack.c.l.b16 %v6742
    %v6775 = vunpack.c.l.b16 %v6743
    %v6776 = vunpack.c.l.b16 %v6744
    %v6777 = vunpack.c.l.b16 %v6745
    %v6778 = vunpack.c.l.b16 %v6746
    %v6779 = vunpack.c.l.b16 %v6747
    %v6780 = vunpack.c.l.b16 %v6748
    %v6781 = vunpack.c.l.b16 %v6749
    %v6782 = vunpack.c.l.b16 %v6750
    %v6783 = vunpack.c.l.b16 %v6751
    %v6784 = vunpack.c.l.b16 %v6752
    %v6785 = vunpack.c.l.b16 %v6753
    %v6786 = vunpack.c.l.b16 %v6754
    %v6787 = vunpack.c.l.b16 %v6755
    %v6788 = vunpack.c.l.b16 %v6756
    %v6789 = vunpack.c.l.b16 %v6757
    %v6790 = vpack.c.b16 %v6775, %v6774
    %v6791 = vpack.c.b16 %v6777, %v6776
    %v6792 = vpack.c.b16 %v6779, %v6778
    %v6793 = vpack.c.b16 %v6781, %v6780
    %v6794 = vpack.c.b16 %v6783, %v6782
    %v6795 = vpack.c.b16 %v6785, %v6784
    %v6796 = vpack.c.b16 %v6787, %v6786
    %v6797 = vpack.c.b16 %v6789, %v6788
    %6806 = vmatprep.subr.bf16.mxu0 0
    %6807 = vmatpush1.bf16.msra.mxu0 %v6797
    %6808 = vmatprep.subr.bf16.mxu0 0
    %6809 = vmatpush1.bf16.msra.mxu0 %v6796
    %6810 = vmatprep.subr.bf16.mxu0 0
    %6811 = vmatpush1.bf16.msra.mxu0 %v6795
    %6812 = vmatprep.subr.bf16.mxu0 0
    %6813 = vmatpush1.bf16.msra.mxu0 %v6794
    %6814 = vmatprep.subr.bf16.mxu0 0
    %6815 = vmatpush1.bf16.msra.mxu0 %v6793
    %6816 = vmatprep.subr.bf16.mxu0 0
    %6817 = vmatpush1.bf16.msra.mxu0 %v6792
    %6818 = vmatprep.subr.bf16.mxu0 0
    %6819 = vmatpush1.bf16.msra.mxu0 %v6791
    %6820 = vmatprep.subr.bf16.mxu0 0
    %6821 = vmatpush1.bf16.msra.mxu0 %v6790
    %6822 = vmatprep.subr.bf16.mxu0 0
    %6823 = vmatpush2.bf16.msra.mxu0 0
    %6824 = vmatprep.subr.bf16.mxu0 0
    %6825 = vmatpush2.bf16.msra.mxu0 0
    %6826 = vmatprep.subr.bf16.mxu0 0
    %6827 = vmatpush2.bf16.msra.mxu0 0
    %6828 = vmatprep.subr.bf16.mxu0 0
    %6829 = vmatpush2.bf16.msra.mxu0 0
    %6830 = vmatprep.subr.bf16.mxu0 0
    %6831 = vmatpush2.bf16.msra.mxu0 0
    %6832 = vmatprep.subr.bf16.mxu0 0
    %6833 = vmatpush2.bf16.msra.mxu0 0
    %6834 = vmatprep.subr.bf16.mxu0 0
    %6835 = vmatpush2.bf16.msra.mxu0 0
    %6836 = vmatprep.subr.bf16.mxu0 0
    %6837 = vmatpush2.bf16.msra.mxu0 0
    %6838 = vmatprep.mubr.bf16.mxu0 0
    %6839 = vmatmul.mubr.bf16.gmra.mxu0 %v6741
    %v6840 = vpop.f32.mrf.mxu0
    %v6841 = vadd.f32 %v6740, %v6840
    %v6842 = vpop.f32.mrf.mxu0
    %v6843 = vpop.f32.mrf.mxu0
    %v6844 = vpop.f32.mrf.mxu0
    %6845 = vdwg.mxu0
    %vm6846 = vcmask 33792
    %v6847 = vsel %vm6846, %v6841, -inf
    %6848 = vmax.xlane.f32.xlu0 %v6847
    %v6849 = vpop.xlane.xlu0 %6848
    %v6850 = vsub.f32 %v6841, %v6849
    %v6851 = vmul.f32 %v6850, 1.442695
    %v6852 = vpow.pop %v6851
    %v6853 = vsel %vm6846, %v6852, 0.0
    %6854 = vadd.xlane.f32.xlu0 %v6853
    %v6855 = vpop.xlane.xlu0 %6854
    %v6856 = vrcp.pop %v6855
    %v6857 = vmul.f32 %v6852, %v6856
    %6858 = vst.msk [vmem:[#allocation23] sm:$0x3] %vm6846, %v6857
    // Predicated region
    $region106: #{_lambda_.1} parent=1 // pred_check
      _
    $region107: #{_lambda_.1} parent=1 // pred_check_branch
      %6860 = sbr.rel (0) target = $region109
    $region108: #{_lambda_.1} parent=1 // pred_region
      %s6862 = ssub.s32 32, 32
      %6863 = vsyncadd [#allocation7], %s6862
      %s6865 = sshll.u32 [#allocation23], 4
      %s6866 = int_to_ptr.vmem [resolvable:$true] %s6865
      %6868 = dma.vmem_to_hbm [thread:$0]  %s6866, 32, %s15, [#allocation7]
    $region109: #{_lambda_.1} parent=1 // pred_fallthru
      _
    // Predicated region
    $region110: #{_lambda_.1} parent=1 // pred_check
      _
    $region111: #{_lambda_.1} parent=1 // pred_check_branch
      %6870 = sbr.rel (0) target = $region113
    $region112: #{_lambda_.1} parent=1 // pred_region
      %6871 = dma.done [#allocation7], 32
    $region113: #{_lambda_.1} parent=1 // pred_fallthru
      _
    %6872 = vsyncpa [#allocation6], 1
    %6873 = vsyncpa [#allocation9], 1
    %6874 = vsyncpa [#allocation12], 1
    %6875 = vsyncpa [#allocation15], 1
    %6876 = vsyncpa [#allocation18], 1
    %6877 = vsyncpa [#allocation21], 1
    %6878 = vsyncpa [#allocation7], 1

</llo_original>
